<compile_context>
chip_gen: v5e
topology: v5e:2x2
jax: 0.10.0
libtpu: 0.0.40
codegen_flags: <defaults>
</compile_context>

<pallas_src>
import jax
import jax.numpy as jnp
from jax import lax
from jax.experimental import pallas as pl
from jax.experimental.pallas import tpu as pltpu


# ---------------------------------------------------------------------------
# helpers
# ---------------------------------------------------------------------------

def _round_up(x, m):
    return ((x + m - 1) // m) * m


def _pad_last2(x, rows, cols):
    """Zero-pad the last two dims of x up to (rows, cols)."""
    pad = [(0, 0)] * (x.ndim - 2) + [
        (0, rows - x.shape[-2]),
        (0, cols - x.shape[-1]),
    ]
    return jnp.pad(x, pad)


# ---------------------------------------------------------------------------
# Fused Pallas kernel: whole GCN forward in one invocation
# ---------------------------------------------------------------------------

def _gcn_fused_forward_kernel(
    A_ref,      # (B*U_p, I_p)   bf16 — all behaviors' adjacency, row-stacked
    ue_ref,     # (U_p, d_p)     bf16
    ie_ref,     # (I_p, d_p)     bf16
    uw_ref,     # (L, d_p, d_p)  bf16  (per-layer u_w)
    iw_ref,     # (L, d_p, d_p)  bf16  (per-layer i_w)
    ucw_ref,    # (L, d_p, d_p)  bf16  (u_concat_w per-layer slices)
    icw_ref,    # (L, d_p, d_p)  bf16
    out_ue_ref,   # (U_p, d_p)    f32
    out_ie_ref,   # (I_p, d_p)    f32
    out_ues_ref,  # (B*U_p, d_p)  f32
    out_ies_ref,  # (B*I_p, d_p)  f32
):
    L = uw_ref.shape[0]
    U_p = ue_ref.shape[0]
    I_p = ie_ref.shape[0]
    B = A_ref.shape[0] // U_p
    cdt = ue_ref.dtype          # MXU input dtype (bf16)
    inv_B = 1.0 / B

    # Accumulate the folded concat projection directly into the VMEM-resident
    # output refs (cheap vst traffic instead of long-lived vreg accumulators).
    out_ue_ref[...] = jnp.zeros_like(out_ue_ref)
    out_ie_ref[...] = jnp.zeros_like(out_ie_ref)
    out_ues_ref[...] = jnp.zeros_like(out_ues_ref)
    out_ies_ref[...] = jnp.zeros_like(out_ies_ref)

    ue = ue_ref[...]            # current-layer embeddings (bf16, MXU inputs)
    ie = ie_ref[...]

    # L and B are tiny (layer_num, #behaviors) -> static unroll.
    # TODO(synk): switch to lax.fori_loop(..., unroll=True) if L/B grow large.
    for l in range(L):
        uw, iw = uw_ref[l], iw_ref[l]
        ucw, icw = ucw_ref[l], icw_ref[l]

        # Project-then-propagate: (A_b @ E) @ W == A_b @ (E @ W).
        iEW = jnp.dot(ie, uw, preferred_element_type=jnp.float32).astype(cdt)
        uEW = jnp.dot(ue, iw, preferred_element_type=jnp.float32).astype(cdt)

        # ---- user side: ONE big-M matmul over all behaviors at once ----
        yu_all = jnp.dot(A_ref[...], iEW,
                         preferred_element_type=jnp.float32)      # (B*U_p, d_p)
        s_u = jax.nn.sigmoid(yu_all)                              # f32 epilogue
        out_ues_ref[...] += jnp.dot(s_u.astype(cdt), ucw,
                                    preferred_element_type=jnp.float32)

        # mean-over-behaviors branch (feeds the next layer)
        yu_mean = yu_all[0:U_p, :]
        for b in range(1, B):
            yu_mean = yu_mean + yu_all[b * U_p:(b + 1) * U_p, :]
        ue = jax.nn.sigmoid(yu_mean * inv_B).astype(cdt)
        out_ue_ref[...] += jnp.dot(ue, ucw, preferred_element_type=jnp.float32)

        # ---- item side: per-behavior transposed-contraction dot
        #      yi_b = A_b^T @ uEW  (no separate AT operand is materialized) ----
        yi_sum = None
        s_i_list = []
        for b in range(B):
            A_b = A_ref[pl.ds(b * U_p, U_p), :]
            yi = lax.dot_general(
                A_b, uEW,
                dimension_numbers=(((0,), (0,)), ((), ())),
                preferred_element_type=jnp.float32)               # (I_p, d_p)
            yi_sum = yi if yi_sum is None else yi_sum + yi
            s_i_list.append(jax.nn.sigmoid(yi).astype(cdt))

        # batched concat epilogue for the per-behavior item outputs
        s_i_all = jnp.concatenate(s_i_list, axis=0)               # (B*I_p, d_p)
        out_ies_ref[...] += jnp.dot(s_i_all, icw,
                                    preferred_element_type=jnp.float32)

        ie = jax.nn.sigmoid(yi_sum * inv_B).astype(cdt)
        out_ie_ref[...] += jnp.dot(ie, icw, preferred_element_type=jnp.float32)


# ---------------------------------------------------------------------------
# Wrapper: pad to TPU-friendly shapes, single pallas_call, slice back
# ---------------------------------------------------------------------------

def gcn_forward(params, A_stack, *, compute_dtype=jnp.bfloat16):
    """Full GCN.forward. Returns (user_embedding, item_embedding,
    user_embeddings, item_embeddings) with the reference semantics."""
    user_emb = params["user_emb"]
    item_emb = params["item_emb"]
    L = len(params["layers"])
    d = user_emb.shape[1]
    B, U, I = A_stack.shape

    u_w = jnp.stack([lw["u_w"] for lw in params["layers"]])   # (L, d, d)
    i_w = jnp.stack([lw["i_w"] for lw in params["layers"]])   # (L, d, d)
    u_cw = params["u_concat_w"].reshape(L, d, d)              # per-layer slices
    i_cw = params["i_concat_w"].reshape(L, d, d)

    # Pad every dim that ever appears as a trailing (lane) dim or a matmul
    # contraction dim to a multiple of 128 (unmasked lane-dense vld/vst,
    # full MXU K utilization).  Zero padding is exact: padded rows/cols of
    # A and W are zero, so padded-region garbage (sigmoid(0)=0.5) never
    # propagates into real rows/cols and is sliced off below.
    d_p = _round_up(d, 128)
    U_p = _round_up(U, 128)
    I_p = _round_up(I, 128)

    cdt = compute_dtype
    ue_p = _pad_last2(user_emb, U_p, d_p).astype(cdt)
    ie_p = _pad_last2(item_emb, I_p, d_p).astype(cdt)
    # Flatten behaviors into the row dim (trace-time reshape, free in XLA):
    A_p = _pad_last2(A_stack, U_p, I_p).astype(cdt).reshape(B * U_p, I_p)
    uw_p = _pad_last2(u_w, d_p, d_p).astype(cdt)
    iw_p = _pad_last2(i_w, d_p, d_p).astype(cdt)
    ucw_p = _pad_last2(u_cw, d_p, d_p).astype(cdt)
    icw_p = _pad_last2(i_cw, d_p, d_p).astype(cdt)

    vmem_spec = pl.BlockSpec(memory_space=pltpu.MemorySpace.VMEM)

    # Size the scoped VMEM limit to the actual resident footprint.
    itemsize_c = jnp.dtype(cdt).itemsize
    in_bytes = (ue_p.size + ie_p.size + A_p.size + uw_p.size + iw_p.size
                + ucw_p.size + icw_p.size) * itemsize_c
    out_bytes = (U_p * d_p + I_p * d_p + B * U_p * d_p + B * I_p * d_p) * 4
    vmem_limit = min(128 * 1024 * 1024,
                     max(32 * 1024 * 1024, int(2 * (in_bytes + out_bytes))))

    # TODO(synk): this whole-problem-in-VMEM, gridless fusion is only valid at
    # small U/I (and uses a single TensorCore — no grid for v7x megacore).  A
    # production-scale version needs a tiled grid per layer ('parallel' row
    # axes, reduction axes 'arbitrary', Buffered A streaming) or a
    # scalar-prefetch CSR gather for the sparse spmm.
    out_ue, out_ie, out_ues, out_ies = pl.pallas_call(
        _gcn_fused_forward_kernel,
        out_shape=(
            jax.ShapeDtypeStruct((U_p, d_p), jnp.float32),
            jax.ShapeDtypeStruct((I_p, d_p), jnp.float32),
            jax.ShapeDtypeStruct((B * U_p, d_p), jnp.float32),
            jax.ShapeDtypeStruct((B * I_p, d_p), jnp.float32),
        ),
        in_specs=[vmem_spec] * 7,
        out_specs=(vmem_spec, vmem_spec, vmem_spec, vmem_spec),
        compiler_params=pltpu.CompilerParams(vmem_limit_bytes=vmem_limit),
    )(A_p, ue_p, ie_p, uw_p, iw_p, ucw_p, icw_p)

    out_ues = out_ues.reshape(B, U_p, d_p)
    out_ies = out_ies.reshape(B, I_p, d_p)
    return (
        out_ue[:U, :d],
        out_ie[:I, :d],
        out_ues[:, :U, :d],
        out_ies[:, :I, :d],
    )


# ---------------------------------------------------------------------------
# Pure-JAX reference (mirrors the torch code exactly) for correctness check
# ---------------------------------------------------------------------------

def gcn_forward_ref(params, A_stack):
    AT_stack = jnp.transpose(A_stack, (0, 2, 1))
    ue = params["user_emb"]
    ie = params["item_emb"]
    all_ue, all_ie, all_ues, all_ies = [], [], [], []
    for lw in params["layers"]:
        u_list = jnp.einsum("bui,id->bud", A_stack, ie)   # spmm(A, item_emb)
        i_list = jnp.einsum("biu,ud->bid", AT_stack, ue)  # spmm(AT, user_emb)
        ue = jax.nn.sigmoid(jnp.matmul(jnp.mean(u_list, axis=0), lw["u_w"]))
        ie = jax.nn.sigmoid(jnp.matmul(jnp.mean(i_list, axis=0), lw["i_w"]))
        ues = jax.nn.sigmoid(jnp.matmul(u_list, lw["u_w"]))
        ies = jax.nn.sigmoid(jnp.matmul(i_list, lw["i_w"]))
        all_ue.append(ue)
        all_ie.append(ie)
        all_ues.append(ues)
        all_ies.append(ies)
    ue_cat = jnp.concatenate(all_ue, axis=1)
    ie_cat = jnp.concatenate(all_ie, axis=1)
    ues_cat = jnp.concatenate(all_ues, axis=2)
    ies_cat = jnp.concatenate(all_ies, axis=2)
    u_cw = params["u_concat_w"]
    i_cw = params["i_concat_w"]
    return (
        ue_cat @ u_cw,
        ie_cat @ i_cw,
        jnp.matmul(ues_cat, u_cw),
        jnp.matmul(ies_cat, i_cw),
    )


# ---------------------------------------------------------------------------
# Deterministic parameter / input construction
# ---------------------------------------------------------------------------

def xavier_uniform(key, shape):
    fan_in, fan_out = shape[0], shape[1]
    limit = (6.0 / (fan_in + fan_out)) ** 0.5
    return jax.random.uniform(key, shape, jnp.float32, -limit, limit)


def build_params(key, user_num, item_num, emb_size, layer_num):
    keys = jax.random.split(key, 4 + 2 * layer_num)
    params = {
        "user_emb": xavier_uniform(keys[0], (user_num, emb_size)),
        "item_emb": xavier_uniform(keys[1], (item_num, emb_size)),
        "u_concat_w": xavier_uniform(keys[2], (layer_num * emb_size, emb_size)),
        "i_concat_w": xavier_uniform(keys[3], (layer_num * emb_size, emb_size)),
        "layers": [],
    }
    for l in range(layer_num):
        params["layers"].append(
            {
                "u_w": xavier_uniform(keys[4 + 2 * l], (emb_size, emb_size)),
                "i_w": xavier_uniform(keys[5 + 2 * l], (emb_size, emb_size)),
            }
        )
    return params


if __name__ == "__main__":
    # Small synthetic configuration (configs['model'] stand-in):
    user_num = 16
    item_num = 24
    emb_size = 32      # configs['model']['embedding_size']
    layer_num = 2      # configs['model']['layer_num']
    num_behaviors = 3  # len(behavior)

    key = jax.random.PRNGKey(0)
    k_params, k_adj = jax.random.split(key)

    params = build_params(k_params, user_num, item_num, emb_size, layer_num)

    # Dense stand-ins for the per-behavior sparse adjacency matrices
    # (row-normalized, deterministic).
    A_stack = jax.random.uniform(
        k_adj, (num_behaviors, user_num, item_num), jnp.float32
    )
    A_stack = A_stack / (jnp.sum(A_stack, axis=-1, keepdims=True) + 1e-6)

    fwd = jax.jit(gcn_forward)
    outs = jax.block_until_ready(fwd(params, A_stack))

    ue, ie, ues, ies = outs
    assert ue.shape == (user_num, emb_size)
    assert ie.shape == (item_num, emb_size)
    assert ues.shape == (num_behaviors, user_num, emb_size)
    assert ies.shape == (num_behaviors, item_num, emb_size)

    # Numerical check vs. the plain-JAX reference (bf16 MXU inputs + fp
    # re-association from the fused/reordered math => loose tolerance).
    refs = gcn_forward_ref(params, A_stack)
    for got, want in zip(outs, refs):
        got = got.astype(jnp.float32)
        assert bool(jnp.all(jnp.isfinite(got)))
        err = float(jnp.max(jnp.abs(got - want)))
        assert err < 1e-1, f"max abs diff vs reference too large: {err}"

    print("KERNEL_OK")
</pallas_src>

<mosaic_0001>
module attributes {stable_mosaic.version = 11 : i64} {
  func.func @_gcn_fused_forward_kernel(%arg0: memref<384x128xbf16, #tpu.memory_space<vmem>>, %arg1: memref<128x128xbf16, #tpu.memory_space<vmem>>, %arg2: memref<128x128xbf16, #tpu.memory_space<vmem>>, %arg3: memref<2x128x128xbf16, #tpu.memory_space<vmem>>, %arg4: memref<2x128x128xbf16, #tpu.memory_space<vmem>>, %arg5: memref<2x128x128xbf16, #tpu.memory_space<vmem>>, %arg6: memref<2x128x128xbf16, #tpu.memory_space<vmem>>, %arg7: memref<128x128xf32, #tpu.memory_space<vmem>>, %arg8: memref<128x128xf32, #tpu.memory_space<vmem>>, %arg9: memref<384x128xf32, #tpu.memory_space<vmem>>, %arg10: memref<384x128xf32, #tpu.memory_space<vmem>>) attributes {dimension_semantics = [], scalar_prefetch = 0 : i64, scratch_operands = 0 : i64, tpu.core_type = #tpu.core_type<tc>} {
    %cst = arith.constant 0.000000e+00 : f32
    %0 = vector.broadcast %cst : f32 to vector<128x128xf32>
    %c0 = arith.constant 0 : index
    %c0_0 = arith.constant 0 : index
    %1 = vector.load %arg7[%c0, %c0_0] : memref<128x128xf32, #tpu.memory_space<vmem>>, vector<128x128xf32>
    tpu.vector_store %arg7[%c0, %c0_0], %0 {strides = array<i32>} : memref<128x128xf32, #tpu.memory_space<vmem>>, vector<128x128xf32>,
    %cst_1 = arith.constant 0.000000e+00 : f32
    %2 = vector.broadcast %cst_1 : f32 to vector<128x128xf32>
    %c0_2 = arith.constant 0 : index
    %c0_3 = arith.constant 0 : index
    %3 = vector.load %arg8[%c0_2, %c0_3] : memref<128x128xf32, #tpu.memory_space<vmem>>, vector<128x128xf32>
    tpu.vector_store %arg8[%c0_2, %c0_3], %2 {strides = array<i32>} : memref<128x128xf32, #tpu.memory_space<vmem>>, vector<128x128xf32>,
    %cst_4 = arith.constant 0.000000e+00 : f32
    %4 = vector.broadcast %cst_4 : f32 to vector<384x128xf32>
    %c0_5 = arith.constant 0 : index
    %c0_6 = arith.constant 0 : index
    %5 = vector.load %arg9[%c0_5, %c0_6] : memref<384x128xf32, #tpu.memory_space<vmem>>, vector<384x128xf32>
    tpu.vector_store %arg9[%c0_5, %c0_6], %4 {strides = array<i32>} : memref<384x128xf32, #tpu.memory_space<vmem>>, vector<384x128xf32>,
    %cst_7 = arith.constant 0.000000e+00 : f32
    %6 = vector.broadcast %cst_7 : f32 to vector<384x128xf32>
    %c0_8 = arith.constant 0 : index
    %c0_9 = arith.constant 0 : index
    %7 = vector.load %arg10[%c0_8, %c0_9] : memref<384x128xf32, #tpu.memory_space<vmem>>, vector<384x128xf32>
    tpu.vector_store %arg10[%c0_8, %c0_9], %6 {strides = array<i32>} : memref<384x128xf32, #tpu.memory_space<vmem>>, vector<384x128xf32>,
    %c0_10 = arith.constant 0 : index
    %c0_11 = arith.constant 0 : index
    %8 = vector.load %arg1[%c0_10, %c0_11] : memref<128x128xbf16, #tpu.memory_space<vmem>>, vector<128x128xbf16>
    %c0_12 = arith.constant 0 : index
    %c0_13 = arith.constant 0 : index
    %9 = vector.load %arg2[%c0_12, %c0_13] : memref<128x128xbf16, #tpu.memory_space<vmem>>, vector<128x128xbf16>
    %c0_14 = arith.constant 0 : index
    %c0_15 = arith.constant 0 : index
    %c0_16 = arith.constant 0 : index
    %10 = vector.load %arg3[%c0_14, %c0_15, %c0_16] : memref<2x128x128xbf16, #tpu.memory_space<vmem>>, vector<1x128x128xbf16>
    %11 = vector.shape_cast %10 : vector<1x128x128xbf16> to vector<128x128xbf16>
    %c0_17 = arith.constant 0 : index
    %c0_18 = arith.constant 0 : index
    %c0_19 = arith.constant 0 : index
    %12 = vector.load %arg4[%c0_17, %c0_18, %c0_19] : memref<2x128x128xbf16, #tpu.memory_space<vmem>>, vector<1x128x128xbf16>
    %13 = vector.shape_cast %12 : vector<1x128x128xbf16> to vector<128x128xbf16>
    %c0_20 = arith.constant 0 : index
    %c0_21 = arith.constant 0 : index
    %c0_22 = arith.constant 0 : index
    %14 = vector.load %arg5[%c0_20, %c0_21, %c0_22] : memref<2x128x128xbf16, #tpu.memory_space<vmem>>, vector<1x128x128xbf16>
    %15 = vector.shape_cast %14 : vector<1x128x128xbf16> to vector<128x128xbf16>
    %c0_23 = arith.constant 0 : index
    %c0_24 = arith.constant 0 : index
    %c0_25 = arith.constant 0 : index
    %16 = vector.load %arg6[%c0_23, %c0_24, %c0_25] : memref<2x128x128xbf16, #tpu.memory_space<vmem>>, vector<1x128x128xbf16>
    %17 = vector.shape_cast %16 : vector<1x128x128xbf16> to vector<128x128xbf16>
    %cst_26 = arith.constant dense<0.000000e+00> : vector<128x128xf32>
    %18 = tpu.matmul %9, %11, %cst_26 {dimension_numbers = #tpu.dot_dimension_numbers<[1], [0], [0], [1], [0, 0, 1, 1], [], []>} : vector<128x128xbf16>, vector<128x128xbf16>, vector<128x128xf32> -> vector<128x128xf32>
    %19 = arith.truncf %18 : vector<128x128xf32> to vector<128x128xbf16>
    %cst_27 = arith.constant dense<0.000000e+00> : vector<128x128xf32>
    %20 = tpu.matmul %8, %13, %cst_27 {dimension_numbers = #tpu.dot_dimension_numbers<[1], [0], [0], [1], [0, 0, 1, 1], [], []>} : vector<128x128xbf16>, vector<128x128xbf16>, vector<128x128xf32> -> vector<128x128xf32>
    %21 = arith.truncf %20 : vector<128x128xf32> to vector<128x128xbf16>
    %c0_28 = arith.constant 0 : index
    %c0_29 = arith.constant 0 : index
    %22 = vector.load %arg0[%c0_28, %c0_29] : memref<384x128xbf16, #tpu.memory_space<vmem>>, vector<384x128xbf16>
    %cst_30 = arith.constant dense<0.000000e+00> : vector<384x128xf32>
    %23 = tpu.matmul %22, %19, %cst_30 {dimension_numbers = #tpu.dot_dimension_numbers<[1], [0], [0], [1], [0, 0, 1, 1], [], []>} : vector<384x128xbf16>, vector<128x128xbf16>, vector<384x128xf32> -> vector<384x128xf32>
    %24 = arith.negf %23 : vector<384x128xf32>
    %25 = math.exp %24 : vector<384x128xf32>
    %cst_31 = arith.constant 1.000000e+00 : f32
    %26 = vector.broadcast %cst_31 : f32 to vector<384x128xf32>
    %27 = arith.addf %26, %25 : vector<384x128xf32>
    %28 = arith.divf %26, %27 : vector<384x128xf32>
    %c0_32 = arith.constant 0 : index
    %c0_33 = arith.constant 0 : index
    %29 = vector.load %arg9[%c0_32, %c0_33] : memref<384x128xf32, #tpu.memory_space<vmem>>, vector<384x128xf32>
    %30 = arith.truncf %28 : vector<384x128xf32> to vector<384x128xbf16>
    %cst_34 = arith.constant dense<0.000000e+00> : vector<384x128xf32>
    %31 = tpu.matmul %30, %15, %cst_34 {dimension_numbers = #tpu.dot_dimension_numbers<[1], [0], [0], [1], [0, 0, 1, 1], [], []>} : vector<384x128xbf16>, vector<128x128xbf16>, vector<384x128xf32> -> vector<384x128xf32>
    %32 = arith.addf %29, %31 : vector<384x128xf32>
    %c0_35 = arith.constant 0 : index
    %c0_36 = arith.constant 0 : index
    %33 = vector.load %arg9[%c0_35, %c0_36] : memref<384x128xf32, #tpu.memory_space<vmem>>, vector<384x128xf32>
    tpu.vector_store %arg9[%c0_35, %c0_36], %32 {strides = array<i32>} : memref<384x128xf32, #tpu.memory_space<vmem>>, vector<384x128xf32>,
    %34 = vector.extract_strided_slice %23 {offsets = [0, 0], sizes = [128, 128], strides = [1, 1]} : vector<384x128xf32> to vector<128x128xf32>
    %35 = vector.extract_strided_slice %23 {offsets = [128, 0], sizes = [128, 128], strides = [1, 1]} : vector<384x128xf32> to vector<128x128xf32>
    %36 = arith.addf %34, %35 : vector<128x128xf32>
    %37 = vector.extract_strided_slice %23 {offsets = [256, 0], sizes = [128, 128], strides = [1, 1]} : vector<384x128xf32> to vector<128x128xf32>
    %38 = arith.addf %36, %37 : vector<128x128xf32>
    %cst_37 = arith.constant 0.333333343 : f32
    %39 = vector.broadcast %cst_37 : f32 to vector<128x128xf32>
    %40 = arith.mulf %38, %39 : vector<128x128xf32>
    %41 = arith.negf %40 : vector<128x128xf32>
    %42 = math.exp %41 : vector<128x128xf32>
    %cst_38 = arith.constant 1.000000e+00 : f32
    %43 = vector.broadcast %cst_38 : f32 to vector<128x128xf32>
    %44 = arith.addf %43, %42 : vector<128x128xf32>
    %45 = arith.divf %43, %44 : vector<128x128xf32>
    %46 = arith.truncf %45 : vector<128x128xf32> to vector<128x128xbf16>
    %c0_39 = arith.constant 0 : index
    %c0_40 = arith.constant 0 : index
    %47 = vector.load %arg7[%c0_39, %c0_40] : memref<128x128xf32, #tpu.memory_space<vmem>>, vector<128x128xf32>
    %cst_41 = arith.constant dense<0.000000e+00> : vector<128x128xf32>
    %48 = tpu.matmul %46, %15, %cst_41 {dimension_numbers = #tpu.dot_dimension_numbers<[1], [0], [0], [1], [0, 0, 1, 1], [], []>} : vector<128x128xbf16>, vector<128x128xbf16>, vector<128x128xf32> -> vector<128x128xf32>
    %49 = arith.addf %47, %48 : vector<128x128xf32>
    %c0_42 = arith.constant 0 : index
    %c0_43 = arith.constant 0 : index
    %50 = vector.load %arg7[%c0_42, %c0_43] : memref<128x128xf32, #tpu.memory_space<vmem>>, vector<128x128xf32>
    tpu.vector_store %arg7[%c0_42, %c0_43], %49 {strides = array<i32>} : memref<128x128xf32, #tpu.memory_space<vmem>>, vector<128x128xf32>,
    %c0_44 = arith.constant 0 : index
    %c0_45 = arith.constant 0 : index
    %51 = vector.load %arg0[%c0_44, %c0_45] : memref<384x128xbf16, #tpu.memory_space<vmem>>, vector<128x128xbf16>
    %cst_46 = arith.constant dense<0.000000e+00> : vector<128x128xf32>
    %52 = tpu.matmul %51, %21, %cst_46 {dimension_numbers = #tpu.dot_dimension_numbers<[0], [0], [1], [1], [0, 1, 1, 1], [], []>} : vector<128x128xbf16>, vector<128x128xbf16>, vector<128x128xf32> -> vector<128x128xf32>
    %53 = arith.negf %52 : vector<128x128xf32>
    %54 = math.exp %53 : vector<128x128xf32>
    %cst_47 = arith.constant 1.000000e+00 : f32
    %55 = vector.broadcast %cst_47 : f32 to vector<128x128xf32>
    %56 = arith.addf %55, %54 : vector<128x128xf32>
    %57 = arith.divf %55, %56 : vector<128x128xf32>
    %58 = arith.truncf %57 : vector<128x128xf32> to vector<128x128xbf16>
    %c128 = arith.constant 128 : index
    %c0_48 = arith.constant 0 : index
    %59 = vector.load %arg0[%c128, %c0_48] : memref<384x128xbf16, #tpu.memory_space<vmem>>, vector<128x128xbf16>
    %cst_49 = arith.constant dense<0.000000e+00> : vector<128x128xf32>
    %60 = tpu.matmul %59, %21, %cst_49 {dimension_numbers = #tpu.dot_dimension_numbers<[0], [0], [1], [1], [0, 1, 1, 1], [], []>} : vector<128x128xbf16>, vector<128x128xbf16>, vector<128x128xf32> -> vector<128x128xf32>
    %61 = arith.addf %52, %60 : vector<128x128xf32>
    %62 = arith.negf %60 : vector<128x128xf32>
    %63 = math.exp %62 : vector<128x128xf32>
    %cst_50 = arith.constant 1.000000e+00 : f32
    %64 = vector.broadcast %cst_50 : f32 to vector<128x128xf32>
    %65 = arith.addf %64, %63 : vector<128x128xf32>
    %66 = arith.divf %64, %65 : vector<128x128xf32>
    %67 = arith.truncf %66 : vector<128x128xf32> to vector<128x128xbf16>
    %c256 = arith.constant 256 : index
    %c0_51 = arith.constant 0 : index
    %68 = vector.load %arg0[%c256, %c0_51] : memref<384x128xbf16, #tpu.memory_space<vmem>>, vector<128x128xbf16>
    %cst_52 = arith.constant dense<0.000000e+00> : vector<128x128xf32>
    %69 = tpu.matmul %68, %21, %cst_52 {dimension_numbers = #tpu.dot_dimension_numbers<[0], [0], [1], [1], [0, 1, 1, 1], [], []>} : vector<128x128xbf16>, vector<128x128xbf16>, vector<128x128xf32> -> vector<128x128xf32>
    %70 = arith.addf %61, %69 : vector<128x128xf32>
    %71 = arith.negf %69 : vector<128x128xf32>
    %72 = math.exp %71 : vector<128x128xf32>
    %cst_53 = arith.constant 1.000000e+00 : f32
    %73 = vector.broadcast %cst_53 : f32 to vector<128x128xf32>
    %74 = arith.addf %73, %72 : vector<128x128xf32>
    %75 = arith.divf %73, %74 : vector<128x128xf32>
    %76 = arith.truncf %75 : vector<128x128xf32> to vector<128x128xbf16>
    %77 = tpu.concatenate %58, %67, %76 in 0 : vector<128x128xbf16>, vector<128x128xbf16>, vector<128x128xbf16> -> vector<384x128xbf16>
    %c0_54 = arith.constant 0 : index
    %c0_55 = arith.constant 0 : index
    %78 = vector.load %arg10[%c0_54, %c0_55] : memref<384x128xf32, #tpu.memory_space<vmem>>, vector<384x128xf32>
    %cst_56 = arith.constant dense<0.000000e+00> : vector<384x128xf32>
    %79 = tpu.matmul %77, %17, %cst_56 {dimension_numbers = #tpu.dot_dimension_numbers<[1], [0], [0], [1], [0, 0, 1, 1], [], []>} : vector<384x128xbf16>, vector<128x128xbf16>, vector<384x128xf32> -> vector<384x128xf32>
    %80 = arith.addf %78, %79 : vector<384x128xf32>
    %c0_57 = arith.constant 0 : index
    %c0_58 = arith.constant 0 : index
    %81 = vector.load %arg10[%c0_57, %c0_58] : memref<384x128xf32, #tpu.memory_space<vmem>>, vector<384x128xf32>
    tpu.vector_store %arg10[%c0_57, %c0_58], %80 {strides = array<i32>} : memref<384x128xf32, #tpu.memory_space<vmem>>, vector<384x128xf32>,
    %cst_59 = arith.constant 0.333333343 : f32
    %82 = vector.broadcast %cst_59 : f32 to vector<128x128xf32>
    %83 = arith.mulf %70, %82 : vector<128x128xf32>
    %84 = arith.negf %83 : vector<128x128xf32>
    %85 = math.exp %84 : vector<128x128xf32>
    %cst_60 = arith.constant 1.000000e+00 : f32
    %86 = vector.broadcast %cst_60 : f32 to vector<128x128xf32>
    %87 = arith.addf %86, %85 : vector<128x128xf32>
    %88 = arith.divf %86, %87 : vector<128x128xf32>
    %89 = arith.truncf %88 : vector<128x128xf32> to vector<128x128xbf16>
    %c0_61 = arith.constant 0 : index
    %c0_62 = arith.constant 0 : index
    %90 = vector.load %arg8[%c0_61, %c0_62] : memref<128x128xf32, #tpu.memory_space<vmem>>, vector<128x128xf32>
    %cst_63 = arith.constant dense<0.000000e+00> : vector<128x128xf32>
    %91 = tpu.matmul %89, %17, %cst_63 {dimension_numbers = #tpu.dot_dimension_numbers<[1], [0], [0], [1], [0, 0, 1, 1], [], []>} : vector<128x128xbf16>, vector<128x128xbf16>, vector<128x128xf32> -> vector<128x128xf32>
    %92 = arith.addf %90, %91 : vector<128x128xf32>
    %c0_64 = arith.constant 0 : index
    %c0_65 = arith.constant 0 : index
    %93 = vector.load %arg8[%c0_64, %c0_65] : memref<128x128xf32, #tpu.memory_space<vmem>>, vector<128x128xf32>
    tpu.vector_store %arg8[%c0_64, %c0_65], %92 {strides = array<i32>} : memref<128x128xf32, #tpu.memory_space<vmem>>, vector<128x128xf32>,
    %c1 = arith.constant 1 : index
    %c0_66 = arith.constant 0 : index
    %c0_67 = arith.constant 0 : index
    %94 = vector.load %arg3[%c1, %c0_66, %c0_67] : memref<2x128x128xbf16, #tpu.memory_space<vmem>>, vector<1x128x128xbf16>
    %95 = vector.shape_cast %94 : vector<1x128x128xbf16> to vector<128x128xbf16>
    %c1_68 = arith.constant 1 : index
    %c0_69 = arith.constant 0 : index
    %c0_70 = arith.constant 0 : index
    %96 = vector.load %arg4[%c1_68, %c0_69, %c0_70] : memref<2x128x128xbf16, #tpu.memory_space<vmem>>, vector<1x128x128xbf16>
    %97 = vector.shape_cast %96 : vector<1x128x128xbf16> to vector<128x128xbf16>
    %c1_71 = arith.constant 1 : index
    %c0_72 = arith.constant 0 : index
    %c0_73 = arith.constant 0 : index
    %98 = vector.load %arg5[%c1_71, %c0_72, %c0_73] : memref<2x128x128xbf16, #tpu.memory_space<vmem>>, vector<1x128x128xbf16>
    %99 = vector.shape_cast %98 : vector<1x128x128xbf16> to vector<128x128xbf16>
    %c1_74 = arith.constant 1 : index
    %c0_75 = arith.constant 0 : index
    %c0_76 = arith.constant 0 : index
    %100 = vector.load %arg6[%c1_74, %c0_75, %c0_76] : memref<2x128x128xbf16, #tpu.memory_space<vmem>>, vector<1x128x128xbf16>
    %101 = vector.shape_cast %100 : vector<1x128x128xbf16> to vector<128x128xbf16>
    %cst_77 = arith.constant dense<0.000000e+00> : vector<128x128xf32>
    %102 = tpu.matmul %89, %95, %cst_77 {dimension_numbers = #tpu.dot_dimension_numbers<[1], [0], [0], [1], [0, 0, 1, 1], [], []>} : vector<128x128xbf16>, vector<128x128xbf16>, vector<128x128xf32> -> vector<128x128xf32>
    %103 = arith.truncf %102 : vector<128x128xf32> to vector<128x128xbf16>
    %cst_78 = arith.constant dense<0.000000e+00> : vector<128x128xf32>
    %104 = tpu.matmul %46, %97, %cst_78 {dimension_numbers = #tpu.dot_dimension_numbers<[1], [0], [0], [1], [0, 0, 1, 1], [], []>} : vector<128x128xbf16>, vector<128x128xbf16>, vector<128x128xf32> -> vector<128x128xf32>
    %105 = arith.truncf %104 : vector<128x128xf32> to vector<128x128xbf16>
    %c0_79 = arith.constant 0 : index
    %c0_80 = arith.constant 0 : index
    %106 = vector.load %arg0[%c0_79, %c0_80] : memref<384x128xbf16, #tpu.memory_space<vmem>>, vector<384x128xbf16>
    %cst_81 = arith.constant dense<0.000000e+00> : vector<384x128xf32>
    %107 = tpu.matmul %106, %103, %cst_81 {dimension_numbers = #tpu.dot_dimension_numbers<[1], [0], [0], [1], [0, 0, 1, 1], [], []>} : vector<384x128xbf16>, vector<128x128xbf16>, vector<384x128xf32> -> vector<384x128xf32>
    %108 = arith.negf %107 : vector<384x128xf32>
    %109 = math.exp %108 : vector<384x128xf32>
    %cst_82 = arith.constant 1.000000e+00 : f32
    %110 = vector.broadcast %cst_82 : f32 to vector<384x128xf32>
    %111 = arith.addf %110, %109 : vector<384x128xf32>
    %112 = arith.divf %110, %111 : vector<384x128xf32>
    %c0_83 = arith.constant 0 : index
    %c0_84 = arith.constant 0 : index
    %113 = vector.load %arg9[%c0_83, %c0_84] : memref<384x128xf32, #tpu.memory_space<vmem>>, vector<384x128xf32>
    %114 = arith.truncf %112 : vector<384x128xf32> to vector<384x128xbf16>
    %cst_85 = arith.constant dense<0.000000e+00> : vector<384x128xf32>
    %115 = tpu.matmul %114, %99, %cst_85 {dimension_numbers = #tpu.dot_dimension_numbers<[1], [0], [0], [1], [0, 0, 1, 1], [], []>} : vector<384x128xbf16>, vector<128x128xbf16>, vector<384x128xf32> -> vector<384x128xf32>
    %116 = arith.addf %113, %115 : vector<384x128xf32>
    %c0_86 = arith.constant 0 : index
    %c0_87 = arith.constant 0 : index
    %117 = vector.load %arg9[%c0_86, %c0_87] : memref<384x128xf32, #tpu.memory_space<vmem>>, vector<384x128xf32>
    tpu.vector_store %arg9[%c0_86, %c0_87], %116 {strides = array<i32>} : memref<384x128xf32, #tpu.memory_space<vmem>>, vector<384x128xf32>,
    %118 = vector.extract_strided_slice %107 {offsets = [0, 0], sizes = [128, 128], strides = [1, 1]} : vector<384x128xf32> to vector<128x128xf32>
    %119 = vector.extract_strided_slice %107 {offsets = [128, 0], sizes = [128, 128], strides = [1, 1]} : vector<384x128xf32> to vector<128x128xf32>
    %120 = arith.addf %118, %119 : vector<128x128xf32>
    %121 = vector.extract_strided_slice %107 {offsets = [256, 0], sizes = [128, 128], strides = [1, 1]} : vector<384x128xf32> to vector<128x128xf32>
    %122 = arith.addf %120, %121 : vector<128x128xf32>
    %cst_88 = arith.constant 0.333333343 : f32
    %123 = vector.broadcast %cst_88 : f32 to vector<128x128xf32>
    %124 = arith.mulf %122, %123 : vector<128x128xf32>
    %125 = arith.negf %124 : vector<128x128xf32>
    %126 = math.exp %125 : vector<128x128xf32>
    %cst_89 = arith.constant 1.000000e+00 : f32
    %127 = vector.broadcast %cst_89 : f32 to vector<128x128xf32>
    %128 = arith.addf %127, %126 : vector<128x128xf32>
    %129 = arith.divf %127, %128 : vector<128x128xf32>
    %130 = arith.truncf %129 : vector<128x128xf32> to vector<128x128xbf16>
    %c0_90 = arith.constant 0 : index
    %c0_91 = arith.constant 0 : index
    %131 = vector.load %arg7[%c0_90, %c0_91] : memref<128x128xf32, #tpu.memory_space<vmem>>, vector<128x128xf32>
    %cst_92 = arith.constant dense<0.000000e+00> : vector<128x128xf32>
    %132 = tpu.matmul %130, %99, %cst_92 {dimension_numbers = #tpu.dot_dimension_numbers<[1], [0], [0], [1], [0, 0, 1, 1], [], []>} : vector<128x128xbf16>, vector<128x128xbf16>, vector<128x128xf32> -> vector<128x128xf32>
    %133 = arith.addf %131, %132 : vector<128x128xf32>
    %c0_93 = arith.constant 0 : index
    %c0_94 = arith.constant 0 : index
    %134 = vector.load %arg7[%c0_93, %c0_94] : memref<128x128xf32, #tpu.memory_space<vmem>>, vector<128x128xf32>
    tpu.vector_store %arg7[%c0_93, %c0_94], %133 {strides = array<i32>} : memref<128x128xf32, #tpu.memory_space<vmem>>, vector<128x128xf32>,
    %c0_95 = arith.constant 0 : index
    %c0_96 = arith.constant 0 : index
    %135 = vector.load %arg0[%c0_95, %c0_96] : memref<384x128xbf16, #tpu.memory_space<vmem>>, vector<128x128xbf16>
    %cst_97 = arith.constant dense<0.000000e+00> : vector<128x128xf32>
    %136 = tpu.matmul %135, %105, %cst_97 {dimension_numbers = #tpu.dot_dimension_numbers<[0], [0], [1], [1], [0, 1, 1, 1], [], []>} : vector<128x128xbf16>, vector<128x128xbf16>, vector<128x128xf32> -> vector<128x128xf32>
    %137 = arith.negf %136 : vector<128x128xf32>
    %138 = math.exp %137 : vector<128x128xf32>
    %cst_98 = arith.constant 1.000000e+00 : f32
    %139 = vector.broadcast %cst_98 : f32 to vector<128x128xf32>
    %140 = arith.addf %139, %138 : vector<128x128xf32>
    %141 = arith.divf %139, %140 : vector<128x128xf32>
    %142 = arith.truncf %141 : vector<128x128xf32> to vector<128x128xbf16>
    %c128_99 = arith.constant 128 : index
    %c0_100 = arith.constant 0 : index
    %143 = vector.load %arg0[%c128_99, %c0_100] : memref<384x128xbf16, #tpu.memory_space<vmem>>, vector<128x128xbf16>
    %cst_101 = arith.constant dense<0.000000e+00> : vector<128x128xf32>
    %144 = tpu.matmul %143, %105, %cst_101 {dimension_numbers = #tpu.dot_dimension_numbers<[0], [0], [1], [1], [0, 1, 1, 1], [], []>} : vector<128x128xbf16>, vector<128x128xbf16>, vector<128x128xf32> -> vector<128x128xf32>
    %145 = arith.addf %136, %144 : vector<128x128xf32>
    %146 = arith.negf %144 : vector<128x128xf32>
    %147 = math.exp %146 : vector<128x128xf32>
    %cst_102 = arith.constant 1.000000e+00 : f32
    %148 = vector.broadcast %cst_102 : f32 to vector<128x128xf32>
    %149 = arith.addf %148, %147 : vector<128x128xf32>
    %150 = arith.divf %148, %149 : vector<128x128xf32>
    %151 = arith.truncf %150 : vector<128x128xf32> to vector<128x128xbf16>
    %c256_103 = arith.constant 256 : index
    %c0_104 = arith.constant 0 : index
    %152 = vector.load %arg0[%c256_103, %c0_104] : memref<384x128xbf16, #tpu.memory_space<vmem>>, vector<128x128xbf16>
    %cst_105 = arith.constant dense<0.000000e+00> : vector<128x128xf32>
    %153 = tpu.matmul %152, %105, %cst_105 {dimension_numbers = #tpu.dot_dimension_numbers<[0], [0], [1], [1], [0, 1, 1, 1], [], []>} : vector<128x128xbf16>, vector<128x128xbf16>, vector<128x128xf32> -> vector<128x128xf32>
    %154 = arith.addf %145, %153 : vector<128x128xf32>
    %155 = arith.negf %153 : vector<128x128xf32>
    %156 = math.exp %155 : vector<128x128xf32>
    %cst_106 = arith.constant 1.000000e+00 : f32
    %157 = vector.broadcast %cst_106 : f32 to vector<128x128xf32>
    %158 = arith.addf %157, %156 : vector<128x128xf32>
    %159 = arith.divf %157, %158 : vector<128x128xf32>
    %160 = arith.truncf %159 : vector<128x128xf32> to vector<128x128xbf16>
    %161 = tpu.concatenate %142, %151, %160 in 0 : vector<128x128xbf16>, vector<128x128xbf16>, vector<128x128xbf16> -> vector<384x128xbf16>
    %c0_107 = arith.constant 0 : index
    %c0_108 = arith.constant 0 : index
    %162 = vector.load %arg10[%c0_107, %c0_108] : memref<384x128xf32, #tpu.memory_space<vmem>>, vector<384x128xf32>
    %cst_109 = arith.constant dense<0.000000e+00> : vector<384x128xf32>
    %163 = tpu.matmul %161, %101, %cst_109 {dimension_numbers = #tpu.dot_dimension_numbers<[1], [0], [0], [1], [0, 0, 1, 1], [], []>} : vector<384x128xbf16>, vector<128x128xbf16>, vector<384x128xf32> -> vector<384x128xf32>
    %164 = arith.addf %162, %163 : vector<384x128xf32>
    %c0_110 = arith.constant 0 : index
    %c0_111 = arith.constant 0 : index
    %165 = vector.load %arg10[%c0_110, %c0_111] : memref<384x128xf32, #tpu.memory_space<vmem>>, vector<384x128xf32>
    tpu.vector_store %arg10[%c0_110, %c0_111], %164 {strides = array<i32>} : memref<384x128xf32, #tpu.memory_space<vmem>>, vector<384x128xf32>,
    %cst_112 = arith.constant 0.333333343 : f32
    %166 = vector.broadcast %cst_112 : f32 to vector<128x128xf32>
    %167 = arith.mulf %154, %166 : vector<128x128xf32>
    %168 = arith.negf %167 : vector<128x128xf32>
    %169 = math.exp %168 : vector<128x128xf32>
    %cst_113 = arith.constant 1.000000e+00 : f32
    %170 = vector.broadcast %cst_113 : f32 to vector<128x128xf32>
    %171 = arith.addf %170, %169 : vector<128x128xf32>
    %172 = arith.divf %170, %171 : vector<128x128xf32>
    %173 = arith.truncf %172 : vector<128x128xf32> to vector<128x128xbf16>
    %c0_114 = arith.constant 0 : index
    %c0_115 = arith.constant 0 : index
    %174 = vector.load %arg8[%c0_114, %c0_115] : memref<128x128xf32, #tpu.memory_space<vmem>>, vector<128x128xf32>
    %cst_116 = arith.constant dense<0.000000e+00> : vector<128x128xf32>
    %175 = tpu.matmul %173, %101, %cst_116 {dimension_numbers = #tpu.dot_dimension_numbers<[1], [0], [0], [1], [0, 0, 1, 1], [], []>} : vector<128x128xbf16>, vector<128x128xbf16>, vector<128x128xf32> -> vector<128x128xf32>
    %176 = arith.addf %174, %175 : vector<128x128xf32>
    %c0_117 = arith.constant 0 : index
    %c0_118 = arith.constant 0 : index
    %177 = vector.load %arg8[%c0_117, %c0_118] : memref<128x128xf32, #tpu.memory_space<vmem>>, vector<128x128xf32>
    tpu.vector_store %arg8[%c0_117, %c0_118], %176 {strides = array<i32>} : memref<128x128xf32, #tpu.memory_space<vmem>>, vector<128x128xf32>,
    return
  }
}

</mosaic_0001>

<llo_original>
// kernel: gcn_forward.1
$region0: #{gcn_forward.1}
  #allocation0 [shape = 'u32[]', space=smem, size = 0x4, offset = 0x4, fixed_abs, tag = 'smem constant byte address 0x4 - core index']
  #allocation1 [shape = 'u32[72,128]{1,0:T(1,128)}', space=vmem, size = 0x9000, scoped, tag = 'internal scratch']
  %s0 = inlined_call_operand.vmem [shape: bf16[384,128], index: 0, kind: input, shape index: {}]
  %s1 = inlined_call_operand.vmem [shape: bf16[128,128], index: 1, kind: input, shape index: {}]
  %s2 = inlined_call_operand.vmem [shape: bf16[128,128], index: 2, kind: input, shape index: {}]
  %s3 = inlined_call_operand.vmem [shape: bf16[2,128,128], index: 3, kind: input, shape index: {}]
  %s4 = inlined_call_operand.vmem [shape: bf16[2,128,128], index: 4, kind: input, shape index: {}]
  %s5 = inlined_call_operand.vmem [shape: bf16[2,128,128], index: 5, kind: input, shape index: {}]
  %s6 = inlined_call_operand.vmem [shape: bf16[2,128,128], index: 6, kind: input, shape index: {}]
  %s7 = inlined_call_operand.vmem [shape: f32[128,128], index: 7, kind: output, shape index: {0}]
  %s8 = inlined_call_operand.vmem [shape: f32[128,128], index: 8, kind: output, shape index: {1}]
  %s9 = inlined_call_operand.vmem [shape: f32[384,128], index: 9, kind: output, shape index: {2}]
  %s10 = inlined_call_operand.vmem [shape: f32[384,128], index: 10, kind: output, shape index: {3}]
  %11 = xla_tuple %s7, %s8, %s9, %s10
  %s12 = sld [smem:[#allocation0]]
  $region62: #{gcn_forward.1} parent=0
    _
  %s14 = ssub.s32 1, %s12
  %s15 = scalar_select 0, %s14, %s12
  // Predicated region
  $region2: #{gcn_forward.1} parent=0 // pred_check
    _
  $region3: #{gcn_forward.1} parent=0 // pred_check_branch
    %17 = sbr.rel (0) target = $region5
  $region4: #{gcn_forward.1} parent=0 // pred_region
    _
  $region5: #{gcn_forward.1} parent=0 // pred_fallthru
    _
  // Predicated region
  $region6: #{gcn_forward.1} parent=0 // pred_check
    _
  $region7: #{gcn_forward.1} parent=0 // pred_check_branch
    %19 = sbr.rel (0) target = $region9
  $region8: #{gcn_forward.1} parent=0 // pred_region
    _
  $region9: #{gcn_forward.1} parent=0 // pred_fallthru
    _
  // Predicated region
  $region10: #{gcn_forward.1} parent=0 // pred_check
    _
  $region11: #{gcn_forward.1} parent=0 // pred_check_branch
    %21 = sbr.rel (0) target = $region13
  $region12: #{gcn_forward.1} parent=0 // pred_region
    _
  $region13: #{gcn_forward.1} parent=0 // pred_fallthru
    _
  // Predicated region
  $region14: #{gcn_forward.1} parent=0 // pred_check
    _
  $region15: #{gcn_forward.1} parent=0 // pred_check_branch
    %23 = sbr.rel (0) target = $region17
  $region16: #{gcn_forward.1} parent=0 // pred_region
    _
  $region17: #{gcn_forward.1} parent=0 // pred_fallthru
    _
  // Predicated region
  $region18: #{gcn_forward.1} parent=0 // pred_check
    _
  $region19: #{gcn_forward.1} parent=0 // pred_check_branch
    %25 = sbr.rel (0) target = $region21
  $region20: #{gcn_forward.1} parent=0 // pred_region
    _
  $region21: #{gcn_forward.1} parent=0 // pred_fallthru
    _
  // Predicated region
  $region22: #{gcn_forward.1} parent=0 // pred_check
    _
  $region23: #{gcn_forward.1} parent=0 // pred_check_branch
    %27 = sbr.rel (0) target = $region25
  $region24: #{gcn_forward.1} parent=0 // pred_region
    _
  $region25: #{gcn_forward.1} parent=0 // pred_fallthru
    _
  // Predicated region
  $region26: #{gcn_forward.1} parent=0 // pred_check
    _
  $region27: #{gcn_forward.1} parent=0 // pred_check_branch
    %29 = sbr.rel (0) target = $region29
  $region28: #{gcn_forward.1} parent=0 // pred_region
    _
  $region29: #{gcn_forward.1} parent=0 // pred_fallthru
    _
  %30 = vst [vmem:[%s7] sm:$0xff] 0.0
  %31 = vst [vmem:[%s7 + $0x8] sm:$0xff] 0.0
  %32 = vst [vmem:[%s7 + $0x10] sm:$0xff] 0.0
  %33 = vst [vmem:[%s7 + $0x18] sm:$0xff] 0.0
  %34 = vst [vmem:[%s7 + $0x20] sm:$0xff] 0.0
  %35 = vst [vmem:[%s7 + $0x28] sm:$0xff] 0.0
  %36 = vst [vmem:[%s7 + $0x30] sm:$0xff] 0.0
  %37 = vst [vmem:[%s7 + $0x38] sm:$0xff] 0.0
  %38 = vst [vmem:[%s7 + $0x40] sm:$0xff] 0.0
  %39 = vst [vmem:[%s7 + $0x48] sm:$0xff] 0.0
  %40 = vst [vmem:[%s7 + $0x50] sm:$0xff] 0.0
  %41 = vst [vmem:[%s7 + $0x58] sm:$0xff] 0.0
  %42 = vst [vmem:[%s7 + $0x60] sm:$0xff] 0.0
  %43 = vst [vmem:[%s7 + $0x68] sm:$0xff] 0.0
  %44 = vst [vmem:[%s7 + $0x70] sm:$0xff] 0.0
  %45 = vst [vmem:[%s7 + $0x78] sm:$0xff] 0.0
  %46 = vst [vmem:[%s8] sm:$0xff] 0.0
  %47 = vst [vmem:[%s8 + $0x8] sm:$0xff] 0.0
  %48 = vst [vmem:[%s8 + $0x10] sm:$0xff] 0.0
  %49 = vst [vmem:[%s8 + $0x18] sm:$0xff] 0.0
  %50 = vst [vmem:[%s8 + $0x20] sm:$0xff] 0.0
  %51 = vst [vmem:[%s8 + $0x28] sm:$0xff] 0.0
  %52 = vst [vmem:[%s8 + $0x30] sm:$0xff] 0.0
  %53 = vst [vmem:[%s8 + $0x38] sm:$0xff] 0.0
  %54 = vst [vmem:[%s8 + $0x40] sm:$0xff] 0.0
  %55 = vst [vmem:[%s8 + $0x48] sm:$0xff] 0.0
  %56 = vst [vmem:[%s8 + $0x50] sm:$0xff] 0.0
  %57 = vst [vmem:[%s8 + $0x58] sm:$0xff] 0.0
  %58 = vst [vmem:[%s8 + $0x60] sm:$0xff] 0.0
  %59 = vst [vmem:[%s8 + $0x68] sm:$0xff] 0.0
  %60 = vst [vmem:[%s8 + $0x70] sm:$0xff] 0.0
  %61 = vst [vmem:[%s8 + $0x78] sm:$0xff] 0.0
  %62 = vst [vmem:[%s9] sm:$0xff] 0.0
  %63 = vst [vmem:[%s9 + $0x8] sm:$0xff] 0.0
  %64 = vst [vmem:[%s9 + $0x10] sm:$0xff] 0.0
  %65 = vst [vmem:[%s9 + $0x18] sm:$0xff] 0.0
  %66 = vst [vmem:[%s9 + $0x20] sm:$0xff] 0.0
  %67 = vst [vmem:[%s9 + $0x28] sm:$0xff] 0.0
  %68 = vst [vmem:[%s9 + $0x30] sm:$0xff] 0.0
  %69 = vst [vmem:[%s9 + $0x38] sm:$0xff] 0.0
  %70 = vst [vmem:[%s9 + $0x40] sm:$0xff] 0.0
  %71 = vst [vmem:[%s9 + $0x48] sm:$0xff] 0.0
  %72 = vst [vmem:[%s9 + $0x50] sm:$0xff] 0.0
  %73 = vst [vmem:[%s9 + $0x58] sm:$0xff] 0.0
  %74 = vst [vmem:[%s9 + $0x60] sm:$0xff] 0.0
  %75 = vst [vmem:[%s9 + $0x68] sm:$0xff] 0.0
  %76 = vst [vmem:[%s9 + $0x70] sm:$0xff] 0.0
  %77 = vst [vmem:[%s9 + $0x78] sm:$0xff] 0.0
  %78 = vst [vmem:[%s9 + $0x80] sm:$0xff] 0.0
  %79 = vst [vmem:[%s9 + $0x88] sm:$0xff] 0.0
  %80 = vst [vmem:[%s9 + $0x90] sm:$0xff] 0.0
  %81 = vst [vmem:[%s9 + $0x98] sm:$0xff] 0.0
  %82 = vst [vmem:[%s9 + $0xa0] sm:$0xff] 0.0
  %83 = vst [vmem:[%s9 + $0xa8] sm:$0xff] 0.0
  %84 = vst [vmem:[%s9 + $0xb0] sm:$0xff] 0.0
  %85 = vst [vmem:[%s9 + $0xb8] sm:$0xff] 0.0
  %86 = vst [vmem:[%s9 + $0xc0] sm:$0xff] 0.0
  %87 = vst [vmem:[%s9 + $0xc8] sm:$0xff] 0.0
  %88 = vst [vmem:[%s9 + $0xd0] sm:$0xff] 0.0
  %89 = vst [vmem:[%s9 + $0xd8] sm:$0xff] 0.0
  %90 = vst [vmem:[%s9 + $0xe0] sm:$0xff] 0.0
  %91 = vst [vmem:[%s9 + $0xe8] sm:$0xff] 0.0
  %92 = vst [vmem:[%s9 + $0xf0] sm:$0xff] 0.0
  %93 = vst [vmem:[%s9 + $0xf8] sm:$0xff] 0.0
  %94 = vst [vmem:[%s9 + $0x100] sm:$0xff] 0.0
  %95 = vst [vmem:[%s9 + $0x108] sm:$0xff] 0.0
  %96 = vst [vmem:[%s9 + $0x110] sm:$0xff] 0.0
  %97 = vst [vmem:[%s9 + $0x118] sm:$0xff] 0.0
  %98 = vst [vmem:[%s9 + $0x120] sm:$0xff] 0.0
  %99 = vst [vmem:[%s9 + $0x128] sm:$0xff] 0.0
  %100 = vst [vmem:[%s9 + $0x130] sm:$0xff] 0.0
  %101 = vst [vmem:[%s9 + $0x138] sm:$0xff] 0.0
  %102 = vst [vmem:[%s9 + $0x140] sm:$0xff] 0.0
  %103 = vst [vmem:[%s9 + $0x148] sm:$0xff] 0.0
  %104 = vst [vmem:[%s9 + $0x150] sm:$0xff] 0.0
  %105 = vst [vmem:[%s9 + $0x158] sm:$0xff] 0.0
  %106 = vst [vmem:[%s9 + $0x160] sm:$0xff] 0.0
  %107 = vst [vmem:[%s9 + $0x168] sm:$0xff] 0.0
  %108 = vst [vmem:[%s9 + $0x170] sm:$0xff] 0.0
  %109 = vst [vmem:[%s9 + $0x178] sm:$0xff] 0.0
  %110 = vst [vmem:[%s10] sm:$0xff] 0.0
  %111 = vst [vmem:[%s10 + $0x8] sm:$0xff] 0.0
  %112 = vst [vmem:[%s10 + $0x10] sm:$0xff] 0.0
  %113 = vst [vmem:[%s10 + $0x18] sm:$0xff] 0.0
  %114 = vst [vmem:[%s10 + $0x20] sm:$0xff] 0.0
  %115 = vst [vmem:[%s10 + $0x28] sm:$0xff] 0.0
  %116 = vst [vmem:[%s10 + $0x30] sm:$0xff] 0.0
  %117 = vst [vmem:[%s10 + $0x38] sm:$0xff] 0.0
  %118 = vst [vmem:[%s10 + $0x40] sm:$0xff] 0.0
  %119 = vst [vmem:[%s10 + $0x48] sm:$0xff] 0.0
  %120 = vst [vmem:[%s10 + $0x50] sm:$0xff] 0.0
  %121 = vst [vmem:[%s10 + $0x58] sm:$0xff] 0.0
  %122 = vst [vmem:[%s10 + $0x60] sm:$0xff] 0.0
  %123 = vst [vmem:[%s10 + $0x68] sm:$0xff] 0.0
  %124 = vst [vmem:[%s10 + $0x70] sm:$0xff] 0.0
  %125 = vst [vmem:[%s10 + $0x78] sm:$0xff] 0.0
  %126 = vst [vmem:[%s10 + $0x80] sm:$0xff] 0.0
  %127 = vst [vmem:[%s10 + $0x88] sm:$0xff] 0.0
  %128 = vst [vmem:[%s10 + $0x90] sm:$0xff] 0.0
  %129 = vst [vmem:[%s10 + $0x98] sm:$0xff] 0.0
  %130 = vst [vmem:[%s10 + $0xa0] sm:$0xff] 0.0
  %131 = vst [vmem:[%s10 + $0xa8] sm:$0xff] 0.0
  %132 = vst [vmem:[%s10 + $0xb0] sm:$0xff] 0.0
  %133 = vst [vmem:[%s10 + $0xb8] sm:$0xff] 0.0
  %134 = vst [vmem:[%s10 + $0xc0] sm:$0xff] 0.0
  %135 = vst [vmem:[%s10 + $0xc8] sm:$0xff] 0.0
  %136 = vst [vmem:[%s10 + $0xd0] sm:$0xff] 0.0
  %137 = vst [vmem:[%s10 + $0xd8] sm:$0xff] 0.0
  %138 = vst [vmem:[%s10 + $0xe0] sm:$0xff] 0.0
  %139 = vst [vmem:[%s10 + $0xe8] sm:$0xff] 0.0
  %140 = vst [vmem:[%s10 + $0xf0] sm:$0xff] 0.0
  %141 = vst [vmem:[%s10 + $0xf8] sm:$0xff] 0.0
  %142 = vst [vmem:[%s10 + $0x100] sm:$0xff] 0.0
  %143 = vst [vmem:[%s10 + $0x108] sm:$0xff] 0.0
  %144 = vst [vmem:[%s10 + $0x110] sm:$0xff] 0.0
  %145 = vst [vmem:[%s10 + $0x118] sm:$0xff] 0.0
  %146 = vst [vmem:[%s10 + $0x120] sm:$0xff] 0.0
  %147 = vst [vmem:[%s10 + $0x128] sm:$0xff] 0.0
  %148 = vst [vmem:[%s10 + $0x130] sm:$0xff] 0.0
  %149 = vst [vmem:[%s10 + $0x138] sm:$0xff] 0.0
  %150 = vst [vmem:[%s10 + $0x140] sm:$0xff] 0.0
  %151 = vst [vmem:[%s10 + $0x148] sm:$0xff] 0.0
  %152 = vst [vmem:[%s10 + $0x150] sm:$0xff] 0.0
  %153 = vst [vmem:[%s10 + $0x158] sm:$0xff] 0.0
  %154 = vst [vmem:[%s10 + $0x160] sm:$0xff] 0.0
  %155 = vst [vmem:[%s10 + $0x168] sm:$0xff] 0.0
  %156 = vst [vmem:[%s10 + $0x170] sm:$0xff] 0.0
  %157 = vst [vmem:[%s10 + $0x178] sm:$0xff] 0.0
  %v158 = vld [vmem:[%s1] sm:$0xf]
  %v159 = vld [vmem:[%s1 + $0x4] sm:$0xf]
  %v160 = vld [vmem:[%s1 + $0x8] sm:$0xf]
  %v161 = vld [vmem:[%s1 + $0xc] sm:$0xf]
  %v162 = vld [vmem:[%s1 + $0x10] sm:$0xf]
  %v163 = vld [vmem:[%s1 + $0x14] sm:$0xf]
  %v164 = vld [vmem:[%s1 + $0x18] sm:$0xf]
  %v165 = vld [vmem:[%s1 + $0x1c] sm:$0xf]
  %v166 = vld [vmem:[%s1 + $0x20] sm:$0xf]
  %v167 = vld [vmem:[%s1 + $0x24] sm:$0xf]
  %v168 = vld [vmem:[%s1 + $0x28] sm:$0xf]
  %v169 = vld [vmem:[%s1 + $0x2c] sm:$0xf]
  %v170 = vld [vmem:[%s1 + $0x30] sm:$0xf]
  %v171 = vld [vmem:[%s1 + $0x34] sm:$0xf]
  %v172 = vld [vmem:[%s1 + $0x38] sm:$0xf]
  %v173 = vld [vmem:[%s1 + $0x3c] sm:$0xf]
  %v174 = vld [vmem:[%s2] sm:$0xf]
  %v175 = vld [vmem:[%s2 + $0x4] sm:$0xf]
  %v176 = vld [vmem:[%s2 + $0x8] sm:$0xf]
  %v177 = vld [vmem:[%s2 + $0xc] sm:$0xf]
  %v178 = vld [vmem:[%s2 + $0x10] sm:$0xf]
  %v179 = vld [vmem:[%s2 + $0x14] sm:$0xf]
  %v180 = vld [vmem:[%s2 + $0x18] sm:$0xf]
  %v181 = vld [vmem:[%s2 + $0x1c] sm:$0xf]
  %v182 = vld [vmem:[%s2 + $0x20] sm:$0xf]
  %v183 = vld [vmem:[%s2 + $0x24] sm:$0xf]
  %v184 = vld [vmem:[%s2 + $0x28] sm:$0xf]
  %v185 = vld [vmem:[%s2 + $0x2c] sm:$0xf]
  %v186 = vld [vmem:[%s2 + $0x30] sm:$0xf]
  %v187 = vld [vmem:[%s2 + $0x34] sm:$0xf]
  %v188 = vld [vmem:[%s2 + $0x38] sm:$0xf]
  %v189 = vld [vmem:[%s2 + $0x3c] sm:$0xf]
  %v190 = vld [vmem:[%s3] sm:$0xf]
  %v191 = vld [vmem:[%s3 + $0x4] sm:$0xf]
  %v192 = vld [vmem:[%s3 + $0x8] sm:$0xf]
  %v193 = vld [vmem:[%s3 + $0xc] sm:$0xf]
  %v194 = vld [vmem:[%s3 + $0x10] sm:$0xf]
  %v195 = vld [vmem:[%s3 + $0x14] sm:$0xf]
  %v196 = vld [vmem:[%s3 + $0x18] sm:$0xf]
  %v197 = vld [vmem:[%s3 + $0x1c] sm:$0xf]
  %v198 = vld [vmem:[%s3 + $0x20] sm:$0xf]
  %v199 = vld [vmem:[%s3 + $0x24] sm:$0xf]
  %v200 = vld [vmem:[%s3 + $0x28] sm:$0xf]
  %v201 = vld [vmem:[%s3 + $0x2c] sm:$0xf]
  %v202 = vld [vmem:[%s3 + $0x30] sm:$0xf]
  %v203 = vld [vmem:[%s3 + $0x34] sm:$0xf]
  %v204 = vld [vmem:[%s3 + $0x38] sm:$0xf]
  %v205 = vld [vmem:[%s3 + $0x3c] sm:$0xf]
  %v206 = vld [vmem:[%s4] sm:$0xf]
  %v207 = vld [vmem:[%s4 + $0x4] sm:$0xf]
  %v208 = vld [vmem:[%s4 + $0x8] sm:$0xf]
  %v209 = vld [vmem:[%s4 + $0xc] sm:$0xf]
  %v210 = vld [vmem:[%s4 + $0x10] sm:$0xf]
  %v211 = vld [vmem:[%s4 + $0x14] sm:$0xf]
  %v212 = vld [vmem:[%s4 + $0x18] sm:$0xf]
  %v213 = vld [vmem:[%s4 + $0x1c] sm:$0xf]
  %v214 = vld [vmem:[%s4 + $0x20] sm:$0xf]
  %v215 = vld [vmem:[%s4 + $0x24] sm:$0xf]
  %v216 = vld [vmem:[%s4 + $0x28] sm:$0xf]
  %v217 = vld [vmem:[%s4 + $0x2c] sm:$0xf]
  %v218 = vld [vmem:[%s4 + $0x30] sm:$0xf]
  %v219 = vld [vmem:[%s4 + $0x34] sm:$0xf]
  %v220 = vld [vmem:[%s4 + $0x38] sm:$0xf]
  %v221 = vld [vmem:[%s4 + $0x3c] sm:$0xf]
  %v222 = vld [vmem:[%s5] sm:$0xf]
  %v223 = vld [vmem:[%s5 + $0x4] sm:$0xf]
  %v224 = vld [vmem:[%s5 + $0x8] sm:$0xf]
  %v225 = vld [vmem:[%s5 + $0xc] sm:$0xf]
  %v226 = vld [vmem:[%s5 + $0x10] sm:$0xf]
  %v227 = vld [vmem:[%s5 + $0x14] sm:$0xf]
  %v228 = vld [vmem:[%s5 + $0x18] sm:$0xf]
  %v229 = vld [vmem:[%s5 + $0x1c] sm:$0xf]
  %v230 = vld [vmem:[%s5 + $0x20] sm:$0xf]
  %v231 = vld [vmem:[%s5 + $0x24] sm:$0xf]
  %v232 = vld [vmem:[%s5 + $0x28] sm:$0xf]
  %v233 = vld [vmem:[%s5 + $0x2c] sm:$0xf]
  %v234 = vld [vmem:[%s5 + $0x30] sm:$0xf]
  %v235 = vld [vmem:[%s5 + $0x34] sm:$0xf]
  %v236 = vld [vmem:[%s5 + $0x38] sm:$0xf]
  %v237 = vld [vmem:[%s5 + $0x3c] sm:$0xf]
  %v238 = vld [vmem:[%s6] sm:$0xf]
  %v239 = vld [vmem:[%s6 + $0x4] sm:$0xf]
  %v240 = vld [vmem:[%s6 + $0x8] sm:$0xf]
  %v241 = vld [vmem:[%s6 + $0xc] sm:$0xf]
  %v242 = vld [vmem:[%s6 + $0x10] sm:$0xf]
  %v243 = vld [vmem:[%s6 + $0x14] sm:$0xf]
  %v244 = vld [vmem:[%s6 + $0x18] sm:$0xf]
  %v245 = vld [vmem:[%s6 + $0x1c] sm:$0xf]
  %v246 = vld [vmem:[%s6 + $0x20] sm:$0xf]
  %v247 = vld [vmem:[%s6 + $0x24] sm:$0xf]
  %v248 = vld [vmem:[%s6 + $0x28] sm:$0xf]
  %v249 = vld [vmem:[%s6 + $0x2c] sm:$0xf]
  %v250 = vld [vmem:[%s6 + $0x30] sm:$0xf]
  %v251 = vld [vmem:[%s6 + $0x34] sm:$0xf]
  %v252 = vld [vmem:[%s6 + $0x38] sm:$0xf]
  %v253 = vld [vmem:[%s6 + $0x3c] sm:$0xf]
  %v270 = vunpack.c.l.b16 %v174
  %v271 = vunpack.c.l.b16 %v175
  %v272 = vunpack.c.l.b16 %v176
  %v273 = vunpack.c.l.b16 %v177
  %v274 = vunpack.c.l.b16 %v178
  %v275 = vunpack.c.l.b16 %v179
  %v276 = vunpack.c.l.b16 %v180
  %v277 = vunpack.c.l.b16 %v181
  %v278 = vunpack.c.l.b16 %v182
  %v279 = vunpack.c.l.b16 %v183
  %v280 = vunpack.c.l.b16 %v184
  %v281 = vunpack.c.l.b16 %v185
  %v282 = vunpack.c.l.b16 %v186
  %v283 = vunpack.c.l.b16 %v187
  %v284 = vunpack.c.l.b16 %v188
  %v285 = vunpack.c.l.b16 %v189
  %v286 = vpack.c.b16 %v271, %v270
  %v287 = vpack.c.b16 %v273, %v272
  %v288 = vpack.c.b16 %v275, %v274
  %v289 = vpack.c.b16 %v277, %v276
  %v290 = vpack.c.b16 %v279, %v278
  %v291 = vpack.c.b16 %v281, %v280
  %v292 = vpack.c.b16 %v283, %v282
  %v293 = vpack.c.b16 %v285, %v284
  %v318 = vunpack.c.l.b16 %v190
  %v319 = vunpack.c.l.b16 %v191
  %v320 = vunpack.c.l.b16 %v192
  %v321 = vunpack.c.l.b16 %v193
  %v322 = vunpack.c.l.b16 %v194
  %v323 = vunpack.c.l.b16 %v195
  %v324 = vunpack.c.l.b16 %v196
  %v325 = vunpack.c.l.b16 %v197
  %v326 = vunpack.c.l.b16 %v198
  %v327 = vunpack.c.l.b16 %v199
  %v328 = vunpack.c.l.b16 %v200
  %v329 = vunpack.c.l.b16 %v201
  %v330 = vunpack.c.l.b16 %v202
  %v331 = vunpack.c.l.b16 %v203
  %v332 = vunpack.c.l.b16 %v204
  %v333 = vunpack.c.l.b16 %v205
  %v334 = vpack.c.b16 %v319, %v318
  %v335 = vpack.c.b16 %v321, %v320
  %v336 = vpack.c.b16 %v323, %v322
  %v337 = vpack.c.b16 %v325, %v324
  %v338 = vpack.c.b16 %v327, %v326
  %v339 = vpack.c.b16 %v329, %v328
  %v340 = vpack.c.b16 %v331, %v330
  %v341 = vpack.c.b16 %v333, %v332
  %350 = vmatpush.bf16.msra.mxu0 %v341
  %351 = vmatpush.bf16.msra.mxu0 %v340
  %352 = vmatpush.bf16.msra.mxu0 %v339
  %353 = vmatpush.bf16.msra.mxu0 %v338
  %354 = vmatpush.bf16.msra.mxu0 %v337
  %355 = vmatpush.bf16.msra.mxu0 %v336
  %356 = vmatpush.bf16.msra.mxu0 %v335
  %357 = vmatpush.bf16.msra.mxu0 %v334
  %358 = vmatmul.bf16.gmra.mxu0 %v286
  %v359 = vpop.f32.mrf.mxu0
  %v360 = vadd.f32 0.0, %v359
  %v361 = vpop.f32.mrf.mxu0
  %v362 = vadd.f32 0.0, %v361
  %363 = vmatmul.bf16.gmra.mxu0 %v287
  %v364 = vpop.f32.mrf.mxu0
  %v365 = vadd.f32 0.0, %v364
  %v366 = vpop.f32.mrf.mxu0
  %v367 = vadd.f32 0.0, %v366
  %368 = vmatmul.bf16.gmra.mxu0 %v288
  %v369 = vpop.f32.mrf.mxu0
  %v370 = vadd.f32 0.0, %v369
  %v371 = vpop.f32.mrf.mxu0
  %v372 = vadd.f32 0.0, %v371
  %373 = vmatmul.bf16.gmra.mxu0 %v289
  %v374 = vpop.f32.mrf.mxu0
  %v375 = vadd.f32 0.0, %v374
  %v376 = vpop.f32.mrf.mxu0
  %v377 = vadd.f32 0.0, %v376
  %378 = vmatmul.bf16.gmra.mxu0 %v290
  %v379 = vpop.f32.mrf.mxu0
  %v380 = vadd.f32 0.0, %v379
  %v381 = vpop.f32.mrf.mxu0
  %v382 = vadd.f32 0.0, %v381
  %383 = vmatmul.bf16.gmra.mxu0 %v291
  %v384 = vpop.f32.mrf.mxu0
  %v385 = vadd.f32 0.0, %v384
  %v386 = vpop.f32.mrf.mxu0
  %v387 = vadd.f32 0.0, %v386
  %388 = vmatmul.bf16.gmra.mxu0 %v292
  %v389 = vpop.f32.mrf.mxu0
  %v390 = vadd.f32 0.0, %v389
  %v391 = vpop.f32.mrf.mxu0
  %v392 = vadd.f32 0.0, %v391
  %393 = vmatmul.bf16.gmra.mxu0 %v293
  %v394 = vpop.f32.mrf.mxu0
  %v395 = vadd.f32 0.0, %v394
  %v396 = vpop.f32.mrf.mxu0
  %v397 = vadd.f32 0.0, %v396
  %398 = vdwg.mxu0
  %v399 = vpack.c.bf16 %v362, %v360
  %v400 = vpack.c.bf16 %v367, %v365
  %v401 = vpack.c.bf16 %v372, %v370
  %v402 = vpack.c.bf16 %v377, %v375
  %v403 = vpack.c.bf16 %v382, %v380
  %v404 = vpack.c.bf16 %v387, %v385
  %v405 = vpack.c.bf16 %v392, %v390
  %v406 = vpack.c.bf16 %v397, %v395
  %v423 = vunpack.c.l.b16 %v158
  %v424 = vunpack.c.l.b16 %v159
  %v425 = vunpack.c.l.b16 %v160
  %v426 = vunpack.c.l.b16 %v161
  %v427 = vunpack.c.l.b16 %v162
  %v428 = vunpack.c.l.b16 %v163
  %v429 = vunpack.c.l.b16 %v164
  %v430 = vunpack.c.l.b16 %v165
  %v431 = vunpack.c.l.b16 %v166
  %v432 = vunpack.c.l.b16 %v167
  %v433 = vunpack.c.l.b16 %v168
  %v434 = vunpack.c.l.b16 %v169
  %v435 = vunpack.c.l.b16 %v170
  %v436 = vunpack.c.l.b16 %v171
  %v437 = vunpack.c.l.b16 %v172
  %v438 = vunpack.c.l.b16 %v173
  %v439 = vpack.c.b16 %v424, %v423
  %v440 = vpack.c.b16 %v426, %v425
  %v441 = vpack.c.b16 %v428, %v427
  %v442 = vpack.c.b16 %v430, %v429
  %v443 = vpack.c.b16 %v432, %v431
  %v444 = vpack.c.b16 %v434, %v433
  %v445 = vpack.c.b16 %v436, %v435
  %v446 = vpack.c.b16 %v438, %v437
  %v471 = vunpack.c.l.b16 %v206
  %v472 = vunpack.c.l.b16 %v207
  %v473 = vunpack.c.l.b16 %v208
  %v474 = vunpack.c.l.b16 %v209
  %v475 = vunpack.c.l.b16 %v210
  %v476 = vunpack.c.l.b16 %v211
  %v477 = vunpack.c.l.b16 %v212
  %v478 = vunpack.c.l.b16 %v213
  %v479 = vunpack.c.l.b16 %v214
  %v480 = vunpack.c.l.b16 %v215
  %v481 = vunpack.c.l.b16 %v216
  %v482 = vunpack.c.l.b16 %v217
  %v483 = vunpack.c.l.b16 %v218
  %v484 = vunpack.c.l.b16 %v219
  %v485 = vunpack.c.l.b16 %v220
  %v486 = vunpack.c.l.b16 %v221
  %v487 = vpack.c.b16 %v472, %v471
  %v488 = vpack.c.b16 %v474, %v473
  %v489 = vpack.c.b16 %v476, %v475
  %v490 = vpack.c.b16 %v478, %v477
  %v491 = vpack.c.b16 %v480, %v479
  %v492 = vpack.c.b16 %v482, %v481
  %v493 = vpack.c.b16 %v484, %v483
  %v494 = vpack.c.b16 %v486, %v485
  %503 = vmatpush.bf16.msra.mxu0 %v494
  %504 = vmatpush.bf16.msra.mxu0 %v493
  %505 = vmatpush.bf16.msra.mxu0 %v492
  %506 = vmatpush.bf16.msra.mxu0 %v491
  %507 = vmatpush.bf16.msra.mxu0 %v490
  %508 = vmatpush.bf16.msra.mxu0 %v489
  %509 = vmatpush.bf16.msra.mxu0 %v488
  %510 = vmatpush.bf16.msra.mxu0 %v487
  %511 = vmatmul.bf16.gmra.mxu0 %v439
  %v512 = vpop.f32.mrf.mxu0
  %v513 = vadd.f32 0.0, %v512
  %v514 = vpop.f32.mrf.mxu0
  %v515 = vadd.f32 0.0, %v514
  %516 = vmatmul.bf16.gmra.mxu0 %v440
  %v517 = vpop.f32.mrf.mxu0
  %v518 = vadd.f32 0.0, %v517
  %v519 = vpop.f32.mrf.mxu0
  %v520 = vadd.f32 0.0, %v519
  %521 = vmatmul.bf16.gmra.mxu0 %v441
  %v522 = vpop.f32.mrf.mxu0
  %v523 = vadd.f32 0.0, %v522
  %v524 = vpop.f32.mrf.mxu0
  %v525 = vadd.f32 0.0, %v524
  %526 = vmatmul.bf16.gmra.mxu0 %v442
  %v527 = vpop.f32.mrf.mxu0
  %v528 = vadd.f32 0.0, %v527
  %v529 = vpop.f32.mrf.mxu0
  %v530 = vadd.f32 0.0, %v529
  %531 = vmatmul.bf16.gmra.mxu0 %v443
  %v532 = vpop.f32.mrf.mxu0
  %v533 = vadd.f32 0.0, %v532
  %v534 = vpop.f32.mrf.mxu0
  %v535 = vadd.f32 0.0, %v534
  %536 = vmatmul.bf16.gmra.mxu0 %v444
  %v537 = vpop.f32.mrf.mxu0
  %v538 = vadd.f32 0.0, %v537
  %v539 = vpop.f32.mrf.mxu0
  %v540 = vadd.f32 0.0, %v539
  %541 = vmatmul.bf16.gmra.mxu0 %v445
  %v542 = vpop.f32.mrf.mxu0
  %v543 = vadd.f32 0.0, %v542
  %v544 = vpop.f32.mrf.mxu0
  %v545 = vadd.f32 0.0, %v544
  %546 = vmatmul.bf16.gmra.mxu0 %v446
  %v547 = vpop.f32.mrf.mxu0
  %v548 = vadd.f32 0.0, %v547
  %v549 = vpop.f32.mrf.mxu0
  %v550 = vadd.f32 0.0, %v549
  %551 = vdwg.mxu0
  %v552 = vpack.c.bf16 %v515, %v513
  %v553 = vpack.c.bf16 %v520, %v518
  %v554 = vpack.c.bf16 %v525, %v523
  %v555 = vpack.c.bf16 %v530, %v528
  %v556 = vpack.c.bf16 %v535, %v533
  %v557 = vpack.c.bf16 %v540, %v538
  %v558 = vpack.c.bf16 %v545, %v543
  %v559 = vpack.c.bf16 %v550, %v548
  %v560 = vld [vmem:[%s0] sm:$0xf]
  %v561 = vld [vmem:[%s0 + $0x4] sm:$0xf]
  %v562 = vld [vmem:[%s0 + $0x8] sm:$0xf]
  %v563 = vld [vmem:[%s0 + $0xc] sm:$0xf]
  %v564 = vld [vmem:[%s0 + $0x10] sm:$0xf]
  %v565 = vld [vmem:[%s0 + $0x14] sm:$0xf]
  %v566 = vld [vmem:[%s0 + $0x18] sm:$0xf]
  %v567 = vld [vmem:[%s0 + $0x1c] sm:$0xf]
  %v568 = vld [vmem:[%s0 + $0x20] sm:$0xf]
  %v569 = vld [vmem:[%s0 + $0x24] sm:$0xf]
  %v570 = vld [vmem:[%s0 + $0x28] sm:$0xf]
  %v571 = vld [vmem:[%s0 + $0x2c] sm:$0xf]
  %v572 = vld [vmem:[%s0 + $0x30] sm:$0xf]
  %v573 = vld [vmem:[%s0 + $0x34] sm:$0xf]
  %v574 = vld [vmem:[%s0 + $0x38] sm:$0xf]
  %v575 = vld [vmem:[%s0 + $0x3c] sm:$0xf]
  %v576 = vld [vmem:[%s0 + $0x40] sm:$0xf]
  %v577 = vld [vmem:[%s0 + $0x44] sm:$0xf]
  %v578 = vld [vmem:[%s0 + $0x48] sm:$0xf]
  %v579 = vld [vmem:[%s0 + $0x4c] sm:$0xf]
  %v580 = vld [vmem:[%s0 + $0x50] sm:$0xf]
  %v581 = vld [vmem:[%s0 + $0x54] sm:$0xf]
  %v582 = vld [vmem:[%s0 + $0x58] sm:$0xf]
  %v583 = vld [vmem:[%s0 + $0x5c] sm:$0xf]
  %v584 = vld [vmem:[%s0 + $0x60] sm:$0xf]
  %v585 = vld [vmem:[%s0 + $0x64] sm:$0xf]
  %v586 = vld [vmem:[%s0 + $0x68] sm:$0xf]
  %v587 = vld [vmem:[%s0 + $0x6c] sm:$0xf]
  %v588 = vld [vmem:[%s0 + $0x70] sm:$0xf]
  %v589 = vld [vmem:[%s0 + $0x74] sm:$0xf]
  %v590 = vld [vmem:[%s0 + $0x78] sm:$0xf]
  %v591 = vld [vmem:[%s0 + $0x7c] sm:$0xf]
  %v592 = vld [vmem:[%s0 + $0x80] sm:$0xf]
  %v593 = vld [vmem:[%s0 + $0x84] sm:$0xf]
  %v594 = vld [vmem:[%s0 + $0x88] sm:$0xf]
  %v595 = vld [vmem:[%s0 + $0x8c] sm:$0xf]
  %v596 = vld [vmem:[%s0 + $0x90] sm:$0xf]
  %v597 = vld [vmem:[%s0 + $0x94] sm:$0xf]
  %v598 = vld [vmem:[%s0 + $0x98] sm:$0xf]
  %v599 = vld [vmem:[%s0 + $0x9c] sm:$0xf]
  %v600 = vld [vmem:[%s0 + $0xa0] sm:$0xf]
  %v601 = vld [vmem:[%s0 + $0xa4] sm:$0xf]
  %v602 = vld [vmem:[%s0 + $0xa8] sm:$0xf]
  %v603 = vld [vmem:[%s0 + $0xac] sm:$0xf]
  %v604 = vld [vmem:[%s0 + $0xb0] sm:$0xf]
  %v605 = vld [vmem:[%s0 + $0xb4] sm:$0xf]
  %v606 = vld [vmem:[%s0 + $0xb8] sm:$0xf]
  %v607 = vld [vmem:[%s0 + $0xbc] sm:$0xf]
  %v656 = vunpack.c.l.b16 %v560
  %v657 = vunpack.c.l.b16 %v561
  %v658 = vunpack.c.l.b16 %v562
  %v659 = vunpack.c.l.b16 %v563
  %v660 = vunpack.c.l.b16 %v564
  %v661 = vunpack.c.l.b16 %v565
  %v662 = vunpack.c.l.b16 %v566
  %v663 = vunpack.c.l.b16 %v567
  %v664 = vunpack.c.l.b16 %v568
  %v665 = vunpack.c.l.b16 %v569
  %v666 = vunpack.c.l.b16 %v570
  %v667 = vunpack.c.l.b16 %v571
  %v668 = vunpack.c.l.b16 %v572
  %v669 = vunpack.c.l.b16 %v573
  %v670 = vunpack.c.l.b16 %v574
  %v671 = vunpack.c.l.b16 %v575
  %v672 = vunpack.c.l.b16 %v576
  %v673 = vunpack.c.l.b16 %v577
  %v674 = vunpack.c.l.b16 %v578
  %v675 = vunpack.c.l.b16 %v579
  %v676 = vunpack.c.l.b16 %v580
  %v677 = vunpack.c.l.b16 %v581
  %v678 = vunpack.c.l.b16 %v582
  %v679 = vunpack.c.l.b16 %v583
  %v680 = vunpack.c.l.b16 %v584
  %v681 = vunpack.c.l.b16 %v585
  %v682 = vunpack.c.l.b16 %v586
  %v683 = vunpack.c.l.b16 %v587
  %v684 = vunpack.c.l.b16 %v588
  %v685 = vunpack.c.l.b16 %v589
  %v686 = vunpack.c.l.b16 %v590
  %v687 = vunpack.c.l.b16 %v591
  %v688 = vunpack.c.l.b16 %v592
  %v689 = vunpack.c.l.b16 %v593
  %v690 = vunpack.c.l.b16 %v594
  %v691 = vunpack.c.l.b16 %v595
  %v692 = vunpack.c.l.b16 %v596
  %v693 = vunpack.c.l.b16 %v597
  %v694 = vunpack.c.l.b16 %v598
  %v695 = vunpack.c.l.b16 %v599
  %v696 = vunpack.c.l.b16 %v600
  %v697 = vunpack.c.l.b16 %v601
  %v698 = vunpack.c.l.b16 %v602
  %v699 = vunpack.c.l.b16 %v603
  %v700 = vunpack.c.l.b16 %v604
  %v701 = vunpack.c.l.b16 %v605
  %v702 = vunpack.c.l.b16 %v606
  %v703 = vunpack.c.l.b16 %v607
  %v704 = vpack.c.b16 %v657, %v656
  %v705 = vpack.c.b16 %v659, %v658
  %v706 = vpack.c.b16 %v661, %v660
  %v707 = vpack.c.b16 %v663, %v662
  %v708 = vpack.c.b16 %v665, %v664
  %v709 = vpack.c.b16 %v667, %v666
  %v710 = vpack.c.b16 %v669, %v668
  %v711 = vpack.c.b16 %v671, %v670
  %v712 = vpack.c.b16 %v673, %v672
  %v713 = vpack.c.b16 %v675, %v674
  %v714 = vpack.c.b16 %v677, %v676
  %v715 = vpack.c.b16 %v679, %v678
  %v716 = vpack.c.b16 %v681, %v680
  %v717 = vpack.c.b16 %v683, %v682
  %v718 = vpack.c.b16 %v685, %v684
  %v719 = vpack.c.b16 %v687, %v686
  %v720 = vpack.c.b16 %v689, %v688
  %v721 = vpack.c.b16 %v691, %v690
  %v722 = vpack.c.b16 %v693, %v692
  %v723 = vpack.c.b16 %v695, %v694
  %v724 = vpack.c.b16 %v697, %v696
  %v725 = vpack.c.b16 %v699, %v698
  %v726 = vpack.c.b16 %v701, %v700
  %v727 = vpack.c.b16 %v703, %v702
  %752 = vmatpush.bf16.msra.mxu0 %v406
  %753 = vmatpush.bf16.msra.mxu0 %v405
  %754 = vmatpush.bf16.msra.mxu0 %v404
  %755 = vmatpush.bf16.msra.mxu0 %v403
  %756 = vmatpush.bf16.msra.mxu0 %v402
  %757 = vmatpush.bf16.msra.mxu0 %v401
  %758 = vmatpush.bf16.msra.mxu0 %v400
  %759 = vmatpush.bf16.msra.mxu0 %v399
  %760 = vmatmul.bf16.gmra.mxu0 %v704
  %v761 = vpop.f32.mrf.mxu0
  %v762 = vadd.f32 0.0, %v761
  %v763 = vpop.f32.mrf.mxu0
  %v764 = vadd.f32 0.0, %v763
  %765 = vmatmul.bf16.gmra.mxu0 %v705
  %v766 = vpop.f32.mrf.mxu0
  %v767 = vadd.f32 0.0, %v766
  %v768 = vpop.f32.mrf.mxu0
  %v769 = vadd.f32 0.0, %v768
  %770 = vmatmul.bf16.gmra.mxu0 %v706
  %v771 = vpop.f32.mrf.mxu0
  %v772 = vadd.f32 0.0, %v771
  %v773 = vpop.f32.mrf.mxu0
  %v774 = vadd.f32 0.0, %v773
  %775 = vmatmul.bf16.gmra.mxu0 %v707
  %v776 = vpop.f32.mrf.mxu0
  %v777 = vadd.f32 0.0, %v776
  %v778 = vpop.f32.mrf.mxu0
  %v779 = vadd.f32 0.0, %v778
  %780 = vmatmul.bf16.gmra.mxu0 %v708
  %v781 = vpop.f32.mrf.mxu0
  %v782 = vadd.f32 0.0, %v781
  %v783 = vpop.f32.mrf.mxu0
  %v784 = vadd.f32 0.0, %v783
  %785 = vmatmul.bf16.gmra.mxu0 %v709
  %v786 = vpop.f32.mrf.mxu0
  %v787 = vadd.f32 0.0, %v786
  %v788 = vpop.f32.mrf.mxu0
  %v789 = vadd.f32 0.0, %v788
  %790 = vmatmul.bf16.gmra.mxu0 %v710
  %v791 = vpop.f32.mrf.mxu0
  %v792 = vadd.f32 0.0, %v791
  %v793 = vpop.f32.mrf.mxu0
  %v794 = vadd.f32 0.0, %v793
  %795 = vmatmul.bf16.gmra.mxu0 %v711
  %v796 = vpop.f32.mrf.mxu0
  %v797 = vadd.f32 0.0, %v796
  %v798 = vpop.f32.mrf.mxu0
  %v799 = vadd.f32 0.0, %v798
  %800 = vmatmul.bf16.gmra.mxu0 %v712
  %v801 = vpop.f32.mrf.mxu0
  %v802 = vadd.f32 0.0, %v801
  %v803 = vpop.f32.mrf.mxu0
  %v804 = vadd.f32 0.0, %v803
  %805 = vmatmul.bf16.gmra.mxu0 %v713
  %v806 = vpop.f32.mrf.mxu0
  %v807 = vadd.f32 0.0, %v806
  %v808 = vpop.f32.mrf.mxu0
  %v809 = vadd.f32 0.0, %v808
  %810 = vmatmul.bf16.gmra.mxu0 %v714
  %v811 = vpop.f32.mrf.mxu0
  %v812 = vadd.f32 0.0, %v811
  %v813 = vpop.f32.mrf.mxu0
  %v814 = vadd.f32 0.0, %v813
  %815 = vmatmul.bf16.gmra.mxu0 %v715
  %v816 = vpop.f32.mrf.mxu0
  %v817 = vadd.f32 0.0, %v816
  %v818 = vpop.f32.mrf.mxu0
  %v819 = vadd.f32 0.0, %v818
  %820 = vmatmul.bf16.gmra.mxu0 %v716
  %v821 = vpop.f32.mrf.mxu0
  %v822 = vadd.f32 0.0, %v821
  %v823 = vpop.f32.mrf.mxu0
  %v824 = vadd.f32 0.0, %v823
  %825 = vmatmul.bf16.gmra.mxu0 %v717
  %v826 = vpop.f32.mrf.mxu0
  %v827 = vadd.f32 0.0, %v826
  %v828 = vpop.f32.mrf.mxu0
  %v829 = vadd.f32 0.0, %v828
  %830 = vmatmul.bf16.gmra.mxu0 %v718
  %v831 = vpop.f32.mrf.mxu0
  %v832 = vadd.f32 0.0, %v831
  %v833 = vpop.f32.mrf.mxu0
  %v834 = vadd.f32 0.0, %v833
  %835 = vmatmul.bf16.gmra.mxu0 %v719
  %v836 = vpop.f32.mrf.mxu0
  %v837 = vadd.f32 0.0, %v836
  %v838 = vpop.f32.mrf.mxu0
  %v839 = vadd.f32 0.0, %v838
  %840 = vmatmul.bf16.gmra.mxu0 %v720
  %v841 = vpop.f32.mrf.mxu0
  %v842 = vadd.f32 0.0, %v841
  %v843 = vpop.f32.mrf.mxu0
  %v844 = vadd.f32 0.0, %v843
  %845 = vmatmul.bf16.gmra.mxu0 %v721
  %v846 = vpop.f32.mrf.mxu0
  %v847 = vadd.f32 0.0, %v846
  %v848 = vpop.f32.mrf.mxu0
  %v849 = vadd.f32 0.0, %v848
  %850 = vmatmul.bf16.gmra.mxu0 %v722
  %v851 = vpop.f32.mrf.mxu0
  %v852 = vadd.f32 0.0, %v851
  %v853 = vpop.f32.mrf.mxu0
  %v854 = vadd.f32 0.0, %v853
  %855 = vmatmul.bf16.gmra.mxu0 %v723
  %v856 = vpop.f32.mrf.mxu0
  %v857 = vadd.f32 0.0, %v856
  %v858 = vpop.f32.mrf.mxu0
  %v859 = vadd.f32 0.0, %v858
  %860 = vmatmul.bf16.gmra.mxu0 %v724
  %v861 = vpop.f32.mrf.mxu0
  %v862 = vadd.f32 0.0, %v861
  %v863 = vpop.f32.mrf.mxu0
  %v864 = vadd.f32 0.0, %v863
  %865 = vmatmul.bf16.gmra.mxu0 %v725
  %v866 = vpop.f32.mrf.mxu0
  %v867 = vadd.f32 0.0, %v866
  %v868 = vpop.f32.mrf.mxu0
  %v869 = vadd.f32 0.0, %v868
  %870 = vmatmul.bf16.gmra.mxu0 %v726
  %v871 = vpop.f32.mrf.mxu0
  %v872 = vadd.f32 0.0, %v871
  %v873 = vpop.f32.mrf.mxu0
  %v874 = vadd.f32 0.0, %v873
  %875 = vmatmul.bf16.gmra.mxu0 %v727
  %v876 = vpop.f32.mrf.mxu0
  %v877 = vadd.f32 0.0, %v876
  %v878 = vpop.f32.mrf.mxu0
  %v879 = vadd.f32 0.0, %v878
  %880 = vdwg.mxu0
  %v881 = vxor.u32 %v762, 2147483648
  %v882 = vxor.u32 %v764, 2147483648
  %v883 = vxor.u32 %v767, 2147483648
  %v884 = vxor.u32 %v769, 2147483648
  %v885 = vxor.u32 %v772, 2147483648
  %v886 = vxor.u32 %v774, 2147483648
  %v887 = vxor.u32 %v777, 2147483648
  %v888 = vxor.u32 %v779, 2147483648
  %v889 = vxor.u32 %v782, 2147483648
  %v890 = vxor.u32 %v784, 2147483648
  %v891 = vxor.u32 %v787, 2147483648
  %v892 = vxor.u32 %v789, 2147483648
  %v893 = vxor.u32 %v792, 2147483648
  %v894 = vxor.u32 %v794, 2147483648
  %v895 = vxor.u32 %v797, 2147483648
  %v896 = vxor.u32 %v799, 2147483648
  %v897 = vxor.u32 %v802, 2147483648
  %v898 = vxor.u32 %v804, 2147483648
  %v899 = vxor.u32 %v807, 2147483648
  %v900 = vxor.u32 %v809, 2147483648
  %v901 = vxor.u32 %v812, 2147483648
  %v902 = vxor.u32 %v814, 2147483648
  %v903 = vxor.u32 %v817, 2147483648
  %v904 = vxor.u32 %v819, 2147483648
  %v905 = vxor.u32 %v822, 2147483648
  %v906 = vxor.u32 %v824, 2147483648
  %v907 = vxor.u32 %v827, 2147483648
  %v908 = vxor.u32 %v829, 2147483648
  %v909 = vxor.u32 %v832, 2147483648
  %v910 = vxor.u32 %v834, 2147483648
  %v911 = vxor.u32 %v837, 2147483648
  %v912 = vxor.u32 %v839, 2147483648
  %v913 = vxor.u32 %v842, 2147483648
  %v914 = vxor.u32 %v844, 2147483648
  %v915 = vxor.u32 %v847, 2147483648
  %v916 = vxor.u32 %v849, 2147483648
  %v917 = vxor.u32 %v852, 2147483648
  %v918 = vxor.u32 %v854, 2147483648
  %v919 = vxor.u32 %v857, 2147483648
  %v920 = vxor.u32 %v859, 2147483648
  %v921 = vxor.u32 %v862, 2147483648
  %v922 = vxor.u32 %v864, 2147483648
  %v923 = vxor.u32 %v867, 2147483648
  %v924 = vxor.u32 %v869, 2147483648
  %v925 = vxor.u32 %v872, 2147483648
  %v926 = vxor.u32 %v874, 2147483648
  %v927 = vxor.u32 %v877, 2147483648
  %v928 = vxor.u32 %v879, 2147483648
  %v929 = vmul.f32 %v881, 1.442695
  %v930 = vpow.pop %v929
  %v931 = vmul.f32 %v882, 1.442695
  %v932 = vpow.pop %v931
  %v933 = vmul.f32 %v883, 1.442695
  %v934 = vpow.pop %v933
  %v935 = vmul.f32 %v884, 1.442695
  %v936 = vpow.pop %v935
  %v937 = vmul.f32 %v885, 1.442695
  %v938 = vpow.pop %v937
  %v939 = vmul.f32 %v886, 1.442695
  %v940 = vpow.pop %v939
  %v941 = vmul.f32 %v887, 1.442695
  %v942 = vpow.pop %v941
  %v943 = vmul.f32 %v888, 1.442695
  %v944 = vpow.pop %v943
  %v945 = vmul.f32 %v889, 1.442695
  %v946 = vpow.pop %v945
  %v947 = vmul.f32 %v890, 1.442695
  %v948 = vpow.pop %v947
  %v949 = vmul.f32 %v891, 1.442695
  %v950 = vpow.pop %v949
  %v951 = vmul.f32 %v892, 1.442695
  %v952 = vpow.pop %v951
  %v953 = vmul.f32 %v893, 1.442695
  %v954 = vpow.pop %v953
  %v955 = vmul.f32 %v894, 1.442695
  %v956 = vpow.pop %v955
  %v957 = vmul.f32 %v895, 1.442695
  %v958 = vpow.pop %v957
  %v959 = vmul.f32 %v896, 1.442695
  %v960 = vpow.pop %v959
  %v961 = vmul.f32 %v897, 1.442695
  %v962 = vpow.pop %v961
  %v963 = vmul.f32 %v898, 1.442695
  %v964 = vpow.pop %v963
  %v965 = vmul.f32 %v899, 1.442695
  %v966 = vpow.pop %v965
  %v967 = vmul.f32 %v900, 1.442695
  %v968 = vpow.pop %v967
  %v969 = vmul.f32 %v901, 1.442695
  %v970 = vpow.pop %v969
  %v971 = vmul.f32 %v902, 1.442695
  %v972 = vpow.pop %v971
  %v973 = vmul.f32 %v903, 1.442695
  %v974 = vpow.pop %v973
  %v975 = vmul.f32 %v904, 1.442695
  %v976 = vpow.pop %v975
  %v977 = vmul.f32 %v905, 1.442695
  %v978 = vpow.pop %v977
  %v979 = vmul.f32 %v906, 1.442695
  %v980 = vpow.pop %v979
  %v981 = vmul.f32 %v907, 1.442695
  %v982 = vpow.pop %v981
  %v983 = vmul.f32 %v908, 1.442695
  %v984 = vpow.pop %v983
  %v985 = vmul.f32 %v909, 1.442695
  %v986 = vpow.pop %v985
  %v987 = vmul.f32 %v910, 1.442695
  %v988 = vpow.pop %v987
  %v989 = vmul.f32 %v911, 1.442695
  %v990 = vpow.pop %v989
  %v991 = vmul.f32 %v912, 1.442695
  %v992 = vpow.pop %v991
  %v993 = vmul.f32 %v913, 1.442695
  %v994 = vpow.pop %v993
  %v995 = vmul.f32 %v914, 1.442695
  %v996 = vpow.pop %v995
  %v997 = vmul.f32 %v915, 1.442695
  %v998 = vpow.pop %v997
  %v999 = vmul.f32 %v916, 1.442695
  %v1000 = vpow.pop %v999
  %v1001 = vmul.f32 %v917, 1.442695
  %v1002 = vpow.pop %v1001
  %v1003 = vmul.f32 %v918, 1.442695
  %v1004 = vpow.pop %v1003
  %v1005 = vmul.f32 %v919, 1.442695
  %v1006 = vpow.pop %v1005
  %v1007 = vmul.f32 %v920, 1.442695
  %v1008 = vpow.pop %v1007
  %v1009 = vmul.f32 %v921, 1.442695
  %v1010 = vpow.pop %v1009
  %v1011 = vmul.f32 %v922, 1.442695
  %v1012 = vpow.pop %v1011
  %v1013 = vmul.f32 %v923, 1.442695
  %v1014 = vpow.pop %v1013
  %v1015 = vmul.f32 %v924, 1.442695
  %v1016 = vpow.pop %v1015
  %v1017 = vmul.f32 %v925, 1.442695
  %v1018 = vpow.pop %v1017
  %v1019 = vmul.f32 %v926, 1.442695
  %v1020 = vpow.pop %v1019
  %v1021 = vmul.f32 %v927, 1.442695
  %v1022 = vpow.pop %v1021
  %v1023 = vmul.f32 %v928, 1.442695
  %v1024 = vpow.pop %v1023
  %v1025 = vadd.f32 %v930, 1.0
  %v1026 = vadd.f32 %v932, 1.0
  %v1027 = vadd.f32 %v934, 1.0
  %v1028 = vadd.f32 %v936, 1.0
  %v1029 = vadd.f32 %v938, 1.0
  %v1030 = vadd.f32 %v940, 1.0
  %v1031 = vadd.f32 %v942, 1.0
  %v1032 = vadd.f32 %v944, 1.0
  %v1033 = vadd.f32 %v946, 1.0
  %v1034 = vadd.f32 %v948, 1.0
  %v1035 = vadd.f32 %v950, 1.0
  %v1036 = vadd.f32 %v952, 1.0
  %v1037 = vadd.f32 %v954, 1.0
  %v1038 = vadd.f32 %v956, 1.0
  %v1039 = vadd.f32 %v958, 1.0
  %v1040 = vadd.f32 %v960, 1.0
  %v1041 = vadd.f32 %v962, 1.0
  %v1042 = vadd.f32 %v964, 1.0
  %v1043 = vadd.f32 %v966, 1.0
  %v1044 = vadd.f32 %v968, 1.0
  %v1045 = vadd.f32 %v970, 1.0
  %v1046 = vadd.f32 %v972, 1.0
  %v1047 = vadd.f32 %v974, 1.0
  %v1048 = vadd.f32 %v976, 1.0
  %v1049 = vadd.f32 %v978, 1.0
  %v1050 = vadd.f32 %v980, 1.0
  %v1051 = vadd.f32 %v982, 1.0
  %v1052 = vadd.f32 %v984, 1.0
  %v1053 = vadd.f32 %v986, 1.0
  %v1054 = vadd.f32 %v988, 1.0
  %v1055 = vadd.f32 %v990, 1.0
  %v1056 = vadd.f32 %v992, 1.0
  %v1057 = vadd.f32 %v994, 1.0
  %v1058 = vadd.f32 %v996, 1.0
  %v1059 = vadd.f32 %v998, 1.0
  %v1060 = vadd.f32 %v1000, 1.0
  %v1061 = vadd.f32 %v1002, 1.0
  %v1062 = vadd.f32 %v1004, 1.0
  %v1063 = vadd.f32 %v1006, 1.0
  %v1064 = vadd.f32 %v1008, 1.0
  %v1065 = vadd.f32 %v1010, 1.0
  %v1066 = vadd.f32 %v1012, 1.0
  %v1067 = vadd.f32 %v1014, 1.0
  %v1068 = vadd.f32 %v1016, 1.0
  %v1069 = vadd.f32 %v1018, 1.0
  %v1070 = vadd.f32 %v1020, 1.0
  %v1071 = vadd.f32 %v1022, 1.0
  %v1072 = vadd.f32 %v1024, 1.0
  %v1073 = vrcp.pop %v1025
  %v1074 = vmul.f32 %v1025, %v1073
  %v1075 = vsub.f32 1.0, %v1074
  %v1076 = vmul.f32 %v1073, %v1075
  %v1077 = vadd.f32 %v1073, %v1076
  %vm1078 = vweird.f32 %v1025
  %vm1079 = vweird.f32 %v1073
  %vm1080 = vmor %vm1078, %vm1079
  %v1081 = vsel %vm1080, %v1073, %v1077
  %v1082 = vand.u32 2147483647, %v1025
  %vm1083 = vcmp.eq.f32.partialorder %v1082, 8.507059e+37
  %v1084 = vand.u32 %v1025, 2147483648
  %v1085 = vor.u32 1.1754944e-38, %v1084
  %v1086 = vsel %vm1083, %v1085, %v1081
  %v1087 = vmul.f32 1.0, %v1086
  %v1088 = vrcp.pop %v1026
  %v1089 = vmul.f32 %v1026, %v1088
  %v1090 = vsub.f32 1.0, %v1089
  %v1091 = vmul.f32 %v1088, %v1090
  %v1092 = vadd.f32 %v1088, %v1091
  %vm1093 = vweird.f32 %v1026
  %vm1094 = vweird.f32 %v1088
  %vm1095 = vmor %vm1093, %vm1094
  %v1096 = vsel %vm1095, %v1088, %v1092
  %v1097 = vand.u32 2147483647, %v1026
  %vm1098 = vcmp.eq.f32.partialorder %v1097, 8.507059e+37
  %v1099 = vand.u32 %v1026, 2147483648
  %v1100 = vor.u32 1.1754944e-38, %v1099
  %v1101 = vsel %vm1098, %v1100, %v1096
  %v1102 = vmul.f32 1.0, %v1101
  %v1103 = vrcp.pop %v1027
  %v1104 = vmul.f32 %v1027, %v1103
  %v1105 = vsub.f32 1.0, %v1104
  %v1106 = vmul.f32 %v1103, %v1105
  %v1107 = vadd.f32 %v1103, %v1106
  %vm1108 = vweird.f32 %v1027
  %vm1109 = vweird.f32 %v1103
  %vm1110 = vmor %vm1108, %vm1109
  %v1111 = vsel %vm1110, %v1103, %v1107
  %v1112 = vand.u32 2147483647, %v1027
  %vm1113 = vcmp.eq.f32.partialorder %v1112, 8.507059e+37
  %v1114 = vand.u32 %v1027, 2147483648
  %v1115 = vor.u32 1.1754944e-38, %v1114
  %v1116 = vsel %vm1113, %v1115, %v1111
  %v1117 = vmul.f32 1.0, %v1116
  %v1118 = vrcp.pop %v1028
  %v1119 = vmul.f32 %v1028, %v1118
  %v1120 = vsub.f32 1.0, %v1119
  %v1121 = vmul.f32 %v1118, %v1120
  %v1122 = vadd.f32 %v1118, %v1121
  %vm1123 = vweird.f32 %v1028
  %vm1124 = vweird.f32 %v1118
  %vm1125 = vmor %vm1123, %vm1124
  %v1126 = vsel %vm1125, %v1118, %v1122
  %v1127 = vand.u32 2147483647, %v1028
  %vm1128 = vcmp.eq.f32.partialorder %v1127, 8.507059e+37
  %v1129 = vand.u32 %v1028, 2147483648
  %v1130 = vor.u32 1.1754944e-38, %v1129
  %v1131 = vsel %vm1128, %v1130, %v1126
  %v1132 = vmul.f32 1.0, %v1131
  %v1133 = vrcp.pop %v1029
  %v1134 = vmul.f32 %v1029, %v1133
  %v1135 = vsub.f32 1.0, %v1134
  %v1136 = vmul.f32 %v1133, %v1135
  %v1137 = vadd.f32 %v1133, %v1136
  %vm1138 = vweird.f32 %v1029
  %vm1139 = vweird.f32 %v1133
  %vm1140 = vmor %vm1138, %vm1139
  %v1141 = vsel %vm1140, %v1133, %v1137
  %v1142 = vand.u32 2147483647, %v1029
  %vm1143 = vcmp.eq.f32.partialorder %v1142, 8.507059e+37
  %v1144 = vand.u32 %v1029, 2147483648
  %v1145 = vor.u32 1.1754944e-38, %v1144
  %v1146 = vsel %vm1143, %v1145, %v1141
  %v1147 = vmul.f32 1.0, %v1146
  %v1148 = vrcp.pop %v1030
  %v1149 = vmul.f32 %v1030, %v1148
  %v1150 = vsub.f32 1.0, %v1149
  %v1151 = vmul.f32 %v1148, %v1150
  %v1152 = vadd.f32 %v1148, %v1151
  %vm1153 = vweird.f32 %v1030
  %vm1154 = vweird.f32 %v1148
  %vm1155 = vmor %vm1153, %vm1154
  %v1156 = vsel %vm1155, %v1148, %v1152
  %v1157 = vand.u32 2147483647, %v1030
  %vm1158 = vcmp.eq.f32.partialorder %v1157, 8.507059e+37
  %v1159 = vand.u32 %v1030, 2147483648
  %v1160 = vor.u32 1.1754944e-38, %v1159
  %v1161 = vsel %vm1158, %v1160, %v1156
  %v1162 = vmul.f32 1.0, %v1161
  %v1163 = vrcp.pop %v1031
  %v1164 = vmul.f32 %v1031, %v1163
  %v1165 = vsub.f32 1.0, %v1164
  %v1166 = vmul.f32 %v1163, %v1165
  %v1167 = vadd.f32 %v1163, %v1166
  %vm1168 = vweird.f32 %v1031
  %vm1169 = vweird.f32 %v1163
  %vm1170 = vmor %vm1168, %vm1169
  %v1171 = vsel %vm1170, %v1163, %v1167
  %v1172 = vand.u32 2147483647, %v1031
  %vm1173 = vcmp.eq.f32.partialorder %v1172, 8.507059e+37
  %v1174 = vand.u32 %v1031, 2147483648
  %v1175 = vor.u32 1.1754944e-38, %v1174
  %v1176 = vsel %vm1173, %v1175, %v1171
  %v1177 = vmul.f32 1.0, %v1176
  %v1178 = vrcp.pop %v1032
  %v1179 = vmul.f32 %v1032, %v1178
  %v1180 = vsub.f32 1.0, %v1179
  %v1181 = vmul.f32 %v1178, %v1180
  %v1182 = vadd.f32 %v1178, %v1181
  %vm1183 = vweird.f32 %v1032
  %vm1184 = vweird.f32 %v1178
  %vm1185 = vmor %vm1183, %vm1184
  %v1186 = vsel %vm1185, %v1178, %v1182
  %v1187 = vand.u32 2147483647, %v1032
  %vm1188 = vcmp.eq.f32.partialorder %v1187, 8.507059e+37
  %v1189 = vand.u32 %v1032, 2147483648
  %v1190 = vor.u32 1.1754944e-38, %v1189
  %v1191 = vsel %vm1188, %v1190, %v1186
  %v1192 = vmul.f32 1.0, %v1191
  %v1193 = vrcp.pop %v1033
  %v1194 = vmul.f32 %v1033, %v1193
  %v1195 = vsub.f32 1.0, %v1194
  %v1196 = vmul.f32 %v1193, %v1195
  %v1197 = vadd.f32 %v1193, %v1196
  %vm1198 = vweird.f32 %v1033
  %vm1199 = vweird.f32 %v1193
  %vm1200 = vmor %vm1198, %vm1199
  %v1201 = vsel %vm1200, %v1193, %v1197
  %v1202 = vand.u32 2147483647, %v1033
  %vm1203 = vcmp.eq.f32.partialorder %v1202, 8.507059e+37
  %v1204 = vand.u32 %v1033, 2147483648
  %v1205 = vor.u32 1.1754944e-38, %v1204
  %v1206 = vsel %vm1203, %v1205, %v1201
  %v1207 = vmul.f32 1.0, %v1206
  %v1208 = vrcp.pop %v1034
  %v1209 = vmul.f32 %v1034, %v1208
  %v1210 = vsub.f32 1.0, %v1209
  %v1211 = vmul.f32 %v1208, %v1210
  %v1212 = vadd.f32 %v1208, %v1211
  %vm1213 = vweird.f32 %v1034
  %vm1214 = vweird.f32 %v1208
  %vm1215 = vmor %vm1213, %vm1214
  %v1216 = vsel %vm1215, %v1208, %v1212
  %v1217 = vand.u32 2147483647, %v1034
  %vm1218 = vcmp.eq.f32.partialorder %v1217, 8.507059e+37
  %v1219 = vand.u32 %v1034, 2147483648
  %v1220 = vor.u32 1.1754944e-38, %v1219
  %v1221 = vsel %vm1218, %v1220, %v1216
  %v1222 = vmul.f32 1.0, %v1221
  %v1223 = vrcp.pop %v1035
  %v1224 = vmul.f32 %v1035, %v1223
  %v1225 = vsub.f32 1.0, %v1224
  %v1226 = vmul.f32 %v1223, %v1225
  %v1227 = vadd.f32 %v1223, %v1226
  %vm1228 = vweird.f32 %v1035
  %vm1229 = vweird.f32 %v1223
  %vm1230 = vmor %vm1228, %vm1229
  %v1231 = vsel %vm1230, %v1223, %v1227
  %v1232 = vand.u32 2147483647, %v1035
  %vm1233 = vcmp.eq.f32.partialorder %v1232, 8.507059e+37
  %v1234 = vand.u32 %v1035, 2147483648
  %v1235 = vor.u32 1.1754944e-38, %v1234
  %v1236 = vsel %vm1233, %v1235, %v1231
  %v1237 = vmul.f32 1.0, %v1236
  %v1238 = vrcp.pop %v1036
  %v1239 = vmul.f32 %v1036, %v1238
  %v1240 = vsub.f32 1.0, %v1239
  %v1241 = vmul.f32 %v1238, %v1240
  %v1242 = vadd.f32 %v1238, %v1241
  %vm1243 = vweird.f32 %v1036
  %vm1244 = vweird.f32 %v1238
  %vm1245 = vmor %vm1243, %vm1244
  %v1246 = vsel %vm1245, %v1238, %v1242
  %v1247 = vand.u32 2147483647, %v1036
  %vm1248 = vcmp.eq.f32.partialorder %v1247, 8.507059e+37
  %v1249 = vand.u32 %v1036, 2147483648
  %v1250 = vor.u32 1.1754944e-38, %v1249
  %v1251 = vsel %vm1248, %v1250, %v1246
  %v1252 = vmul.f32 1.0, %v1251
  %v1253 = vrcp.pop %v1037
  %v1254 = vmul.f32 %v1037, %v1253
  %v1255 = vsub.f32 1.0, %v1254
  %v1256 = vmul.f32 %v1253, %v1255
  %v1257 = vadd.f32 %v1253, %v1256
  %vm1258 = vweird.f32 %v1037
  %vm1259 = vweird.f32 %v1253
  %vm1260 = vmor %vm1258, %vm1259
  %v1261 = vsel %vm1260, %v1253, %v1257
  %v1262 = vand.u32 2147483647, %v1037
  %vm1263 = vcmp.eq.f32.partialorder %v1262, 8.507059e+37
  %v1264 = vand.u32 %v1037, 2147483648
  %v1265 = vor.u32 1.1754944e-38, %v1264
  %v1266 = vsel %vm1263, %v1265, %v1261
  %v1267 = vmul.f32 1.0, %v1266
  %v1268 = vrcp.pop %v1038
  %v1269 = vmul.f32 %v1038, %v1268
  %v1270 = vsub.f32 1.0, %v1269
  %v1271 = vmul.f32 %v1268, %v1270
  %v1272 = vadd.f32 %v1268, %v1271
  %vm1273 = vweird.f32 %v1038
  %vm1274 = vweird.f32 %v1268
  %vm1275 = vmor %vm1273, %vm1274
  %v1276 = vsel %vm1275, %v1268, %v1272
  %v1277 = vand.u32 2147483647, %v1038
  %vm1278 = vcmp.eq.f32.partialorder %v1277, 8.507059e+37
  %v1279 = vand.u32 %v1038, 2147483648
  %v1280 = vor.u32 1.1754944e-38, %v1279
  %v1281 = vsel %vm1278, %v1280, %v1276
  %v1282 = vmul.f32 1.0, %v1281
  %v1283 = vrcp.pop %v1039
  %v1284 = vmul.f32 %v1039, %v1283
  %v1285 = vsub.f32 1.0, %v1284
  %v1286 = vmul.f32 %v1283, %v1285
  %v1287 = vadd.f32 %v1283, %v1286
  %vm1288 = vweird.f32 %v1039
  %vm1289 = vweird.f32 %v1283
  %vm1290 = vmor %vm1288, %vm1289
  %v1291 = vsel %vm1290, %v1283, %v1287
  %v1292 = vand.u32 2147483647, %v1039
  %vm1293 = vcmp.eq.f32.partialorder %v1292, 8.507059e+37
  %v1294 = vand.u32 %v1039, 2147483648
  %v1295 = vor.u32 1.1754944e-38, %v1294
  %v1296 = vsel %vm1293, %v1295, %v1291
  %v1297 = vmul.f32 1.0, %v1296
  %v1298 = vrcp.pop %v1040
  %v1299 = vmul.f32 %v1040, %v1298
  %v1300 = vsub.f32 1.0, %v1299
  %v1301 = vmul.f32 %v1298, %v1300
  %v1302 = vadd.f32 %v1298, %v1301
  %vm1303 = vweird.f32 %v1040
  %vm1304 = vweird.f32 %v1298
  %vm1305 = vmor %vm1303, %vm1304
  %v1306 = vsel %vm1305, %v1298, %v1302
  %v1307 = vand.u32 2147483647, %v1040
  %vm1308 = vcmp.eq.f32.partialorder %v1307, 8.507059e+37
  %v1309 = vand.u32 %v1040, 2147483648
  %v1310 = vor.u32 1.1754944e-38, %v1309
  %v1311 = vsel %vm1308, %v1310, %v1306
  %v1312 = vmul.f32 1.0, %v1311
  %v1313 = vrcp.pop %v1041
  %v1314 = vmul.f32 %v1041, %v1313
  %v1315 = vsub.f32 1.0, %v1314
  %v1316 = vmul.f32 %v1313, %v1315
  %v1317 = vadd.f32 %v1313, %v1316
  %vm1318 = vweird.f32 %v1041
  %vm1319 = vweird.f32 %v1313
  %vm1320 = vmor %vm1318, %vm1319
  %v1321 = vsel %vm1320, %v1313, %v1317
  %v1322 = vand.u32 2147483647, %v1041
  %vm1323 = vcmp.eq.f32.partialorder %v1322, 8.507059e+37
  %v1324 = vand.u32 %v1041, 2147483648
  %v1325 = vor.u32 1.1754944e-38, %v1324
  %v1326 = vsel %vm1323, %v1325, %v1321
  %v1327 = vmul.f32 1.0, %v1326
  %v1328 = vrcp.pop %v1042
  %v1329 = vmul.f32 %v1042, %v1328
  %v1330 = vsub.f32 1.0, %v1329
  %v1331 = vmul.f32 %v1328, %v1330
  %v1332 = vadd.f32 %v1328, %v1331
  %vm1333 = vweird.f32 %v1042
  %vm1334 = vweird.f32 %v1328
  %vm1335 = vmor %vm1333, %vm1334
  %v1336 = vsel %vm1335, %v1328, %v1332
  %v1337 = vand.u32 2147483647, %v1042
  %vm1338 = vcmp.eq.f32.partialorder %v1337, 8.507059e+37
  %v1339 = vand.u32 %v1042, 2147483648
  %v1340 = vor.u32 1.1754944e-38, %v1339
  %v1341 = vsel %vm1338, %v1340, %v1336
  %v1342 = vmul.f32 1.0, %v1341
  %v1343 = vrcp.pop %v1043
  %v1344 = vmul.f32 %v1043, %v1343
  %v1345 = vsub.f32 1.0, %v1344
  %v1346 = vmul.f32 %v1343, %v1345
  %v1347 = vadd.f32 %v1343, %v1346
  %vm1348 = vweird.f32 %v1043
  %vm1349 = vweird.f32 %v1343
  %vm1350 = vmor %vm1348, %vm1349
  %v1351 = vsel %vm1350, %v1343, %v1347
  %v1352 = vand.u32 2147483647, %v1043
  %vm1353 = vcmp.eq.f32.partialorder %v1352, 8.507059e+37
  %v1354 = vand.u32 %v1043, 2147483648
  %v1355 = vor.u32 1.1754944e-38, %v1354
  %v1356 = vsel %vm1353, %v1355, %v1351
  %v1357 = vmul.f32 1.0, %v1356
  %v1358 = vrcp.pop %v1044
  %v1359 = vmul.f32 %v1044, %v1358
  %v1360 = vsub.f32 1.0, %v1359
  %v1361 = vmul.f32 %v1358, %v1360
  %v1362 = vadd.f32 %v1358, %v1361
  %vm1363 = vweird.f32 %v1044
  %vm1364 = vweird.f32 %v1358
  %vm1365 = vmor %vm1363, %vm1364
  %v1366 = vsel %vm1365, %v1358, %v1362
  %v1367 = vand.u32 2147483647, %v1044
  %vm1368 = vcmp.eq.f32.partialorder %v1367, 8.507059e+37
  %v1369 = vand.u32 %v1044, 2147483648
  %v1370 = vor.u32 1.1754944e-38, %v1369
  %v1371 = vsel %vm1368, %v1370, %v1366
  %v1372 = vmul.f32 1.0, %v1371
  %v1373 = vrcp.pop %v1045
  %v1374 = vmul.f32 %v1045, %v1373
  %v1375 = vsub.f32 1.0, %v1374
  %v1376 = vmul.f32 %v1373, %v1375
  %v1377 = vadd.f32 %v1373, %v1376
  %vm1378 = vweird.f32 %v1045
  %vm1379 = vweird.f32 %v1373
  %vm1380 = vmor %vm1378, %vm1379
  %v1381 = vsel %vm1380, %v1373, %v1377
  %v1382 = vand.u32 2147483647, %v1045
  %vm1383 = vcmp.eq.f32.partialorder %v1382, 8.507059e+37
  %v1384 = vand.u32 %v1045, 2147483648
  %v1385 = vor.u32 1.1754944e-38, %v1384
  %v1386 = vsel %vm1383, %v1385, %v1381
  %v1387 = vmul.f32 1.0, %v1386
  %v1388 = vrcp.pop %v1046
  %v1389 = vmul.f32 %v1046, %v1388
  %v1390 = vsub.f32 1.0, %v1389
  %v1391 = vmul.f32 %v1388, %v1390
  %v1392 = vadd.f32 %v1388, %v1391
  %vm1393 = vweird.f32 %v1046
  %vm1394 = vweird.f32 %v1388
  %vm1395 = vmor %vm1393, %vm1394
  %v1396 = vsel %vm1395, %v1388, %v1392
  %v1397 = vand.u32 2147483647, %v1046
  %vm1398 = vcmp.eq.f32.partialorder %v1397, 8.507059e+37
  %v1399 = vand.u32 %v1046, 2147483648
  %v1400 = vor.u32 1.1754944e-38, %v1399
  %v1401 = vsel %vm1398, %v1400, %v1396
  %v1402 = vmul.f32 1.0, %v1401
  %v1403 = vrcp.pop %v1047
  %v1404 = vmul.f32 %v1047, %v1403
  %v1405 = vsub.f32 1.0, %v1404
  %v1406 = vmul.f32 %v1403, %v1405
  %v1407 = vadd.f32 %v1403, %v1406
  %vm1408 = vweird.f32 %v1047
  %vm1409 = vweird.f32 %v1403
  %vm1410 = vmor %vm1408, %vm1409
  %v1411 = vsel %vm1410, %v1403, %v1407
  %v1412 = vand.u32 2147483647, %v1047
  %vm1413 = vcmp.eq.f32.partialorder %v1412, 8.507059e+37
  %v1414 = vand.u32 %v1047, 2147483648
  %v1415 = vor.u32 1.1754944e-38, %v1414
  %v1416 = vsel %vm1413, %v1415, %v1411
  %v1417 = vmul.f32 1.0, %v1416
  %v1418 = vrcp.pop %v1048
  %v1419 = vmul.f32 %v1048, %v1418
  %v1420 = vsub.f32 1.0, %v1419
  %v1421 = vmul.f32 %v1418, %v1420
  %v1422 = vadd.f32 %v1418, %v1421
  %vm1423 = vweird.f32 %v1048
  %vm1424 = vweird.f32 %v1418
  %vm1425 = vmor %vm1423, %vm1424
  %v1426 = vsel %vm1425, %v1418, %v1422
  %v1427 = vand.u32 2147483647, %v1048
  %vm1428 = vcmp.eq.f32.partialorder %v1427, 8.507059e+37
  %v1429 = vand.u32 %v1048, 2147483648
  %v1430 = vor.u32 1.1754944e-38, %v1429
  %v1431 = vsel %vm1428, %v1430, %v1426
  %v1432 = vmul.f32 1.0, %v1431
  %v1433 = vrcp.pop %v1049
  %v1434 = vmul.f32 %v1049, %v1433
  %v1435 = vsub.f32 1.0, %v1434
  %v1436 = vmul.f32 %v1433, %v1435
  %v1437 = vadd.f32 %v1433, %v1436
  %vm1438 = vweird.f32 %v1049
  %vm1439 = vweird.f32 %v1433
  %vm1440 = vmor %vm1438, %vm1439
  %v1441 = vsel %vm1440, %v1433, %v1437
  %v1442 = vand.u32 2147483647, %v1049
  %vm1443 = vcmp.eq.f32.partialorder %v1442, 8.507059e+37
  %v1444 = vand.u32 %v1049, 2147483648
  %v1445 = vor.u32 1.1754944e-38, %v1444
  %v1446 = vsel %vm1443, %v1445, %v1441
  %v1447 = vmul.f32 1.0, %v1446
  %v1448 = vrcp.pop %v1050
  %v1449 = vmul.f32 %v1050, %v1448
  %v1450 = vsub.f32 1.0, %v1449
  %v1451 = vmul.f32 %v1448, %v1450
  %v1452 = vadd.f32 %v1448, %v1451
  %vm1453 = vweird.f32 %v1050
  %vm1454 = vweird.f32 %v1448
  %vm1455 = vmor %vm1453, %vm1454
  %v1456 = vsel %vm1455, %v1448, %v1452
  %v1457 = vand.u32 2147483647, %v1050
  %vm1458 = vcmp.eq.f32.partialorder %v1457, 8.507059e+37
  %v1459 = vand.u32 %v1050, 2147483648
  %v1460 = vor.u32 1.1754944e-38, %v1459
  %v1461 = vsel %vm1458, %v1460, %v1456
  %v1462 = vmul.f32 1.0, %v1461
  %v1463 = vrcp.pop %v1051
  %v1464 = vmul.f32 %v1051, %v1463
  %v1465 = vsub.f32 1.0, %v1464
  %v1466 = vmul.f32 %v1463, %v1465
  %v1467 = vadd.f32 %v1463, %v1466
  %vm1468 = vweird.f32 %v1051
  %vm1469 = vweird.f32 %v1463
  %vm1470 = vmor %vm1468, %vm1469
  %v1471 = vsel %vm1470, %v1463, %v1467
  %v1472 = vand.u32 2147483647, %v1051
  %vm1473 = vcmp.eq.f32.partialorder %v1472, 8.507059e+37
  %v1474 = vand.u32 %v1051, 2147483648
  %v1475 = vor.u32 1.1754944e-38, %v1474
  %v1476 = vsel %vm1473, %v1475, %v1471
  %v1477 = vmul.f32 1.0, %v1476
  %v1478 = vrcp.pop %v1052
  %v1479 = vmul.f32 %v1052, %v1478
  %v1480 = vsub.f32 1.0, %v1479
  %v1481 = vmul.f32 %v1478, %v1480
  %v1482 = vadd.f32 %v1478, %v1481
  %vm1483 = vweird.f32 %v1052
  %vm1484 = vweird.f32 %v1478
  %vm1485 = vmor %vm1483, %vm1484
  %v1486 = vsel %vm1485, %v1478, %v1482
  %v1487 = vand.u32 2147483647, %v1052
  %vm1488 = vcmp.eq.f32.partialorder %v1487, 8.507059e+37
  %v1489 = vand.u32 %v1052, 2147483648
  %v1490 = vor.u32 1.1754944e-38, %v1489
  %v1491 = vsel %vm1488, %v1490, %v1486
  %v1492 = vmul.f32 1.0, %v1491
  %v1493 = vrcp.pop %v1053
  %v1494 = vmul.f32 %v1053, %v1493
  %v1495 = vsub.f32 1.0, %v1494
  %v1496 = vmul.f32 %v1493, %v1495
  %v1497 = vadd.f32 %v1493, %v1496
  %vm1498 = vweird.f32 %v1053
  %vm1499 = vweird.f32 %v1493
  %vm1500 = vmor %vm1498, %vm1499
  %v1501 = vsel %vm1500, %v1493, %v1497
  %v1502 = vand.u32 2147483647, %v1053
  %vm1503 = vcmp.eq.f32.partialorder %v1502, 8.507059e+37
  %v1504 = vand.u32 %v1053, 2147483648
  %v1505 = vor.u32 1.1754944e-38, %v1504
  %v1506 = vsel %vm1503, %v1505, %v1501
  %v1507 = vmul.f32 1.0, %v1506
  %v1508 = vrcp.pop %v1054
  %v1509 = vmul.f32 %v1054, %v1508
  %v1510 = vsub.f32 1.0, %v1509
  %v1511 = vmul.f32 %v1508, %v1510
  %v1512 = vadd.f32 %v1508, %v1511
  %vm1513 = vweird.f32 %v1054
  %vm1514 = vweird.f32 %v1508
  %vm1515 = vmor %vm1513, %vm1514
  %v1516 = vsel %vm1515, %v1508, %v1512
  %v1517 = vand.u32 2147483647, %v1054
  %vm1518 = vcmp.eq.f32.partialorder %v1517, 8.507059e+37
  %v1519 = vand.u32 %v1054, 2147483648
  %v1520 = vor.u32 1.1754944e-38, %v1519
  %v1521 = vsel %vm1518, %v1520, %v1516
  %v1522 = vmul.f32 1.0, %v1521
  %v1523 = vrcp.pop %v1055
  %v1524 = vmul.f32 %v1055, %v1523
  %v1525 = vsub.f32 1.0, %v1524
  %v1526 = vmul.f32 %v1523, %v1525
  %v1527 = vadd.f32 %v1523, %v1526
  %vm1528 = vweird.f32 %v1055
  %vm1529 = vweird.f32 %v1523
  %vm1530 = vmor %vm1528, %vm1529
  %v1531 = vsel %vm1530, %v1523, %v1527
  %v1532 = vand.u32 2147483647, %v1055
  %vm1533 = vcmp.eq.f32.partialorder %v1532, 8.507059e+37
  %v1534 = vand.u32 %v1055, 2147483648
  %v1535 = vor.u32 1.1754944e-38, %v1534
  %v1536 = vsel %vm1533, %v1535, %v1531
  %v1537 = vmul.f32 1.0, %v1536
  %v1538 = vrcp.pop %v1056
  %v1539 = vmul.f32 %v1056, %v1538
  %v1540 = vsub.f32 1.0, %v1539
  %v1541 = vmul.f32 %v1538, %v1540
  %v1542 = vadd.f32 %v1538, %v1541
  %vm1543 = vweird.f32 %v1056
  %vm1544 = vweird.f32 %v1538
  %vm1545 = vmor %vm1543, %vm1544
  %v1546 = vsel %vm1545, %v1538, %v1542
  %v1547 = vand.u32 2147483647, %v1056
  %vm1548 = vcmp.eq.f32.partialorder %v1547, 8.507059e+37
  %v1549 = vand.u32 %v1056, 2147483648
  %v1550 = vor.u32 1.1754944e-38, %v1549
  %v1551 = vsel %vm1548, %v1550, %v1546
  %v1552 = vmul.f32 1.0, %v1551
  %v1553 = vrcp.pop %v1057
  %v1554 = vmul.f32 %v1057, %v1553
  %v1555 = vsub.f32 1.0, %v1554
  %v1556 = vmul.f32 %v1553, %v1555
  %v1557 = vadd.f32 %v1553, %v1556
  %vm1558 = vweird.f32 %v1057
  %vm1559 = vweird.f32 %v1553
  %vm1560 = vmor %vm1558, %vm1559
  %v1561 = vsel %vm1560, %v1553, %v1557
  %v1562 = vand.u32 2147483647, %v1057
  %vm1563 = vcmp.eq.f32.partialorder %v1562, 8.507059e+37
  %v1564 = vand.u32 %v1057, 2147483648
  %v1565 = vor.u32 1.1754944e-38, %v1564
  %v1566 = vsel %vm1563, %v1565, %v1561
  %v1567 = vmul.f32 1.0, %v1566
  %v1568 = vrcp.pop %v1058
  %v1569 = vmul.f32 %v1058, %v1568
  %v1570 = vsub.f32 1.0, %v1569
  %v1571 = vmul.f32 %v1568, %v1570
  %v1572 = vadd.f32 %v1568, %v1571
  %vm1573 = vweird.f32 %v1058
  %vm1574 = vweird.f32 %v1568
  %vm1575 = vmor %vm1573, %vm1574
  %v1576 = vsel %vm1575, %v1568, %v1572
  %v1577 = vand.u32 2147483647, %v1058
  %vm1578 = vcmp.eq.f32.partialorder %v1577, 8.507059e+37
  %v1579 = vand.u32 %v1058, 2147483648
  %v1580 = vor.u32 1.1754944e-38, %v1579
  %v1581 = vsel %vm1578, %v1580, %v1576
  %v1582 = vmul.f32 1.0, %v1581
  %v1583 = vrcp.pop %v1059
  %v1584 = vmul.f32 %v1059, %v1583
  %v1585 = vsub.f32 1.0, %v1584
  %v1586 = vmul.f32 %v1583, %v1585
  %v1587 = vadd.f32 %v1583, %v1586
  %vm1588 = vweird.f32 %v1059
  %vm1589 = vweird.f32 %v1583
  %vm1590 = vmor %vm1588, %vm1589
  %v1591 = vsel %vm1590, %v1583, %v1587
  %v1592 = vand.u32 2147483647, %v1059
  %vm1593 = vcmp.eq.f32.partialorder %v1592, 8.507059e+37
  %v1594 = vand.u32 %v1059, 2147483648
  %v1595 = vor.u32 1.1754944e-38, %v1594
  %v1596 = vsel %vm1593, %v1595, %v1591
  %v1597 = vmul.f32 1.0, %v1596
  %v1598 = vrcp.pop %v1060
  %v1599 = vmul.f32 %v1060, %v1598
  %v1600 = vsub.f32 1.0, %v1599
  %v1601 = vmul.f32 %v1598, %v1600
  %v1602 = vadd.f32 %v1598, %v1601
  %vm1603 = vweird.f32 %v1060
  %vm1604 = vweird.f32 %v1598
  %vm1605 = vmor %vm1603, %vm1604
  %v1606 = vsel %vm1605, %v1598, %v1602
  %v1607 = vand.u32 2147483647, %v1060
  %vm1608 = vcmp.eq.f32.partialorder %v1607, 8.507059e+37
  %v1609 = vand.u32 %v1060, 2147483648
  %v1610 = vor.u32 1.1754944e-38, %v1609
  %v1611 = vsel %vm1608, %v1610, %v1606
  %v1612 = vmul.f32 1.0, %v1611
  %v1613 = vrcp.pop %v1061
  %v1614 = vmul.f32 %v1061, %v1613
  %v1615 = vsub.f32 1.0, %v1614
  %v1616 = vmul.f32 %v1613, %v1615
  %v1617 = vadd.f32 %v1613, %v1616
  %vm1618 = vweird.f32 %v1061
  %vm1619 = vweird.f32 %v1613
  %vm1620 = vmor %vm1618, %vm1619
  %v1621 = vsel %vm1620, %v1613, %v1617
  %v1622 = vand.u32 2147483647, %v1061
  %vm1623 = vcmp.eq.f32.partialorder %v1622, 8.507059e+37
  %v1624 = vand.u32 %v1061, 2147483648
  %v1625 = vor.u32 1.1754944e-38, %v1624
  %v1626 = vsel %vm1623, %v1625, %v1621
  %v1627 = vmul.f32 1.0, %v1626
  %v1628 = vrcp.pop %v1062
  %v1629 = vmul.f32 %v1062, %v1628
  %v1630 = vsub.f32 1.0, %v1629
  %v1631 = vmul.f32 %v1628, %v1630
  %v1632 = vadd.f32 %v1628, %v1631
  %vm1633 = vweird.f32 %v1062
  %vm1634 = vweird.f32 %v1628
  %vm1635 = vmor %vm1633, %vm1634
  %v1636 = vsel %vm1635, %v1628, %v1632
  %v1637 = vand.u32 2147483647, %v1062
  %vm1638 = vcmp.eq.f32.partialorder %v1637, 8.507059e+37
  %v1639 = vand.u32 %v1062, 2147483648
  %v1640 = vor.u32 1.1754944e-38, %v1639
  %v1641 = vsel %vm1638, %v1640, %v1636
  %v1642 = vmul.f32 1.0, %v1641
  %v1643 = vrcp.pop %v1063
  %v1644 = vmul.f32 %v1063, %v1643
  %v1645 = vsub.f32 1.0, %v1644
  %v1646 = vmul.f32 %v1643, %v1645
  %v1647 = vadd.f32 %v1643, %v1646
  %vm1648 = vweird.f32 %v1063
  %vm1649 = vweird.f32 %v1643
  %vm1650 = vmor %vm1648, %vm1649
  %v1651 = vsel %vm1650, %v1643, %v1647
  %v1652 = vand.u32 2147483647, %v1063
  %vm1653 = vcmp.eq.f32.partialorder %v1652, 8.507059e+37
  %v1654 = vand.u32 %v1063, 2147483648
  %v1655 = vor.u32 1.1754944e-38, %v1654
  %v1656 = vsel %vm1653, %v1655, %v1651
  %v1657 = vmul.f32 1.0, %v1656
  %v1658 = vrcp.pop %v1064
  %v1659 = vmul.f32 %v1064, %v1658
  %v1660 = vsub.f32 1.0, %v1659
  %v1661 = vmul.f32 %v1658, %v1660
  %v1662 = vadd.f32 %v1658, %v1661
  %vm1663 = vweird.f32 %v1064
  %vm1664 = vweird.f32 %v1658
  %vm1665 = vmor %vm1663, %vm1664
  %v1666 = vsel %vm1665, %v1658, %v1662
  %v1667 = vand.u32 2147483647, %v1064
  %vm1668 = vcmp.eq.f32.partialorder %v1667, 8.507059e+37
  %v1669 = vand.u32 %v1064, 2147483648
  %v1670 = vor.u32 1.1754944e-38, %v1669
  %v1671 = vsel %vm1668, %v1670, %v1666
  %v1672 = vmul.f32 1.0, %v1671
  %v1673 = vrcp.pop %v1065
  %v1674 = vmul.f32 %v1065, %v1673
  %v1675 = vsub.f32 1.0, %v1674
  %v1676 = vmul.f32 %v1673, %v1675
  %v1677 = vadd.f32 %v1673, %v1676
  %vm1678 = vweird.f32 %v1065
  %vm1679 = vweird.f32 %v1673
  %vm1680 = vmor %vm1678, %vm1679
  %v1681 = vsel %vm1680, %v1673, %v1677
  %v1682 = vand.u32 2147483647, %v1065
  %vm1683 = vcmp.eq.f32.partialorder %v1682, 8.507059e+37
  %v1684 = vand.u32 %v1065, 2147483648
  %v1685 = vor.u32 1.1754944e-38, %v1684
  %v1686 = vsel %vm1683, %v1685, %v1681
  %v1687 = vmul.f32 1.0, %v1686
  %v1688 = vrcp.pop %v1066
  %v1689 = vmul.f32 %v1066, %v1688
  %v1690 = vsub.f32 1.0, %v1689
  %v1691 = vmul.f32 %v1688, %v1690
  %v1692 = vadd.f32 %v1688, %v1691
  %vm1693 = vweird.f32 %v1066
  %vm1694 = vweird.f32 %v1688
  %vm1695 = vmor %vm1693, %vm1694
  %v1696 = vsel %vm1695, %v1688, %v1692
  %v1697 = vand.u32 2147483647, %v1066
  %vm1698 = vcmp.eq.f32.partialorder %v1697, 8.507059e+37
  %v1699 = vand.u32 %v1066, 2147483648
  %v1700 = vor.u32 1.1754944e-38, %v1699
  %v1701 = vsel %vm1698, %v1700, %v1696
  %v1702 = vmul.f32 1.0, %v1701
  %v1703 = vrcp.pop %v1067
  %v1704 = vmul.f32 %v1067, %v1703
  %v1705 = vsub.f32 1.0, %v1704
  %v1706 = vmul.f32 %v1703, %v1705
  %v1707 = vadd.f32 %v1703, %v1706
  %vm1708 = vweird.f32 %v1067
  %vm1709 = vweird.f32 %v1703
  %vm1710 = vmor %vm1708, %vm1709
  %v1711 = vsel %vm1710, %v1703, %v1707
  %v1712 = vand.u32 2147483647, %v1067
  %vm1713 = vcmp.eq.f32.partialorder %v1712, 8.507059e+37
  %v1714 = vand.u32 %v1067, 2147483648
  %v1715 = vor.u32 1.1754944e-38, %v1714
  %v1716 = vsel %vm1713, %v1715, %v1711
  %v1717 = vmul.f32 1.0, %v1716
  %v1718 = vrcp.pop %v1068
  %v1719 = vmul.f32 %v1068, %v1718
  %v1720 = vsub.f32 1.0, %v1719
  %v1721 = vmul.f32 %v1718, %v1720
  %v1722 = vadd.f32 %v1718, %v1721
  %vm1723 = vweird.f32 %v1068
  %vm1724 = vweird.f32 %v1718
  %vm1725 = vmor %vm1723, %vm1724
  %v1726 = vsel %vm1725, %v1718, %v1722
  %v1727 = vand.u32 2147483647, %v1068
  %vm1728 = vcmp.eq.f32.partialorder %v1727, 8.507059e+37
  %v1729 = vand.u32 %v1068, 2147483648
  %v1730 = vor.u32 1.1754944e-38, %v1729
  %v1731 = vsel %vm1728, %v1730, %v1726
  %v1732 = vmul.f32 1.0, %v1731
  %v1733 = vrcp.pop %v1069
  %v1734 = vmul.f32 %v1069, %v1733
  %v1735 = vsub.f32 1.0, %v1734
  %v1736 = vmul.f32 %v1733, %v1735
  %v1737 = vadd.f32 %v1733, %v1736
  %vm1738 = vweird.f32 %v1069
  %vm1739 = vweird.f32 %v1733
  %vm1740 = vmor %vm1738, %vm1739
  %v1741 = vsel %vm1740, %v1733, %v1737
  %v1742 = vand.u32 2147483647, %v1069
  %vm1743 = vcmp.eq.f32.partialorder %v1742, 8.507059e+37
  %v1744 = vand.u32 %v1069, 2147483648
  %v1745 = vor.u32 1.1754944e-38, %v1744
  %v1746 = vsel %vm1743, %v1745, %v1741
  %v1747 = vmul.f32 1.0, %v1746
  %v1748 = vrcp.pop %v1070
  %v1749 = vmul.f32 %v1070, %v1748
  %v1750 = vsub.f32 1.0, %v1749
  %v1751 = vmul.f32 %v1748, %v1750
  %v1752 = vadd.f32 %v1748, %v1751
  %vm1753 = vweird.f32 %v1070
  %vm1754 = vweird.f32 %v1748
  %vm1755 = vmor %vm1753, %vm1754
  %v1756 = vsel %vm1755, %v1748, %v1752
  %v1757 = vand.u32 2147483647, %v1070
  %vm1758 = vcmp.eq.f32.partialorder %v1757, 8.507059e+37
  %v1759 = vand.u32 %v1070, 2147483648
  %v1760 = vor.u32 1.1754944e-38, %v1759
  %v1761 = vsel %vm1758, %v1760, %v1756
  %v1762 = vmul.f32 1.0, %v1761
  %v1763 = vrcp.pop %v1071
  %v1764 = vmul.f32 %v1071, %v1763
  %v1765 = vsub.f32 1.0, %v1764
  %v1766 = vmul.f32 %v1763, %v1765
  %v1767 = vadd.f32 %v1763, %v1766
  %vm1768 = vweird.f32 %v1071
  %vm1769 = vweird.f32 %v1763
  %vm1770 = vmor %vm1768, %vm1769
  %v1771 = vsel %vm1770, %v1763, %v1767
  %v1772 = vand.u32 2147483647, %v1071
  %vm1773 = vcmp.eq.f32.partialorder %v1772, 8.507059e+37
  %v1774 = vand.u32 %v1071, 2147483648
  %v1775 = vor.u32 1.1754944e-38, %v1774
  %v1776 = vsel %vm1773, %v1775, %v1771
  %v1777 = vmul.f32 1.0, %v1776
  %v1778 = vrcp.pop %v1072
  %v1779 = vmul.f32 %v1072, %v1778
  %v1780 = vsub.f32 1.0, %v1779
  %v1781 = vmul.f32 %v1778, %v1780
  %v1782 = vadd.f32 %v1778, %v1781
  %vm1783 = vweird.f32 %v1072
  %vm1784 = vweird.f32 %v1778
  %vm1785 = vmor %vm1783, %vm1784
  %v1786 = vsel %vm1785, %v1778, %v1782
  %v1787 = vand.u32 2147483647, %v1072
  %vm1788 = vcmp.eq.f32.partialorder %v1787, 8.507059e+37
  %v1789 = vand.u32 %v1072, 2147483648
  %v1790 = vor.u32 1.1754944e-38, %v1789
  %v1791 = vsel %vm1788, %v1790, %v1786
  %v1792 = vmul.f32 1.0, %v1791
  %v1793 = vld [vmem:[%s9] sm:$0xff]
  %v1794 = vld [vmem:[%s9 + $0x8] sm:$0xff]
  %v1795 = vld [vmem:[%s9 + $0x10] sm:$0xff]
  %v1796 = vld [vmem:[%s9 + $0x18] sm:$0xff]
  %v1797 = vld [vmem:[%s9 + $0x20] sm:$0xff]
  %v1798 = vld [vmem:[%s9 + $0x28] sm:$0xff]
  %v1799 = vld [vmem:[%s9 + $0x30] sm:$0xff]
  %v1800 = vld [vmem:[%s9 + $0x38] sm:$0xff]
  %v1801 = vld [vmem:[%s9 + $0x40] sm:$0xff]
  %v1802 = vld [vmem:[%s9 + $0x48] sm:$0xff]
  %v1803 = vld [vmem:[%s9 + $0x50] sm:$0xff]
  %v1804 = vld [vmem:[%s9 + $0x58] sm:$0xff]
  %v1805 = vld [vmem:[%s9 + $0x60] sm:$0xff]
  %v1806 = vld [vmem:[%s9 + $0x68] sm:$0xff]
  %v1807 = vld [vmem:[%s9 + $0x70] sm:$0xff]
  %v1808 = vld [vmem:[%s9 + $0x78] sm:$0xff]
  %v1809 = vld [vmem:[%s9 + $0x80] sm:$0xff]
  %v1810 = vld [vmem:[%s9 + $0x88] sm:$0xff]
  %v1811 = vld [vmem:[%s9 + $0x90] sm:$0xff]
  %v1812 = vld [vmem:[%s9 + $0x98] sm:$0xff]
  %v1813 = vld [vmem:[%s9 + $0xa0] sm:$0xff]
  %v1814 = vld [vmem:[%s9 + $0xa8] sm:$0xff]
  %v1815 = vld [vmem:[%s9 + $0xb0] sm:$0xff]
  %v1816 = vld [vmem:[%s9 + $0xb8] sm:$0xff]
  %v1817 = vld [vmem:[%s9 + $0xc0] sm:$0xff]
  %v1818 = vld [vmem:[%s9 + $0xc8] sm:$0xff]
  %v1819 = vld [vmem:[%s9 + $0xd0] sm:$0xff]
  %v1820 = vld [vmem:[%s9 + $0xd8] sm:$0xff]
  %v1821 = vld [vmem:[%s9 + $0xe0] sm:$0xff]
  %v1822 = vld [vmem:[%s9 + $0xe8] sm:$0xff]
  %v1823 = vld [vmem:[%s9 + $0xf0] sm:$0xff]
  %v1824 = vld [vmem:[%s9 + $0xf8] sm:$0xff]
  %v1825 = vld [vmem:[%s9 + $0x100] sm:$0xff]
  %v1826 = vld [vmem:[%s9 + $0x108] sm:$0xff]
  %v1827 = vld [vmem:[%s9 + $0x110] sm:$0xff]
  %v1828 = vld [vmem:[%s9 + $0x118] sm:$0xff]
  %v1829 = vld [vmem:[%s9 + $0x120] sm:$0xff]
  %v1830 = vld [vmem:[%s9 + $0x128] sm:$0xff]
  %v1831 = vld [vmem:[%s9 + $0x130] sm:$0xff]
  %v1832 = vld [vmem:[%s9 + $0x138] sm:$0xff]
  %v1833 = vld [vmem:[%s9 + $0x140] sm:$0xff]
  %v1834 = vld [vmem:[%s9 + $0x148] sm:$0xff]
  %v1835 = vld [vmem:[%s9 + $0x150] sm:$0xff]
  %v1836 = vld [vmem:[%s9 + $0x158] sm:$0xff]
  %v1837 = vld [vmem:[%s9 + $0x160] sm:$0xff]
  %v1838 = vld [vmem:[%s9 + $0x168] sm:$0xff]
  %v1839 = vld [vmem:[%s9 + $0x170] sm:$0xff]
  %v1840 = vld [vmem:[%s9 + $0x178] sm:$0xff]
  %v1841 = vpack.c.bf16 %v1102, %v1087
  %v1842 = vpack.c.bf16 %v1132, %v1117
  %v1843 = vpack.c.bf16 %v1162, %v1147
  %v1844 = vpack.c.bf16 %v1192, %v1177
  %v1845 = vpack.c.bf16 %v1222, %v1207
  %v1846 = vpack.c.bf16 %v1252, %v1237
  %v1847 = vpack.c.bf16 %v1282, %v1267
  %v1848 = vpack.c.bf16 %v1312, %v1297
  %v1849 = vpack.c.bf16 %v1342, %v1327
  %v1850 = vpack.c.bf16 %v1372, %v1357
  %v1851 = vpack.c.bf16 %v1402, %v1387
  %v1852 = vpack.c.bf16 %v1432, %v1417
  %v1853 = vpack.c.bf16 %v1462, %v1447
  %v1854 = vpack.c.bf16 %v1492, %v1477
  %v1855 = vpack.c.bf16 %v1522, %v1507
  %v1856 = vpack.c.bf16 %v1552, %v1537
  %v1857 = vpack.c.bf16 %v1582, %v1567
  %v1858 = vpack.c.bf16 %v1612, %v1597
  %v1859 = vpack.c.bf16 %v1642, %v1627
  %v1860 = vpack.c.bf16 %v1672, %v1657
  %v1861 = vpack.c.bf16 %v1702, %v1687
  %v1862 = vpack.c.bf16 %v1732, %v1717
  %v1863 = vpack.c.bf16 %v1762, %v1747
  %v1864 = vpack.c.bf16 %v1792, %v1777
  %v1881 = vunpack.c.l.b16 %v222
  %v1882 = vunpack.c.l.b16 %v223
  %v1883 = vunpack.c.l.b16 %v224
  %v1884 = vunpack.c.l.b16 %v225
  %v1885 = vunpack.c.l.b16 %v226
  %v1886 = vunpack.c.l.b16 %v227
  %v1887 = vunpack.c.l.b16 %v228
  %v1888 = vunpack.c.l.b16 %v229
  %v1889 = vunpack.c.l.b16 %v230
  %v1890 = vunpack.c.l.b16 %v231
  %v1891 = vunpack.c.l.b16 %v232
  %v1892 = vunpack.c.l.b16 %v233
  %v1893 = vunpack.c.l.b16 %v234
  %v1894 = vunpack.c.l.b16 %v235
  %v1895 = vunpack.c.l.b16 %v236
  %v1896 = vunpack.c.l.b16 %v237
  %v1897 = vpack.c.b16 %v1882, %v1881
  %v1898 = vpack.c.b16 %v1884, %v1883
  %v1899 = vpack.c.b16 %v1886, %v1885
  %v1900 = vpack.c.b16 %v1888, %v1887
  %v1901 = vpack.c.b16 %v1890, %v1889
  %v1902 = vpack.c.b16 %v1892, %v1891
  %v1903 = vpack.c.b16 %v1894, %v1893
  %v1904 = vpack.c.b16 %v1896, %v1895
  %1913 = vmatpush.bf16.msra.mxu0 %v1904
  %1914 = vmatpush.bf16.msra.mxu0 %v1903
  %1915 = vmatpush.bf16.msra.mxu0 %v1902
  %1916 = vmatpush.bf16.msra.mxu0 %v1901
  %1917 = vmatpush.bf16.msra.mxu0 %v1900
  %1918 = vmatpush.bf16.msra.mxu0 %v1899
  %1919 = vmatpush.bf16.msra.mxu0 %v1898
  %1920 = vmatpush.bf16.msra.mxu0 %v1897
  %1921 = vmatmul.bf16.gmra.mxu0 %v1841
  %v1922 = vpop.f32.mrf.mxu0
  %v1923 = vadd.f32 0.0, %v1922
  %v1924 = vpop.f32.mrf.mxu0
  %v1925 = vadd.f32 0.0, %v1924
  %1926 = vmatmul.bf16.gmra.mxu0 %v1842
  %v1927 = vpop.f32.mrf.mxu0
  %v1928 = vadd.f32 0.0, %v1927
  %v1929 = vpop.f32.mrf.mxu0
  %v1930 = vadd.f32 0.0, %v1929
  %1931 = vmatmul.bf16.gmra.mxu0 %v1843
  %v1932 = vpop.f32.mrf.mxu0
  %v1933 = vadd.f32 0.0, %v1932
  %v1934 = vpop.f32.mrf.mxu0
  %v1935 = vadd.f32 0.0, %v1934
  %1936 = vmatmul.bf16.gmra.mxu0 %v1844
  %v1937 = vpop.f32.mrf.mxu0
  %v1938 = vadd.f32 0.0, %v1937
  %v1939 = vpop.f32.mrf.mxu0
  %v1940 = vadd.f32 0.0, %v1939
  %1941 = vmatmul.bf16.gmra.mxu0 %v1845
  %v1942 = vpop.f32.mrf.mxu0
  %v1943 = vadd.f32 0.0, %v1942
  %v1944 = vpop.f32.mrf.mxu0
  %v1945 = vadd.f32 0.0, %v1944
  %1946 = vmatmul.bf16.gmra.mxu0 %v1846
  %v1947 = vpop.f32.mrf.mxu0
  %v1948 = vadd.f32 0.0, %v1947
  %v1949 = vpop.f32.mrf.mxu0
  %v1950 = vadd.f32 0.0, %v1949
  %1951 = vmatmul.bf16.gmra.mxu0 %v1847
  %v1952 = vpop.f32.mrf.mxu0
  %v1953 = vadd.f32 0.0, %v1952
  %v1954 = vpop.f32.mrf.mxu0
  %v1955 = vadd.f32 0.0, %v1954
  %1956 = vmatmul.bf16.gmra.mxu0 %v1848
  %v1957 = vpop.f32.mrf.mxu0
  %v1958 = vadd.f32 0.0, %v1957
  %v1959 = vpop.f32.mrf.mxu0
  %v1960 = vadd.f32 0.0, %v1959
  %1961 = vmatmul.bf16.gmra.mxu0 %v1849
  %v1962 = vpop.f32.mrf.mxu0
  %v1963 = vadd.f32 0.0, %v1962
  %v1964 = vpop.f32.mrf.mxu0
  %v1965 = vadd.f32 0.0, %v1964
  %1966 = vmatmul.bf16.gmra.mxu0 %v1850
  %v1967 = vpop.f32.mrf.mxu0
  %v1968 = vadd.f32 0.0, %v1967
  %v1969 = vpop.f32.mrf.mxu0
  %v1970 = vadd.f32 0.0, %v1969
  %1971 = vmatmul.bf16.gmra.mxu0 %v1851
  %v1972 = vpop.f32.mrf.mxu0
  %v1973 = vadd.f32 0.0, %v1972
  %v1974 = vpop.f32.mrf.mxu0
  %v1975 = vadd.f32 0.0, %v1974
  %1976 = vmatmul.bf16.gmra.mxu0 %v1852
  %v1977 = vpop.f32.mrf.mxu0
  %v1978 = vadd.f32 0.0, %v1977
  %v1979 = vpop.f32.mrf.mxu0
  %v1980 = vadd.f32 0.0, %v1979
  %1981 = vmatmul.bf16.gmra.mxu0 %v1853
  %v1982 = vpop.f32.mrf.mxu0
  %v1983 = vadd.f32 0.0, %v1982
  %v1984 = vpop.f32.mrf.mxu0
  %v1985 = vadd.f32 0.0, %v1984
  %1986 = vmatmul.bf16.gmra.mxu0 %v1854
  %v1987 = vpop.f32.mrf.mxu0
  %v1988 = vadd.f32 0.0, %v1987
  %v1989 = vpop.f32.mrf.mxu0
  %v1990 = vadd.f32 0.0, %v1989
  %1991 = vmatmul.bf16.gmra.mxu0 %v1855
  %v1992 = vpop.f32.mrf.mxu0
  %v1993 = vadd.f32 0.0, %v1992
  %v1994 = vpop.f32.mrf.mxu0
  %v1995 = vadd.f32 0.0, %v1994
  %1996 = vmatmul.bf16.gmra.mxu0 %v1856
  %v1997 = vpop.f32.mrf.mxu0
  %v1998 = vadd.f32 0.0, %v1997
  %v1999 = vpop.f32.mrf.mxu0
  %v2000 = vadd.f32 0.0, %v1999
  %2001 = vmatmul.bf16.gmra.mxu0 %v1857
  %v2002 = vpop.f32.mrf.mxu0
  %v2003 = vadd.f32 0.0, %v2002
  %v2004 = vpop.f32.mrf.mxu0
  %v2005 = vadd.f32 0.0, %v2004
  %2006 = vmatmul.bf16.gmra.mxu0 %v1858
  %v2007 = vpop.f32.mrf.mxu0
  %v2008 = vadd.f32 0.0, %v2007
  %v2009 = vpop.f32.mrf.mxu0
  %v2010 = vadd.f32 0.0, %v2009
  %2011 = vmatmul.bf16.gmra.mxu0 %v1859
  %v2012 = vpop.f32.mrf.mxu0
  %v2013 = vadd.f32 0.0, %v2012
  %v2014 = vpop.f32.mrf.mxu0
  %v2015 = vadd.f32 0.0, %v2014
  %2016 = vmatmul.bf16.gmra.mxu0 %v1860
  %v2017 = vpop.f32.mrf.mxu0
  %v2018 = vadd.f32 0.0, %v2017
  %v2019 = vpop.f32.mrf.mxu0
  %v2020 = vadd.f32 0.0, %v2019
  %2021 = vmatmul.bf16.gmra.mxu0 %v1861
  %v2022 = vpop.f32.mrf.mxu0
  %v2023 = vadd.f32 0.0, %v2022
  %v2024 = vpop.f32.mrf.mxu0
  %v2025 = vadd.f32 0.0, %v2024
  %2026 = vmatmul.bf16.gmra.mxu0 %v1862
  %v2027 = vpop.f32.mrf.mxu0
  %v2028 = vadd.f32 0.0, %v2027
  %v2029 = vpop.f32.mrf.mxu0
  %v2030 = vadd.f32 0.0, %v2029
  %2031 = vmatmul.bf16.gmra.mxu0 %v1863
  %v2032 = vpop.f32.mrf.mxu0
  %v2033 = vadd.f32 0.0, %v2032
  %v2034 = vpop.f32.mrf.mxu0
  %v2035 = vadd.f32 0.0, %v2034
  %2036 = vmatmul.bf16.gmra.mxu0 %v1864
  %v2037 = vpop.f32.mrf.mxu0
  %v2038 = vadd.f32 0.0, %v2037
  %v2039 = vpop.f32.mrf.mxu0
  %v2040 = vadd.f32 0.0, %v2039
  %2041 = vdwg.mxu0
  %v2042 = vadd.f32 %v1793, %v1923
  %v2043 = vadd.f32 %v1794, %v1925
  %v2044 = vadd.f32 %v1795, %v1928
  %v2045 = vadd.f32 %v1796, %v1930
  %v2046 = vadd.f32 %v1797, %v1933
  %v2047 = vadd.f32 %v1798, %v1935
  %v2048 = vadd.f32 %v1799, %v1938
  %v2049 = vadd.f32 %v1800, %v1940
  %v2050 = vadd.f32 %v1801, %v1943
  %v2051 = vadd.f32 %v1802, %v1945
  %v2052 = vadd.f32 %v1803, %v1948
  %v2053 = vadd.f32 %v1804, %v1950
  %v2054 = vadd.f32 %v1805, %v1953
  %v2055 = vadd.f32 %v1806, %v1955
  %v2056 = vadd.f32 %v1807, %v1958
  %v2057 = vadd.f32 %v1808, %v1960
  %v2058 = vadd.f32 %v1809, %v1963
  %v2059 = vadd.f32 %v1810, %v1965
  %v2060 = vadd.f32 %v1811, %v1968
  %v2061 = vadd.f32 %v1812, %v1970
  %v2062 = vadd.f32 %v1813, %v1973
  %v2063 = vadd.f32 %v1814, %v1975
  %v2064 = vadd.f32 %v1815, %v1978
  %v2065 = vadd.f32 %v1816, %v1980
  %v2066 = vadd.f32 %v1817, %v1983
  %v2067 = vadd.f32 %v1818, %v1985
  %v2068 = vadd.f32 %v1819, %v1988
  %v2069 = vadd.f32 %v1820, %v1990
  %v2070 = vadd.f32 %v1821, %v1993
  %v2071 = vadd.f32 %v1822, %v1995
  %v2072 = vadd.f32 %v1823, %v1998
  %v2073 = vadd.f32 %v1824, %v2000
  %v2074 = vadd.f32 %v1825, %v2003
  %v2075 = vadd.f32 %v1826, %v2005
  %v2076 = vadd.f32 %v1827, %v2008
  %v2077 = vadd.f32 %v1828, %v2010
  %v2078 = vadd.f32 %v1829, %v2013
  %v2079 = vadd.f32 %v1830, %v2015
  %v2080 = vadd.f32 %v1831, %v2018
  %v2081 = vadd.f32 %v1832, %v2020
  %v2082 = vadd.f32 %v1833, %v2023
  %v2083 = vadd.f32 %v1834, %v2025
  %v2084 = vadd.f32 %v1835, %v2028
  %v2085 = vadd.f32 %v1836, %v2030
  %v2086 = vadd.f32 %v1837, %v2033
  %v2087 = vadd.f32 %v1838, %v2035
  %v2088 = vadd.f32 %v1839, %v2038
  %v2089 = vadd.f32 %v1840, %v2040
  %2090 = vst [vmem:[%s9] sm:$0xff] %v2042
  %2091 = vst [vmem:[%s9 + $0x8] sm:$0xff] %v2043
  %2092 = vst [vmem:[%s9 + $0x10] sm:$0xff] %v2044
  %2093 = vst [vmem:[%s9 + $0x18] sm:$0xff] %v2045
  %2094 = vst [vmem:[%s9 + $0x20] sm:$0xff] %v2046
  %2095 = vst [vmem:[%s9 + $0x28] sm:$0xff] %v2047
  %2096 = vst [vmem:[%s9 + $0x30] sm:$0xff] %v2048
  %2097 = vst [vmem:[%s9 + $0x38] sm:$0xff] %v2049
  %2098 = vst [vmem:[%s9 + $0x40] sm:$0xff] %v2050
  %2099 = vst [vmem:[%s9 + $0x48] sm:$0xff] %v2051
  %2100 = vst [vmem:[%s9 + $0x50] sm:$0xff] %v2052
  %2101 = vst [vmem:[%s9 + $0x58] sm:$0xff] %v2053
  %2102 = vst [vmem:[%s9 + $0x60] sm:$0xff] %v2054
  %2103 = vst [vmem:[%s9 + $0x68] sm:$0xff] %v2055
  %2104 = vst [vmem:[%s9 + $0x70] sm:$0xff] %v2056
  %2105 = vst [vmem:[%s9 + $0x78] sm:$0xff] %v2057
  %2106 = vst [vmem:[%s9 + $0x80] sm:$0xff] %v2058
  %2107 = vst [vmem:[%s9 + $0x88] sm:$0xff] %v2059
  %2108 = vst [vmem:[%s9 + $0x90] sm:$0xff] %v2060
  %2109 = vst [vmem:[%s9 + $0x98] sm:$0xff] %v2061
  %2110 = vst [vmem:[%s9 + $0xa0] sm:$0xff] %v2062
  %2111 = vst [vmem:[%s9 + $0xa8] sm:$0xff] %v2063
  %2112 = vst [vmem:[%s9 + $0xb0] sm:$0xff] %v2064
  %2113 = vst [vmem:[%s9 + $0xb8] sm:$0xff] %v2065
  %2114 = vst [vmem:[%s9 + $0xc0] sm:$0xff] %v2066
  %2115 = vst [vmem:[%s9 + $0xc8] sm:$0xff] %v2067
  %2116 = vst [vmem:[%s9 + $0xd0] sm:$0xff] %v2068
  %2117 = vst [vmem:[%s9 + $0xd8] sm:$0xff] %v2069
  %2118 = vst [vmem:[%s9 + $0xe0] sm:$0xff] %v2070
  %2119 = vst [vmem:[%s9 + $0xe8] sm:$0xff] %v2071
  %2120 = vst [vmem:[%s9 + $0xf0] sm:$0xff] %v2072
  %2121 = vst [vmem:[%s9 + $0xf8] sm:$0xff] %v2073
  %2122 = vst [vmem:[%s9 + $0x100] sm:$0xff] %v2074
  %2123 = vst [vmem:[%s9 + $0x108] sm:$0xff] %v2075
  %2124 = vst [vmem:[%s9 + $0x110] sm:$0xff] %v2076
  %2125 = vst [vmem:[%s9 + $0x118] sm:$0xff] %v2077
  %2126 = vst [vmem:[%s9 + $0x120] sm:$0xff] %v2078
  %2127 = vst [vmem:[%s9 + $0x128] sm:$0xff] %v2079
  %2128 = vst [vmem:[%s9 + $0x130] sm:$0xff] %v2080
  %2129 = vst [vmem:[%s9 + $0x138] sm:$0xff] %v2081
  %2130 = vst [vmem:[%s9 + $0x140] sm:$0xff] %v2082
  %2131 = vst [vmem:[%s9 + $0x148] sm:$0xff] %v2083
  %2132 = vst [vmem:[%s9 + $0x150] sm:$0xff] %v2084
  %2133 = vst [vmem:[%s9 + $0x158] sm:$0xff] %v2085
  %2134 = vst [vmem:[%s9 + $0x160] sm:$0xff] %v2086
  %2135 = vst [vmem:[%s9 + $0x168] sm:$0xff] %v2087
  %2136 = vst [vmem:[%s9 + $0x170] sm:$0xff] %v2088
  %2137 = vst [vmem:[%s9 + $0x178] sm:$0xff] %v2089
  %v2138 = vadd.f32 %v762, %v802
  %v2139 = vadd.f32 %v764, %v804
  %v2140 = vadd.f32 %v767, %v807
  %v2141 = vadd.f32 %v769, %v809
  %v2142 = vadd.f32 %v772, %v812
  %v2143 = vadd.f32 %v774, %v814
  %v2144 = vadd.f32 %v777, %v817
  %v2145 = vadd.f32 %v779, %v819
  %v2146 = vadd.f32 %v782, %v822
  %v2147 = vadd.f32 %v784, %v824
  %v2148 = vadd.f32 %v787, %v827
  %v2149 = vadd.f32 %v789, %v829
  %v2150 = vadd.f32 %v792, %v832
  %v2151 = vadd.f32 %v794, %v834
  %v2152 = vadd.f32 %v797, %v837
  %v2153 = vadd.f32 %v799, %v839
  %v2154 = vadd.f32 %v2138, %v842
  %v2155 = vadd.f32 %v2139, %v844
  %v2156 = vadd.f32 %v2140, %v847
  %v2157 = vadd.f32 %v2141, %v849
  %v2158 = vadd.f32 %v2142, %v852
  %v2159 = vadd.f32 %v2143, %v854
  %v2160 = vadd.f32 %v2144, %v857
  %v2161 = vadd.f32 %v2145, %v859
  %v2162 = vadd.f32 %v2146, %v862
  %v2163 = vadd.f32 %v2147, %v864
  %v2164 = vadd.f32 %v2148, %v867
  %v2165 = vadd.f32 %v2149, %v869
  %v2166 = vadd.f32 %v2150, %v872
  %v2167 = vadd.f32 %v2151, %v874
  %v2168 = vadd.f32 %v2152, %v877
  %v2169 = vadd.f32 %v2153, %v879
  %v2170 = vmul.f32 %v2154, 0.33333334
  %v2171 = vmul.f32 %v2155, 0.33333334
  %v2172 = vmul.f32 %v2156, 0.33333334
  %v2173 = vmul.f32 %v2157, 0.33333334
  %v2174 = vmul.f32 %v2158, 0.33333334
  %v2175 = vmul.f32 %v2159, 0.33333334
  %v2176 = vmul.f32 %v2160, 0.33333334
  %v2177 = vmul.f32 %v2161, 0.33333334
  %v2178 = vmul.f32 %v2162, 0.33333334
  %v2179 = vmul.f32 %v2163, 0.33333334
  %v2180 = vmul.f32 %v2164, 0.33333334
  %v2181 = vmul.f32 %v2165, 0.33333334
  %v2182 = vmul.f32 %v2166, 0.33333334
  %v2183 = vmul.f32 %v2167, 0.33333334
  %v2184 = vmul.f32 %v2168, 0.33333334
  %v2185 = vmul.f32 %v2169, 0.33333334
  %v2186 = vxor.u32 %v2170, 2147483648
  %v2187 = vxor.u32 %v2171, 2147483648
  %v2188 = vxor.u32 %v2172, 2147483648
  %v2189 = vxor.u32 %v2173, 2147483648
  %v2190 = vxor.u32 %v2174, 2147483648
  %v2191 = vxor.u32 %v2175, 2147483648
  %v2192 = vxor.u32 %v2176, 2147483648
  %v2193 = vxor.u32 %v2177, 2147483648
  %v2194 = vxor.u32 %v2178, 2147483648
  %v2195 = vxor.u32 %v2179, 2147483648
  %v2196 = vxor.u32 %v2180, 2147483648
  %v2197 = vxor.u32 %v2181, 2147483648
  %v2198 = vxor.u32 %v2182, 2147483648
  %v2199 = vxor.u32 %v2183, 2147483648
  %v2200 = vxor.u32 %v2184, 2147483648
  %v2201 = vxor.u32 %v2185, 2147483648
  %v2202 = vmul.f32 %v2186, 1.442695
  %v2203 = vpow.pop %v2202
  %v2204 = vmul.f32 %v2187, 1.442695
  %v2205 = vpow.pop %v2204
  %v2206 = vmul.f32 %v2188, 1.442695
  %v2207 = vpow.pop %v2206
  %v2208 = vmul.f32 %v2189, 1.442695
  %v2209 = vpow.pop %v2208
  %v2210 = vmul.f32 %v2190, 1.442695
  %v2211 = vpow.pop %v2210
  %v2212 = vmul.f32 %v2191, 1.442695
  %v2213 = vpow.pop %v2212
  %v2214 = vmul.f32 %v2192, 1.442695
  %v2215 = vpow.pop %v2214
  %v2216 = vmul.f32 %v2193, 1.442695
  %v2217 = vpow.pop %v2216
  %v2218 = vmul.f32 %v2194, 1.442695
  %v2219 = vpow.pop %v2218
  %v2220 = vmul.f32 %v2195, 1.442695
  %v2221 = vpow.pop %v2220
  %v2222 = vmul.f32 %v2196, 1.442695
  %v2223 = vpow.pop %v2222
  %v2224 = vmul.f32 %v2197, 1.442695
  %v2225 = vpow.pop %v2224
  %v2226 = vmul.f32 %v2198, 1.442695
  %v2227 = vpow.pop %v2226
  %v2228 = vmul.f32 %v2199, 1.442695
  %v2229 = vpow.pop %v2228
  %v2230 = vmul.f32 %v2200, 1.442695
  %v2231 = vpow.pop %v2230
  %v2232 = vmul.f32 %v2201, 1.442695
  %v2233 = vpow.pop %v2232
  %v2234 = vadd.f32 %v2203, 1.0
  %v2235 = vadd.f32 %v2205, 1.0
  %v2236 = vadd.f32 %v2207, 1.0
  %v2237 = vadd.f32 %v2209, 1.0
  %v2238 = vadd.f32 %v2211, 1.0
  %v2239 = vadd.f32 %v2213, 1.0
  %v2240 = vadd.f32 %v2215, 1.0
  %v2241 = vadd.f32 %v2217, 1.0
  %v2242 = vadd.f32 %v2219, 1.0
  %v2243 = vadd.f32 %v2221, 1.0
  %v2244 = vadd.f32 %v2223, 1.0
  %v2245 = vadd.f32 %v2225, 1.0
  %v2246 = vadd.f32 %v2227, 1.0
  %v2247 = vadd.f32 %v2229, 1.0
  %v2248 = vadd.f32 %v2231, 1.0
  %v2249 = vadd.f32 %v2233, 1.0
  %v2250 = vrcp.pop %v2234
  %v2251 = vmul.f32 %v2234, %v2250
  %v2252 = vsub.f32 1.0, %v2251
  %v2253 = vmul.f32 %v2250, %v2252
  %v2254 = vadd.f32 %v2250, %v2253
  %vm2255 = vweird.f32 %v2234
  %vm2256 = vweird.f32 %v2250
  %vm2257 = vmor %vm2255, %vm2256
  %v2258 = vsel %vm2257, %v2250, %v2254
  %v2259 = vand.u32 2147483647, %v2234
  %vm2260 = vcmp.eq.f32.partialorder %v2259, 8.507059e+37
  %v2261 = vand.u32 %v2234, 2147483648
  %v2262 = vor.u32 1.1754944e-38, %v2261
  %v2263 = vsel %vm2260, %v2262, %v2258
  %v2264 = vmul.f32 1.0, %v2263
  %v2265 = vrcp.pop %v2235
  %v2266 = vmul.f32 %v2235, %v2265
  %v2267 = vsub.f32 1.0, %v2266
  %v2268 = vmul.f32 %v2265, %v2267
  %v2269 = vadd.f32 %v2265, %v2268
  %vm2270 = vweird.f32 %v2235
  %vm2271 = vweird.f32 %v2265
  %vm2272 = vmor %vm2270, %vm2271
  %v2273 = vsel %vm2272, %v2265, %v2269
  %v2274 = vand.u32 2147483647, %v2235
  %vm2275 = vcmp.eq.f32.partialorder %v2274, 8.507059e+37
  %v2276 = vand.u32 %v2235, 2147483648
  %v2277 = vor.u32 1.1754944e-38, %v2276
  %v2278 = vsel %vm2275, %v2277, %v2273
  %v2279 = vmul.f32 1.0, %v2278
  %v2280 = vrcp.pop %v2236
  %v2281 = vmul.f32 %v2236, %v2280
  %v2282 = vsub.f32 1.0, %v2281
  %v2283 = vmul.f32 %v2280, %v2282
  %v2284 = vadd.f32 %v2280, %v2283
  %vm2285 = vweird.f32 %v2236
  %vm2286 = vweird.f32 %v2280
  %vm2287 = vmor %vm2285, %vm2286
  %v2288 = vsel %vm2287, %v2280, %v2284
  %v2289 = vand.u32 2147483647, %v2236
  %vm2290 = vcmp.eq.f32.partialorder %v2289, 8.507059e+37
  %v2291 = vand.u32 %v2236, 2147483648
  %v2292 = vor.u32 1.1754944e-38, %v2291
  %v2293 = vsel %vm2290, %v2292, %v2288
  %v2294 = vmul.f32 1.0, %v2293
  %v2295 = vrcp.pop %v2237
  %v2296 = vmul.f32 %v2237, %v2295
  %v2297 = vsub.f32 1.0, %v2296
  %v2298 = vmul.f32 %v2295, %v2297
  %v2299 = vadd.f32 %v2295, %v2298
  %vm2300 = vweird.f32 %v2237
  %vm2301 = vweird.f32 %v2295
  %vm2302 = vmor %vm2300, %vm2301
  %v2303 = vsel %vm2302, %v2295, %v2299
  %v2304 = vand.u32 2147483647, %v2237
  %vm2305 = vcmp.eq.f32.partialorder %v2304, 8.507059e+37
  %v2306 = vand.u32 %v2237, 2147483648
  %v2307 = vor.u32 1.1754944e-38, %v2306
  %v2308 = vsel %vm2305, %v2307, %v2303
  %v2309 = vmul.f32 1.0, %v2308
  %v2310 = vrcp.pop %v2238
  %v2311 = vmul.f32 %v2238, %v2310
  %v2312 = vsub.f32 1.0, %v2311
  %v2313 = vmul.f32 %v2310, %v2312
  %v2314 = vadd.f32 %v2310, %v2313
  %vm2315 = vweird.f32 %v2238
  %vm2316 = vweird.f32 %v2310
  %vm2317 = vmor %vm2315, %vm2316
  %v2318 = vsel %vm2317, %v2310, %v2314
  %v2319 = vand.u32 2147483647, %v2238
  %vm2320 = vcmp.eq.f32.partialorder %v2319, 8.507059e+37
  %v2321 = vand.u32 %v2238, 2147483648
  %v2322 = vor.u32 1.1754944e-38, %v2321
  %v2323 = vsel %vm2320, %v2322, %v2318
  %v2324 = vmul.f32 1.0, %v2323
  %v2325 = vrcp.pop %v2239
  %v2326 = vmul.f32 %v2239, %v2325
  %v2327 = vsub.f32 1.0, %v2326
  %v2328 = vmul.f32 %v2325, %v2327
  %v2329 = vadd.f32 %v2325, %v2328
  %vm2330 = vweird.f32 %v2239
  %vm2331 = vweird.f32 %v2325
  %vm2332 = vmor %vm2330, %vm2331
  %v2333 = vsel %vm2332, %v2325, %v2329
  %v2334 = vand.u32 2147483647, %v2239
  %vm2335 = vcmp.eq.f32.partialorder %v2334, 8.507059e+37
  %v2336 = vand.u32 %v2239, 2147483648
  %v2337 = vor.u32 1.1754944e-38, %v2336
  %v2338 = vsel %vm2335, %v2337, %v2333
  %v2339 = vmul.f32 1.0, %v2338
  %v2340 = vrcp.pop %v2240
  %v2341 = vmul.f32 %v2240, %v2340
  %v2342 = vsub.f32 1.0, %v2341
  %v2343 = vmul.f32 %v2340, %v2342
  %v2344 = vadd.f32 %v2340, %v2343
  %vm2345 = vweird.f32 %v2240
  %vm2346 = vweird.f32 %v2340
  %vm2347 = vmor %vm2345, %vm2346
  %v2348 = vsel %vm2347, %v2340, %v2344
  %v2349 = vand.u32 2147483647, %v2240
  %vm2350 = vcmp.eq.f32.partialorder %v2349, 8.507059e+37
  %v2351 = vand.u32 %v2240, 2147483648
  %v2352 = vor.u32 1.1754944e-38, %v2351
  %v2353 = vsel %vm2350, %v2352, %v2348
  %v2354 = vmul.f32 1.0, %v2353
  %v2355 = vrcp.pop %v2241
  %v2356 = vmul.f32 %v2241, %v2355
  %v2357 = vsub.f32 1.0, %v2356
  %v2358 = vmul.f32 %v2355, %v2357
  %v2359 = vadd.f32 %v2355, %v2358
  %vm2360 = vweird.f32 %v2241
  %vm2361 = vweird.f32 %v2355
  %vm2362 = vmor %vm2360, %vm2361
  %v2363 = vsel %vm2362, %v2355, %v2359
  %v2364 = vand.u32 2147483647, %v2241
  %vm2365 = vcmp.eq.f32.partialorder %v2364, 8.507059e+37
  %v2366 = vand.u32 %v2241, 2147483648
  %v2367 = vor.u32 1.1754944e-38, %v2366
  %v2368 = vsel %vm2365, %v2367, %v2363
  %v2369 = vmul.f32 1.0, %v2368
  %v2370 = vrcp.pop %v2242
  %v2371 = vmul.f32 %v2242, %v2370
  %v2372 = vsub.f32 1.0, %v2371
  %v2373 = vmul.f32 %v2370, %v2372
  %v2374 = vadd.f32 %v2370, %v2373
  %vm2375 = vweird.f32 %v2242
  %vm2376 = vweird.f32 %v2370
  %vm2377 = vmor %vm2375, %vm2376
  %v2378 = vsel %vm2377, %v2370, %v2374
  %v2379 = vand.u32 2147483647, %v2242
  %vm2380 = vcmp.eq.f32.partialorder %v2379, 8.507059e+37
  %v2381 = vand.u32 %v2242, 2147483648
  %v2382 = vor.u32 1.1754944e-38, %v2381
  %v2383 = vsel %vm2380, %v2382, %v2378
  %v2384 = vmul.f32 1.0, %v2383
  %v2385 = vrcp.pop %v2243
  %v2386 = vmul.f32 %v2243, %v2385
  %v2387 = vsub.f32 1.0, %v2386
  %v2388 = vmul.f32 %v2385, %v2387
  %v2389 = vadd.f32 %v2385, %v2388
  %vm2390 = vweird.f32 %v2243
  %vm2391 = vweird.f32 %v2385
  %vm2392 = vmor %vm2390, %vm2391
  %v2393 = vsel %vm2392, %v2385, %v2389
  %v2394 = vand.u32 2147483647, %v2243
  %vm2395 = vcmp.eq.f32.partialorder %v2394, 8.507059e+37
  %v2396 = vand.u32 %v2243, 2147483648
  %v2397 = vor.u32 1.1754944e-38, %v2396
  %v2398 = vsel %vm2395, %v2397, %v2393
  %v2399 = vmul.f32 1.0, %v2398
  %v2400 = vrcp.pop %v2244
  %v2401 = vmul.f32 %v2244, %v2400
  %v2402 = vsub.f32 1.0, %v2401
  %v2403 = vmul.f32 %v2400, %v2402
  %v2404 = vadd.f32 %v2400, %v2403
  %vm2405 = vweird.f32 %v2244
  %vm2406 = vweird.f32 %v2400
  %vm2407 = vmor %vm2405, %vm2406
  %v2408 = vsel %vm2407, %v2400, %v2404
  %v2409 = vand.u32 2147483647, %v2244
  %vm2410 = vcmp.eq.f32.partialorder %v2409, 8.507059e+37
  %v2411 = vand.u32 %v2244, 2147483648
  %v2412 = vor.u32 1.1754944e-38, %v2411
  %v2413 = vsel %vm2410, %v2412, %v2408
  %v2414 = vmul.f32 1.0, %v2413
  %v2415 = vrcp.pop %v2245
  %v2416 = vmul.f32 %v2245, %v2415
  %v2417 = vsub.f32 1.0, %v2416
  %v2418 = vmul.f32 %v2415, %v2417
  %v2419 = vadd.f32 %v2415, %v2418
  %vm2420 = vweird.f32 %v2245
  %vm2421 = vweird.f32 %v2415
  %vm2422 = vmor %vm2420, %vm2421
  %v2423 = vsel %vm2422, %v2415, %v2419
  %v2424 = vand.u32 2147483647, %v2245
  %vm2425 = vcmp.eq.f32.partialorder %v2424, 8.507059e+37
  %v2426 = vand.u32 %v2245, 2147483648
  %v2427 = vor.u32 1.1754944e-38, %v2426
  %v2428 = vsel %vm2425, %v2427, %v2423
  %v2429 = vmul.f32 1.0, %v2428
  %v2430 = vrcp.pop %v2246
  %v2431 = vmul.f32 %v2246, %v2430
  %v2432 = vsub.f32 1.0, %v2431
  %v2433 = vmul.f32 %v2430, %v2432
  %v2434 = vadd.f32 %v2430, %v2433
  %vm2435 = vweird.f32 %v2246
  %vm2436 = vweird.f32 %v2430
  %vm2437 = vmor %vm2435, %vm2436
  %v2438 = vsel %vm2437, %v2430, %v2434
  %v2439 = vand.u32 2147483647, %v2246
  %vm2440 = vcmp.eq.f32.partialorder %v2439, 8.507059e+37
  %v2441 = vand.u32 %v2246, 2147483648
  %v2442 = vor.u32 1.1754944e-38, %v2441
  %v2443 = vsel %vm2440, %v2442, %v2438
  %v2444 = vmul.f32 1.0, %v2443
  %v2445 = vrcp.pop %v2247
  %v2446 = vmul.f32 %v2247, %v2445
  %v2447 = vsub.f32 1.0, %v2446
  %v2448 = vmul.f32 %v2445, %v2447
  %v2449 = vadd.f32 %v2445, %v2448
  %vm2450 = vweird.f32 %v2247
  %vm2451 = vweird.f32 %v2445
  %vm2452 = vmor %vm2450, %vm2451
  %v2453 = vsel %vm2452, %v2445, %v2449
  %v2454 = vand.u32 2147483647, %v2247
  %vm2455 = vcmp.eq.f32.partialorder %v2454, 8.507059e+37
  %v2456 = vand.u32 %v2247, 2147483648
  %v2457 = vor.u32 1.1754944e-38, %v2456
  %v2458 = vsel %vm2455, %v2457, %v2453
  %v2459 = vmul.f32 1.0, %v2458
  %v2460 = vrcp.pop %v2248
  %v2461 = vmul.f32 %v2248, %v2460
  %v2462 = vsub.f32 1.0, %v2461
  %v2463 = vmul.f32 %v2460, %v2462
  %v2464 = vadd.f32 %v2460, %v2463
  %vm2465 = vweird.f32 %v2248
  %vm2466 = vweird.f32 %v2460
  %vm2467 = vmor %vm2465, %vm2466
  %v2468 = vsel %vm2467, %v2460, %v2464
  %v2469 = vand.u32 2147483647, %v2248
  %vm2470 = vcmp.eq.f32.partialorder %v2469, 8.507059e+37
  %v2471 = vand.u32 %v2248, 2147483648
  %v2472 = vor.u32 1.1754944e-38, %v2471
  %v2473 = vsel %vm2470, %v2472, %v2468
  %v2474 = vmul.f32 1.0, %v2473
  %v2475 = vrcp.pop %v2249
  %v2476 = vmul.f32 %v2249, %v2475
  %v2477 = vsub.f32 1.0, %v2476
  %v2478 = vmul.f32 %v2475, %v2477
  %v2479 = vadd.f32 %v2475, %v2478
  %vm2480 = vweird.f32 %v2249
  %vm2481 = vweird.f32 %v2475
  %vm2482 = vmor %vm2480, %vm2481
  %v2483 = vsel %vm2482, %v2475, %v2479
  %v2484 = vand.u32 2147483647, %v2249
  %vm2485 = vcmp.eq.f32.partialorder %v2484, 8.507059e+37
  %v2486 = vand.u32 %v2249, 2147483648
  %v2487 = vor.u32 1.1754944e-38, %v2486
  %v2488 = vsel %vm2485, %v2487, %v2483
  %v2489 = vmul.f32 1.0, %v2488
  %v2490 = vpack.c.bf16 %v2279, %v2264
  %v2491 = vpack.c.bf16 %v2309, %v2294
  %v2492 = vpack.c.bf16 %v2339, %v2324
  %v2493 = vpack.c.bf16 %v2369, %v2354
  %v2494 = vpack.c.bf16 %v2399, %v2384
  %v2495 = vpack.c.bf16 %v2429, %v2414
  %v2496 = vpack.c.bf16 %v2459, %v2444
  %v2497 = vpack.c.bf16 %v2489, %v2474
  %v2498 = vld [vmem:[%s7] sm:$0xff]
  %v2499 = vld [vmem:[%s7 + $0x8] sm:$0xff]
  %v2500 = vld [vmem:[%s7 + $0x10] sm:$0xff]
  %v2501 = vld [vmem:[%s7 + $0x18] sm:$0xff]
  %v2502 = vld [vmem:[%s7 + $0x20] sm:$0xff]
  %v2503 = vld [vmem:[%s7 + $0x28] sm:$0xff]
  %v2504 = vld [vmem:[%s7 + $0x30] sm:$0xff]
  %v2505 = vld [vmem:[%s7 + $0x38] sm:$0xff]
  %v2506 = vld [vmem:[%s7 + $0x40] sm:$0xff]
  %v2507 = vld [vmem:[%s7 + $0x48] sm:$0xff]
  %v2508 = vld [vmem:[%s7 + $0x50] sm:$0xff]
  %v2509 = vld [vmem:[%s7 + $0x58] sm:$0xff]
  %v2510 = vld [vmem:[%s7 + $0x60] sm:$0xff]
  %v2511 = vld [vmem:[%s7 + $0x68] sm:$0xff]
  %v2512 = vld [vmem:[%s7 + $0x70] sm:$0xff]
  %v2513 = vld [vmem:[%s7 + $0x78] sm:$0xff]
  %2514 = vmatpush.bf16.msra.mxu0 %v1904
  %2515 = vmatpush.bf16.msra.mxu0 %v1903
  %2516 = vmatpush.bf16.msra.mxu0 %v1902
  %2517 = vmatpush.bf16.msra.mxu0 %v1901
  %2518 = vmatpush.bf16.msra.mxu0 %v1900
  %2519 = vmatpush.bf16.msra.mxu0 %v1899
  %2520 = vmatpush.bf16.msra.mxu0 %v1898
  %2521 = vmatpush.bf16.msra.mxu0 %v1897
  %2522 = vmatmul.bf16.gmra.mxu0 %v2490
  %v2523 = vpop.f32.mrf.mxu0
  %v2524 = vadd.f32 0.0, %v2523
  %v2525 = vpop.f32.mrf.mxu0
  %v2526 = vadd.f32 0.0, %v2525
  %2527 = vmatmul.bf16.gmra.mxu0 %v2491
  %v2528 = vpop.f32.mrf.mxu0
  %v2529 = vadd.f32 0.0, %v2528
  %v2530 = vpop.f32.mrf.mxu0
  %v2531 = vadd.f32 0.0, %v2530
  %2532 = vmatmul.bf16.gmra.mxu0 %v2492
  %v2533 = vpop.f32.mrf.mxu0
  %v2534 = vadd.f32 0.0, %v2533
  %v2535 = vpop.f32.mrf.mxu0
  %v2536 = vadd.f32 0.0, %v2535
  %2537 = vmatmul.bf16.gmra.mxu0 %v2493
  %v2538 = vpop.f32.mrf.mxu0
  %v2539 = vadd.f32 0.0, %v2538
  %v2540 = vpop.f32.mrf.mxu0
  %v2541 = vadd.f32 0.0, %v2540
  %2542 = vmatmul.bf16.gmra.mxu0 %v2494
  %v2543 = vpop.f32.mrf.mxu0
  %v2544 = vadd.f32 0.0, %v2543
  %v2545 = vpop.f32.mrf.mxu0
  %v2546 = vadd.f32 0.0, %v2545
  %2547 = vmatmul.bf16.gmra.mxu0 %v2495
  %v2548 = vpop.f32.mrf.mxu0
  %v2549 = vadd.f32 0.0, %v2548
  %v2550 = vpop.f32.mrf.mxu0
  %v2551 = vadd.f32 0.0, %v2550
  %2552 = vmatmul.bf16.gmra.mxu0 %v2496
  %v2553 = vpop.f32.mrf.mxu0
  %v2554 = vadd.f32 0.0, %v2553
  %v2555 = vpop.f32.mrf.mxu0
  %v2556 = vadd.f32 0.0, %v2555
  %2557 = vmatmul.bf16.gmra.mxu0 %v2497
  %v2558 = vpop.f32.mrf.mxu0
  %v2559 = vadd.f32 0.0, %v2558
  %v2560 = vpop.f32.mrf.mxu0
  %v2561 = vadd.f32 0.0, %v2560
  %2562 = vdwg.mxu0
  %v2563 = vadd.f32 %v2498, %v2524
  %v2564 = vadd.f32 %v2499, %v2526
  %v2565 = vadd.f32 %v2500, %v2529
  %v2566 = vadd.f32 %v2501, %v2531
  %v2567 = vadd.f32 %v2502, %v2534
  %v2568 = vadd.f32 %v2503, %v2536
  %v2569 = vadd.f32 %v2504, %v2539
  %v2570 = vadd.f32 %v2505, %v2541
  %v2571 = vadd.f32 %v2506, %v2544
  %v2572 = vadd.f32 %v2507, %v2546
  %v2573 = vadd.f32 %v2508, %v2549
  %v2574 = vadd.f32 %v2509, %v2551
  %v2575 = vadd.f32 %v2510, %v2554
  %v2576 = vadd.f32 %v2511, %v2556
  %v2577 = vadd.f32 %v2512, %v2559
  %v2578 = vadd.f32 %v2513, %v2561
  %2579 = vst [vmem:[%s7] sm:$0xff] %v2563
  %2580 = vst [vmem:[%s7 + $0x8] sm:$0xff] %v2564
  %2581 = vst [vmem:[%s7 + $0x10] sm:$0xff] %v2565
  %2582 = vst [vmem:[%s7 + $0x18] sm:$0xff] %v2566
  %2583 = vst [vmem:[%s7 + $0x20] sm:$0xff] %v2567
  %2584 = vst [vmem:[%s7 + $0x28] sm:$0xff] %v2568
  %2585 = vst [vmem:[%s7 + $0x30] sm:$0xff] %v2569
  %2586 = vst [vmem:[%s7 + $0x38] sm:$0xff] %v2570
  %2587 = vst [vmem:[%s7 + $0x40] sm:$0xff] %v2571
  %2588 = vst [vmem:[%s7 + $0x48] sm:$0xff] %v2572
  %2589 = vst [vmem:[%s7 + $0x50] sm:$0xff] %v2573
  %2590 = vst [vmem:[%s7 + $0x58] sm:$0xff] %v2574
  %2591 = vst [vmem:[%s7 + $0x60] sm:$0xff] %v2575
  %2592 = vst [vmem:[%s7 + $0x68] sm:$0xff] %v2576
  %2593 = vst [vmem:[%s7 + $0x70] sm:$0xff] %v2577
  %2594 = vst [vmem:[%s7 + $0x78] sm:$0xff] %v2578
  %v2595 = vld [vmem:[%s0] sm:$0xf]
  %v2596 = vld [vmem:[%s0 + $0x4] sm:$0xf]
  %v2597 = vld [vmem:[%s0 + $0x8] sm:$0xf]
  %v2598 = vld [vmem:[%s0 + $0xc] sm:$0xf]
  %v2599 = vld [vmem:[%s0 + $0x10] sm:$0xf]
  %v2600 = vld [vmem:[%s0 + $0x14] sm:$0xf]
  %v2601 = vld [vmem:[%s0 + $0x18] sm:$0xf]
  %v2602 = vld [vmem:[%s0 + $0x1c] sm:$0xf]
  %v2603 = vld [vmem:[%s0 + $0x20] sm:$0xf]
  %v2604 = vld [vmem:[%s0 + $0x24] sm:$0xf]
  %v2605 = vld [vmem:[%s0 + $0x28] sm:$0xf]
  %v2606 = vld [vmem:[%s0 + $0x2c] sm:$0xf]
  %v2607 = vld [vmem:[%s0 + $0x30] sm:$0xf]
  %v2608 = vld [vmem:[%s0 + $0x34] sm:$0xf]
  %v2609 = vld [vmem:[%s0 + $0x38] sm:$0xf]
  %v2610 = vld [vmem:[%s0 + $0x3c] sm:$0xf]
  %v2627 = vunpack.c.l.b16 %v2595
  %v2628 = vunpack.c.l.b16 %v2596
  %v2629 = vunpack.c.l.b16 %v2597
  %v2630 = vunpack.c.l.b16 %v2598
  %v2631 = vunpack.c.l.b16 %v2599
  %v2632 = vunpack.c.l.b16 %v2600
  %v2633 = vunpack.c.l.b16 %v2601
  %v2634 = vunpack.c.l.b16 %v2602
  %v2635 = vunpack.c.l.b16 %v2603
  %v2636 = vunpack.c.l.b16 %v2604
  %v2637 = vunpack.c.l.b16 %v2605
  %v2638 = vunpack.c.l.b16 %v2606
  %v2639 = vunpack.c.l.b16 %v2607
  %v2640 = vunpack.c.l.b16 %v2608
  %v2641 = vunpack.c.l.b16 %v2609
  %v2642 = vunpack.c.l.b16 %v2610
  %v2643 = vpack.c.b16 %v2628, %v2627
  %v2644 = vpack.c.b16 %v2630, %v2629
  %v2645 = vpack.c.b16 %v2632, %v2631
  %v2646 = vpack.c.b16 %v2634, %v2633
  %v2647 = vpack.c.b16 %v2636, %v2635
  %v2648 = vpack.c.b16 %v2638, %v2637
  %v2649 = vpack.c.b16 %v2640, %v2639
  %v2650 = vpack.c.b16 %v2642, %v2641
  %2659 = vxpose.xlu0.c.b16.start [1/8] %v2643, 128
  %2660 = vxpose.xlu0.c.b16.cont [2/8] %v2644, 128
  %2661 = vxpose.xlu0.c.b16.cont [3/8] %v2645, 128
  %2662 = vxpose.xlu0.c.b16.cont [4/8] %v2646, 128
  %2663 = vxpose.xlu0.c.b16.cont [5/8] %v2647, 128
  %2664 = vxpose.xlu0.c.b16.cont [6/8] %v2648, 128
  %2665 = vxpose.xlu0.c.b16.cont [7/8] %v2649, 128
  %2666 = vxpose.xlu0.c.b16.end [8/8] %v2650, 128
  %v2667 = vpop.trf.xlu0
  %v2668 = vpop.trf.xlu0
  %v2669 = vpop.trf.xlu0
  %v2670 = vpop.trf.xlu0
  %v2671 = vpop.trf.xlu0
  %v2672 = vpop.trf.xlu0
  %v2673 = vpop.trf.xlu0
  %v2674 = vpop.trf.xlu0
  %2675 = vmatpush.bf16.msra.mxu0 %v559
  %2676 = vmatpush.bf16.msra.mxu0 %v558
  %2677 = vmatpush.bf16.msra.mxu0 %v557
  %2678 = vmatpush.bf16.msra.mxu0 %v556
  %2679 = vmatpush.bf16.msra.mxu0 %v555
  %2680 = vmatpush.bf16.msra.mxu0 %v554
  %2681 = vmatpush.bf16.msra.mxu0 %v553
  %2682 = vmatpush.bf16.msra.mxu0 %v552
  %2683 = vmatmul.bf16.gmra.mxu0 %v2667
  %v2684 = vpop.f32.mrf.mxu0
  %v2685 = vadd.f32 0.0, %v2684
  %v2686 = vpop.f32.mrf.mxu0
  %v2687 = vadd.f32 0.0, %v2686
  %2688 = vmatmul.bf16.gmra.mxu0 %v2668
  %v2689 = vpop.f32.mrf.mxu0
  %v2690 = vadd.f32 0.0, %v2689
  %v2691 = vpop.f32.mrf.mxu0
  %v2692 = vadd.f32 0.0, %v2691
  %2693 = vmatmul.bf16.gmra.mxu0 %v2669
  %v2694 = vpop.f32.mrf.mxu0
  %v2695 = vadd.f32 0.0, %v2694
  %v2696 = vpop.f32.mrf.mxu0
  %v2697 = vadd.f32 0.0, %v2696
  %2698 = vmatmul.bf16.gmra.mxu0 %v2670
  %v2699 = vpop.f32.mrf.mxu0
  %v2700 = vadd.f32 0.0, %v2699
  %v2701 = vpop.f32.mrf.mxu0
  %v2702 = vadd.f32 0.0, %v2701
  %2703 = vmatmul.bf16.gmra.mxu0 %v2671
  %v2704 = vpop.f32.mrf.mxu0
  %v2705 = vadd.f32 0.0, %v2704
  %v2706 = vpop.f32.mrf.mxu0
  %v2707 = vadd.f32 0.0, %v2706
  %2708 = vmatmul.bf16.gmra.mxu0 %v2672
  %v2709 = vpop.f32.mrf.mxu0
  %v2710 = vadd.f32 0.0, %v2709
  %v2711 = vpop.f32.mrf.mxu0
  %v2712 = vadd.f32 0.0, %v2711
  %2713 = vmatmul.bf16.gmra.mxu0 %v2673
  %v2714 = vpop.f32.mrf.mxu0
  %v2715 = vadd.f32 0.0, %v2714
  %v2716 = vpop.f32.mrf.mxu0
  %v2717 = vadd.f32 0.0, %v2716
  %2718 = vmatmul.bf16.gmra.mxu0 %v2674
  %v2719 = vpop.f32.mrf.mxu0
  %v2720 = vadd.f32 0.0, %v2719
  %v2721 = vpop.f32.mrf.mxu0
  %v2722 = vadd.f32 0.0, %v2721
  %2723 = vdwg.mxu0
  %v2724 = vxor.u32 %v2685, 2147483648
  %v2725 = vxor.u32 %v2687, 2147483648
  %v2726 = vxor.u32 %v2690, 2147483648
  %v2727 = vxor.u32 %v2692, 2147483648
  %v2728 = vxor.u32 %v2695, 2147483648
  %v2729 = vxor.u32 %v2697, 2147483648
  %v2730 = vxor.u32 %v2700, 2147483648
  %v2731 = vxor.u32 %v2702, 2147483648
  %v2732 = vxor.u32 %v2705, 2147483648
  %v2733 = vxor.u32 %v2707, 2147483648
  %v2734 = vxor.u32 %v2710, 2147483648
  %v2735 = vxor.u32 %v2712, 2147483648
  %v2736 = vxor.u32 %v2715, 2147483648
  %v2737 = vxor.u32 %v2717, 2147483648
  %v2738 = vxor.u32 %v2720, 2147483648
  %v2739 = vxor.u32 %v2722, 2147483648
  %v2740 = vmul.f32 %v2724, 1.442695
  %v2741 = vpow.pop %v2740
  %v2742 = vmul.f32 %v2725, 1.442695
  %v2743 = vpow.pop %v2742
  %v2744 = vmul.f32 %v2726, 1.442695
  %v2745 = vpow.pop %v2744
  %v2746 = vmul.f32 %v2727, 1.442695
  %v2747 = vpow.pop %v2746
  %v2748 = vmul.f32 %v2728, 1.442695
  %v2749 = vpow.pop %v2748
  %v2750 = vmul.f32 %v2729, 1.442695
  %v2751 = vpow.pop %v2750
  %v2752 = vmul.f32 %v2730, 1.442695
  %v2753 = vpow.pop %v2752
  %v2754 = vmul.f32 %v2731, 1.442695
  %v2755 = vpow.pop %v2754
  %v2756 = vmul.f32 %v2732, 1.442695
  %v2757 = vpow.pop %v2756
  %v2758 = vmul.f32 %v2733, 1.442695
  %v2759 = vpow.pop %v2758
  %v2760 = vmul.f32 %v2734, 1.442695
  %v2761 = vpow.pop %v2760
  %v2762 = vmul.f32 %v2735, 1.442695
  %v2763 = vpow.pop %v2762
  %v2764 = vmul.f32 %v2736, 1.442695
  %v2765 = vpow.pop %v2764
  %v2766 = vmul.f32 %v2737, 1.442695
  %v2767 = vpow.pop %v2766
  %v2768 = vmul.f32 %v2738, 1.442695
  %v2769 = vpow.pop %v2768
  %v2770 = vmul.f32 %v2739, 1.442695
  %v2771 = vpow.pop %v2770
  %v2772 = vadd.f32 %v2741, 1.0
  %v2773 = vadd.f32 %v2743, 1.0
  %v2774 = vadd.f32 %v2745, 1.0
  %v2775 = vadd.f32 %v2747, 1.0
  %v2776 = vadd.f32 %v2749, 1.0
  %v2777 = vadd.f32 %v2751, 1.0
  %v2778 = vadd.f32 %v2753, 1.0
  %v2779 = vadd.f32 %v2755, 1.0
  %v2780 = vadd.f32 %v2757, 1.0
  %v2781 = vadd.f32 %v2759, 1.0
  %v2782 = vadd.f32 %v2761, 1.0
  %v2783 = vadd.f32 %v2763, 1.0
  %v2784 = vadd.f32 %v2765, 1.0
  %v2785 = vadd.f32 %v2767, 1.0
  %v2786 = vadd.f32 %v2769, 1.0
  %v2787 = vadd.f32 %v2771, 1.0
  %v2788 = vrcp.pop %v2772
  %v2789 = vmul.f32 %v2772, %v2788
  %v2790 = vsub.f32 1.0, %v2789
  %v2791 = vmul.f32 %v2788, %v2790
  %v2792 = vadd.f32 %v2788, %v2791
  %vm2793 = vweird.f32 %v2772
  %vm2794 = vweird.f32 %v2788
  %vm2795 = vmor %vm2793, %vm2794
  %v2796 = vsel %vm2795, %v2788, %v2792
  %v2797 = vand.u32 2147483647, %v2772
  %vm2798 = vcmp.eq.f32.partialorder %v2797, 8.507059e+37
  %v2799 = vand.u32 %v2772, 2147483648
  %v2800 = vor.u32 1.1754944e-38, %v2799
  %v2801 = vsel %vm2798, %v2800, %v2796
  %v2802 = vmul.f32 1.0, %v2801
  %v2803 = vrcp.pop %v2773
  %v2804 = vmul.f32 %v2773, %v2803
  %v2805 = vsub.f32 1.0, %v2804
  %v2806 = vmul.f32 %v2803, %v2805
  %v2807 = vadd.f32 %v2803, %v2806
  %vm2808 = vweird.f32 %v2773
  %vm2809 = vweird.f32 %v2803
  %vm2810 = vmor %vm2808, %vm2809
  %v2811 = vsel %vm2810, %v2803, %v2807
  %v2812 = vand.u32 2147483647, %v2773
  %vm2813 = vcmp.eq.f32.partialorder %v2812, 8.507059e+37
  %v2814 = vand.u32 %v2773, 2147483648
  %v2815 = vor.u32 1.1754944e-38, %v2814
  %v2816 = vsel %vm2813, %v2815, %v2811
  %v2817 = vmul.f32 1.0, %v2816
  %v2818 = vrcp.pop %v2774
  %v2819 = vmul.f32 %v2774, %v2818
  %v2820 = vsub.f32 1.0, %v2819
  %v2821 = vmul.f32 %v2818, %v2820
  %v2822 = vadd.f32 %v2818, %v2821
  %vm2823 = vweird.f32 %v2774
  %vm2824 = vweird.f32 %v2818
  %vm2825 = vmor %vm2823, %vm2824
  %v2826 = vsel %vm2825, %v2818, %v2822
  %v2827 = vand.u32 2147483647, %v2774
  %vm2828 = vcmp.eq.f32.partialorder %v2827, 8.507059e+37
  %v2829 = vand.u32 %v2774, 2147483648
  %v2830 = vor.u32 1.1754944e-38, %v2829
  %v2831 = vsel %vm2828, %v2830, %v2826
  %v2832 = vmul.f32 1.0, %v2831
  %v2833 = vrcp.pop %v2775
  %v2834 = vmul.f32 %v2775, %v2833
  %v2835 = vsub.f32 1.0, %v2834
  %v2836 = vmul.f32 %v2833, %v2835
  %v2837 = vadd.f32 %v2833, %v2836
  %vm2838 = vweird.f32 %v2775
  %vm2839 = vweird.f32 %v2833
  %vm2840 = vmor %vm2838, %vm2839
  %v2841 = vsel %vm2840, %v2833, %v2837
  %v2842 = vand.u32 2147483647, %v2775
  %vm2843 = vcmp.eq.f32.partialorder %v2842, 8.507059e+37
  %v2844 = vand.u32 %v2775, 2147483648
  %v2845 = vor.u32 1.1754944e-38, %v2844
  %v2846 = vsel %vm2843, %v2845, %v2841
  %v2847 = vmul.f32 1.0, %v2846
  %v2848 = vrcp.pop %v2776
  %v2849 = vmul.f32 %v2776, %v2848
  %v2850 = vsub.f32 1.0, %v2849
  %v2851 = vmul.f32 %v2848, %v2850
  %v2852 = vadd.f32 %v2848, %v2851
  %vm2853 = vweird.f32 %v2776
  %vm2854 = vweird.f32 %v2848
  %vm2855 = vmor %vm2853, %vm2854
  %v2856 = vsel %vm2855, %v2848, %v2852
  %v2857 = vand.u32 2147483647, %v2776
  %vm2858 = vcmp.eq.f32.partialorder %v2857, 8.507059e+37
  %v2859 = vand.u32 %v2776, 2147483648
  %v2860 = vor.u32 1.1754944e-38, %v2859
  %v2861 = vsel %vm2858, %v2860, %v2856
  %v2862 = vmul.f32 1.0, %v2861
  %v2863 = vrcp.pop %v2777
  %v2864 = vmul.f32 %v2777, %v2863
  %v2865 = vsub.f32 1.0, %v2864
  %v2866 = vmul.f32 %v2863, %v2865
  %v2867 = vadd.f32 %v2863, %v2866
  %vm2868 = vweird.f32 %v2777
  %vm2869 = vweird.f32 %v2863
  %vm2870 = vmor %vm2868, %vm2869
  %v2871 = vsel %vm2870, %v2863, %v2867
  %v2872 = vand.u32 2147483647, %v2777
  %vm2873 = vcmp.eq.f32.partialorder %v2872, 8.507059e+37
  %v2874 = vand.u32 %v2777, 2147483648
  %v2875 = vor.u32 1.1754944e-38, %v2874
  %v2876 = vsel %vm2873, %v2875, %v2871
  %v2877 = vmul.f32 1.0, %v2876
  %v2878 = vrcp.pop %v2778
  %v2879 = vmul.f32 %v2778, %v2878
  %v2880 = vsub.f32 1.0, %v2879
  %v2881 = vmul.f32 %v2878, %v2880
  %v2882 = vadd.f32 %v2878, %v2881
  %vm2883 = vweird.f32 %v2778
  %vm2884 = vweird.f32 %v2878
  %vm2885 = vmor %vm2883, %vm2884
  %v2886 = vsel %vm2885, %v2878, %v2882
  %v2887 = vand.u32 2147483647, %v2778
  %vm2888 = vcmp.eq.f32.partialorder %v2887, 8.507059e+37
  %v2889 = vand.u32 %v2778, 2147483648
  %v2890 = vor.u32 1.1754944e-38, %v2889
  %v2891 = vsel %vm2888, %v2890, %v2886
  %v2892 = vmul.f32 1.0, %v2891
  %v2893 = vrcp.pop %v2779
  %v2894 = vmul.f32 %v2779, %v2893
  %v2895 = vsub.f32 1.0, %v2894
  %v2896 = vmul.f32 %v2893, %v2895
  %v2897 = vadd.f32 %v2893, %v2896
  %vm2898 = vweird.f32 %v2779
  %vm2899 = vweird.f32 %v2893
  %vm2900 = vmor %vm2898, %vm2899
  %v2901 = vsel %vm2900, %v2893, %v2897
  %v2902 = vand.u32 2147483647, %v2779
  %vm2903 = vcmp.eq.f32.partialorder %v2902, 8.507059e+37
  %v2904 = vand.u32 %v2779, 2147483648
  %v2905 = vor.u32 1.1754944e-38, %v2904
  %v2906 = vsel %vm2903, %v2905, %v2901
  %v2907 = vmul.f32 1.0, %v2906
  %v2908 = vrcp.pop %v2780
  %v2909 = vmul.f32 %v2780, %v2908
  %v2910 = vsub.f32 1.0, %v2909
  %v2911 = vmul.f32 %v2908, %v2910
  %v2912 = vadd.f32 %v2908, %v2911
  %vm2913 = vweird.f32 %v2780
  %vm2914 = vweird.f32 %v2908
  %vm2915 = vmor %vm2913, %vm2914
  %v2916 = vsel %vm2915, %v2908, %v2912
  %v2917 = vand.u32 2147483647, %v2780
  %vm2918 = vcmp.eq.f32.partialorder %v2917, 8.507059e+37
  %v2919 = vand.u32 %v2780, 2147483648
  %v2920 = vor.u32 1.1754944e-38, %v2919
  %v2921 = vsel %vm2918, %v2920, %v2916
  %v2922 = vmul.f32 1.0, %v2921
  %v2923 = vrcp.pop %v2781
  %v2924 = vmul.f32 %v2781, %v2923
  %v2925 = vsub.f32 1.0, %v2924
  %v2926 = vmul.f32 %v2923, %v2925
  %v2927 = vadd.f32 %v2923, %v2926
  %vm2928 = vweird.f32 %v2781
  %vm2929 = vweird.f32 %v2923
  %vm2930 = vmor %vm2928, %vm2929
  %v2931 = vsel %vm2930, %v2923, %v2927
  %v2932 = vand.u32 2147483647, %v2781
  %vm2933 = vcmp.eq.f32.partialorder %v2932, 8.507059e+37
  %v2934 = vand.u32 %v2781, 2147483648
  %v2935 = vor.u32 1.1754944e-38, %v2934
  %v2936 = vsel %vm2933, %v2935, %v2931
  %v2937 = vmul.f32 1.0, %v2936
  %v2938 = vrcp.pop %v2782
  %v2939 = vmul.f32 %v2782, %v2938
  %v2940 = vsub.f32 1.0, %v2939
  %v2941 = vmul.f32 %v2938, %v2940
  %v2942 = vadd.f32 %v2938, %v2941
  %vm2943 = vweird.f32 %v2782
  %vm2944 = vweird.f32 %v2938
  %vm2945 = vmor %vm2943, %vm2944
  %v2946 = vsel %vm2945, %v2938, %v2942
  %v2947 = vand.u32 2147483647, %v2782
  %vm2948 = vcmp.eq.f32.partialorder %v2947, 8.507059e+37
  %v2949 = vand.u32 %v2782, 2147483648
  %v2950 = vor.u32 1.1754944e-38, %v2949
  %v2951 = vsel %vm2948, %v2950, %v2946
  %v2952 = vmul.f32 1.0, %v2951
  %v2953 = vrcp.pop %v2783
  %v2954 = vmul.f32 %v2783, %v2953
  %v2955 = vsub.f32 1.0, %v2954
  %v2956 = vmul.f32 %v2953, %v2955
  %v2957 = vadd.f32 %v2953, %v2956
  %vm2958 = vweird.f32 %v2783
  %vm2959 = vweird.f32 %v2953
  %vm2960 = vmor %vm2958, %vm2959
  %v2961 = vsel %vm2960, %v2953, %v2957
  %v2962 = vand.u32 2147483647, %v2783
  %vm2963 = vcmp.eq.f32.partialorder %v2962, 8.507059e+37
  %v2964 = vand.u32 %v2783, 2147483648
  %v2965 = vor.u32 1.1754944e-38, %v2964
  %v2966 = vsel %vm2963, %v2965, %v2961
  %v2967 = vmul.f32 1.0, %v2966
  %v2968 = vrcp.pop %v2784
  %v2969 = vmul.f32 %v2784, %v2968
  %v2970 = vsub.f32 1.0, %v2969
  %v2971 = vmul.f32 %v2968, %v2970
  %v2972 = vadd.f32 %v2968, %v2971
  %vm2973 = vweird.f32 %v2784
  %vm2974 = vweird.f32 %v2968
  %vm2975 = vmor %vm2973, %vm2974
  %v2976 = vsel %vm2975, %v2968, %v2972
  %v2977 = vand.u32 2147483647, %v2784
  %vm2978 = vcmp.eq.f32.partialorder %v2977, 8.507059e+37
  %v2979 = vand.u32 %v2784, 2147483648
  %v2980 = vor.u32 1.1754944e-38, %v2979
  %v2981 = vsel %vm2978, %v2980, %v2976
  %v2982 = vmul.f32 1.0, %v2981
  %v2983 = vrcp.pop %v2785
  %v2984 = vmul.f32 %v2785, %v2983
  %v2985 = vsub.f32 1.0, %v2984
  %v2986 = vmul.f32 %v2983, %v2985
  %v2987 = vadd.f32 %v2983, %v2986
  %vm2988 = vweird.f32 %v2785
  %vm2989 = vweird.f32 %v2983
  %vm2990 = vmor %vm2988, %vm2989
  %v2991 = vsel %vm2990, %v2983, %v2987
  %v2992 = vand.u32 2147483647, %v2785
  %vm2993 = vcmp.eq.f32.partialorder %v2992, 8.507059e+37
  %v2994 = vand.u32 %v2785, 2147483648
  %v2995 = vor.u32 1.1754944e-38, %v2994
  %v2996 = vsel %vm2993, %v2995, %v2991
  %v2997 = vmul.f32 1.0, %v2996
  %v2998 = vrcp.pop %v2786
  %v2999 = vmul.f32 %v2786, %v2998
  %v3000 = vsub.f32 1.0, %v2999
  %v3001 = vmul.f32 %v2998, %v3000
  %v3002 = vadd.f32 %v2998, %v3001
  %vm3003 = vweird.f32 %v2786
  %vm3004 = vweird.f32 %v2998
  %vm3005 = vmor %vm3003, %vm3004
  %v3006 = vsel %vm3005, %v2998, %v3002
  %v3007 = vand.u32 2147483647, %v2786
  %vm3008 = vcmp.eq.f32.partialorder %v3007, 8.507059e+37
  %v3009 = vand.u32 %v2786, 2147483648
  %v3010 = vor.u32 1.1754944e-38, %v3009
  %v3011 = vsel %vm3008, %v3010, %v3006
  %v3012 = vmul.f32 1.0, %v3011
  %v3013 = vrcp.pop %v2787
  %v3014 = vmul.f32 %v2787, %v3013
  %v3015 = vsub.f32 1.0, %v3014
  %v3016 = vmul.f32 %v3013, %v3015
  %v3017 = vadd.f32 %v3013, %v3016
  %vm3018 = vweird.f32 %v2787
  %vm3019 = vweird.f32 %v3013
  %vm3020 = vmor %vm3018, %vm3019
  %v3021 = vsel %vm3020, %v3013, %v3017
  %v3022 = vand.u32 2147483647, %v2787
  %vm3023 = vcmp.eq.f32.partialorder %v3022, 8.507059e+37
  %v3024 = vand.u32 %v2787, 2147483648
  %v3025 = vor.u32 1.1754944e-38, %v3024
  %v3026 = vsel %vm3023, %v3025, %v3021
  %v3027 = vmul.f32 1.0, %v3026
  %v3028 = vpack.c.bf16 %v2802, %v2802
  %v3029 = vpack.c.bf16 %v2817, %v2817
  %v3030 = vpack.c.bf16 %v2832, %v2832
  %v3031 = vpack.c.bf16 %v2847, %v2847
  %v3032 = vpack.c.bf16 %v2862, %v2862
  %v3033 = vpack.c.bf16 %v2877, %v2877
  %v3034 = vpack.c.bf16 %v2892, %v2892
  %v3035 = vpack.c.bf16 %v2907, %v2907
  %v3036 = vpack.c.bf16 %v2922, %v2922
  %v3037 = vpack.c.bf16 %v2937, %v2937
  %v3038 = vpack.c.bf16 %v2952, %v2952
  %v3039 = vpack.c.bf16 %v2967, %v2967
  %v3040 = vpack.c.bf16 %v2982, %v2982
  %v3041 = vpack.c.bf16 %v2997, %v2997
  %v3042 = vpack.c.bf16 %v3012, %v3012
  %v3043 = vpack.c.bf16 %v3027, %v3027
  %v3044 = vld [vmem:[%s0 + $0x40] sm:$0xf]
  %v3045 = vld [vmem:[%s0 + $0x44] sm:$0xf]
  %v3046 = vld [vmem:[%s0 + $0x48] sm:$0xf]
  %v3047 = vld [vmem:[%s0 + $0x4c] sm:$0xf]
  %v3048 = vld [vmem:[%s0 + $0x50] sm:$0xf]
  %v3049 = vld [vmem:[%s0 + $0x54] sm:$0xf]
  %v3050 = vld [vmem:[%s0 + $0x58] sm:$0xf]
  %v3051 = vld [vmem:[%s0 + $0x5c] sm:$0xf]
  %v3052 = vld [vmem:[%s0 + $0x60] sm:$0xf]
  %v3053 = vld [vmem:[%s0 + $0x64] sm:$0xf]
  %v3054 = vld [vmem:[%s0 + $0x68] sm:$0xf]
  %v3055 = vld [vmem:[%s0 + $0x6c] sm:$0xf]
  %v3056 = vld [vmem:[%s0 + $0x70] sm:$0xf]
  %v3057 = vld [vmem:[%s0 + $0x74] sm:$0xf]
  %v3058 = vld [vmem:[%s0 + $0x78] sm:$0xf]
  %v3059 = vld [vmem:[%s0 + $0x7c] sm:$0xf]
  %v3076 = vunpack.c.l.b16 %v3044
  %v3077 = vunpack.c.l.b16 %v3045
  %v3078 = vunpack.c.l.b16 %v3046
  %v3079 = vunpack.c.l.b16 %v3047
  %v3080 = vunpack.c.l.b16 %v3048
  %v3081 = vunpack.c.l.b16 %v3049
  %v3082 = vunpack.c.l.b16 %v3050
  %v3083 = vunpack.c.l.b16 %v3051
  %v3084 = vunpack.c.l.b16 %v3052
  %v3085 = vunpack.c.l.b16 %v3053
  %v3086 = vunpack.c.l.b16 %v3054
  %v3087 = vunpack.c.l.b16 %v3055
  %v3088 = vunpack.c.l.b16 %v3056
  %v3089 = vunpack.c.l.b16 %v3057
  %v3090 = vunpack.c.l.b16 %v3058
  %v3091 = vunpack.c.l.b16 %v3059
  %v3092 = vpack.c.b16 %v3077, %v3076
  %v3093 = vpack.c.b16 %v3079, %v3078
  %v3094 = vpack.c.b16 %v3081, %v3080
  %v3095 = vpack.c.b16 %v3083, %v3082
  %v3096 = vpack.c.b16 %v3085, %v3084
  %v3097 = vpack.c.b16 %v3087, %v3086
  %v3098 = vpack.c.b16 %v3089, %v3088
  %v3099 = vpack.c.b16 %v3091, %v3090
  %3108 = vxpose.xlu0.c.b16.start [1/8] %v3092, 128
  %3109 = vxpose.xlu0.c.b16.cont [2/8] %v3093, 128
  %3110 = vxpose.xlu0.c.b16.cont [3/8] %v3094, 128
  %3111 = vxpose.xlu0.c.b16.cont [4/8] %v3095, 128
  %3112 = vxpose.xlu0.c.b16.cont [5/8] %v3096, 128
  %3113 = vxpose.xlu0.c.b16.cont [6/8] %v3097, 128
  %3114 = vxpose.xlu0.c.b16.cont [7/8] %v3098, 128
  %3115 = vxpose.xlu0.c.b16.end [8/8] %v3099, 128
  %v3116 = vpop.trf.xlu0
  %v3117 = vpop.trf.xlu0
  %v3118 = vpop.trf.xlu0
  %v3119 = vpop.trf.xlu0
  %v3120 = vpop.trf.xlu0
  %v3121 = vpop.trf.xlu0
  %v3122 = vpop.trf.xlu0
  %v3123 = vpop.trf.xlu0
  %3124 = vmatpush.bf16.msra.mxu0 %v559
  %3125 = vmatpush.bf16.msra.mxu0 %v558
  %3126 = vmatpush.bf16.msra.mxu0 %v557
  %3127 = vmatpush.bf16.msra.mxu0 %v556
  %3128 = vmatpush.bf16.msra.mxu0 %v555
  %3129 = vmatpush.bf16.msra.mxu0 %v554
  %3130 = vmatpush.bf16.msra.mxu0 %v553
  %3131 = vmatpush.bf16.msra.mxu0 %v552
  %3132 = vmatmul.bf16.gmra.mxu0 %v3116
  %v3133 = vpop.f32.mrf.mxu0
  %v3134 = vadd.f32 0.0, %v3133
  %v3135 = vpop.f32.mrf.mxu0
  %v3136 = vadd.f32 0.0, %v3135
  %3137 = vmatmul.bf16.gmra.mxu0 %v3117
  %v3138 = vpop.f32.mrf.mxu0
  %v3139 = vadd.f32 0.0, %v3138
  %v3140 = vpop.f32.mrf.mxu0
  %v3141 = vadd.f32 0.0, %v3140
  %3142 = vmatmul.bf16.gmra.mxu0 %v3118
  %v3143 = vpop.f32.mrf.mxu0
  %v3144 = vadd.f32 0.0, %v3143
  %v3145 = vpop.f32.mrf.mxu0
  %v3146 = vadd.f32 0.0, %v3145
  %3147 = vmatmul.bf16.gmra.mxu0 %v3119
  %v3148 = vpop.f32.mrf.mxu0
  %v3149 = vadd.f32 0.0, %v3148
  %v3150 = vpop.f32.mrf.mxu0
  %v3151 = vadd.f32 0.0, %v3150
  %3152 = vmatmul.bf16.gmra.mxu0 %v3120
  %v3153 = vpop.f32.mrf.mxu0
  %v3154 = vadd.f32 0.0, %v3153
  %v3155 = vpop.f32.mrf.mxu0
  %v3156 = vadd.f32 0.0, %v3155
  %3157 = vmatmul.bf16.gmra.mxu0 %v3121
  %v3158 = vpop.f32.mrf.mxu0
  %v3159 = vadd.f32 0.0, %v3158
  %v3160 = vpop.f32.mrf.mxu0
  %v3161 = vadd.f32 0.0, %v3160
  %3162 = vmatmul.bf16.gmra.mxu0 %v3122
  %v3163 = vpop.f32.mrf.mxu0
  %v3164 = vadd.f32 0.0, %v3163
  %v3165 = vpop.f32.mrf.mxu0
  %v3166 = vadd.f32 0.0, %v3165
  %3167 = vmatmul.bf16.gmra.mxu0 %v3123
  %v3168 = vpop.f32.mrf.mxu0
  %v3169 = vadd.f32 0.0, %v3168
  %v3170 = vpop.f32.mrf.mxu0
  %v3171 = vadd.f32 0.0, %v3170
  %3172 = vdwg.mxu0
  %v3173 = vadd.f32 %v2685, %v3134
  %v3174 = vadd.f32 %v2687, %v3136
  %v3175 = vadd.f32 %v2690, %v3139
  %v3176 = vadd.f32 %v2692, %v3141
  %v3177 = vadd.f32 %v2695, %v3144
  %v3178 = vadd.f32 %v2697, %v3146
  %v3179 = vadd.f32 %v2700, %v3149
  %v3180 = vadd.f32 %v2702, %v3151
  %v3181 = vadd.f32 %v2705, %v3154
  %v3182 = vadd.f32 %v2707, %v3156
  %v3183 = vadd.f32 %v2710, %v3159
  %v3184 = vadd.f32 %v2712, %v3161
  %v3185 = vadd.f32 %v2715, %v3164
  %v3186 = vadd.f32 %v2717, %v3166
  %v3187 = vadd.f32 %v2720, %v3169
  %v3188 = vadd.f32 %v2722, %v3171
  %v3189 = vxor.u32 %v3134, 2147483648
  %v3190 = vxor.u32 %v3136, 2147483648
  %v3191 = vxor.u32 %v3139, 2147483648
  %v3192 = vxor.u32 %v3141, 2147483648
  %v3193 = vxor.u32 %v3144, 2147483648
  %v3194 = vxor.u32 %v3146, 2147483648
  %v3195 = vxor.u32 %v3149, 2147483648
  %v3196 = vxor.u32 %v3151, 2147483648
  %v3197 = vxor.u32 %v3154, 2147483648
  %v3198 = vxor.u32 %v3156, 2147483648
  %v3199 = vxor.u32 %v3159, 2147483648
  %v3200 = vxor.u32 %v3161, 2147483648
  %v3201 = vxor.u32 %v3164, 2147483648
  %v3202 = vxor.u32 %v3166, 2147483648
  %v3203 = vxor.u32 %v3169, 2147483648
  %v3204 = vxor.u32 %v3171, 2147483648
  %v3205 = vmul.f32 %v3189, 1.442695
  %v3206 = vpow.pop %v3205
  %v3207 = vmul.f32 %v3190, 1.442695
  %v3208 = vpow.pop %v3207
  %v3209 = vmul.f32 %v3191, 1.442695
  %v3210 = vpow.pop %v3209
  %v3211 = vmul.f32 %v3192, 1.442695
  %v3212 = vpow.pop %v3211
  %v3213 = vmul.f32 %v3193, 1.442695
  %v3214 = vpow.pop %v3213
  %v3215 = vmul.f32 %v3194, 1.442695
  %v3216 = vpow.pop %v3215
  %v3217 = vmul.f32 %v3195, 1.442695
  %v3218 = vpow.pop %v3217
  %v3219 = vmul.f32 %v3196, 1.442695
  %v3220 = vpow.pop %v3219
  %v3221 = vmul.f32 %v3197, 1.442695
  %v3222 = vpow.pop %v3221
  %v3223 = vmul.f32 %v3198, 1.442695
  %v3224 = vpow.pop %v3223
  %v3225 = vmul.f32 %v3199, 1.442695
  %v3226 = vpow.pop %v3225
  %v3227 = vmul.f32 %v3200, 1.442695
  %v3228 = vpow.pop %v3227
  %v3229 = vmul.f32 %v3201, 1.442695
  %v3230 = vpow.pop %v3229
  %v3231 = vmul.f32 %v3202, 1.442695
  %v3232 = vpow.pop %v3231
  %v3233 = vmul.f32 %v3203, 1.442695
  %v3234 = vpow.pop %v3233
  %v3235 = vmul.f32 %v3204, 1.442695
  %v3236 = vpow.pop %v3235
  %v3237 = vadd.f32 %v3206, 1.0
  %v3238 = vadd.f32 %v3208, 1.0
  %v3239 = vadd.f32 %v3210, 1.0
  %v3240 = vadd.f32 %v3212, 1.0
  %v3241 = vadd.f32 %v3214, 1.0
  %v3242 = vadd.f32 %v3216, 1.0
  %v3243 = vadd.f32 %v3218, 1.0
  %v3244 = vadd.f32 %v3220, 1.0
  %v3245 = vadd.f32 %v3222, 1.0
  %v3246 = vadd.f32 %v3224, 1.0
  %v3247 = vadd.f32 %v3226, 1.0
  %v3248 = vadd.f32 %v3228, 1.0
  %v3249 = vadd.f32 %v3230, 1.0
  %v3250 = vadd.f32 %v3232, 1.0
  %v3251 = vadd.f32 %v3234, 1.0
  %v3252 = vadd.f32 %v3236, 1.0
  %v3253 = vrcp.pop %v3237
  %v3254 = vmul.f32 %v3237, %v3253
  %v3255 = vsub.f32 1.0, %v3254
  %v3256 = vmul.f32 %v3253, %v3255
  %v3257 = vadd.f32 %v3253, %v3256
  %vm3258 = vweird.f32 %v3237
  %vm3259 = vweird.f32 %v3253
  %vm3260 = vmor %vm3258, %vm3259
  %v3261 = vsel %vm3260, %v3253, %v3257
  %v3262 = vand.u32 2147483647, %v3237
  %vm3263 = vcmp.eq.f32.partialorder %v3262, 8.507059e+37
  %v3264 = vand.u32 %v3237, 2147483648
  %v3265 = vor.u32 1.1754944e-38, %v3264
  %v3266 = vsel %vm3263, %v3265, %v3261
  %v3267 = vmul.f32 1.0, %v3266
  %v3268 = vrcp.pop %v3238
  %v3269 = vmul.f32 %v3238, %v3268
  %v3270 = vsub.f32 1.0, %v3269
  %v3271 = vmul.f32 %v3268, %v3270
  %v3272 = vadd.f32 %v3268, %v3271
  %vm3273 = vweird.f32 %v3238
  %vm3274 = vweird.f32 %v3268
  %vm3275 = vmor %vm3273, %vm3274
  %v3276 = vsel %vm3275, %v3268, %v3272
  %v3277 = vand.u32 2147483647, %v3238
  %vm3278 = vcmp.eq.f32.partialorder %v3277, 8.507059e+37
  %v3279 = vand.u32 %v3238, 2147483648
  %v3280 = vor.u32 1.1754944e-38, %v3279
  %v3281 = vsel %vm3278, %v3280, %v3276
  %v3282 = vmul.f32 1.0, %v3281
  %v3283 = vrcp.pop %v3239
  %v3284 = vmul.f32 %v3239, %v3283
  %v3285 = vsub.f32 1.0, %v3284
  %v3286 = vmul.f32 %v3283, %v3285
  %v3287 = vadd.f32 %v3283, %v3286
  %vm3288 = vweird.f32 %v3239
  %vm3289 = vweird.f32 %v3283
  %vm3290 = vmor %vm3288, %vm3289
  %v3291 = vsel %vm3290, %v3283, %v3287
  %v3292 = vand.u32 2147483647, %v3239
  %vm3293 = vcmp.eq.f32.partialorder %v3292, 8.507059e+37
  %v3294 = vand.u32 %v3239, 2147483648
  %v3295 = vor.u32 1.1754944e-38, %v3294
  %v3296 = vsel %vm3293, %v3295, %v3291
  %v3297 = vmul.f32 1.0, %v3296
  %v3298 = vrcp.pop %v3240
  %v3299 = vmul.f32 %v3240, %v3298
  %v3300 = vsub.f32 1.0, %v3299
  %v3301 = vmul.f32 %v3298, %v3300
  %v3302 = vadd.f32 %v3298, %v3301
  %vm3303 = vweird.f32 %v3240
  %vm3304 = vweird.f32 %v3298
  %vm3305 = vmor %vm3303, %vm3304
  %v3306 = vsel %vm3305, %v3298, %v3302
  %v3307 = vand.u32 2147483647, %v3240
  %vm3308 = vcmp.eq.f32.partialorder %v3307, 8.507059e+37
  %v3309 = vand.u32 %v3240, 2147483648
  %v3310 = vor.u32 1.1754944e-38, %v3309
  %v3311 = vsel %vm3308, %v3310, %v3306
  %v3312 = vmul.f32 1.0, %v3311
  %v3313 = vrcp.pop %v3241
  %v3314 = vmul.f32 %v3241, %v3313
  %v3315 = vsub.f32 1.0, %v3314
  %v3316 = vmul.f32 %v3313, %v3315
  %v3317 = vadd.f32 %v3313, %v3316
  %vm3318 = vweird.f32 %v3241
  %vm3319 = vweird.f32 %v3313
  %vm3320 = vmor %vm3318, %vm3319
  %v3321 = vsel %vm3320, %v3313, %v3317
  %v3322 = vand.u32 2147483647, %v3241
  %vm3323 = vcmp.eq.f32.partialorder %v3322, 8.507059e+37
  %v3324 = vand.u32 %v3241, 2147483648
  %v3325 = vor.u32 1.1754944e-38, %v3324
  %v3326 = vsel %vm3323, %v3325, %v3321
  %v3327 = vmul.f32 1.0, %v3326
  %v3328 = vrcp.pop %v3242
  %v3329 = vmul.f32 %v3242, %v3328
  %v3330 = vsub.f32 1.0, %v3329
  %v3331 = vmul.f32 %v3328, %v3330
  %v3332 = vadd.f32 %v3328, %v3331
  %vm3333 = vweird.f32 %v3242
  %vm3334 = vweird.f32 %v3328
  %vm3335 = vmor %vm3333, %vm3334
  %v3336 = vsel %vm3335, %v3328, %v3332
  %v3337 = vand.u32 2147483647, %v3242
  %vm3338 = vcmp.eq.f32.partialorder %v3337, 8.507059e+37
  %v3339 = vand.u32 %v3242, 2147483648
  %v3340 = vor.u32 1.1754944e-38, %v3339
  %v3341 = vsel %vm3338, %v3340, %v3336
  %v3342 = vmul.f32 1.0, %v3341
  %v3343 = vrcp.pop %v3243
  %v3344 = vmul.f32 %v3243, %v3343
  %v3345 = vsub.f32 1.0, %v3344
  %v3346 = vmul.f32 %v3343, %v3345
  %v3347 = vadd.f32 %v3343, %v3346
  %vm3348 = vweird.f32 %v3243
  %vm3349 = vweird.f32 %v3343
  %vm3350 = vmor %vm3348, %vm3349
  %v3351 = vsel %vm3350, %v3343, %v3347
  %v3352 = vand.u32 2147483647, %v3243
  %vm3353 = vcmp.eq.f32.partialorder %v3352, 8.507059e+37
  %v3354 = vand.u32 %v3243, 2147483648
  %v3355 = vor.u32 1.1754944e-38, %v3354
  %v3356 = vsel %vm3353, %v3355, %v3351
  %v3357 = vmul.f32 1.0, %v3356
  %v3358 = vrcp.pop %v3244
  %v3359 = vmul.f32 %v3244, %v3358
  %v3360 = vsub.f32 1.0, %v3359
  %v3361 = vmul.f32 %v3358, %v3360
  %v3362 = vadd.f32 %v3358, %v3361
  %vm3363 = vweird.f32 %v3244
  %vm3364 = vweird.f32 %v3358
  %vm3365 = vmor %vm3363, %vm3364
  %v3366 = vsel %vm3365, %v3358, %v3362
  %v3367 = vand.u32 2147483647, %v3244
  %vm3368 = vcmp.eq.f32.partialorder %v3367, 8.507059e+37
  %v3369 = vand.u32 %v3244, 2147483648
  %v3370 = vor.u32 1.1754944e-38, %v3369
  %v3371 = vsel %vm3368, %v3370, %v3366
  %v3372 = vmul.f32 1.0, %v3371
  %v3373 = vrcp.pop %v3245
  %v3374 = vmul.f32 %v3245, %v3373
  %v3375 = vsub.f32 1.0, %v3374
  %v3376 = vmul.f32 %v3373, %v3375
  %v3377 = vadd.f32 %v3373, %v3376
  %vm3378 = vweird.f32 %v3245
  %vm3379 = vweird.f32 %v3373
  %vm3380 = vmor %vm3378, %vm3379
  %v3381 = vsel %vm3380, %v3373, %v3377
  %v3382 = vand.u32 2147483647, %v3245
  %vm3383 = vcmp.eq.f32.partialorder %v3382, 8.507059e+37
  %v3384 = vand.u32 %v3245, 2147483648
  %v3385 = vor.u32 1.1754944e-38, %v3384
  %v3386 = vsel %vm3383, %v3385, %v3381
  %v3387 = vmul.f32 1.0, %v3386
  %v3388 = vrcp.pop %v3246
  %v3389 = vmul.f32 %v3246, %v3388
  %v3390 = vsub.f32 1.0, %v3389
  %v3391 = vmul.f32 %v3388, %v3390
  %v3392 = vadd.f32 %v3388, %v3391
  %vm3393 = vweird.f32 %v3246
  %vm3394 = vweird.f32 %v3388
  %vm3395 = vmor %vm3393, %vm3394
  %v3396 = vsel %vm3395, %v3388, %v3392
  %v3397 = vand.u32 2147483647, %v3246
  %vm3398 = vcmp.eq.f32.partialorder %v3397, 8.507059e+37
  %v3399 = vand.u32 %v3246, 2147483648
  %v3400 = vor.u32 1.1754944e-38, %v3399
  %v3401 = vsel %vm3398, %v3400, %v3396
  %v3402 = vmul.f32 1.0, %v3401
  %v3403 = vrcp.pop %v3247
  %v3404 = vmul.f32 %v3247, %v3403
  %v3405 = vsub.f32 1.0, %v3404
  %v3406 = vmul.f32 %v3403, %v3405
  %v3407 = vadd.f32 %v3403, %v3406
  %vm3408 = vweird.f32 %v3247
  %vm3409 = vweird.f32 %v3403
  %vm3410 = vmor %vm3408, %vm3409
  %v3411 = vsel %vm3410, %v3403, %v3407
  %v3412 = vand.u32 2147483647, %v3247
  %vm3413 = vcmp.eq.f32.partialorder %v3412, 8.507059e+37
  %v3414 = vand.u32 %v3247, 2147483648
  %v3415 = vor.u32 1.1754944e-38, %v3414
  %v3416 = vsel %vm3413, %v3415, %v3411
  %v3417 = vmul.f32 1.0, %v3416
  %v3418 = vrcp.pop %v3248
  %v3419 = vmul.f32 %v3248, %v3418
  %v3420 = vsub.f32 1.0, %v3419
  %v3421 = vmul.f32 %v3418, %v3420
  %v3422 = vadd.f32 %v3418, %v3421
  %vm3423 = vweird.f32 %v3248
  %vm3424 = vweird.f32 %v3418
  %vm3425 = vmor %vm3423, %vm3424
  %v3426 = vsel %vm3425, %v3418, %v3422
  %v3427 = vand.u32 2147483647, %v3248
  %vm3428 = vcmp.eq.f32.partialorder %v3427, 8.507059e+37
  %v3429 = vand.u32 %v3248, 2147483648
  %v3430 = vor.u32 1.1754944e-38, %v3429
  %v3431 = vsel %vm3428, %v3430, %v3426
  %v3432 = vmul.f32 1.0, %v3431
  %v3433 = vrcp.pop %v3249
  %v3434 = vmul.f32 %v3249, %v3433
  %v3435 = vsub.f32 1.0, %v3434
  %v3436 = vmul.f32 %v3433, %v3435
  %v3437 = vadd.f32 %v3433, %v3436
  %vm3438 = vweird.f32 %v3249
  %vm3439 = vweird.f32 %v3433
  %vm3440 = vmor %vm3438, %vm3439
  %v3441 = vsel %vm3440, %v3433, %v3437
  %v3442 = vand.u32 2147483647, %v3249
  %vm3443 = vcmp.eq.f32.partialorder %v3442, 8.507059e+37
  %v3444 = vand.u32 %v3249, 2147483648
  %v3445 = vor.u32 1.1754944e-38, %v3444
  %v3446 = vsel %vm3443, %v3445, %v3441
  %v3447 = vmul.f32 1.0, %v3446
  %v3448 = vrcp.pop %v3250
  %v3449 = vmul.f32 %v3250, %v3448
  %v3450 = vsub.f32 1.0, %v3449
  %v3451 = vmul.f32 %v3448, %v3450
  %v3452 = vadd.f32 %v3448, %v3451
  %vm3453 = vweird.f32 %v3250
  %vm3454 = vweird.f32 %v3448
  %vm3455 = vmor %vm3453, %vm3454
  %v3456 = vsel %vm3455, %v3448, %v3452
  %v3457 = vand.u32 2147483647, %v3250
  %vm3458 = vcmp.eq.f32.partialorder %v3457, 8.507059e+37
  %v3459 = vand.u32 %v3250, 2147483648
  %v3460 = vor.u32 1.1754944e-38, %v3459
  %v3461 = vsel %vm3458, %v3460, %v3456
  %v3462 = vmul.f32 1.0, %v3461
  %v3463 = vrcp.pop %v3251
  %v3464 = vmul.f32 %v3251, %v3463
  %v3465 = vsub.f32 1.0, %v3464
  %v3466 = vmul.f32 %v3463, %v3465
  %v3467 = vadd.f32 %v3463, %v3466
  %vm3468 = vweird.f32 %v3251
  %vm3469 = vweird.f32 %v3463
  %vm3470 = vmor %vm3468, %vm3469
  %v3471 = vsel %vm3470, %v3463, %v3467
  %v3472 = vand.u32 2147483647, %v3251
  %vm3473 = vcmp.eq.f32.partialorder %v3472, 8.507059e+37
  %v3474 = vand.u32 %v3251, 2147483648
  %v3475 = vor.u32 1.1754944e-38, %v3474
  %v3476 = vsel %vm3473, %v3475, %v3471
  %v3477 = vmul.f32 1.0, %v3476
  %v3478 = vrcp.pop %v3252
  %v3479 = vmul.f32 %v3252, %v3478
  %v3480 = vsub.f32 1.0, %v3479
  %v3481 = vmul.f32 %v3478, %v3480
  %v3482 = vadd.f32 %v3478, %v3481
  %vm3483 = vweird.f32 %v3252
  %vm3484 = vweird.f32 %v3478
  %vm3485 = vmor %vm3483, %vm3484
  %v3486 = vsel %vm3485, %v3478, %v3482
  %v3487 = vand.u32 2147483647, %v3252
  %vm3488 = vcmp.eq.f32.partialorder %v3487, 8.507059e+37
  %v3489 = vand.u32 %v3252, 2147483648
  %v3490 = vor.u32 1.1754944e-38, %v3489
  %v3491 = vsel %vm3488, %v3490, %v3486
  %v3492 = vmul.f32 1.0, %v3491
  %v3493 = vpack.c.bf16 %v3267, %v3267
  %v3494 = vpack.c.bf16 %v3282, %v3282
  %v3495 = vpack.c.bf16 %v3297, %v3297
  %v3496 = vpack.c.bf16 %v3312, %v3312
  %v3497 = vpack.c.bf16 %v3327, %v3327
  %v3498 = vpack.c.bf16 %v3342, %v3342
  %v3499 = vpack.c.bf16 %v3357, %v3357
  %v3500 = vpack.c.bf16 %v3372, %v3372
  %v3501 = vpack.c.bf16 %v3387, %v3387
  %v3502 = vpack.c.bf16 %v3402, %v3402
  %v3503 = vpack.c.bf16 %v3417, %v3417
  %v3504 = vpack.c.bf16 %v3432, %v3432
  %v3505 = vpack.c.bf16 %v3447, %v3447
  %v3506 = vpack.c.bf16 %v3462, %v3462
  %v3507 = vpack.c.bf16 %v3477, %v3477
  %v3508 = vpack.c.bf16 %v3492, %v3492
  %v3509 = vld [vmem:[%s0 + $0x80] sm:$0xf]
  %v3510 = vld [vmem:[%s0 + $0x84] sm:$0xf]
  %v3511 = vld [vmem:[%s0 + $0x88] sm:$0xf]
  %v3512 = vld [vmem:[%s0 + $0x8c] sm:$0xf]
  %v3513 = vld [vmem:[%s0 + $0x90] sm:$0xf]
  %v3514 = vld [vmem:[%s0 + $0x94] sm:$0xf]
  %v3515 = vld [vmem:[%s0 + $0x98] sm:$0xf]
  %v3516 = vld [vmem:[%s0 + $0x9c] sm:$0xf]
  %v3517 = vld [vmem:[%s0 + $0xa0] sm:$0xf]
  %v3518 = vld [vmem:[%s0 + $0xa4] sm:$0xf]
  %v3519 = vld [vmem:[%s0 + $0xa8] sm:$0xf]
  %v3520 = vld [vmem:[%s0 + $0xac] sm:$0xf]
  %v3521 = vld [vmem:[%s0 + $0xb0] sm:$0xf]
  %v3522 = vld [vmem:[%s0 + $0xb4] sm:$0xf]
  %v3523 = vld [vmem:[%s0 + $0xb8] sm:$0xf]
  %v3524 = vld [vmem:[%s0 + $0xbc] sm:$0xf]
  %v3541 = vunpack.c.l.b16 %v3509
  %v3542 = vunpack.c.l.b16 %v3510
  %v3543 = vunpack.c.l.b16 %v3511
  %v3544 = vunpack.c.l.b16 %v3512
  %v3545 = vunpack.c.l.b16 %v3513
  %v3546 = vunpack.c.l.b16 %v3514
  %v3547 = vunpack.c.l.b16 %v3515
  %v3548 = vunpack.c.l.b16 %v3516
  %v3549 = vunpack.c.l.b16 %v3517
  %v3550 = vunpack.c.l.b16 %v3518
  %v3551 = vunpack.c.l.b16 %v3519
  %v3552 = vunpack.c.l.b16 %v3520
  %v3553 = vunpack.c.l.b16 %v3521
  %v3554 = vunpack.c.l.b16 %v3522
  %v3555 = vunpack.c.l.b16 %v3523
  %v3556 = vunpack.c.l.b16 %v3524
  %v3557 = vpack.c.b16 %v3542, %v3541
  %v3558 = vpack.c.b16 %v3544, %v3543
  %v3559 = vpack.c.b16 %v3546, %v3545
  %v3560 = vpack.c.b16 %v3548, %v3547
  %v3561 = vpack.c.b16 %v3550, %v3549
  %v3562 = vpack.c.b16 %v3552, %v3551
  %v3563 = vpack.c.b16 %v3554, %v3553
  %v3564 = vpack.c.b16 %v3556, %v3555
  %3573 = vxpose.xlu0.c.b16.start [1/8] %v3557, 128
  %3574 = vxpose.xlu0.c.b16.cont [2/8] %v3558, 128
  %3575 = vxpose.xlu0.c.b16.cont [3/8] %v3559, 128
  %3576 = vxpose.xlu0.c.b16.cont [4/8] %v3560, 128
  %3577 = vxpose.xlu0.c.b16.cont [5/8] %v3561, 128
  %3578 = vxpose.xlu0.c.b16.cont [6/8] %v3562, 128
  %3579 = vxpose.xlu0.c.b16.cont [7/8] %v3563, 128
  %3580 = vxpose.xlu0.c.b16.end [8/8] %v3564, 128
  %v3581 = vpop.trf.xlu0
  %v3582 = vpop.trf.xlu0
  %v3583 = vpop.trf.xlu0
  %v3584 = vpop.trf.xlu0
  %v3585 = vpop.trf.xlu0
  %v3586 = vpop.trf.xlu0
  %v3587 = vpop.trf.xlu0
  %v3588 = vpop.trf.xlu0
  %3589 = vmatpush.bf16.msra.mxu0 %v559
  %3590 = vmatpush.bf16.msra.mxu0 %v558
  %3591 = vmatpush.bf16.msra.mxu0 %v557
  %3592 = vmatpush.bf16.msra.mxu0 %v556
  %3593 = vmatpush.bf16.msra.mxu0 %v555
  %3594 = vmatpush.bf16.msra.mxu0 %v554
  %3595 = vmatpush.bf16.msra.mxu0 %v553
  %3596 = vmatpush.bf16.msra.mxu0 %v552
  %3597 = vmatmul.bf16.gmra.mxu0 %v3581
  %v3598 = vpop.f32.mrf.mxu0
  %v3599 = vadd.f32 0.0, %v3598
  %v3600 = vpop.f32.mrf.mxu0
  %v3601 = vadd.f32 0.0, %v3600
  %3602 = vmatmul.bf16.gmra.mxu0 %v3582
  %v3603 = vpop.f32.mrf.mxu0
  %v3604 = vadd.f32 0.0, %v3603
  %v3605 = vpop.f32.mrf.mxu0
  %v3606 = vadd.f32 0.0, %v3605
  %3607 = vmatmul.bf16.gmra.mxu0 %v3583
  %v3608 = vpop.f32.mrf.mxu0
  %v3609 = vadd.f32 0.0, %v3608
  %v3610 = vpop.f32.mrf.mxu0
  %v3611 = vadd.f32 0.0, %v3610
  %3612 = vmatmul.bf16.gmra.mxu0 %v3584
  %v3613 = vpop.f32.mrf.mxu0
  %v3614 = vadd.f32 0.0, %v3613
  %v3615 = vpop.f32.mrf.mxu0
  %v3616 = vadd.f32 0.0, %v3615
  %3617 = vmatmul.bf16.gmra.mxu0 %v3585
  %v3618 = vpop.f32.mrf.mxu0
  %v3619 = vadd.f32 0.0, %v3618
  %v3620 = vpop.f32.mrf.mxu0
  %v3621 = vadd.f32 0.0, %v3620
  %3622 = vmatmul.bf16.gmra.mxu0 %v3586
  %v3623 = vpop.f32.mrf.mxu0
  %v3624 = vadd.f32 0.0, %v3623
  %v3625 = vpop.f32.mrf.mxu0
  %v3626 = vadd.f32 0.0, %v3625
  %3627 = vmatmul.bf16.gmra.mxu0 %v3587
  %v3628 = vpop.f32.mrf.mxu0
  %v3629 = vadd.f32 0.0, %v3628
  %v3630 = vpop.f32.mrf.mxu0
  %v3631 = vadd.f32 0.0, %v3630
  %3632 = vmatmul.bf16.gmra.mxu0 %v3588
  %v3633 = vpop.f32.mrf.mxu0
  %v3634 = vadd.f32 0.0, %v3633
  %v3635 = vpop.f32.mrf.mxu0
  %v3636 = vadd.f32 0.0, %v3635
  %3637 = vdwg.mxu0
  %v3638 = vadd.f32 %v3173, %v3599
  %v3639 = vadd.f32 %v3174, %v3601
  %v3640 = vadd.f32 %v3175, %v3604
  %v3641 = vadd.f32 %v3176, %v3606
  %v3642 = vadd.f32 %v3177, %v3609
  %v3643 = vadd.f32 %v3178, %v3611
  %v3644 = vadd.f32 %v3179, %v3614
  %v3645 = vadd.f32 %v3180, %v3616
  %v3646 = vadd.f32 %v3181, %v3619
  %v3647 = vadd.f32 %v3182, %v3621
  %v3648 = vadd.f32 %v3183, %v3624
  %v3649 = vadd.f32 %v3184, %v3626
  %v3650 = vadd.f32 %v3185, %v3629
  %v3651 = vadd.f32 %v3186, %v3631
  %v3652 = vadd.f32 %v3187, %v3634
  %v3653 = vadd.f32 %v3188, %v3636
  %v3654 = vxor.u32 %v3599, 2147483648
  %v3655 = vxor.u32 %v3601, 2147483648
  %v3656 = vxor.u32 %v3604, 2147483648
  %v3657 = vxor.u32 %v3606, 2147483648
  %v3658 = vxor.u32 %v3609, 2147483648
  %v3659 = vxor.u32 %v3611, 2147483648
  %v3660 = vxor.u32 %v3614, 2147483648
  %v3661 = vxor.u32 %v3616, 2147483648
  %v3662 = vxor.u32 %v3619, 2147483648
  %v3663 = vxor.u32 %v3621, 2147483648
  %v3664 = vxor.u32 %v3624, 2147483648
  %v3665 = vxor.u32 %v3626, 2147483648
  %v3666 = vxor.u32 %v3629, 2147483648
  %v3667 = vxor.u32 %v3631, 2147483648
  %v3668 = vxor.u32 %v3634, 2147483648
  %v3669 = vxor.u32 %v3636, 2147483648
  %v3670 = vmul.f32 %v3654, 1.442695
  %v3671 = vpow.pop %v3670
  %v3672 = vmul.f32 %v3655, 1.442695
  %v3673 = vpow.pop %v3672
  %v3674 = vmul.f32 %v3656, 1.442695
  %v3675 = vpow.pop %v3674
  %v3676 = vmul.f32 %v3657, 1.442695
  %v3677 = vpow.pop %v3676
  %v3678 = vmul.f32 %v3658, 1.442695
  %v3679 = vpow.pop %v3678
  %v3680 = vmul.f32 %v3659, 1.442695
  %v3681 = vpow.pop %v3680
  %v3682 = vmul.f32 %v3660, 1.442695
  %v3683 = vpow.pop %v3682
  %v3684 = vmul.f32 %v3661, 1.442695
  %v3685 = vpow.pop %v3684
  %v3686 = vmul.f32 %v3662, 1.442695
  %v3687 = vpow.pop %v3686
  %v3688 = vmul.f32 %v3663, 1.442695
  %v3689 = vpow.pop %v3688
  %v3690 = vmul.f32 %v3664, 1.442695
  %v3691 = vpow.pop %v3690
  %v3692 = vmul.f32 %v3665, 1.442695
  %v3693 = vpow.pop %v3692
  %v3694 = vmul.f32 %v3666, 1.442695
  %v3695 = vpow.pop %v3694
  %v3696 = vmul.f32 %v3667, 1.442695
  %v3697 = vpow.pop %v3696
  %v3698 = vmul.f32 %v3668, 1.442695
  %v3699 = vpow.pop %v3698
  %v3700 = vmul.f32 %v3669, 1.442695
  %v3701 = vpow.pop %v3700
  %v3702 = vadd.f32 %v3671, 1.0
  %v3703 = vadd.f32 %v3673, 1.0
  %v3704 = vadd.f32 %v3675, 1.0
  %v3705 = vadd.f32 %v3677, 1.0
  %v3706 = vadd.f32 %v3679, 1.0
  %v3707 = vadd.f32 %v3681, 1.0
  %v3708 = vadd.f32 %v3683, 1.0
  %v3709 = vadd.f32 %v3685, 1.0
  %v3710 = vadd.f32 %v3687, 1.0
  %v3711 = vadd.f32 %v3689, 1.0
  %v3712 = vadd.f32 %v3691, 1.0
  %v3713 = vadd.f32 %v3693, 1.0
  %v3714 = vadd.f32 %v3695, 1.0
  %v3715 = vadd.f32 %v3697, 1.0
  %v3716 = vadd.f32 %v3699, 1.0
  %v3717 = vadd.f32 %v3701, 1.0
  %v3718 = vrcp.pop %v3702
  %v3719 = vmul.f32 %v3702, %v3718
  %v3720 = vsub.f32 1.0, %v3719
  %v3721 = vmul.f32 %v3718, %v3720
  %v3722 = vadd.f32 %v3718, %v3721
  %vm3723 = vweird.f32 %v3702
  %vm3724 = vweird.f32 %v3718
  %vm3725 = vmor %vm3723, %vm3724
  %v3726 = vsel %vm3725, %v3718, %v3722
  %v3727 = vand.u32 2147483647, %v3702
  %vm3728 = vcmp.eq.f32.partialorder %v3727, 8.507059e+37
  %v3729 = vand.u32 %v3702, 2147483648
  %v3730 = vor.u32 1.1754944e-38, %v3729
  %v3731 = vsel %vm3728, %v3730, %v3726
  %v3732 = vmul.f32 1.0, %v3731
  %v3733 = vrcp.pop %v3703
  %v3734 = vmul.f32 %v3703, %v3733
  %v3735 = vsub.f32 1.0, %v3734
  %v3736 = vmul.f32 %v3733, %v3735
  %v3737 = vadd.f32 %v3733, %v3736
  %vm3738 = vweird.f32 %v3703
  %vm3739 = vweird.f32 %v3733
  %vm3740 = vmor %vm3738, %vm3739
  %v3741 = vsel %vm3740, %v3733, %v3737
  %v3742 = vand.u32 2147483647, %v3703
  %vm3743 = vcmp.eq.f32.partialorder %v3742, 8.507059e+37
  %v3744 = vand.u32 %v3703, 2147483648
  %v3745 = vor.u32 1.1754944e-38, %v3744
  %v3746 = vsel %vm3743, %v3745, %v3741
  %v3747 = vmul.f32 1.0, %v3746
  %v3748 = vrcp.pop %v3704
  %v3749 = vmul.f32 %v3704, %v3748
  %v3750 = vsub.f32 1.0, %v3749
  %v3751 = vmul.f32 %v3748, %v3750
  %v3752 = vadd.f32 %v3748, %v3751
  %vm3753 = vweird.f32 %v3704
  %vm3754 = vweird.f32 %v3748
  %vm3755 = vmor %vm3753, %vm3754
  %v3756 = vsel %vm3755, %v3748, %v3752
  %v3757 = vand.u32 2147483647, %v3704
  %vm3758 = vcmp.eq.f32.partialorder %v3757, 8.507059e+37
  %v3759 = vand.u32 %v3704, 2147483648
  %v3760 = vor.u32 1.1754944e-38, %v3759
  %v3761 = vsel %vm3758, %v3760, %v3756
  %v3762 = vmul.f32 1.0, %v3761
  %v3763 = vrcp.pop %v3705
  %v3764 = vmul.f32 %v3705, %v3763
  %v3765 = vsub.f32 1.0, %v3764
  %v3766 = vmul.f32 %v3763, %v3765
  %v3767 = vadd.f32 %v3763, %v3766
  %vm3768 = vweird.f32 %v3705
  %vm3769 = vweird.f32 %v3763
  %vm3770 = vmor %vm3768, %vm3769
  %v3771 = vsel %vm3770, %v3763, %v3767
  %v3772 = vand.u32 2147483647, %v3705
  %vm3773 = vcmp.eq.f32.partialorder %v3772, 8.507059e+37
  %v3774 = vand.u32 %v3705, 2147483648
  %v3775 = vor.u32 1.1754944e-38, %v3774
  %v3776 = vsel %vm3773, %v3775, %v3771
  %v3777 = vmul.f32 1.0, %v3776
  %v3778 = vrcp.pop %v3706
  %v3779 = vmul.f32 %v3706, %v3778
  %v3780 = vsub.f32 1.0, %v3779
  %v3781 = vmul.f32 %v3778, %v3780
  %v3782 = vadd.f32 %v3778, %v3781
  %vm3783 = vweird.f32 %v3706
  %vm3784 = vweird.f32 %v3778
  %vm3785 = vmor %vm3783, %vm3784
  %v3786 = vsel %vm3785, %v3778, %v3782
  %v3787 = vand.u32 2147483647, %v3706
  %vm3788 = vcmp.eq.f32.partialorder %v3787, 8.507059e+37
  %v3789 = vand.u32 %v3706, 2147483648
  %v3790 = vor.u32 1.1754944e-38, %v3789
  %v3791 = vsel %vm3788, %v3790, %v3786
  %v3792 = vmul.f32 1.0, %v3791
  %v3793 = vrcp.pop %v3707
  %v3794 = vmul.f32 %v3707, %v3793
  %v3795 = vsub.f32 1.0, %v3794
  %v3796 = vmul.f32 %v3793, %v3795
  %v3797 = vadd.f32 %v3793, %v3796
  %vm3798 = vweird.f32 %v3707
  %vm3799 = vweird.f32 %v3793
  %vm3800 = vmor %vm3798, %vm3799
  %v3801 = vsel %vm3800, %v3793, %v3797
  %v3802 = vand.u32 2147483647, %v3707
  %vm3803 = vcmp.eq.f32.partialorder %v3802, 8.507059e+37
  %v3804 = vand.u32 %v3707, 2147483648
  %v3805 = vor.u32 1.1754944e-38, %v3804
  %v3806 = vsel %vm3803, %v3805, %v3801
  %v3807 = vmul.f32 1.0, %v3806
  %v3808 = vrcp.pop %v3708
  %v3809 = vmul.f32 %v3708, %v3808
  %v3810 = vsub.f32 1.0, %v3809
  %v3811 = vmul.f32 %v3808, %v3810
  %v3812 = vadd.f32 %v3808, %v3811
  %vm3813 = vweird.f32 %v3708
  %vm3814 = vweird.f32 %v3808
  %vm3815 = vmor %vm3813, %vm3814
  %v3816 = vsel %vm3815, %v3808, %v3812
  %v3817 = vand.u32 2147483647, %v3708
  %vm3818 = vcmp.eq.f32.partialorder %v3817, 8.507059e+37
  %v3819 = vand.u32 %v3708, 2147483648
  %v3820 = vor.u32 1.1754944e-38, %v3819
  %v3821 = vsel %vm3818, %v3820, %v3816
  %v3822 = vmul.f32 1.0, %v3821
  %v3823 = vrcp.pop %v3709
  %v3824 = vmul.f32 %v3709, %v3823
  %v3825 = vsub.f32 1.0, %v3824
  %v3826 = vmul.f32 %v3823, %v3825
  %v3827 = vadd.f32 %v3823, %v3826
  %vm3828 = vweird.f32 %v3709
  %vm3829 = vweird.f32 %v3823
  %vm3830 = vmor %vm3828, %vm3829
  %v3831 = vsel %vm3830, %v3823, %v3827
  %v3832 = vand.u32 2147483647, %v3709
  %vm3833 = vcmp.eq.f32.partialorder %v3832, 8.507059e+37
  %v3834 = vand.u32 %v3709, 2147483648
  %v3835 = vor.u32 1.1754944e-38, %v3834
  %v3836 = vsel %vm3833, %v3835, %v3831
  %v3837 = vmul.f32 1.0, %v3836
  %v3838 = vrcp.pop %v3710
  %v3839 = vmul.f32 %v3710, %v3838
  %v3840 = vsub.f32 1.0, %v3839
  %v3841 = vmul.f32 %v3838, %v3840
  %v3842 = vadd.f32 %v3838, %v3841
  %vm3843 = vweird.f32 %v3710
  %vm3844 = vweird.f32 %v3838
  %vm3845 = vmor %vm3843, %vm3844
  %v3846 = vsel %vm3845, %v3838, %v3842
  %v3847 = vand.u32 2147483647, %v3710
  %vm3848 = vcmp.eq.f32.partialorder %v3847, 8.507059e+37
  %v3849 = vand.u32 %v3710, 2147483648
  %v3850 = vor.u32 1.1754944e-38, %v3849
  %v3851 = vsel %vm3848, %v3850, %v3846
  %v3852 = vmul.f32 1.0, %v3851
  %v3853 = vrcp.pop %v3711
  %v3854 = vmul.f32 %v3711, %v3853
  %v3855 = vsub.f32 1.0, %v3854
  %v3856 = vmul.f32 %v3853, %v3855
  %v3857 = vadd.f32 %v3853, %v3856
  %vm3858 = vweird.f32 %v3711
  %vm3859 = vweird.f32 %v3853
  %vm3860 = vmor %vm3858, %vm3859
  %v3861 = vsel %vm3860, %v3853, %v3857
  %v3862 = vand.u32 2147483647, %v3711
  %vm3863 = vcmp.eq.f32.partialorder %v3862, 8.507059e+37
  %v3864 = vand.u32 %v3711, 2147483648
  %v3865 = vor.u32 1.1754944e-38, %v3864
  %v3866 = vsel %vm3863, %v3865, %v3861
  %v3867 = vmul.f32 1.0, %v3866
  %v3868 = vrcp.pop %v3712
  %v3869 = vmul.f32 %v3712, %v3868
  %v3870 = vsub.f32 1.0, %v3869
  %v3871 = vmul.f32 %v3868, %v3870
  %v3872 = vadd.f32 %v3868, %v3871
  %vm3873 = vweird.f32 %v3712
  %vm3874 = vweird.f32 %v3868
  %vm3875 = vmor %vm3873, %vm3874
  %v3876 = vsel %vm3875, %v3868, %v3872
  %v3877 = vand.u32 2147483647, %v3712
  %vm3878 = vcmp.eq.f32.partialorder %v3877, 8.507059e+37
  %v3879 = vand.u32 %v3712, 2147483648
  %v3880 = vor.u32 1.1754944e-38, %v3879
  %v3881 = vsel %vm3878, %v3880, %v3876
  %v3882 = vmul.f32 1.0, %v3881
  %v3883 = vrcp.pop %v3713
  %v3884 = vmul.f32 %v3713, %v3883
  %v3885 = vsub.f32 1.0, %v3884
  %v3886 = vmul.f32 %v3883, %v3885
  %v3887 = vadd.f32 %v3883, %v3886
  %vm3888 = vweird.f32 %v3713
  %vm3889 = vweird.f32 %v3883
  %vm3890 = vmor %vm3888, %vm3889
  %v3891 = vsel %vm3890, %v3883, %v3887
  %v3892 = vand.u32 2147483647, %v3713
  %vm3893 = vcmp.eq.f32.partialorder %v3892, 8.507059e+37
  %v3894 = vand.u32 %v3713, 2147483648
  %v3895 = vor.u32 1.1754944e-38, %v3894
  %v3896 = vsel %vm3893, %v3895, %v3891
  %v3897 = vmul.f32 1.0, %v3896
  %v3898 = vrcp.pop %v3714
  %v3899 = vmul.f32 %v3714, %v3898
  %v3900 = vsub.f32 1.0, %v3899
  %v3901 = vmul.f32 %v3898, %v3900
  %v3902 = vadd.f32 %v3898, %v3901
  %vm3903 = vweird.f32 %v3714
  %vm3904 = vweird.f32 %v3898
  %vm3905 = vmor %vm3903, %vm3904
  %v3906 = vsel %vm3905, %v3898, %v3902
  %v3907 = vand.u32 2147483647, %v3714
  %vm3908 = vcmp.eq.f32.partialorder %v3907, 8.507059e+37
  %v3909 = vand.u32 %v3714, 2147483648
  %v3910 = vor.u32 1.1754944e-38, %v3909
  %v3911 = vsel %vm3908, %v3910, %v3906
  %v3912 = vmul.f32 1.0, %v3911
  %v3913 = vrcp.pop %v3715
  %v3914 = vmul.f32 %v3715, %v3913
  %v3915 = vsub.f32 1.0, %v3914
  %v3916 = vmul.f32 %v3913, %v3915
  %v3917 = vadd.f32 %v3913, %v3916
  %vm3918 = vweird.f32 %v3715
  %vm3919 = vweird.f32 %v3913
  %vm3920 = vmor %vm3918, %vm3919
  %v3921 = vsel %vm3920, %v3913, %v3917
  %v3922 = vand.u32 2147483647, %v3715
  %vm3923 = vcmp.eq.f32.partialorder %v3922, 8.507059e+37
  %v3924 = vand.u32 %v3715, 2147483648
  %v3925 = vor.u32 1.1754944e-38, %v3924
  %v3926 = vsel %vm3923, %v3925, %v3921
  %v3927 = vmul.f32 1.0, %v3926
  %v3928 = vrcp.pop %v3716
  %v3929 = vmul.f32 %v3716, %v3928
  %v3930 = vsub.f32 1.0, %v3929
  %v3931 = vmul.f32 %v3928, %v3930
  %v3932 = vadd.f32 %v3928, %v3931
  %vm3933 = vweird.f32 %v3716
  %vm3934 = vweird.f32 %v3928
  %vm3935 = vmor %vm3933, %vm3934
  %v3936 = vsel %vm3935, %v3928, %v3932
  %v3937 = vand.u32 2147483647, %v3716
  %vm3938 = vcmp.eq.f32.partialorder %v3937, 8.507059e+37
  %v3939 = vand.u32 %v3716, 2147483648
  %v3940 = vor.u32 1.1754944e-38, %v3939
  %v3941 = vsel %vm3938, %v3940, %v3936
  %v3942 = vmul.f32 1.0, %v3941
  %v3943 = vrcp.pop %v3717
  %v3944 = vmul.f32 %v3717, %v3943
  %v3945 = vsub.f32 1.0, %v3944
  %v3946 = vmul.f32 %v3943, %v3945
  %v3947 = vadd.f32 %v3943, %v3946
  %vm3948 = vweird.f32 %v3717
  %vm3949 = vweird.f32 %v3943
  %vm3950 = vmor %vm3948, %vm3949
  %v3951 = vsel %vm3950, %v3943, %v3947
  %v3952 = vand.u32 2147483647, %v3717
  %vm3953 = vcmp.eq.f32.partialorder %v3952, 8.507059e+37
  %v3954 = vand.u32 %v3717, 2147483648
  %v3955 = vor.u32 1.1754944e-38, %v3954
  %v3956 = vsel %vm3953, %v3955, %v3951
  %v3957 = vmul.f32 1.0, %v3956
  %v3958 = vpack.c.bf16 %v3732, %v3732
  %v3959 = vpack.c.bf16 %v3747, %v3747
  %v3960 = vpack.c.bf16 %v3762, %v3762
  %v3961 = vpack.c.bf16 %v3777, %v3777
  %v3962 = vpack.c.bf16 %v3792, %v3792
  %v3963 = vpack.c.bf16 %v3807, %v3807
  %v3964 = vpack.c.bf16 %v3822, %v3822
  %v3965 = vpack.c.bf16 %v3837, %v3837
  %v3966 = vpack.c.bf16 %v3852, %v3852
  %v3967 = vpack.c.bf16 %v3867, %v3867
  %v3968 = vpack.c.bf16 %v3882, %v3882
  %v3969 = vpack.c.bf16 %v3897, %v3897
  %v3970 = vpack.c.bf16 %v3912, %v3912
  %v3971 = vpack.c.bf16 %v3927, %v3927
  %v3972 = vpack.c.bf16 %v3942, %v3942
  %v3973 = vpack.c.bf16 %v3957, %v3957
  %v3990 = vunpack.c.l.b16 %v3028
  %v3991 = vunpack.c.l.b16 %v3029
  %v3992 = vunpack.c.l.b16 %v3030
  %v3993 = vunpack.c.l.b16 %v3031
  %v3994 = vunpack.c.l.b16 %v3032
  %v3995 = vunpack.c.l.b16 %v3033
  %v3996 = vunpack.c.l.b16 %v3034
  %v3997 = vunpack.c.l.b16 %v3035
  %v3998 = vunpack.c.l.b16 %v3036
  %v3999 = vunpack.c.l.b16 %v3037
  %v4000 = vunpack.c.l.b16 %v3038
  %v4001 = vunpack.c.l.b16 %v3039
  %v4002 = vunpack.c.l.b16 %v3040
  %v4003 = vunpack.c.l.b16 %v3041
  %v4004 = vunpack.c.l.b16 %v3042
  %v4005 = vunpack.c.l.b16 %v3043
  %v4006 = vpack.c.b16 %v3991, %v3990
  %v4007 = vpack.c.b16 %v3993, %v3992
  %v4008 = vpack.c.b16 %v3995, %v3994
  %v4009 = vpack.c.b16 %v3997, %v3996
  %v4010 = vpack.c.b16 %v3999, %v3998
  %v4011 = vpack.c.b16 %v4001, %v4000
  %v4012 = vpack.c.b16 %v4003, %v4002
  %v4013 = vpack.c.b16 %v4005, %v4004
  %v4038 = vunpack.c.l.b16 %v3493
  %v4039 = vunpack.c.l.b16 %v3494
  %v4040 = vunpack.c.l.b16 %v3495
  %v4041 = vunpack.c.l.b16 %v3496
  %v4042 = vunpack.c.l.b16 %v3497
  %v4043 = vunpack.c.l.b16 %v3498
  %v4044 = vunpack.c.l.b16 %v3499
  %v4045 = vunpack.c.l.b16 %v3500
  %v4046 = vunpack.c.l.b16 %v3501
  %v4047 = vunpack.c.l.b16 %v3502
  %v4048 = vunpack.c.l.b16 %v3503
  %v4049 = vunpack.c.l.b16 %v3504
  %v4050 = vunpack.c.l.b16 %v3505
  %v4051 = vunpack.c.l.b16 %v3506
  %v4052 = vunpack.c.l.b16 %v3507
  %v4053 = vunpack.c.l.b16 %v3508
  %v4054 = vpack.c.b16 %v4039, %v4038
  %v4055 = vpack.c.b16 %v4041, %v4040
  %v4056 = vpack.c.b16 %v4043, %v4042
  %v4057 = vpack.c.b16 %v4045, %v4044
  %v4058 = vpack.c.b16 %v4047, %v4046
  %v4059 = vpack.c.b16 %v4049, %v4048
  %v4060 = vpack.c.b16 %v4051, %v4050
  %v4061 = vpack.c.b16 %v4053, %v4052
  %v4086 = vunpack.c.l.b16 %v3958
  %v4087 = vunpack.c.l.b16 %v3959
  %v4088 = vunpack.c.l.b16 %v3960
  %v4089 = vunpack.c.l.b16 %v3961
  %v4090 = vunpack.c.l.b16 %v3962
  %v4091 = vunpack.c.l.b16 %v3963
  %v4092 = vunpack.c.l.b16 %v3964
  %v4093 = vunpack.c.l.b16 %v3965
  %v4094 = vunpack.c.l.b16 %v3966
  %v4095 = vunpack.c.l.b16 %v3967
  %v4096 = vunpack.c.l.b16 %v3968
  %v4097 = vunpack.c.l.b16 %v3969
  %v4098 = vunpack.c.l.b16 %v3970
  %v4099 = vunpack.c.l.b16 %v3971
  %v4100 = vunpack.c.l.b16 %v3972
  %v4101 = vunpack.c.l.b16 %v3973
  %v4102 = vpack.c.b16 %v4087, %v4086
  %v4103 = vpack.c.b16 %v4089, %v4088
  %v4104 = vpack.c.b16 %v4091, %v4090
  %v4105 = vpack.c.b16 %v4093, %v4092
  %v4106 = vpack.c.b16 %v4095, %v4094
  %v4107 = vpack.c.b16 %v4097, %v4096
  %v4108 = vpack.c.b16 %v4099, %v4098
  %v4109 = vpack.c.b16 %v4101, %v4100
  %v4118 = vld [vmem:[%s10] sm:$0xff]
  %v4119 = vld [vmem:[%s10 + $0x8] sm:$0xff]
  %v4120 = vld [vmem:[%s10 + $0x10] sm:$0xff]
  %v4121 = vld [vmem:[%s10 + $0x18] sm:$0xff]
  %v4122 = vld [vmem:[%s10 + $0x20] sm:$0xff]
  %v4123 = vld [vmem:[%s10 + $0x28] sm:$0xff]
  %v4124 = vld [vmem:[%s10 + $0x30] sm:$0xff]
  %v4125 = vld [vmem:[%s10 + $0x38] sm:$0xff]
  %v4126 = vld [vmem:[%s10 + $0x40] sm:$0xff]
  %v4127 = vld [vmem:[%s10 + $0x48] sm:$0xff]
  %v4128 = vld [vmem:[%s10 + $0x50] sm:$0xff]
  %v4129 = vld [vmem:[%s10 + $0x58] sm:$0xff]
  %v4130 = vld [vmem:[%s10 + $0x60] sm:$0xff]
  %v4131 = vld [vmem:[%s10 + $0x68] sm:$0xff]
  %v4132 = vld [vmem:[%s10 + $0x70] sm:$0xff]
  %v4133 = vld [vmem:[%s10 + $0x78] sm:$0xff]
  %v4134 = vld [vmem:[%s10 + $0x80] sm:$0xff]
  %v4135 = vld [vmem:[%s10 + $0x88] sm:$0xff]
  %v4136 = vld [vmem:[%s10 + $0x90] sm:$0xff]
  %v4137 = vld [vmem:[%s10 + $0x98] sm:$0xff]
  %v4138 = vld [vmem:[%s10 + $0xa0] sm:$0xff]
  %v4139 = vld [vmem:[%s10 + $0xa8] sm:$0xff]
  %v4140 = vld [vmem:[%s10 + $0xb0] sm:$0xff]
  %v4141 = vld [vmem:[%s10 + $0xb8] sm:$0xff]
  %v4142 = vld [vmem:[%s10 + $0xc0] sm:$0xff]
  %v4143 = vld [vmem:[%s10 + $0xc8] sm:$0xff]
  %v4144 = vld [vmem:[%s10 + $0xd0] sm:$0xff]
  %v4145 = vld [vmem:[%s10 + $0xd8] sm:$0xff]
  %v4146 = vld [vmem:[%s10 + $0xe0] sm:$0xff]
  %v4147 = vld [vmem:[%s10 + $0xe8] sm:$0xff]
  %v4148 = vld [vmem:[%s10 + $0xf0] sm:$0xff]
  %v4149 = vld [vmem:[%s10 + $0xf8] sm:$0xff]
  %v4150 = vld [vmem:[%s10 + $0x100] sm:$0xff]
  %v4151 = vld [vmem:[%s10 + $0x108] sm:$0xff]
  %v4152 = vld [vmem:[%s10 + $0x110] sm:$0xff]
  %v4153 = vld [vmem:[%s10 + $0x118] sm:$0xff]
  %v4154 = vld [vmem:[%s10 + $0x120] sm:$0xff]
  %v4155 = vld [vmem:[%s10 + $0x128] sm:$0xff]
  %v4156 = vld [vmem:[%s10 + $0x130] sm:$0xff]
  %v4157 = vld [vmem:[%s10 + $0x138] sm:$0xff]
  %v4158 = vld [vmem:[%s10 + $0x140] sm:$0xff]
  %v4159 = vld [vmem:[%s10 + $0x148] sm:$0xff]
  %v4160 = vld [vmem:[%s10 + $0x150] sm:$0xff]
  %v4161 = vld [vmem:[%s10 + $0x158] sm:$0xff]
  %v4162 = vld [vmem:[%s10 + $0x160] sm:$0xff]
  %v4163 = vld [vmem:[%s10 + $0x168] sm:$0xff]
  %v4164 = vld [vmem:[%s10 + $0x170] sm:$0xff]
  %v4165 = vld [vmem:[%s10 + $0x178] sm:$0xff]
  %v4182 = vunpack.c.l.b16 %v238
  %v4183 = vunpack.c.l.b16 %v239
  %v4184 = vunpack.c.l.b16 %v240
  %v4185 = vunpack.c.l.b16 %v241
  %v4186 = vunpack.c.l.b16 %v242
  %v4187 = vunpack.c.l.b16 %v243
  %v4188 = vunpack.c.l.b16 %v244
  %v4189 = vunpack.c.l.b16 %v245
  %v4190 = vunpack.c.l.b16 %v246
  %v4191 = vunpack.c.l.b16 %v247
  %v4192 = vunpack.c.l.b16 %v248
  %v4193 = vunpack.c.l.b16 %v249
  %v4194 = vunpack.c.l.b16 %v250
  %v4195 = vunpack.c.l.b16 %v251
  %v4196 = vunpack.c.l.b16 %v252
  %v4197 = vunpack.c.l.b16 %v253
  %v4198 = vpack.c.b16 %v4183, %v4182
  %v4199 = vpack.c.b16 %v4185, %v4184
  %v4200 = vpack.c.b16 %v4187, %v4186
  %v4201 = vpack.c.b16 %v4189, %v4188
  %v4202 = vpack.c.b16 %v4191, %v4190
  %v4203 = vpack.c.b16 %v4193, %v4192
  %v4204 = vpack.c.b16 %v4195, %v4194
  %v4205 = vpack.c.b16 %v4197, %v4196
  %4214 = vmatpush.bf16.msra.mxu0 %v4205
  %4215 = vmatpush.bf16.msra.mxu0 %v4204
  %4216 = vmatpush.bf16.msra.mxu0 %v4203
  %4217 = vmatpush.bf16.msra.mxu0 %v4202
  %4218 = vmatpush.bf16.msra.mxu0 %v4201
  %4219 = vmatpush.bf16.msra.mxu0 %v4200
  %4220 = vmatpush.bf16.msra.mxu0 %v4199
  %4221 = vmatpush.bf16.msra.mxu0 %v4198
  %4222 = vmatmul.bf16.gmra.mxu0 %v4006
  %v4223 = vpop.f32.mrf.mxu0
  %v4224 = vadd.f32 0.0, %v4223
  %v4225 = vpop.f32.mrf.mxu0
  %v4226 = vadd.f32 0.0, %v4225
  %4227 = vmatmul.bf16.gmra.mxu0 %v4007
  %v4228 = vpop.f32.mrf.mxu0
  %v4229 = vadd.f32 0.0, %v4228
  %v4230 = vpop.f32.mrf.mxu0
  %v4231 = vadd.f32 0.0, %v4230
  %4232 = vmatmul.bf16.gmra.mxu0 %v4008
  %v4233 = vpop.f32.mrf.mxu0
  %v4234 = vadd.f32 0.0, %v4233
  %v4235 = vpop.f32.mrf.mxu0
  %v4236 = vadd.f32 0.0, %v4235
  %4237 = vmatmul.bf16.gmra.mxu0 %v4009
  %v4238 = vpop.f32.mrf.mxu0
  %v4239 = vadd.f32 0.0, %v4238
  %v4240 = vpop.f32.mrf.mxu0
  %v4241 = vadd.f32 0.0, %v4240
  %4242 = vmatmul.bf16.gmra.mxu0 %v4010
  %v4243 = vpop.f32.mrf.mxu0
  %v4244 = vadd.f32 0.0, %v4243
  %v4245 = vpop.f32.mrf.mxu0
  %v4246 = vadd.f32 0.0, %v4245
  %4247 = vmatmul.bf16.gmra.mxu0 %v4011
  %v4248 = vpop.f32.mrf.mxu0
  %v4249 = vadd.f32 0.0, %v4248
  %v4250 = vpop.f32.mrf.mxu0
  %v4251 = vadd.f32 0.0, %v4250
  %4252 = vmatmul.bf16.gmra.mxu0 %v4012
  %v4253 = vpop.f32.mrf.mxu0
  %v4254 = vadd.f32 0.0, %v4253
  %v4255 = vpop.f32.mrf.mxu0
  %v4256 = vadd.f32 0.0, %v4255
  %4257 = vmatmul.bf16.gmra.mxu0 %v4013
  %v4258 = vpop.f32.mrf.mxu0
  %v4259 = vadd.f32 0.0, %v4258
  %v4260 = vpop.f32.mrf.mxu0
  %v4261 = vadd.f32 0.0, %v4260
  %4262 = vmatmul.bf16.gmra.mxu0 %v4054
  %v4263 = vpop.f32.mrf.mxu0
  %v4264 = vadd.f32 0.0, %v4263
  %v4265 = vpop.f32.mrf.mxu0
  %v4266 = vadd.f32 0.0, %v4265
  %4267 = vmatmul.bf16.gmra.mxu0 %v4055
  %v4268 = vpop.f32.mrf.mxu0
  %v4269 = vadd.f32 0.0, %v4268
  %v4270 = vpop.f32.mrf.mxu0
  %v4271 = vadd.f32 0.0, %v4270
  %4272 = vmatmul.bf16.gmra.mxu0 %v4056
  %v4273 = vpop.f32.mrf.mxu0
  %v4274 = vadd.f32 0.0, %v4273
  %v4275 = vpop.f32.mrf.mxu0
  %v4276 = vadd.f32 0.0, %v4275
  %4277 = vmatmul.bf16.gmra.mxu0 %v4057
  %v4278 = vpop.f32.mrf.mxu0
  %v4279 = vadd.f32 0.0, %v4278
  %v4280 = vpop.f32.mrf.mxu0
  %v4281 = vadd.f32 0.0, %v4280
  %4282 = vmatmul.bf16.gmra.mxu0 %v4058
  %v4283 = vpop.f32.mrf.mxu0
  %v4284 = vadd.f32 0.0, %v4283
  %v4285 = vpop.f32.mrf.mxu0
  %v4286 = vadd.f32 0.0, %v4285
  %4287 = vmatmul.bf16.gmra.mxu0 %v4059
  %v4288 = vpop.f32.mrf.mxu0
  %v4289 = vadd.f32 0.0, %v4288
  %v4290 = vpop.f32.mrf.mxu0
  %v4291 = vadd.f32 0.0, %v4290
  %4292 = vmatmul.bf16.gmra.mxu0 %v4060
  %v4293 = vpop.f32.mrf.mxu0
  %v4294 = vadd.f32 0.0, %v4293
  %v4295 = vpop.f32.mrf.mxu0
  %v4296 = vadd.f32 0.0, %v4295
  %4297 = vmatmul.bf16.gmra.mxu0 %v4061
  %v4298 = vpop.f32.mrf.mxu0
  %v4299 = vadd.f32 0.0, %v4298
  %v4300 = vpop.f32.mrf.mxu0
  %v4301 = vadd.f32 0.0, %v4300
  %4302 = vmatmul.bf16.gmra.mxu0 %v4102
  %v4303 = vpop.f32.mrf.mxu0
  %v4304 = vadd.f32 0.0, %v4303
  %v4305 = vpop.f32.mrf.mxu0
  %v4306 = vadd.f32 0.0, %v4305
  %4307 = vmatmul.bf16.gmra.mxu0 %v4103
  %v4308 = vpop.f32.mrf.mxu0
  %v4309 = vadd.f32 0.0, %v4308
  %v4310 = vpop.f32.mrf.mxu0
  %v4311 = vadd.f32 0.0, %v4310
  %4312 = vmatmul.bf16.gmra.mxu0 %v4104
  %v4313 = vpop.f32.mrf.mxu0
  %v4314 = vadd.f32 0.0, %v4313
  %v4315 = vpop.f32.mrf.mxu0
  %v4316 = vadd.f32 0.0, %v4315
  %4317 = vmatmul.bf16.gmra.mxu0 %v4105
  %v4318 = vpop.f32.mrf.mxu0
  %v4319 = vadd.f32 0.0, %v4318
  %v4320 = vpop.f32.mrf.mxu0
  %v4321 = vadd.f32 0.0, %v4320
  %4322 = vmatmul.bf16.gmra.mxu0 %v4106
  %v4323 = vpop.f32.mrf.mxu0
  %v4324 = vadd.f32 0.0, %v4323
  %v4325 = vpop.f32.mrf.mxu0
  %v4326 = vadd.f32 0.0, %v4325
  %4327 = vmatmul.bf16.gmra.mxu0 %v4107
  %v4328 = vpop.f32.mrf.mxu0
  %v4329 = vadd.f32 0.0, %v4328
  %v4330 = vpop.f32.mrf.mxu0
  %v4331 = vadd.f32 0.0, %v4330
  %4332 = vmatmul.bf16.gmra.mxu0 %v4108
  %v4333 = vpop.f32.mrf.mxu0
  %v4334 = vadd.f32 0.0, %v4333
  %v4335 = vpop.f32.mrf.mxu0
  %v4336 = vadd.f32 0.0, %v4335
  %4337 = vmatmul.bf16.gmra.mxu0 %v4109
  %v4338 = vpop.f32.mrf.mxu0
  %v4339 = vadd.f32 0.0, %v4338
  %v4340 = vpop.f32.mrf.mxu0
  %v4341 = vadd.f32 0.0, %v4340
  %4342 = vdwg.mxu0
  %v4343 = vadd.f32 %v4118, %v4224
  %v4344 = vadd.f32 %v4119, %v4226
  %v4345 = vadd.f32 %v4120, %v4229
  %v4346 = vadd.f32 %v4121, %v4231
  %v4347 = vadd.f32 %v4122, %v4234
  %v4348 = vadd.f32 %v4123, %v4236
  %v4349 = vadd.f32 %v4124, %v4239
  %v4350 = vadd.f32 %v4125, %v4241
  %v4351 = vadd.f32 %v4126, %v4244
  %v4352 = vadd.f32 %v4127, %v4246
  %v4353 = vadd.f32 %v4128, %v4249
  %v4354 = vadd.f32 %v4129, %v4251
  %v4355 = vadd.f32 %v4130, %v4254
  %v4356 = vadd.f32 %v4131, %v4256
  %v4357 = vadd.f32 %v4132, %v4259
  %v4358 = vadd.f32 %v4133, %v4261
  %v4359 = vadd.f32 %v4134, %v4264
  %v4360 = vadd.f32 %v4135, %v4266
  %v4361 = vadd.f32 %v4136, %v4269
  %v4362 = vadd.f32 %v4137, %v4271
  %v4363 = vadd.f32 %v4138, %v4274
  %v4364 = vadd.f32 %v4139, %v4276
  %v4365 = vadd.f32 %v4140, %v4279
  %v4366 = vadd.f32 %v4141, %v4281
  %v4367 = vadd.f32 %v4142, %v4284
  %v4368 = vadd.f32 %v4143, %v4286
  %v4369 = vadd.f32 %v4144, %v4289
  %v4370 = vadd.f32 %v4145, %v4291
  %v4371 = vadd.f32 %v4146, %v4294
  %v4372 = vadd.f32 %v4147, %v4296
  %v4373 = vadd.f32 %v4148, %v4299
  %v4374 = vadd.f32 %v4149, %v4301
  %v4375 = vadd.f32 %v4150, %v4304
  %v4376 = vadd.f32 %v4151, %v4306
  %v4377 = vadd.f32 %v4152, %v4309
  %v4378 = vadd.f32 %v4153, %v4311
  %v4379 = vadd.f32 %v4154, %v4314
  %v4380 = vadd.f32 %v4155, %v4316
  %v4381 = vadd.f32 %v4156, %v4319
  %v4382 = vadd.f32 %v4157, %v4321
  %v4383 = vadd.f32 %v4158, %v4324
  %v4384 = vadd.f32 %v4159, %v4326
  %v4385 = vadd.f32 %v4160, %v4329
  %v4386 = vadd.f32 %v4161, %v4331
  %v4387 = vadd.f32 %v4162, %v4334
  %v4388 = vadd.f32 %v4163, %v4336
  %v4389 = vadd.f32 %v4164, %v4339
  %v4390 = vadd.f32 %v4165, %v4341
  %4391 = vst [vmem:[%s10] sm:$0xff] %v4343
  %4392 = vst [vmem:[%s10 + $0x8] sm:$0xff] %v4344
  %4393 = vst [vmem:[%s10 + $0x10] sm:$0xff] %v4345
  %4394 = vst [vmem:[%s10 + $0x18] sm:$0xff] %v4346
  %4395 = vst [vmem:[%s10 + $0x20] sm:$0xff] %v4347
  %4396 = vst [vmem:[%s10 + $0x28] sm:$0xff] %v4348
  %4397 = vst [vmem:[%s10 + $0x30] sm:$0xff] %v4349
  %4398 = vst [vmem:[%s10 + $0x38] sm:$0xff] %v4350
  %4399 = vst [vmem:[%s10 + $0x40] sm:$0xff] %v4351
  %4400 = vst [vmem:[%s10 + $0x48] sm:$0xff] %v4352
  %4401 = vst [vmem:[%s10 + $0x50] sm:$0xff] %v4353
  %4402 = vst [vmem:[%s10 + $0x58] sm:$0xff] %v4354
  %4403 = vst [vmem:[%s10 + $0x60] sm:$0xff] %v4355
  %4404 = vst [vmem:[%s10 + $0x68] sm:$0xff] %v4356
  %4405 = vst [vmem:[%s10 + $0x70] sm:$0xff] %v4357
  %4406 = vst [vmem:[%s10 + $0x78] sm:$0xff] %v4358
  %4407 = vst [vmem:[%s10 + $0x80] sm:$0xff] %v4359
  %4408 = vst [vmem:[%s10 + $0x88] sm:$0xff] %v4360
  %4409 = vst [vmem:[%s10 + $0x90] sm:$0xff] %v4361
  %4410 = vst [vmem:[%s10 + $0x98] sm:$0xff] %v4362
  %4411 = vst [vmem:[%s10 + $0xa0] sm:$0xff] %v4363
  %4412 = vst [vmem:[%s10 + $0xa8] sm:$0xff] %v4364
  %4413 = vst [vmem:[%s10 + $0xb0] sm:$0xff] %v4365
  %4414 = vst [vmem:[%s10 + $0xb8] sm:$0xff] %v4366
  %4415 = vst [vmem:[%s10 + $0xc0] sm:$0xff] %v4367
  %4416 = vst [vmem:[%s10 + $0xc8] sm:$0xff] %v4368
  %4417 = vst [vmem:[%s10 + $0xd0] sm:$0xff] %v4369
  %4418 = vst [vmem:[%s10 + $0xd8] sm:$0xff] %v4370
  %4419 = vst [vmem:[%s10 + $0xe0] sm:$0xff] %v4371
  %4420 = vst [vmem:[%s10 + $0xe8] sm:$0xff] %v4372
  %4421 = vst [vmem:[%s10 + $0xf0] sm:$0xff] %v4373
  %4422 = vst [vmem:[%s10 + $0xf8] sm:$0xff] %v4374
  %4423 = vst [vmem:[%s10 + $0x100] sm:$0xff] %v4375
  %4424 = vst [vmem:[%s10 + $0x108] sm:$0xff] %v4376
  %4425 = vst [vmem:[%s10 + $0x110] sm:$0xff] %v4377
  %4426 = vst [vmem:[%s10 + $0x118] sm:$0xff] %v4378
  %4427 = vst [vmem:[%s10 + $0x120] sm:$0xff] %v4379
  %4428 = vst [vmem:[%s10 + $0x128] sm:$0xff] %v4380
  %4429 = vst [vmem:[%s10 + $0x130] sm:$0xff] %v4381
  %4430 = vst [vmem:[%s10 + $0x138] sm:$0xff] %v4382
  %4431 = vst [vmem:[%s10 + $0x140] sm:$0xff] %v4383
  %4432 = vst [vmem:[%s10 + $0x148] sm:$0xff] %v4384
  %4433 = vst [vmem:[%s10 + $0x150] sm:$0xff] %v4385
  %4434 = vst [vmem:[%s10 + $0x158] sm:$0xff] %v4386
  %4435 = vst [vmem:[%s10 + $0x160] sm:$0xff] %v4387
  %4436 = vst [vmem:[%s10 + $0x168] sm:$0xff] %v4388
  %4437 = vst [vmem:[%s10 + $0x170] sm:$0xff] %v4389
  %4438 = vst [vmem:[%s10 + $0x178] sm:$0xff] %v4390
  %v4439 = vmul.f32 %v3638, 0.33333334
  %v4440 = vmul.f32 %v3639, 0.33333334
  %v4441 = vmul.f32 %v3640, 0.33333334
  %v4442 = vmul.f32 %v3641, 0.33333334
  %v4443 = vmul.f32 %v3642, 0.33333334
  %v4444 = vmul.f32 %v3643, 0.33333334
  %v4445 = vmul.f32 %v3644, 0.33333334
  %v4446 = vmul.f32 %v3645, 0.33333334
  %v4447 = vmul.f32 %v3646, 0.33333334
  %v4448 = vmul.f32 %v3647, 0.33333334
  %v4449 = vmul.f32 %v3648, 0.33333334
  %v4450 = vmul.f32 %v3649, 0.33333334
  %v4451 = vmul.f32 %v3650, 0.33333334
  %v4452 = vmul.f32 %v3651, 0.33333334
  %v4453 = vmul.f32 %v3652, 0.33333334
  %v4454 = vmul.f32 %v3653, 0.33333334
  %v4455 = vxor.u32 %v4439, 2147483648
  %v4456 = vxor.u32 %v4440, 2147483648
  %v4457 = vxor.u32 %v4441, 2147483648
  %v4458 = vxor.u32 %v4442, 2147483648
  %v4459 = vxor.u32 %v4443, 2147483648
  %v4460 = vxor.u32 %v4444, 2147483648
  %v4461 = vxor.u32 %v4445, 2147483648
  %v4462 = vxor.u32 %v4446, 2147483648
  %v4463 = vxor.u32 %v4447, 2147483648
  %v4464 = vxor.u32 %v4448, 2147483648
  %v4465 = vxor.u32 %v4449, 2147483648
  %v4466 = vxor.u32 %v4450, 2147483648
  %v4467 = vxor.u32 %v4451, 2147483648
  %v4468 = vxor.u32 %v4452, 2147483648
  %v4469 = vxor.u32 %v4453, 2147483648
  %v4470 = vxor.u32 %v4454, 2147483648
  %v4471 = vmul.f32 %v4455, 1.442695
  %v4472 = vpow.pop %v4471
  %v4473 = vmul.f32 %v4456, 1.442695
  %v4474 = vpow.pop %v4473
  %v4475 = vmul.f32 %v4457, 1.442695
  %v4476 = vpow.pop %v4475
  %v4477 = vmul.f32 %v4458, 1.442695
  %v4478 = vpow.pop %v4477
  %v4479 = vmul.f32 %v4459, 1.442695
  %v4480 = vpow.pop %v4479
  %v4481 = vmul.f32 %v4460, 1.442695
  %v4482 = vpow.pop %v4481
  %v4483 = vmul.f32 %v4461, 1.442695
  %v4484 = vpow.pop %v4483
  %v4485 = vmul.f32 %v4462, 1.442695
  %v4486 = vpow.pop %v4485
  %v4487 = vmul.f32 %v4463, 1.442695
  %v4488 = vpow.pop %v4487
  %v4489 = vmul.f32 %v4464, 1.442695
  %v4490 = vpow.pop %v4489
  %v4491 = vmul.f32 %v4465, 1.442695
  %v4492 = vpow.pop %v4491
  %v4493 = vmul.f32 %v4466, 1.442695
  %v4494 = vpow.pop %v4493
  %v4495 = vmul.f32 %v4467, 1.442695
  %v4496 = vpow.pop %v4495
  %v4497 = vmul.f32 %v4468, 1.442695
  %v4498 = vpow.pop %v4497
  %v4499 = vmul.f32 %v4469, 1.442695
  %v4500 = vpow.pop %v4499
  %v4501 = vmul.f32 %v4470, 1.442695
  %v4502 = vpow.pop %v4501
  %v4503 = vadd.f32 %v4472, 1.0
  %v4504 = vadd.f32 %v4474, 1.0
  %v4505 = vadd.f32 %v4476, 1.0
  %v4506 = vadd.f32 %v4478, 1.0
  %v4507 = vadd.f32 %v4480, 1.0
  %v4508 = vadd.f32 %v4482, 1.0
  %v4509 = vadd.f32 %v4484, 1.0
  %v4510 = vadd.f32 %v4486, 1.0
  %v4511 = vadd.f32 %v4488, 1.0
  %v4512 = vadd.f32 %v4490, 1.0
  %v4513 = vadd.f32 %v4492, 1.0
  %v4514 = vadd.f32 %v4494, 1.0
  %v4515 = vadd.f32 %v4496, 1.0
  %v4516 = vadd.f32 %v4498, 1.0
  %v4517 = vadd.f32 %v4500, 1.0
  %v4518 = vadd.f32 %v4502, 1.0
  %v4519 = vrcp.pop %v4503
  %v4520 = vmul.f32 %v4503, %v4519
  %v4521 = vsub.f32 1.0, %v4520
  %v4522 = vmul.f32 %v4519, %v4521
  %v4523 = vadd.f32 %v4519, %v4522
  %vm4524 = vweird.f32 %v4503
  %vm4525 = vweird.f32 %v4519
  %vm4526 = vmor %vm4524, %vm4525
  %v4527 = vsel %vm4526, %v4519, %v4523
  %v4528 = vand.u32 2147483647, %v4503
  %vm4529 = vcmp.eq.f32.partialorder %v4528, 8.507059e+37
  %v4530 = vand.u32 %v4503, 2147483648
  %v4531 = vor.u32 1.1754944e-38, %v4530
  %v4532 = vsel %vm4529, %v4531, %v4527
  %v4533 = vmul.f32 1.0, %v4532
  %v4534 = vrcp.pop %v4504
  %v4535 = vmul.f32 %v4504, %v4534
  %v4536 = vsub.f32 1.0, %v4535
  %v4537 = vmul.f32 %v4534, %v4536
  %v4538 = vadd.f32 %v4534, %v4537
  %vm4539 = vweird.f32 %v4504
  %vm4540 = vweird.f32 %v4534
  %vm4541 = vmor %vm4539, %vm4540
  %v4542 = vsel %vm4541, %v4534, %v4538
  %v4543 = vand.u32 2147483647, %v4504
  %vm4544 = vcmp.eq.f32.partialorder %v4543, 8.507059e+37
  %v4545 = vand.u32 %v4504, 2147483648
  %v4546 = vor.u32 1.1754944e-38, %v4545
  %v4547 = vsel %vm4544, %v4546, %v4542
  %v4548 = vmul.f32 1.0, %v4547
  %v4549 = vrcp.pop %v4505
  %v4550 = vmul.f32 %v4505, %v4549
  %v4551 = vsub.f32 1.0, %v4550
  %v4552 = vmul.f32 %v4549, %v4551
  %v4553 = vadd.f32 %v4549, %v4552
  %vm4554 = vweird.f32 %v4505
  %vm4555 = vweird.f32 %v4549
  %vm4556 = vmor %vm4554, %vm4555
  %v4557 = vsel %vm4556, %v4549, %v4553
  %v4558 = vand.u32 2147483647, %v4505
  %vm4559 = vcmp.eq.f32.partialorder %v4558, 8.507059e+37
  %v4560 = vand.u32 %v4505, 2147483648
  %v4561 = vor.u32 1.1754944e-38, %v4560
  %v4562 = vsel %vm4559, %v4561, %v4557
  %v4563 = vmul.f32 1.0, %v4562
  %v4564 = vrcp.pop %v4506
  %v4565 = vmul.f32 %v4506, %v4564
  %v4566 = vsub.f32 1.0, %v4565
  %v4567 = vmul.f32 %v4564, %v4566
  %v4568 = vadd.f32 %v4564, %v4567
  %vm4569 = vweird.f32 %v4506
  %vm4570 = vweird.f32 %v4564
  %vm4571 = vmor %vm4569, %vm4570
  %v4572 = vsel %vm4571, %v4564, %v4568
  %v4573 = vand.u32 2147483647, %v4506
  %vm4574 = vcmp.eq.f32.partialorder %v4573, 8.507059e+37
  %v4575 = vand.u32 %v4506, 2147483648
  %v4576 = vor.u32 1.1754944e-38, %v4575
  %v4577 = vsel %vm4574, %v4576, %v4572
  %v4578 = vmul.f32 1.0, %v4577
  %v4579 = vrcp.pop %v4507
  %v4580 = vmul.f32 %v4507, %v4579
  %v4581 = vsub.f32 1.0, %v4580
  %v4582 = vmul.f32 %v4579, %v4581
  %v4583 = vadd.f32 %v4579, %v4582
  %vm4584 = vweird.f32 %v4507
  %vm4585 = vweird.f32 %v4579
  %vm4586 = vmor %vm4584, %vm4585
  %v4587 = vsel %vm4586, %v4579, %v4583
  %v4588 = vand.u32 2147483647, %v4507
  %vm4589 = vcmp.eq.f32.partialorder %v4588, 8.507059e+37
  %v4590 = vand.u32 %v4507, 2147483648
  %v4591 = vor.u32 1.1754944e-38, %v4590
  %v4592 = vsel %vm4589, %v4591, %v4587
  %v4593 = vmul.f32 1.0, %v4592
  %v4594 = vrcp.pop %v4508
  %v4595 = vmul.f32 %v4508, %v4594
  %v4596 = vsub.f32 1.0, %v4595
  %v4597 = vmul.f32 %v4594, %v4596
  %v4598 = vadd.f32 %v4594, %v4597
  %vm4599 = vweird.f32 %v4508
  %vm4600 = vweird.f32 %v4594
  %vm4601 = vmor %vm4599, %vm4600
  %v4602 = vsel %vm4601, %v4594, %v4598
  %v4603 = vand.u32 2147483647, %v4508
  %vm4604 = vcmp.eq.f32.partialorder %v4603, 8.507059e+37
  %v4605 = vand.u32 %v4508, 2147483648
  %v4606 = vor.u32 1.1754944e-38, %v4605
  %v4607 = vsel %vm4604, %v4606, %v4602
  %v4608 = vmul.f32 1.0, %v4607
  %v4609 = vrcp.pop %v4509
  %v4610 = vmul.f32 %v4509, %v4609
  %v4611 = vsub.f32 1.0, %v4610
  %v4612 = vmul.f32 %v4609, %v4611
  %v4613 = vadd.f32 %v4609, %v4612
  %vm4614 = vweird.f32 %v4509
  %vm4615 = vweird.f32 %v4609
  %vm4616 = vmor %vm4614, %vm4615
  %v4617 = vsel %vm4616, %v4609, %v4613
  %v4618 = vand.u32 2147483647, %v4509
  %vm4619 = vcmp.eq.f32.partialorder %v4618, 8.507059e+37
  %v4620 = vand.u32 %v4509, 2147483648
  %v4621 = vor.u32 1.1754944e-38, %v4620
  %v4622 = vsel %vm4619, %v4621, %v4617
  %v4623 = vmul.f32 1.0, %v4622
  %v4624 = vrcp.pop %v4510
  %v4625 = vmul.f32 %v4510, %v4624
  %v4626 = vsub.f32 1.0, %v4625
  %v4627 = vmul.f32 %v4624, %v4626
  %v4628 = vadd.f32 %v4624, %v4627
  %vm4629 = vweird.f32 %v4510
  %vm4630 = vweird.f32 %v4624
  %vm4631 = vmor %vm4629, %vm4630
  %v4632 = vsel %vm4631, %v4624, %v4628
  %v4633 = vand.u32 2147483647, %v4510
  %vm4634 = vcmp.eq.f32.partialorder %v4633, 8.507059e+37
  %v4635 = vand.u32 %v4510, 2147483648
  %v4636 = vor.u32 1.1754944e-38, %v4635
  %v4637 = vsel %vm4634, %v4636, %v4632
  %v4638 = vmul.f32 1.0, %v4637
  %v4639 = vrcp.pop %v4511
  %v4640 = vmul.f32 %v4511, %v4639
  %v4641 = vsub.f32 1.0, %v4640
  %v4642 = vmul.f32 %v4639, %v4641
  %v4643 = vadd.f32 %v4639, %v4642
  %vm4644 = vweird.f32 %v4511
  %vm4645 = vweird.f32 %v4639
  %vm4646 = vmor %vm4644, %vm4645
  %v4647 = vsel %vm4646, %v4639, %v4643
  %v4648 = vand.u32 2147483647, %v4511
  %vm4649 = vcmp.eq.f32.partialorder %v4648, 8.507059e+37
  %v4650 = vand.u32 %v4511, 2147483648
  %v4651 = vor.u32 1.1754944e-38, %v4650
  %v4652 = vsel %vm4649, %v4651, %v4647
  %v4653 = vmul.f32 1.0, %v4652
  %v4654 = vrcp.pop %v4512
  %v4655 = vmul.f32 %v4512, %v4654
  %v4656 = vsub.f32 1.0, %v4655
  %v4657 = vmul.f32 %v4654, %v4656
  %v4658 = vadd.f32 %v4654, %v4657
  %vm4659 = vweird.f32 %v4512
  %vm4660 = vweird.f32 %v4654
  %vm4661 = vmor %vm4659, %vm4660
  %v4662 = vsel %vm4661, %v4654, %v4658
  %v4663 = vand.u32 2147483647, %v4512
  %vm4664 = vcmp.eq.f32.partialorder %v4663, 8.507059e+37
  %v4665 = vand.u32 %v4512, 2147483648
  %v4666 = vor.u32 1.1754944e-38, %v4665
  %v4667 = vsel %vm4664, %v4666, %v4662
  %v4668 = vmul.f32 1.0, %v4667
  %v4669 = vrcp.pop %v4513
  %v4670 = vmul.f32 %v4513, %v4669
  %v4671 = vsub.f32 1.0, %v4670
  %v4672 = vmul.f32 %v4669, %v4671
  %v4673 = vadd.f32 %v4669, %v4672
  %vm4674 = vweird.f32 %v4513
  %vm4675 = vweird.f32 %v4669
  %vm4676 = vmor %vm4674, %vm4675
  %v4677 = vsel %vm4676, %v4669, %v4673
  %v4678 = vand.u32 2147483647, %v4513
  %vm4679 = vcmp.eq.f32.partialorder %v4678, 8.507059e+37
  %v4680 = vand.u32 %v4513, 2147483648
  %v4681 = vor.u32 1.1754944e-38, %v4680
  %v4682 = vsel %vm4679, %v4681, %v4677
  %v4683 = vmul.f32 1.0, %v4682
  %v4684 = vrcp.pop %v4514
  %v4685 = vmul.f32 %v4514, %v4684
  %v4686 = vsub.f32 1.0, %v4685
  %v4687 = vmul.f32 %v4684, %v4686
  %v4688 = vadd.f32 %v4684, %v4687
  %vm4689 = vweird.f32 %v4514
  %vm4690 = vweird.f32 %v4684
  %vm4691 = vmor %vm4689, %vm4690
  %v4692 = vsel %vm4691, %v4684, %v4688
  %v4693 = vand.u32 2147483647, %v4514
  %vm4694 = vcmp.eq.f32.partialorder %v4693, 8.507059e+37
  %v4695 = vand.u32 %v4514, 2147483648
  %v4696 = vor.u32 1.1754944e-38, %v4695
  %v4697 = vsel %vm4694, %v4696, %v4692
  %v4698 = vmul.f32 1.0, %v4697
  %v4699 = vrcp.pop %v4515
  %v4700 = vmul.f32 %v4515, %v4699
  %v4701 = vsub.f32 1.0, %v4700
  %v4702 = vmul.f32 %v4699, %v4701
  %v4703 = vadd.f32 %v4699, %v4702
  %vm4704 = vweird.f32 %v4515
  %vm4705 = vweird.f32 %v4699
  %vm4706 = vmor %vm4704, %vm4705
  %v4707 = vsel %vm4706, %v4699, %v4703
  %v4708 = vand.u32 2147483647, %v4515
  %vm4709 = vcmp.eq.f32.partialorder %v4708, 8.507059e+37
  %v4710 = vand.u32 %v4515, 2147483648
  %v4711 = vor.u32 1.1754944e-38, %v4710
  %v4712 = vsel %vm4709, %v4711, %v4707
  %v4713 = vmul.f32 1.0, %v4712
  %v4714 = vrcp.pop %v4516
  %v4715 = vmul.f32 %v4516, %v4714
  %v4716 = vsub.f32 1.0, %v4715
  %v4717 = vmul.f32 %v4714, %v4716
  %v4718 = vadd.f32 %v4714, %v4717
  %vm4719 = vweird.f32 %v4516
  %vm4720 = vweird.f32 %v4714
  %vm4721 = vmor %vm4719, %vm4720
  %v4722 = vsel %vm4721, %v4714, %v4718
  %v4723 = vand.u32 2147483647, %v4516
  %vm4724 = vcmp.eq.f32.partialorder %v4723, 8.507059e+37
  %v4725 = vand.u32 %v4516, 2147483648
  %v4726 = vor.u32 1.1754944e-38, %v4725
  %v4727 = vsel %vm4724, %v4726, %v4722
  %v4728 = vmul.f32 1.0, %v4727
  %v4729 = vrcp.pop %v4517
  %v4730 = vmul.f32 %v4517, %v4729
  %v4731 = vsub.f32 1.0, %v4730
  %v4732 = vmul.f32 %v4729, %v4731
  %v4733 = vadd.f32 %v4729, %v4732
  %vm4734 = vweird.f32 %v4517
  %vm4735 = vweird.f32 %v4729
  %vm4736 = vmor %vm4734, %vm4735
  %v4737 = vsel %vm4736, %v4729, %v4733
  %v4738 = vand.u32 2147483647, %v4517
  %vm4739 = vcmp.eq.f32.partialorder %v4738, 8.507059e+37
  %v4740 = vand.u32 %v4517, 2147483648
  %v4741 = vor.u32 1.1754944e-38, %v4740
  %v4742 = vsel %vm4739, %v4741, %v4737
  %v4743 = vmul.f32 1.0, %v4742
  %v4744 = vrcp.pop %v4518
  %v4745 = vmul.f32 %v4518, %v4744
  %v4746 = vsub.f32 1.0, %v4745
  %v4747 = vmul.f32 %v4744, %v4746
  %v4748 = vadd.f32 %v4744, %v4747
  %vm4749 = vweird.f32 %v4518
  %vm4750 = vweird.f32 %v4744
  %vm4751 = vmor %vm4749, %vm4750
  %v4752 = vsel %vm4751, %v4744, %v4748
  %v4753 = vand.u32 2147483647, %v4518
  %vm4754 = vcmp.eq.f32.partialorder %v4753, 8.507059e+37
  %v4755 = vand.u32 %v4518, 2147483648
  %v4756 = vor.u32 1.1754944e-38, %v4755
  %v4757 = vsel %vm4754, %v4756, %v4752
  %v4758 = vmul.f32 1.0, %v4757
  %v4759 = vpack.c.bf16 %v4548, %v4533
  %v4760 = vpack.c.bf16 %v4578, %v4563
  %v4761 = vpack.c.bf16 %v4608, %v4593
  %v4762 = vpack.c.bf16 %v4638, %v4623
  %v4763 = vpack.c.bf16 %v4668, %v4653
  %v4764 = vpack.c.bf16 %v4698, %v4683
  %v4765 = vpack.c.bf16 %v4728, %v4713
  %v4766 = vpack.c.bf16 %v4758, %v4743
  %v4767 = vld [vmem:[%s8] sm:$0xff]
  %v4768 = vld [vmem:[%s8 + $0x8] sm:$0xff]
  %v4769 = vld [vmem:[%s8 + $0x10] sm:$0xff]
  %v4770 = vld [vmem:[%s8 + $0x18] sm:$0xff]
  %v4771 = vld [vmem:[%s8 + $0x20] sm:$0xff]
  %v4772 = vld [vmem:[%s8 + $0x28] sm:$0xff]
  %v4773 = vld [vmem:[%s8 + $0x30] sm:$0xff]
  %v4774 = vld [vmem:[%s8 + $0x38] sm:$0xff]
  %v4775 = vld [vmem:[%s8 + $0x40] sm:$0xff]
  %v4776 = vld [vmem:[%s8 + $0x48] sm:$0xff]
  %v4777 = vld [vmem:[%s8 + $0x50] sm:$0xff]
  %v4778 = vld [vmem:[%s8 + $0x58] sm:$0xff]
  %v4779 = vld [vmem:[%s8 + $0x60] sm:$0xff]
  %v4780 = vld [vmem:[%s8 + $0x68] sm:$0xff]
  %v4781 = vld [vmem:[%s8 + $0x70] sm:$0xff]
  %v4782 = vld [vmem:[%s8 + $0x78] sm:$0xff]
  %4783 = vmatpush.bf16.msra.mxu0 %v4205
  %4784 = vmatpush.bf16.msra.mxu0 %v4204
  %4785 = vmatpush.bf16.msra.mxu0 %v4203
  %4786 = vmatpush.bf16.msra.mxu0 %v4202
  %4787 = vmatpush.bf16.msra.mxu0 %v4201
  %4788 = vmatpush.bf16.msra.mxu0 %v4200
  %4789 = vmatpush.bf16.msra.mxu0 %v4199
  %4790 = vmatpush.bf16.msra.mxu0 %v4198
  %4791 = vmatmul.bf16.gmra.mxu0 %v4759
  %v4792 = vpop.f32.mrf.mxu0
  %v4793 = vadd.f32 0.0, %v4792
  %v4794 = vpop.f32.mrf.mxu0
  %v4795 = vadd.f32 0.0, %v4794
  %4796 = vmatmul.bf16.gmra.mxu0 %v4760
  %v4797 = vpop.f32.mrf.mxu0
  %v4798 = vadd.f32 0.0, %v4797
  %v4799 = vpop.f32.mrf.mxu0
  %v4800 = vadd.f32 0.0, %v4799
  %4801 = vmatmul.bf16.gmra.mxu0 %v4761
  %v4802 = vpop.f32.mrf.mxu0
  %v4803 = vadd.f32 0.0, %v4802
  %v4804 = vpop.f32.mrf.mxu0
  %v4805 = vadd.f32 0.0, %v4804
  %4806 = vmatmul.bf16.gmra.mxu0 %v4762
  %v4807 = vpop.f32.mrf.mxu0
  %v4808 = vadd.f32 0.0, %v4807
  %v4809 = vpop.f32.mrf.mxu0
  %v4810 = vadd.f32 0.0, %v4809
  %4811 = vmatmul.bf16.gmra.mxu0 %v4763
  %v4812 = vpop.f32.mrf.mxu0
  %v4813 = vadd.f32 0.0, %v4812
  %v4814 = vpop.f32.mrf.mxu0
  %v4815 = vadd.f32 0.0, %v4814
  %4816 = vmatmul.bf16.gmra.mxu0 %v4764
  %v4817 = vpop.f32.mrf.mxu0
  %v4818 = vadd.f32 0.0, %v4817
  %v4819 = vpop.f32.mrf.mxu0
  %v4820 = vadd.f32 0.0, %v4819
  %4821 = vmatmul.bf16.gmra.mxu0 %v4765
  %v4822 = vpop.f32.mrf.mxu0
  %v4823 = vadd.f32 0.0, %v4822
  %v4824 = vpop.f32.mrf.mxu0
  %v4825 = vadd.f32 0.0, %v4824
  %4826 = vmatmul.bf16.gmra.mxu0 %v4766
  %v4827 = vpop.f32.mrf.mxu0
  %v4828 = vadd.f32 0.0, %v4827
  %v4829 = vpop.f32.mrf.mxu0
  %v4830 = vadd.f32 0.0, %v4829
  %4831 = vdwg.mxu0
  %v4832 = vadd.f32 %v4767, %v4793
  %v4833 = vadd.f32 %v4768, %v4795
  %v4834 = vadd.f32 %v4769, %v4798
  %v4835 = vadd.f32 %v4770, %v4800
  %v4836 = vadd.f32 %v4771, %v4803
  %v4837 = vadd.f32 %v4772, %v4805
  %v4838 = vadd.f32 %v4773, %v4808
  %v4839 = vadd.f32 %v4774, %v4810
  %v4840 = vadd.f32 %v4775, %v4813
  %v4841 = vadd.f32 %v4776, %v4815
  %v4842 = vadd.f32 %v4777, %v4818
  %v4843 = vadd.f32 %v4778, %v4820
  %v4844 = vadd.f32 %v4779, %v4823
  %v4845 = vadd.f32 %v4780, %v4825
  %v4846 = vadd.f32 %v4781, %v4828
  %v4847 = vadd.f32 %v4782, %v4830
  %4848 = vst [vmem:[%s8] sm:$0xff] %v4832
  %4849 = vst [vmem:[%s8 + $0x8] sm:$0xff] %v4833
  %4850 = vst [vmem:[%s8 + $0x10] sm:$0xff] %v4834
  %4851 = vst [vmem:[%s8 + $0x18] sm:$0xff] %v4835
  %4852 = vst [vmem:[%s8 + $0x20] sm:$0xff] %v4836
  %4853 = vst [vmem:[%s8 + $0x28] sm:$0xff] %v4837
  %4854 = vst [vmem:[%s8 + $0x30] sm:$0xff] %v4838
  %4855 = vst [vmem:[%s8 + $0x38] sm:$0xff] %v4839
  %4856 = vst [vmem:[%s8 + $0x40] sm:$0xff] %v4840
  %4857 = vst [vmem:[%s8 + $0x48] sm:$0xff] %v4841
  %4858 = vst [vmem:[%s8 + $0x50] sm:$0xff] %v4842
  %4859 = vst [vmem:[%s8 + $0x58] sm:$0xff] %v4843
  %4860 = vst [vmem:[%s8 + $0x60] sm:$0xff] %v4844
  %4861 = vst [vmem:[%s8 + $0x68] sm:$0xff] %v4845
  %4862 = vst [vmem:[%s8 + $0x70] sm:$0xff] %v4846
  %4863 = vst [vmem:[%s8 + $0x78] sm:$0xff] %v4847
  %s4864 = scalar_lea.vmem %s3, 64
  %v4865 = vld [vmem:[%s4864] sm:$0xf]
  %v4866 = vld [vmem:[%s4864 + $0x4] sm:$0xf]
  %v4867 = vld [vmem:[%s4864 + $0x8] sm:$0xf]
  %v4868 = vld [vmem:[%s4864 + $0xc] sm:$0xf]
  %v4869 = vld [vmem:[%s4864 + $0x10] sm:$0xf]
  %v4870 = vld [vmem:[%s4864 + $0x14] sm:$0xf]
  %v4871 = vld [vmem:[%s4864 + $0x18] sm:$0xf]
  %v4872 = vld [vmem:[%s4864 + $0x1c] sm:$0xf]
  %v4873 = vld [vmem:[%s4864 + $0x20] sm:$0xf]
  %v4874 = vld [vmem:[%s4864 + $0x24] sm:$0xf]
  %v4875 = vld [vmem:[%s4864 + $0x28] sm:$0xf]
  %v4876 = vld [vmem:[%s4864 + $0x2c] sm:$0xf]
  %v4877 = vld [vmem:[%s4864 + $0x30] sm:$0xf]
  %v4878 = vld [vmem:[%s4864 + $0x34] sm:$0xf]
  %v4879 = vld [vmem:[%s4864 + $0x38] sm:$0xf]
  %v4880 = vld [vmem:[%s4864 + $0x3c] sm:$0xf]
  %s4881 = scalar_lea.vmem %s4, 64
  %v4882 = vld [vmem:[%s4881] sm:$0xf]
  %v4883 = vld [vmem:[%s4881 + $0x4] sm:$0xf]
  %v4884 = vld [vmem:[%s4881 + $0x8] sm:$0xf]
  %v4885 = vld [vmem:[%s4881 + $0xc] sm:$0xf]
  %v4886 = vld [vmem:[%s4881 + $0x10] sm:$0xf]
  %v4887 = vld [vmem:[%s4881 + $0x14] sm:$0xf]
  %v4888 = vld [vmem:[%s4881 + $0x18] sm:$0xf]
  %v4889 = vld [vmem:[%s4881 + $0x1c] sm:$0xf]
  %v4890 = vld [vmem:[%s4881 + $0x20] sm:$0xf]
  %v4891 = vld [vmem:[%s4881 + $0x24] sm:$0xf]
  %v4892 = vld [vmem:[%s4881 + $0x28] sm:$0xf]
  %v4893 = vld [vmem:[%s4881 + $0x2c] sm:$0xf]
  %v4894 = vld [vmem:[%s4881 + $0x30] sm:$0xf]
  %v4895 = vld [vmem:[%s4881 + $0x34] sm:$0xf]
  %v4896 = vld [vmem:[%s4881 + $0x38] sm:$0xf]
  %v4897 = vld [vmem:[%s4881 + $0x3c] sm:$0xf]
  %s4898 = scalar_lea.vmem %s5, 64
  %v4899 = vld [vmem:[%s4898] sm:$0xf]
  %v4900 = vld [vmem:[%s4898 + $0x4] sm:$0xf]
  %v4901 = vld [vmem:[%s4898 + $0x8] sm:$0xf]
  %v4902 = vld [vmem:[%s4898 + $0xc] sm:$0xf]
  %v4903 = vld [vmem:[%s4898 + $0x10] sm:$0xf]
  %v4904 = vld [vmem:[%s4898 + $0x14] sm:$0xf]
  %v4905 = vld [vmem:[%s4898 + $0x18] sm:$0xf]
  %v4906 = vld [vmem:[%s4898 + $0x1c] sm:$0xf]
  %v4907 = vld [vmem:[%s4898 + $0x20] sm:$0xf]
  %v4908 = vld [vmem:[%s4898 + $0x24] sm:$0xf]
  %v4909 = vld [vmem:[%s4898 + $0x28] sm:$0xf]
  %v4910 = vld [vmem:[%s4898 + $0x2c] sm:$0xf]
  %v4911 = vld [vmem:[%s4898 + $0x30] sm:$0xf]
  %v4912 = vld [vmem:[%s4898 + $0x34] sm:$0xf]
  %v4913 = vld [vmem:[%s4898 + $0x38] sm:$0xf]
  %v4914 = vld [vmem:[%s4898 + $0x3c] sm:$0xf]
  %s4915 = scalar_lea.vmem %s6, 64
  %v4916 = vld [vmem:[%s4915] sm:$0xf]
  %v4917 = vld [vmem:[%s4915 + $0x4] sm:$0xf]
  %v4918 = vld [vmem:[%s4915 + $0x8] sm:$0xf]
  %v4919 = vld [vmem:[%s4915 + $0xc] sm:$0xf]
  %v4920 = vld [vmem:[%s4915 + $0x10] sm:$0xf]
  %v4921 = vld [vmem:[%s4915 + $0x14] sm:$0xf]
  %v4922 = vld [vmem:[%s4915 + $0x18] sm:$0xf]
  %v4923 = vld [vmem:[%s4915 + $0x1c] sm:$0xf]
  %v4924 = vld [vmem:[%s4915 + $0x20] sm:$0xf]
  %v4925 = vld [vmem:[%s4915 + $0x24] sm:$0xf]
  %v4926 = vld [vmem:[%s4915 + $0x28] sm:$0xf]
  %v4927 = vld [vmem:[%s4915 + $0x2c] sm:$0xf]
  %v4928 = vld [vmem:[%s4915 + $0x30] sm:$0xf]
  %v4929 = vld [vmem:[%s4915 + $0x34] sm:$0xf]
  %v4930 = vld [vmem:[%s4915 + $0x38] sm:$0xf]
  %v4931 = vld [vmem:[%s4915 + $0x3c] sm:$0xf]
  %v4948 = vunpack.c.l.b16 %v4865
  %v4949 = vunpack.c.l.b16 %v4866
  %v4950 = vunpack.c.l.b16 %v4867
  %v4951 = vunpack.c.l.b16 %v4868
  %v4952 = vunpack.c.l.b16 %v4869
  %v4953 = vunpack.c.l.b16 %v4870
  %v4954 = vunpack.c.l.b16 %v4871
  %v4955 = vunpack.c.l.b16 %v4872
  %v4956 = vunpack.c.l.b16 %v4873
  %v4957 = vunpack.c.l.b16 %v4874
  %v4958 = vunpack.c.l.b16 %v4875
  %v4959 = vunpack.c.l.b16 %v4876
  %v4960 = vunpack.c.l.b16 %v4877
  %v4961 = vunpack.c.l.b16 %v4878
  %v4962 = vunpack.c.l.b16 %v4879
  %v4963 = vunpack.c.l.b16 %v4880
  %v4964 = vpack.c.b16 %v4949, %v4948
  %v4965 = vpack.c.b16 %v4951, %v4950
  %v4966 = vpack.c.b16 %v4953, %v4952
  %v4967 = vpack.c.b16 %v4955, %v4954
  %v4968 = vpack.c.b16 %v4957, %v4956
  %v4969 = vpack.c.b16 %v4959, %v4958
  %v4970 = vpack.c.b16 %v4961, %v4960
  %v4971 = vpack.c.b16 %v4963, %v4962
  %4980 = vmatpush.bf16.msra.mxu0 %v4971
  %4981 = vmatpush.bf16.msra.mxu0 %v4970
  %4982 = vmatpush.bf16.msra.mxu0 %v4969
  %4983 = vmatpush.bf16.msra.mxu0 %v4968
  %4984 = vmatpush.bf16.msra.mxu0 %v4967
  %4985 = vmatpush.bf16.msra.mxu0 %v4966
  %4986 = vmatpush.bf16.msra.mxu0 %v4965
  %4987 = vmatpush.bf16.msra.mxu0 %v4964
  %4988 = vmatmul.bf16.gmra.mxu0 %v4759
  %v4989 = vpop.f32.mrf.mxu0
  %v4990 = vadd.f32 0.0, %v4989
  %v4991 = vpop.f32.mrf.mxu0
  %v4992 = vadd.f32 0.0, %v4991
  %4993 = vmatmul.bf16.gmra.mxu0 %v4760
  %v4994 = vpop.f32.mrf.mxu0
  %v4995 = vadd.f32 0.0, %v4994
  %v4996 = vpop.f32.mrf.mxu0
  %v4997 = vadd.f32 0.0, %v4996
  %4998 = vmatmul.bf16.gmra.mxu0 %v4761
  %v4999 = vpop.f32.mrf.mxu0
  %v5000 = vadd.f32 0.0, %v4999
  %v5001 = vpop.f32.mrf.mxu0
  %v5002 = vadd.f32 0.0, %v5001
  %5003 = vmatmul.bf16.gmra.mxu0 %v4762
  %v5004 = vpop.f32.mrf.mxu0
  %v5005 = vadd.f32 0.0, %v5004
  %v5006 = vpop.f32.mrf.mxu0
  %v5007 = vadd.f32 0.0, %v5006
  %5008 = vmatmul.bf16.gmra.mxu0 %v4763
  %v5009 = vpop.f32.mrf.mxu0
  %v5010 = vadd.f32 0.0, %v5009
  %v5011 = vpop.f32.mrf.mxu0
  %v5012 = vadd.f32 0.0, %v5011
  %5013 = vmatmul.bf16.gmra.mxu0 %v4764
  %v5014 = vpop.f32.mrf.mxu0
  %v5015 = vadd.f32 0.0, %v5014
  %v5016 = vpop.f32.mrf.mxu0
  %v5017 = vadd.f32 0.0, %v5016
  %5018 = vmatmul.bf16.gmra.mxu0 %v4765
  %v5019 = vpop.f32.mrf.mxu0
  %v5020 = vadd.f32 0.0, %v5019
  %v5021 = vpop.f32.mrf.mxu0
  %v5022 = vadd.f32 0.0, %v5021
  %5023 = vmatmul.bf16.gmra.mxu0 %v4766
  %v5024 = vpop.f32.mrf.mxu0
  %v5025 = vadd.f32 0.0, %v5024
  %v5026 = vpop.f32.mrf.mxu0
  %v5027 = vadd.f32 0.0, %v5026
  %5028 = vdwg.mxu0
  %v5029 = vpack.c.bf16 %v4992, %v4990
  %v5030 = vpack.c.bf16 %v4997, %v4995
  %v5031 = vpack.c.bf16 %v5002, %v5000
  %v5032 = vpack.c.bf16 %v5007, %v5005
  %v5033 = vpack.c.bf16 %v5012, %v5010
  %v5034 = vpack.c.bf16 %v5017, %v5015
  %v5035 = vpack.c.bf16 %v5022, %v5020
  %v5036 = vpack.c.bf16 %v5027, %v5025
  %v5053 = vunpack.c.l.b16 %v4882
  %v5054 = vunpack.c.l.b16 %v4883
  %v5055 = vunpack.c.l.b16 %v4884
  %v5056 = vunpack.c.l.b16 %v4885
  %v5057 = vunpack.c.l.b16 %v4886
  %v5058 = vunpack.c.l.b16 %v4887
  %v5059 = vunpack.c.l.b16 %v4888
  %v5060 = vunpack.c.l.b16 %v4889
  %v5061 = vunpack.c.l.b16 %v4890
  %v5062 = vunpack.c.l.b16 %v4891
  %v5063 = vunpack.c.l.b16 %v4892
  %v5064 = vunpack.c.l.b16 %v4893
  %v5065 = vunpack.c.l.b16 %v4894
  %v5066 = vunpack.c.l.b16 %v4895
  %v5067 = vunpack.c.l.b16 %v4896
  %v5068 = vunpack.c.l.b16 %v4897
  %v5069 = vpack.c.b16 %v5054, %v5053
  %v5070 = vpack.c.b16 %v5056, %v5055
  %v5071 = vpack.c.b16 %v5058, %v5057
  %v5072 = vpack.c.b16 %v5060, %v5059
  %v5073 = vpack.c.b16 %v5062, %v5061
  %v5074 = vpack.c.b16 %v5064, %v5063
  %v5075 = vpack.c.b16 %v5066, %v5065
  %v5076 = vpack.c.b16 %v5068, %v5067
  %5085 = vmatpush.bf16.msra.mxu0 %v5076
  %5086 = vmatpush.bf16.msra.mxu0 %v5075
  %5087 = vmatpush.bf16.msra.mxu0 %v5074
  %5088 = vmatpush.bf16.msra.mxu0 %v5073
  %5089 = vmatpush.bf16.msra.mxu0 %v5072
  %5090 = vmatpush.bf16.msra.mxu0 %v5071
  %5091 = vmatpush.bf16.msra.mxu0 %v5070
  %5092 = vmatpush.bf16.msra.mxu0 %v5069
  %5093 = vmatmul.bf16.gmra.mxu0 %v2490
  %v5094 = vpop.f32.mrf.mxu0
  %v5095 = vadd.f32 0.0, %v5094
  %v5096 = vpop.f32.mrf.mxu0
  %v5097 = vadd.f32 0.0, %v5096
  %5098 = vmatmul.bf16.gmra.mxu0 %v2491
  %v5099 = vpop.f32.mrf.mxu0
  %v5100 = vadd.f32 0.0, %v5099
  %v5101 = vpop.f32.mrf.mxu0
  %v5102 = vadd.f32 0.0, %v5101
  %5103 = vmatmul.bf16.gmra.mxu0 %v2492
  %v5104 = vpop.f32.mrf.mxu0
  %v5105 = vadd.f32 0.0, %v5104
  %v5106 = vpop.f32.mrf.mxu0
  %v5107 = vadd.f32 0.0, %v5106
  %5108 = vmatmul.bf16.gmra.mxu0 %v2493
  %v5109 = vpop.f32.mrf.mxu0
  %v5110 = vadd.f32 0.0, %v5109
  %v5111 = vpop.f32.mrf.mxu0
  %v5112 = vadd.f32 0.0, %v5111
  %5113 = vmatmul.bf16.gmra.mxu0 %v2494
  %v5114 = vpop.f32.mrf.mxu0
  %v5115 = vadd.f32 0.0, %v5114
  %v5116 = vpop.f32.mrf.mxu0
  %v5117 = vadd.f32 0.0, %v5116
  %5118 = vmatmul.bf16.gmra.mxu0 %v2495
  %v5119 = vpop.f32.mrf.mxu0
  %v5120 = vadd.f32 0.0, %v5119
  %v5121 = vpop.f32.mrf.mxu0
  %v5122 = vadd.f32 0.0, %v5121
  %5123 = vmatmul.bf16.gmra.mxu0 %v2496
  %v5124 = vpop.f32.mrf.mxu0
  %v5125 = vadd.f32 0.0, %v5124
  %v5126 = vpop.f32.mrf.mxu0
  %v5127 = vadd.f32 0.0, %v5126
  %5128 = vmatmul.bf16.gmra.mxu0 %v2497
  %v5129 = vpop.f32.mrf.mxu0
  %v5130 = vadd.f32 0.0, %v5129
  %v5131 = vpop.f32.mrf.mxu0
  %v5132 = vadd.f32 0.0, %v5131
  %5133 = vdwg.mxu0
  %v5134 = vpack.c.bf16 %v5097, %v5095
  %v5135 = vpack.c.bf16 %v5102, %v5100
  %v5136 = vpack.c.bf16 %v5107, %v5105
  %v5137 = vpack.c.bf16 %v5112, %v5110
  %v5138 = vpack.c.bf16 %v5117, %v5115
  %v5139 = vpack.c.bf16 %v5122, %v5120
  %v5140 = vpack.c.bf16 %v5127, %v5125
  %v5141 = vpack.c.bf16 %v5132, %v5130
  %v5142 = vld [vmem:[%s0] sm:$0xf]
  %v5143 = vld [vmem:[%s0 + $0x4] sm:$0xf]
  %v5144 = vld [vmem:[%s0 + $0x8] sm:$0xf]
  %v5145 = vld [vmem:[%s0 + $0xc] sm:$0xf]
  %v5146 = vld [vmem:[%s0 + $0x10] sm:$0xf]
  %v5147 = vld [vmem:[%s0 + $0x14] sm:$0xf]
  %v5148 = vld [vmem:[%s0 + $0x18] sm:$0xf]
  %v5149 = vld [vmem:[%s0 + $0x1c] sm:$0xf]
  %v5150 = vld [vmem:[%s0 + $0x20] sm:$0xf]
  %v5151 = vld [vmem:[%s0 + $0x24] sm:$0xf]
  %v5152 = vld [vmem:[%s0 + $0x28] sm:$0xf]
  %v5153 = vld [vmem:[%s0 + $0x2c] sm:$0xf]
  %v5154 = vld [vmem:[%s0 + $0x30] sm:$0xf]
  %v5155 = vld [vmem:[%s0 + $0x34] sm:$0xf]
  %v5156 = vld [vmem:[%s0 + $0x38] sm:$0xf]
  %v5157 = vld [vmem:[%s0 + $0x3c] sm:$0xf]
  %v5158 = vld [vmem:[%s0 + $0x40] sm:$0xf]
  %v5159 = vld [vmem:[%s0 + $0x44] sm:$0xf]
  %v5160 = vld [vmem:[%s0 + $0x48] sm:$0xf]
  %v5161 = vld [vmem:[%s0 + $0x4c] sm:$0xf]
  %v5162 = vld [vmem:[%s0 + $0x50] sm:$0xf]
  %v5163 = vld [vmem:[%s0 + $0x54] sm:$0xf]
  %v5164 = vld [vmem:[%s0 + $0x58] sm:$0xf]
  %v5165 = vld [vmem:[%s0 + $0x5c] sm:$0xf]
  %v5166 = vld [vmem:[%s0 + $0x60] sm:$0xf]
  %v5167 = vld [vmem:[%s0 + $0x64] sm:$0xf]
  %v5168 = vld [vmem:[%s0 + $0x68] sm:$0xf]
  %v5169 = vld [vmem:[%s0 + $0x6c] sm:$0xf]
  %v5170 = vld [vmem:[%s0 + $0x70] sm:$0xf]
  %v5171 = vld [vmem:[%s0 + $0x74] sm:$0xf]
  %v5172 = vld [vmem:[%s0 + $0x78] sm:$0xf]
  %v5173 = vld [vmem:[%s0 + $0x7c] sm:$0xf]
  %v5174 = vld [vmem:[%s0 + $0x80] sm:$0xf]
  %v5175 = vld [vmem:[%s0 + $0x84] sm:$0xf]
  %v5176 = vld [vmem:[%s0 + $0x88] sm:$0xf]
  %v5177 = vld [vmem:[%s0 + $0x8c] sm:$0xf]
  %v5178 = vld [vmem:[%s0 + $0x90] sm:$0xf]
  %v5179 = vld [vmem:[%s0 + $0x94] sm:$0xf]
  %v5180 = vld [vmem:[%s0 + $0x98] sm:$0xf]
  %v5181 = vld [vmem:[%s0 + $0x9c] sm:$0xf]
  %v5182 = vld [vmem:[%s0 + $0xa0] sm:$0xf]
  %v5183 = vld [vmem:[%s0 + $0xa4] sm:$0xf]
  %v5184 = vld [vmem:[%s0 + $0xa8] sm:$0xf]
  %v5185 = vld [vmem:[%s0 + $0xac] sm:$0xf]
  %v5186 = vld [vmem:[%s0 + $0xb0] sm:$0xf]
  %v5187 = vld [vmem:[%s0 + $0xb4] sm:$0xf]
  %v5188 = vld [vmem:[%s0 + $0xb8] sm:$0xf]
  %v5189 = vld [vmem:[%s0 + $0xbc] sm:$0xf]
  %v5238 = vunpack.c.l.b16 %v5142
  %v5239 = vunpack.c.l.b16 %v5143
  %v5240 = vunpack.c.l.b16 %v5144
  %v5241 = vunpack.c.l.b16 %v5145
  %v5242 = vunpack.c.l.b16 %v5146
  %v5243 = vunpack.c.l.b16 %v5147
  %v5244 = vunpack.c.l.b16 %v5148
  %v5245 = vunpack.c.l.b16 %v5149
  %v5246 = vunpack.c.l.b16 %v5150
  %v5247 = vunpack.c.l.b16 %v5151
  %v5248 = vunpack.c.l.b16 %v5152
  %v5249 = vunpack.c.l.b16 %v5153
  %v5250 = vunpack.c.l.b16 %v5154
  %v5251 = vunpack.c.l.b16 %v5155
  %v5252 = vunpack.c.l.b16 %v5156
  %v5253 = vunpack.c.l.b16 %v5157
  %v5254 = vunpack.c.l.b16 %v5158
  %v5255 = vunpack.c.l.b16 %v5159
  %v5256 = vunpack.c.l.b16 %v5160
  %v5257 = vunpack.c.l.b16 %v5161
  %v5258 = vunpack.c.l.b16 %v5162
  %v5259 = vunpack.c.l.b16 %v5163
  %v5260 = vunpack.c.l.b16 %v5164
  %v5261 = vunpack.c.l.b16 %v5165
  %v5262 = vunpack.c.l.b16 %v5166
  %v5263 = vunpack.c.l.b16 %v5167
  %v5264 = vunpack.c.l.b16 %v5168
  %v5265 = vunpack.c.l.b16 %v5169
  %v5266 = vunpack.c.l.b16 %v5170
  %v5267 = vunpack.c.l.b16 %v5171
  %v5268 = vunpack.c.l.b16 %v5172
  %v5269 = vunpack.c.l.b16 %v5173
  %v5270 = vunpack.c.l.b16 %v5174
  %v5271 = vunpack.c.l.b16 %v5175
  %v5272 = vunpack.c.l.b16 %v5176
  %v5273 = vunpack.c.l.b16 %v5177
  %v5274 = vunpack.c.l.b16 %v5178
  %v5275 = vunpack.c.l.b16 %v5179
  %v5276 = vunpack.c.l.b16 %v5180
  %v5277 = vunpack.c.l.b16 %v5181
  %v5278 = vunpack.c.l.b16 %v5182
  %v5279 = vunpack.c.l.b16 %v5183
  %v5280 = vunpack.c.l.b16 %v5184
  %v5281 = vunpack.c.l.b16 %v5185
  %v5282 = vunpack.c.l.b16 %v5186
  %v5283 = vunpack.c.l.b16 %v5187
  %v5284 = vunpack.c.l.b16 %v5188
  %v5285 = vunpack.c.l.b16 %v5189
  %v5286 = vpack.c.b16 %v5239, %v5238
  %v5287 = vpack.c.b16 %v5241, %v5240
  %v5288 = vpack.c.b16 %v5243, %v5242
  %v5289 = vpack.c.b16 %v5245, %v5244
  %v5290 = vpack.c.b16 %v5247, %v5246
  %v5291 = vpack.c.b16 %v5249, %v5248
  %v5292 = vpack.c.b16 %v5251, %v5250
  %v5293 = vpack.c.b16 %v5253, %v5252
  %v5294 = vpack.c.b16 %v5255, %v5254
  %v5295 = vpack.c.b16 %v5257, %v5256
  %v5296 = vpack.c.b16 %v5259, %v5258
  %v5297 = vpack.c.b16 %v5261, %v5260
  %v5298 = vpack.c.b16 %v5263, %v5262
  %v5299 = vpack.c.b16 %v5265, %v5264
  %v5300 = vpack.c.b16 %v5267, %v5266
  %v5301 = vpack.c.b16 %v5269, %v5268
  %v5302 = vpack.c.b16 %v5271, %v5270
  %v5303 = vpack.c.b16 %v5273, %v5272
  %v5304 = vpack.c.b16 %v5275, %v5274
  %v5305 = vpack.c.b16 %v5277, %v5276
  %v5306 = vpack.c.b16 %v5279, %v5278
  %v5307 = vpack.c.b16 %v5281, %v5280
  %v5308 = vpack.c.b16 %v5283, %v5282
  %v5309 = vpack.c.b16 %v5285, %v5284
  %5334 = vmatpush.bf16.msra.mxu0 %v5036
  %5335 = vmatpush.bf16.msra.mxu0 %v5035
  %5336 = vmatpush.bf16.msra.mxu0 %v5034
  %5337 = vmatpush.bf16.msra.mxu0 %v5033
  %5338 = vmatpush.bf16.msra.mxu0 %v5032
  %5339 = vmatpush.bf16.msra.mxu0 %v5031
  %5340 = vmatpush.bf16.msra.mxu0 %v5030
  %5341 = vmatpush.bf16.msra.mxu0 %v5029
  %5342 = vmatmul.bf16.gmra.mxu0 %v5286
  %v5343 = vpop.f32.mrf.mxu0
  %v5344 = vadd.f32 0.0, %v5343
  %v5345 = vpop.f32.mrf.mxu0
  %v5346 = vadd.f32 0.0, %v5345
  %5347 = vmatmul.bf16.gmra.mxu0 %v5287
  %v5348 = vpop.f32.mrf.mxu0
  %v5349 = vadd.f32 0.0, %v5348
  %v5350 = vpop.f32.mrf.mxu0
  %v5351 = vadd.f32 0.0, %v5350
  %5352 = vmatmul.bf16.gmra.mxu0 %v5288
  %v5353 = vpop.f32.mrf.mxu0
  %v5354 = vadd.f32 0.0, %v5353
  %v5355 = vpop.f32.mrf.mxu0
  %v5356 = vadd.f32 0.0, %v5355
  %5357 = vmatmul.bf16.gmra.mxu0 %v5289
  %v5358 = vpop.f32.mrf.mxu0
  %v5359 = vadd.f32 0.0, %v5358
  %v5360 = vpop.f32.mrf.mxu0
  %v5361 = vadd.f32 0.0, %v5360
  %5362 = vmatmul.bf16.gmra.mxu0 %v5290
  %v5363 = vpop.f32.mrf.mxu0
  %v5364 = vadd.f32 0.0, %v5363
  %v5365 = vpop.f32.mrf.mxu0
  %v5366 = vadd.f32 0.0, %v5365
  %5367 = vmatmul.bf16.gmra.mxu0 %v5291
  %v5368 = vpop.f32.mrf.mxu0
  %v5369 = vadd.f32 0.0, %v5368
  %v5370 = vpop.f32.mrf.mxu0
  %v5371 = vadd.f32 0.0, %v5370
  %5372 = vmatmul.bf16.gmra.mxu0 %v5292
  %v5373 = vpop.f32.mrf.mxu0
  %v5374 = vadd.f32 0.0, %v5373
  %v5375 = vpop.f32.mrf.mxu0
  %v5376 = vadd.f32 0.0, %v5375
  %5377 = vmatmul.bf16.gmra.mxu0 %v5293
  %v5378 = vpop.f32.mrf.mxu0
  %v5379 = vadd.f32 0.0, %v5378
  %v5380 = vpop.f32.mrf.mxu0
  %v5381 = vadd.f32 0.0, %v5380
  %5382 = vmatmul.bf16.gmra.mxu0 %v5294
  %v5383 = vpop.f32.mrf.mxu0
  %v5384 = vadd.f32 0.0, %v5383
  %v5385 = vpop.f32.mrf.mxu0
  %v5386 = vadd.f32 0.0, %v5385
  %5387 = vmatmul.bf16.gmra.mxu0 %v5295
  %v5388 = vpop.f32.mrf.mxu0
  %v5389 = vadd.f32 0.0, %v5388
  %v5390 = vpop.f32.mrf.mxu0
  %v5391 = vadd.f32 0.0, %v5390
  %5392 = vmatmul.bf16.gmra.mxu0 %v5296
  %v5393 = vpop.f32.mrf.mxu0
  %v5394 = vadd.f32 0.0, %v5393
  %v5395 = vpop.f32.mrf.mxu0
  %v5396 = vadd.f32 0.0, %v5395
  %5397 = vmatmul.bf16.gmra.mxu0 %v5297
  %v5398 = vpop.f32.mrf.mxu0
  %v5399 = vadd.f32 0.0, %v5398
  %v5400 = vpop.f32.mrf.mxu0
  %v5401 = vadd.f32 0.0, %v5400
  %5402 = vmatmul.bf16.gmra.mxu0 %v5298
  %v5403 = vpop.f32.mrf.mxu0
  %v5404 = vadd.f32 0.0, %v5403
  %v5405 = vpop.f32.mrf.mxu0
  %v5406 = vadd.f32 0.0, %v5405
  %5407 = vmatmul.bf16.gmra.mxu0 %v5299
  %v5408 = vpop.f32.mrf.mxu0
  %v5409 = vadd.f32 0.0, %v5408
  %v5410 = vpop.f32.mrf.mxu0
  %v5411 = vadd.f32 0.0, %v5410
  %5412 = vmatmul.bf16.gmra.mxu0 %v5300
  %v5413 = vpop.f32.mrf.mxu0
  %v5414 = vadd.f32 0.0, %v5413
  %v5415 = vpop.f32.mrf.mxu0
  %v5416 = vadd.f32 0.0, %v5415
  %5417 = vmatmul.bf16.gmra.mxu0 %v5301
  %v5418 = vpop.f32.mrf.mxu0
  %v5419 = vadd.f32 0.0, %v5418
  %v5420 = vpop.f32.mrf.mxu0
  %v5421 = vadd.f32 0.0, %v5420
  %5422 = vmatmul.bf16.gmra.mxu0 %v5302
  %v5423 = vpop.f32.mrf.mxu0
  %v5424 = vadd.f32 0.0, %v5423
  %v5425 = vpop.f32.mrf.mxu0
  %v5426 = vadd.f32 0.0, %v5425
  %5427 = vmatmul.bf16.gmra.mxu0 %v5303
  %v5428 = vpop.f32.mrf.mxu0
  %v5429 = vadd.f32 0.0, %v5428
  %v5430 = vpop.f32.mrf.mxu0
  %v5431 = vadd.f32 0.0, %v5430
  %5432 = vmatmul.bf16.gmra.mxu0 %v5304
  %v5433 = vpop.f32.mrf.mxu0
  %v5434 = vadd.f32 0.0, %v5433
  %v5435 = vpop.f32.mrf.mxu0
  %v5436 = vadd.f32 0.0, %v5435
  %5437 = vmatmul.bf16.gmra.mxu0 %v5305
  %v5438 = vpop.f32.mrf.mxu0
  %v5439 = vadd.f32 0.0, %v5438
  %v5440 = vpop.f32.mrf.mxu0
  %v5441 = vadd.f32 0.0, %v5440
  %5442 = vmatmul.bf16.gmra.mxu0 %v5306
  %v5443 = vpop.f32.mrf.mxu0
  %v5444 = vadd.f32 0.0, %v5443
  %v5445 = vpop.f32.mrf.mxu0
  %v5446 = vadd.f32 0.0, %v5445
  %5447 = vmatmul.bf16.gmra.mxu0 %v5307
  %v5448 = vpop.f32.mrf.mxu0
  %v5449 = vadd.f32 0.0, %v5448
  %v5450 = vpop.f32.mrf.mxu0
  %v5451 = vadd.f32 0.0, %v5450
  %5452 = vmatmul.bf16.gmra.mxu0 %v5308
  %v5453 = vpop.f32.mrf.mxu0
  %v5454 = vadd.f32 0.0, %v5453
  %v5455 = vpop.f32.mrf.mxu0
  %v5456 = vadd.f32 0.0, %v5455
  %5457 = vmatmul.bf16.gmra.mxu0 %v5309
  %v5458 = vpop.f32.mrf.mxu0
  %v5459 = vadd.f32 0.0, %v5458
  %v5460 = vpop.f32.mrf.mxu0
  %v5461 = vadd.f32 0.0, %v5460
  %5462 = vdwg.mxu0
  %v5463 = vxor.u32 %v5344, 2147483648
  %v5464 = vxor.u32 %v5346, 2147483648
  %v5465 = vxor.u32 %v5349, 2147483648
  %v5466 = vxor.u32 %v5351, 2147483648
  %v5467 = vxor.u32 %v5354, 2147483648
  %v5468 = vxor.u32 %v5356, 2147483648
  %v5469 = vxor.u32 %v5359, 2147483648
  %v5470 = vxor.u32 %v5361, 2147483648
  %v5471 = vxor.u32 %v5364, 2147483648
  %v5472 = vxor.u32 %v5366, 2147483648
  %v5473 = vxor.u32 %v5369, 2147483648
  %v5474 = vxor.u32 %v5371, 2147483648
  %v5475 = vxor.u32 %v5374, 2147483648
  %v5476 = vxor.u32 %v5376, 2147483648
  %v5477 = vxor.u32 %v5379, 2147483648
  %v5478 = vxor.u32 %v5381, 2147483648
  %v5479 = vxor.u32 %v5384, 2147483648
  %v5480 = vxor.u32 %v5386, 2147483648
  %v5481 = vxor.u32 %v5389, 2147483648
  %v5482 = vxor.u32 %v5391, 2147483648
  %v5483 = vxor.u32 %v5394, 2147483648
  %v5484 = vxor.u32 %v5396, 2147483648
  %v5485 = vxor.u32 %v5399, 2147483648
  %v5486 = vxor.u32 %v5401, 2147483648
  %v5487 = vxor.u32 %v5404, 2147483648
  %v5488 = vxor.u32 %v5406, 2147483648
  %v5489 = vxor.u32 %v5409, 2147483648
  %v5490 = vxor.u32 %v5411, 2147483648
  %v5491 = vxor.u32 %v5414, 2147483648
  %v5492 = vxor.u32 %v5416, 2147483648
  %v5493 = vxor.u32 %v5419, 2147483648
  %v5494 = vxor.u32 %v5421, 2147483648
  %v5495 = vxor.u32 %v5424, 2147483648
  %v5496 = vxor.u32 %v5426, 2147483648
  %v5497 = vxor.u32 %v5429, 2147483648
  %v5498 = vxor.u32 %v5431, 2147483648
  %v5499 = vxor.u32 %v5434, 2147483648
  %v5500 = vxor.u32 %v5436, 2147483648
  %v5501 = vxor.u32 %v5439, 2147483648
  %v5502 = vxor.u32 %v5441, 2147483648
  %v5503 = vxor.u32 %v5444, 2147483648
  %v5504 = vxor.u32 %v5446, 2147483648
  %v5505 = vxor.u32 %v5449, 2147483648
  %v5506 = vxor.u32 %v5451, 2147483648
  %v5507 = vxor.u32 %v5454, 2147483648
  %v5508 = vxor.u32 %v5456, 2147483648
  %v5509 = vxor.u32 %v5459, 2147483648
  %v5510 = vxor.u32 %v5461, 2147483648
  %v5511 = vmul.f32 %v5463, 1.442695
  %v5512 = vpow.pop %v5511
  %v5513 = vmul.f32 %v5464, 1.442695
  %v5514 = vpow.pop %v5513
  %v5515 = vmul.f32 %v5465, 1.442695
  %v5516 = vpow.pop %v5515
  %v5517 = vmul.f32 %v5466, 1.442695
  %v5518 = vpow.pop %v5517
  %v5519 = vmul.f32 %v5467, 1.442695
  %v5520 = vpow.pop %v5519
  %v5521 = vmul.f32 %v5468, 1.442695
  %v5522 = vpow.pop %v5521
  %v5523 = vmul.f32 %v5469, 1.442695
  %v5524 = vpow.pop %v5523
  %v5525 = vmul.f32 %v5470, 1.442695
  %v5526 = vpow.pop %v5525
  %v5527 = vmul.f32 %v5471, 1.442695
  %v5528 = vpow.pop %v5527
  %v5529 = vmul.f32 %v5472, 1.442695
  %v5530 = vpow.pop %v5529
  %v5531 = vmul.f32 %v5473, 1.442695
  %v5532 = vpow.pop %v5531
  %v5533 = vmul.f32 %v5474, 1.442695
  %v5534 = vpow.pop %v5533
  %v5535 = vmul.f32 %v5475, 1.442695
  %v5536 = vpow.pop %v5535
  %v5537 = vmul.f32 %v5476, 1.442695
  %v5538 = vpow.pop %v5537
  %v5539 = vmul.f32 %v5477, 1.442695
  %v5540 = vpow.pop %v5539
  %v5541 = vmul.f32 %v5478, 1.442695
  %v5542 = vpow.pop %v5541
  %v5543 = vmul.f32 %v5479, 1.442695
  %v5544 = vpow.pop %v5543
  %v5545 = vmul.f32 %v5480, 1.442695
  %v5546 = vpow.pop %v5545
  %v5547 = vmul.f32 %v5481, 1.442695
  %v5548 = vpow.pop %v5547
  %v5549 = vmul.f32 %v5482, 1.442695
  %v5550 = vpow.pop %v5549
  %v5551 = vmul.f32 %v5483, 1.442695
  %v5552 = vpow.pop %v5551
  %v5553 = vmul.f32 %v5484, 1.442695
  %v5554 = vpow.pop %v5553
  %v5555 = vmul.f32 %v5485, 1.442695
  %v5556 = vpow.pop %v5555
  %v5557 = vmul.f32 %v5486, 1.442695
  %v5558 = vpow.pop %v5557
  %v5559 = vmul.f32 %v5487, 1.442695
  %v5560 = vpow.pop %v5559
  %v5561 = vmul.f32 %v5488, 1.442695
  %v5562 = vpow.pop %v5561
  %v5563 = vmul.f32 %v5489, 1.442695
  %v5564 = vpow.pop %v5563
  %v5565 = vmul.f32 %v5490, 1.442695
  %v5566 = vpow.pop %v5565
  %v5567 = vmul.f32 %v5491, 1.442695
  %v5568 = vpow.pop %v5567
  %v5569 = vmul.f32 %v5492, 1.442695
  %v5570 = vpow.pop %v5569
  %v5571 = vmul.f32 %v5493, 1.442695
  %v5572 = vpow.pop %v5571
  %v5573 = vmul.f32 %v5494, 1.442695
  %v5574 = vpow.pop %v5573
  %v5575 = vmul.f32 %v5495, 1.442695
  %v5576 = vpow.pop %v5575
  %v5577 = vmul.f32 %v5496, 1.442695
  %v5578 = vpow.pop %v5577
  %v5579 = vmul.f32 %v5497, 1.442695
  %v5580 = vpow.pop %v5579
  %v5581 = vmul.f32 %v5498, 1.442695
  %v5582 = vpow.pop %v5581
  %v5583 = vmul.f32 %v5499, 1.442695
  %v5584 = vpow.pop %v5583
  %v5585 = vmul.f32 %v5500, 1.442695
  %v5586 = vpow.pop %v5585
  %v5587 = vmul.f32 %v5501, 1.442695
  %v5588 = vpow.pop %v5587
  %v5589 = vmul.f32 %v5502, 1.442695
  %v5590 = vpow.pop %v5589
  %v5591 = vmul.f32 %v5503, 1.442695
  %v5592 = vpow.pop %v5591
  %v5593 = vmul.f32 %v5504, 1.442695
  %v5594 = vpow.pop %v5593
  %v5595 = vmul.f32 %v5505, 1.442695
  %v5596 = vpow.pop %v5595
  %v5597 = vmul.f32 %v5506, 1.442695
  %v5598 = vpow.pop %v5597
  %v5599 = vmul.f32 %v5507, 1.442695
  %v5600 = vpow.pop %v5599
  %v5601 = vmul.f32 %v5508, 1.442695
  %v5602 = vpow.pop %v5601
  %v5603 = vmul.f32 %v5509, 1.442695
  %v5604 = vpow.pop %v5603
  %v5605 = vmul.f32 %v5510, 1.442695
  %v5606 = vpow.pop %v5605
  %v5607 = vadd.f32 %v5512, 1.0
  %v5608 = vadd.f32 %v5514, 1.0
  %v5609 = vadd.f32 %v5516, 1.0
  %v5610 = vadd.f32 %v5518, 1.0
  %v5611 = vadd.f32 %v5520, 1.0
  %v5612 = vadd.f32 %v5522, 1.0
  %v5613 = vadd.f32 %v5524, 1.0
  %v5614 = vadd.f32 %v5526, 1.0
  %v5615 = vadd.f32 %v5528, 1.0
  %v5616 = vadd.f32 %v5530, 1.0
  %v5617 = vadd.f32 %v5532, 1.0
  %v5618 = vadd.f32 %v5534, 1.0
  %v5619 = vadd.f32 %v5536, 1.0
  %v5620 = vadd.f32 %v5538, 1.0
  %v5621 = vadd.f32 %v5540, 1.0
  %v5622 = vadd.f32 %v5542, 1.0
  %v5623 = vadd.f32 %v5544, 1.0
  %v5624 = vadd.f32 %v5546, 1.0
  %v5625 = vadd.f32 %v5548, 1.0
  %v5626 = vadd.f32 %v5550, 1.0
  %v5627 = vadd.f32 %v5552, 1.0
  %v5628 = vadd.f32 %v5554, 1.0
  %v5629 = vadd.f32 %v5556, 1.0
  %v5630 = vadd.f32 %v5558, 1.0
  %v5631 = vadd.f32 %v5560, 1.0
  %v5632 = vadd.f32 %v5562, 1.0
  %v5633 = vadd.f32 %v5564, 1.0
  %v5634 = vadd.f32 %v5566, 1.0
  %v5635 = vadd.f32 %v5568, 1.0
  %v5636 = vadd.f32 %v5570, 1.0
  %v5637 = vadd.f32 %v5572, 1.0
  %v5638 = vadd.f32 %v5574, 1.0
  %v5639 = vadd.f32 %v5576, 1.0
  %v5640 = vadd.f32 %v5578, 1.0
  %v5641 = vadd.f32 %v5580, 1.0
  %v5642 = vadd.f32 %v5582, 1.0
  %v5643 = vadd.f32 %v5584, 1.0
  %v5644 = vadd.f32 %v5586, 1.0
  %v5645 = vadd.f32 %v5588, 1.0
  %v5646 = vadd.f32 %v5590, 1.0
  %v5647 = vadd.f32 %v5592, 1.0
  %v5648 = vadd.f32 %v5594, 1.0
  %v5649 = vadd.f32 %v5596, 1.0
  %v5650 = vadd.f32 %v5598, 1.0
  %v5651 = vadd.f32 %v5600, 1.0
  %v5652 = vadd.f32 %v5602, 1.0
  %v5653 = vadd.f32 %v5604, 1.0
  %v5654 = vadd.f32 %v5606, 1.0
  %v5655 = vrcp.pop %v5607
  %v5656 = vmul.f32 %v5607, %v5655
  %v5657 = vsub.f32 1.0, %v5656
  %v5658 = vmul.f32 %v5655, %v5657
  %v5659 = vadd.f32 %v5655, %v5658
  %vm5660 = vweird.f32 %v5607
  %vm5661 = vweird.f32 %v5655
  %vm5662 = vmor %vm5660, %vm5661
  %v5663 = vsel %vm5662, %v5655, %v5659
  %v5664 = vand.u32 2147483647, %v5607
  %vm5665 = vcmp.eq.f32.partialorder %v5664, 8.507059e+37
  %v5666 = vand.u32 %v5607, 2147483648
  %v5667 = vor.u32 1.1754944e-38, %v5666
  %v5668 = vsel %vm5665, %v5667, %v5663
  %v5669 = vmul.f32 1.0, %v5668
  %v5670 = vrcp.pop %v5608
  %v5671 = vmul.f32 %v5608, %v5670
  %v5672 = vsub.f32 1.0, %v5671
  %v5673 = vmul.f32 %v5670, %v5672
  %v5674 = vadd.f32 %v5670, %v5673
  %vm5675 = vweird.f32 %v5608
  %vm5676 = vweird.f32 %v5670
  %vm5677 = vmor %vm5675, %vm5676
  %v5678 = vsel %vm5677, %v5670, %v5674
  %v5679 = vand.u32 2147483647, %v5608
  %vm5680 = vcmp.eq.f32.partialorder %v5679, 8.507059e+37
  %v5681 = vand.u32 %v5608, 2147483648
  %v5682 = vor.u32 1.1754944e-38, %v5681
  %v5683 = vsel %vm5680, %v5682, %v5678
  %v5684 = vmul.f32 1.0, %v5683
  %v5685 = vrcp.pop %v5609
  %v5686 = vmul.f32 %v5609, %v5685
  %v5687 = vsub.f32 1.0, %v5686
  %v5688 = vmul.f32 %v5685, %v5687
  %v5689 = vadd.f32 %v5685, %v5688
  %vm5690 = vweird.f32 %v5609
  %vm5691 = vweird.f32 %v5685
  %vm5692 = vmor %vm5690, %vm5691
  %v5693 = vsel %vm5692, %v5685, %v5689
  %v5694 = vand.u32 2147483647, %v5609
  %vm5695 = vcmp.eq.f32.partialorder %v5694, 8.507059e+37
  %v5696 = vand.u32 %v5609, 2147483648
  %v5697 = vor.u32 1.1754944e-38, %v5696
  %v5698 = vsel %vm5695, %v5697, %v5693
  %v5699 = vmul.f32 1.0, %v5698
  %v5700 = vrcp.pop %v5610
  %v5701 = vmul.f32 %v5610, %v5700
  %v5702 = vsub.f32 1.0, %v5701
  %v5703 = vmul.f32 %v5700, %v5702
  %v5704 = vadd.f32 %v5700, %v5703
  %vm5705 = vweird.f32 %v5610
  %vm5706 = vweird.f32 %v5700
  %vm5707 = vmor %vm5705, %vm5706
  %v5708 = vsel %vm5707, %v5700, %v5704
  %v5709 = vand.u32 2147483647, %v5610
  %vm5710 = vcmp.eq.f32.partialorder %v5709, 8.507059e+37
  %v5711 = vand.u32 %v5610, 2147483648
  %v5712 = vor.u32 1.1754944e-38, %v5711
  %v5713 = vsel %vm5710, %v5712, %v5708
  %v5714 = vmul.f32 1.0, %v5713
  %v5715 = vrcp.pop %v5611
  %v5716 = vmul.f32 %v5611, %v5715
  %v5717 = vsub.f32 1.0, %v5716
  %v5718 = vmul.f32 %v5715, %v5717
  %v5719 = vadd.f32 %v5715, %v5718
  %vm5720 = vweird.f32 %v5611
  %vm5721 = vweird.f32 %v5715
  %vm5722 = vmor %vm5720, %vm5721
  %v5723 = vsel %vm5722, %v5715, %v5719
  %v5724 = vand.u32 2147483647, %v5611
  %vm5725 = vcmp.eq.f32.partialorder %v5724, 8.507059e+37
  %v5726 = vand.u32 %v5611, 2147483648
  %v5727 = vor.u32 1.1754944e-38, %v5726
  %v5728 = vsel %vm5725, %v5727, %v5723
  %v5729 = vmul.f32 1.0, %v5728
  %v5730 = vrcp.pop %v5612
  %v5731 = vmul.f32 %v5612, %v5730
  %v5732 = vsub.f32 1.0, %v5731
  %v5733 = vmul.f32 %v5730, %v5732
  %v5734 = vadd.f32 %v5730, %v5733
  %vm5735 = vweird.f32 %v5612
  %vm5736 = vweird.f32 %v5730
  %vm5737 = vmor %vm5735, %vm5736
  %v5738 = vsel %vm5737, %v5730, %v5734
  %v5739 = vand.u32 2147483647, %v5612
  %vm5740 = vcmp.eq.f32.partialorder %v5739, 8.507059e+37
  %v5741 = vand.u32 %v5612, 2147483648
  %v5742 = vor.u32 1.1754944e-38, %v5741
  %v5743 = vsel %vm5740, %v5742, %v5738
  %v5744 = vmul.f32 1.0, %v5743
  %v5745 = vrcp.pop %v5613
  %v5746 = vmul.f32 %v5613, %v5745
  %v5747 = vsub.f32 1.0, %v5746
  %v5748 = vmul.f32 %v5745, %v5747
  %v5749 = vadd.f32 %v5745, %v5748
  %vm5750 = vweird.f32 %v5613
  %vm5751 = vweird.f32 %v5745
  %vm5752 = vmor %vm5750, %vm5751
  %v5753 = vsel %vm5752, %v5745, %v5749
  %v5754 = vand.u32 2147483647, %v5613
  %vm5755 = vcmp.eq.f32.partialorder %v5754, 8.507059e+37
  %v5756 = vand.u32 %v5613, 2147483648
  %v5757 = vor.u32 1.1754944e-38, %v5756
  %v5758 = vsel %vm5755, %v5757, %v5753
  %v5759 = vmul.f32 1.0, %v5758
  %v5760 = vrcp.pop %v5614
  %v5761 = vmul.f32 %v5614, %v5760
  %v5762 = vsub.f32 1.0, %v5761
  %v5763 = vmul.f32 %v5760, %v5762
  %v5764 = vadd.f32 %v5760, %v5763
  %vm5765 = vweird.f32 %v5614
  %vm5766 = vweird.f32 %v5760
  %vm5767 = vmor %vm5765, %vm5766
  %v5768 = vsel %vm5767, %v5760, %v5764
  %v5769 = vand.u32 2147483647, %v5614
  %vm5770 = vcmp.eq.f32.partialorder %v5769, 8.507059e+37
  %v5771 = vand.u32 %v5614, 2147483648
  %v5772 = vor.u32 1.1754944e-38, %v5771
  %v5773 = vsel %vm5770, %v5772, %v5768
  %v5774 = vmul.f32 1.0, %v5773
  %v5775 = vrcp.pop %v5615
  %v5776 = vmul.f32 %v5615, %v5775
  %v5777 = vsub.f32 1.0, %v5776
  %v5778 = vmul.f32 %v5775, %v5777
  %v5779 = vadd.f32 %v5775, %v5778
  %vm5780 = vweird.f32 %v5615
  %vm5781 = vweird.f32 %v5775
  %vm5782 = vmor %vm5780, %vm5781
  %v5783 = vsel %vm5782, %v5775, %v5779
  %v5784 = vand.u32 2147483647, %v5615
  %vm5785 = vcmp.eq.f32.partialorder %v5784, 8.507059e+37
  %v5786 = vand.u32 %v5615, 2147483648
  %v5787 = vor.u32 1.1754944e-38, %v5786
  %v5788 = vsel %vm5785, %v5787, %v5783
  %v5789 = vmul.f32 1.0, %v5788
  %v5790 = vrcp.pop %v5616
  %v5791 = vmul.f32 %v5616, %v5790
  %v5792 = vsub.f32 1.0, %v5791
  %v5793 = vmul.f32 %v5790, %v5792
  %v5794 = vadd.f32 %v5790, %v5793
  %vm5795 = vweird.f32 %v5616
  %vm5796 = vweird.f32 %v5790
  %vm5797 = vmor %vm5795, %vm5796
  %v5798 = vsel %vm5797, %v5790, %v5794
  %v5799 = vand.u32 2147483647, %v5616
  %vm5800 = vcmp.eq.f32.partialorder %v5799, 8.507059e+37
  %v5801 = vand.u32 %v5616, 2147483648
  %v5802 = vor.u32 1.1754944e-38, %v5801
  %v5803 = vsel %vm5800, %v5802, %v5798
  %v5804 = vmul.f32 1.0, %v5803
  %v5805 = vrcp.pop %v5617
  %v5806 = vmul.f32 %v5617, %v5805
  %v5807 = vsub.f32 1.0, %v5806
  %v5808 = vmul.f32 %v5805, %v5807
  %v5809 = vadd.f32 %v5805, %v5808
  %vm5810 = vweird.f32 %v5617
  %vm5811 = vweird.f32 %v5805
  %vm5812 = vmor %vm5810, %vm5811
  %v5813 = vsel %vm5812, %v5805, %v5809
  %v5814 = vand.u32 2147483647, %v5617
  %vm5815 = vcmp.eq.f32.partialorder %v5814, 8.507059e+37
  %v5816 = vand.u32 %v5617, 2147483648
  %v5817 = vor.u32 1.1754944e-38, %v5816
  %v5818 = vsel %vm5815, %v5817, %v5813
  %v5819 = vmul.f32 1.0, %v5818
  %v5820 = vrcp.pop %v5618
  %v5821 = vmul.f32 %v5618, %v5820
  %v5822 = vsub.f32 1.0, %v5821
  %v5823 = vmul.f32 %v5820, %v5822
  %v5824 = vadd.f32 %v5820, %v5823
  %vm5825 = vweird.f32 %v5618
  %vm5826 = vweird.f32 %v5820
  %vm5827 = vmor %vm5825, %vm5826
  %v5828 = vsel %vm5827, %v5820, %v5824
  %v5829 = vand.u32 2147483647, %v5618
  %vm5830 = vcmp.eq.f32.partialorder %v5829, 8.507059e+37
  %v5831 = vand.u32 %v5618, 2147483648
  %v5832 = vor.u32 1.1754944e-38, %v5831
  %v5833 = vsel %vm5830, %v5832, %v5828
  %v5834 = vmul.f32 1.0, %v5833
  %v5835 = vrcp.pop %v5619
  %v5836 = vmul.f32 %v5619, %v5835
  %v5837 = vsub.f32 1.0, %v5836
  %v5838 = vmul.f32 %v5835, %v5837
  %v5839 = vadd.f32 %v5835, %v5838
  %vm5840 = vweird.f32 %v5619
  %vm5841 = vweird.f32 %v5835
  %vm5842 = vmor %vm5840, %vm5841
  %v5843 = vsel %vm5842, %v5835, %v5839
  %v5844 = vand.u32 2147483647, %v5619
  %vm5845 = vcmp.eq.f32.partialorder %v5844, 8.507059e+37
  %v5846 = vand.u32 %v5619, 2147483648
  %v5847 = vor.u32 1.1754944e-38, %v5846
  %v5848 = vsel %vm5845, %v5847, %v5843
  %v5849 = vmul.f32 1.0, %v5848
  %v5850 = vrcp.pop %v5620
  %v5851 = vmul.f32 %v5620, %v5850
  %v5852 = vsub.f32 1.0, %v5851
  %v5853 = vmul.f32 %v5850, %v5852
  %v5854 = vadd.f32 %v5850, %v5853
  %vm5855 = vweird.f32 %v5620
  %vm5856 = vweird.f32 %v5850
  %vm5857 = vmor %vm5855, %vm5856
  %v5858 = vsel %vm5857, %v5850, %v5854
  %v5859 = vand.u32 2147483647, %v5620
  %vm5860 = vcmp.eq.f32.partialorder %v5859, 8.507059e+37
  %v5861 = vand.u32 %v5620, 2147483648
  %v5862 = vor.u32 1.1754944e-38, %v5861
  %v5863 = vsel %vm5860, %v5862, %v5858
  %v5864 = vmul.f32 1.0, %v5863
  %v5865 = vrcp.pop %v5621
  %v5866 = vmul.f32 %v5621, %v5865
  %v5867 = vsub.f32 1.0, %v5866
  %v5868 = vmul.f32 %v5865, %v5867
  %v5869 = vadd.f32 %v5865, %v5868
  %vm5870 = vweird.f32 %v5621
  %vm5871 = vweird.f32 %v5865
  %vm5872 = vmor %vm5870, %vm5871
  %v5873 = vsel %vm5872, %v5865, %v5869
  %v5874 = vand.u32 2147483647, %v5621
  %vm5875 = vcmp.eq.f32.partialorder %v5874, 8.507059e+37
  %v5876 = vand.u32 %v5621, 2147483648
  %v5877 = vor.u32 1.1754944e-38, %v5876
  %v5878 = vsel %vm5875, %v5877, %v5873
  %v5879 = vmul.f32 1.0, %v5878
  %v5880 = vrcp.pop %v5622
  %v5881 = vmul.f32 %v5622, %v5880
  %v5882 = vsub.f32 1.0, %v5881
  %v5883 = vmul.f32 %v5880, %v5882
  %v5884 = vadd.f32 %v5880, %v5883
  %vm5885 = vweird.f32 %v5622
  %vm5886 = vweird.f32 %v5880
  %vm5887 = vmor %vm5885, %vm5886
  %v5888 = vsel %vm5887, %v5880, %v5884
  %v5889 = vand.u32 2147483647, %v5622
  %vm5890 = vcmp.eq.f32.partialorder %v5889, 8.507059e+37
  %v5891 = vand.u32 %v5622, 2147483648
  %v5892 = vor.u32 1.1754944e-38, %v5891
  %v5893 = vsel %vm5890, %v5892, %v5888
  %v5894 = vmul.f32 1.0, %v5893
  %v5895 = vrcp.pop %v5623
  %v5896 = vmul.f32 %v5623, %v5895
  %v5897 = vsub.f32 1.0, %v5896
  %v5898 = vmul.f32 %v5895, %v5897
  %v5899 = vadd.f32 %v5895, %v5898
  %vm5900 = vweird.f32 %v5623
  %vm5901 = vweird.f32 %v5895
  %vm5902 = vmor %vm5900, %vm5901
  %v5903 = vsel %vm5902, %v5895, %v5899
  %v5904 = vand.u32 2147483647, %v5623
  %vm5905 = vcmp.eq.f32.partialorder %v5904, 8.507059e+37
  %v5906 = vand.u32 %v5623, 2147483648
  %v5907 = vor.u32 1.1754944e-38, %v5906
  %v5908 = vsel %vm5905, %v5907, %v5903
  %v5909 = vmul.f32 1.0, %v5908
  %v5910 = vrcp.pop %v5624
  %v5911 = vmul.f32 %v5624, %v5910
  %v5912 = vsub.f32 1.0, %v5911
  %v5913 = vmul.f32 %v5910, %v5912
  %v5914 = vadd.f32 %v5910, %v5913
  %vm5915 = vweird.f32 %v5624
  %vm5916 = vweird.f32 %v5910
  %vm5917 = vmor %vm5915, %vm5916
  %v5918 = vsel %vm5917, %v5910, %v5914
  %v5919 = vand.u32 2147483647, %v5624
  %vm5920 = vcmp.eq.f32.partialorder %v5919, 8.507059e+37
  %v5921 = vand.u32 %v5624, 2147483648
  %v5922 = vor.u32 1.1754944e-38, %v5921
  %v5923 = vsel %vm5920, %v5922, %v5918
  %v5924 = vmul.f32 1.0, %v5923
  %v5925 = vrcp.pop %v5625
  %v5926 = vmul.f32 %v5625, %v5925
  %v5927 = vsub.f32 1.0, %v5926
  %v5928 = vmul.f32 %v5925, %v5927
  %v5929 = vadd.f32 %v5925, %v5928
  %vm5930 = vweird.f32 %v5625
  %vm5931 = vweird.f32 %v5925
  %vm5932 = vmor %vm5930, %vm5931
  %v5933 = vsel %vm5932, %v5925, %v5929
  %v5934 = vand.u32 2147483647, %v5625
  %vm5935 = vcmp.eq.f32.partialorder %v5934, 8.507059e+37
  %v5936 = vand.u32 %v5625, 2147483648
  %v5937 = vor.u32 1.1754944e-38, %v5936
  %v5938 = vsel %vm5935, %v5937, %v5933
  %v5939 = vmul.f32 1.0, %v5938
  %v5940 = vrcp.pop %v5626
  %v5941 = vmul.f32 %v5626, %v5940
  %v5942 = vsub.f32 1.0, %v5941
  %v5943 = vmul.f32 %v5940, %v5942
  %v5944 = vadd.f32 %v5940, %v5943
  %vm5945 = vweird.f32 %v5626
  %vm5946 = vweird.f32 %v5940
  %vm5947 = vmor %vm5945, %vm5946
  %v5948 = vsel %vm5947, %v5940, %v5944
  %v5949 = vand.u32 2147483647, %v5626
  %vm5950 = vcmp.eq.f32.partialorder %v5949, 8.507059e+37
  %v5951 = vand.u32 %v5626, 2147483648
  %v5952 = vor.u32 1.1754944e-38, %v5951
  %v5953 = vsel %vm5950, %v5952, %v5948
  %v5954 = vmul.f32 1.0, %v5953
  %v5955 = vrcp.pop %v5627
  %v5956 = vmul.f32 %v5627, %v5955
  %v5957 = vsub.f32 1.0, %v5956
  %v5958 = vmul.f32 %v5955, %v5957
  %v5959 = vadd.f32 %v5955, %v5958
  %vm5960 = vweird.f32 %v5627
  %vm5961 = vweird.f32 %v5955
  %vm5962 = vmor %vm5960, %vm5961
  %v5963 = vsel %vm5962, %v5955, %v5959
  %v5964 = vand.u32 2147483647, %v5627
  %vm5965 = vcmp.eq.f32.partialorder %v5964, 8.507059e+37
  %v5966 = vand.u32 %v5627, 2147483648
  %v5967 = vor.u32 1.1754944e-38, %v5966
  %v5968 = vsel %vm5965, %v5967, %v5963
  %v5969 = vmul.f32 1.0, %v5968
  %v5970 = vrcp.pop %v5628
  %v5971 = vmul.f32 %v5628, %v5970
  %v5972 = vsub.f32 1.0, %v5971
  %v5973 = vmul.f32 %v5970, %v5972
  %v5974 = vadd.f32 %v5970, %v5973
  %vm5975 = vweird.f32 %v5628
  %vm5976 = vweird.f32 %v5970
  %vm5977 = vmor %vm5975, %vm5976
  %v5978 = vsel %vm5977, %v5970, %v5974
  %v5979 = vand.u32 2147483647, %v5628
  %vm5980 = vcmp.eq.f32.partialorder %v5979, 8.507059e+37
  %v5981 = vand.u32 %v5628, 2147483648
  %v5982 = vor.u32 1.1754944e-38, %v5981
  %v5983 = vsel %vm5980, %v5982, %v5978
  %v5984 = vmul.f32 1.0, %v5983
  %v5985 = vrcp.pop %v5629
  %v5986 = vmul.f32 %v5629, %v5985
  %v5987 = vsub.f32 1.0, %v5986
  %v5988 = vmul.f32 %v5985, %v5987
  %v5989 = vadd.f32 %v5985, %v5988
  %vm5990 = vweird.f32 %v5629
  %vm5991 = vweird.f32 %v5985
  %vm5992 = vmor %vm5990, %vm5991
  %v5993 = vsel %vm5992, %v5985, %v5989
  %v5994 = vand.u32 2147483647, %v5629
  %vm5995 = vcmp.eq.f32.partialorder %v5994, 8.507059e+37
  %v5996 = vand.u32 %v5629, 2147483648
  %v5997 = vor.u32 1.1754944e-38, %v5996
  %v5998 = vsel %vm5995, %v5997, %v5993
  %v5999 = vmul.f32 1.0, %v5998
  %v6000 = vrcp.pop %v5630
  %v6001 = vmul.f32 %v5630, %v6000
  %v6002 = vsub.f32 1.0, %v6001
  %v6003 = vmul.f32 %v6000, %v6002
  %v6004 = vadd.f32 %v6000, %v6003
  %vm6005 = vweird.f32 %v5630
  %vm6006 = vweird.f32 %v6000
  %vm6007 = vmor %vm6005, %vm6006
  %v6008 = vsel %vm6007, %v6000, %v6004
  %v6009 = vand.u32 2147483647, %v5630
  %vm6010 = vcmp.eq.f32.partialorder %v6009, 8.507059e+37
  %v6011 = vand.u32 %v5630, 2147483648
  %v6012 = vor.u32 1.1754944e-38, %v6011
  %v6013 = vsel %vm6010, %v6012, %v6008
  %v6014 = vmul.f32 1.0, %v6013
  %v6015 = vrcp.pop %v5631
  %v6016 = vmul.f32 %v5631, %v6015
  %v6017 = vsub.f32 1.0, %v6016
  %v6018 = vmul.f32 %v6015, %v6017
  %v6019 = vadd.f32 %v6015, %v6018
  %vm6020 = vweird.f32 %v5631
  %vm6021 = vweird.f32 %v6015
  %vm6022 = vmor %vm6020, %vm6021
  %v6023 = vsel %vm6022, %v6015, %v6019
  %v6024 = vand.u32 2147483647, %v5631
  %vm6025 = vcmp.eq.f32.partialorder %v6024, 8.507059e+37
  %v6026 = vand.u32 %v5631, 2147483648
  %v6027 = vor.u32 1.1754944e-38, %v6026
  %v6028 = vsel %vm6025, %v6027, %v6023
  %v6029 = vmul.f32 1.0, %v6028
  %v6030 = vrcp.pop %v5632
  %v6031 = vmul.f32 %v5632, %v6030
  %v6032 = vsub.f32 1.0, %v6031
  %v6033 = vmul.f32 %v6030, %v6032
  %v6034 = vadd.f32 %v6030, %v6033
  %vm6035 = vweird.f32 %v5632
  %vm6036 = vweird.f32 %v6030
  %vm6037 = vmor %vm6035, %vm6036
  %v6038 = vsel %vm6037, %v6030, %v6034
  %v6039 = vand.u32 2147483647, %v5632
  %vm6040 = vcmp.eq.f32.partialorder %v6039, 8.507059e+37
  %v6041 = vand.u32 %v5632, 2147483648
  %v6042 = vor.u32 1.1754944e-38, %v6041
  %v6043 = vsel %vm6040, %v6042, %v6038
  %v6044 = vmul.f32 1.0, %v6043
  %v6045 = vrcp.pop %v5633
  %v6046 = vmul.f32 %v5633, %v6045
  %v6047 = vsub.f32 1.0, %v6046
  %v6048 = vmul.f32 %v6045, %v6047
  %v6049 = vadd.f32 %v6045, %v6048
  %vm6050 = vweird.f32 %v5633
  %vm6051 = vweird.f32 %v6045
  %vm6052 = vmor %vm6050, %vm6051
  %v6053 = vsel %vm6052, %v6045, %v6049
  %v6054 = vand.u32 2147483647, %v5633
  %vm6055 = vcmp.eq.f32.partialorder %v6054, 8.507059e+37
  %v6056 = vand.u32 %v5633, 2147483648
  %v6057 = vor.u32 1.1754944e-38, %v6056
  %v6058 = vsel %vm6055, %v6057, %v6053
  %v6059 = vmul.f32 1.0, %v6058
  %v6060 = vrcp.pop %v5634
  %v6061 = vmul.f32 %v5634, %v6060
  %v6062 = vsub.f32 1.0, %v6061
  %v6063 = vmul.f32 %v6060, %v6062
  %v6064 = vadd.f32 %v6060, %v6063
  %vm6065 = vweird.f32 %v5634
  %vm6066 = vweird.f32 %v6060
  %vm6067 = vmor %vm6065, %vm6066
  %v6068 = vsel %vm6067, %v6060, %v6064
  %v6069 = vand.u32 2147483647, %v5634
  %vm6070 = vcmp.eq.f32.partialorder %v6069, 8.507059e+37
  %v6071 = vand.u32 %v5634, 2147483648
  %v6072 = vor.u32 1.1754944e-38, %v6071
  %v6073 = vsel %vm6070, %v6072, %v6068
  %v6074 = vmul.f32 1.0, %v6073
  %v6075 = vrcp.pop %v5635
  %v6076 = vmul.f32 %v5635, %v6075
  %v6077 = vsub.f32 1.0, %v6076
  %v6078 = vmul.f32 %v6075, %v6077
  %v6079 = vadd.f32 %v6075, %v6078
  %vm6080 = vweird.f32 %v5635
  %vm6081 = vweird.f32 %v6075
  %vm6082 = vmor %vm6080, %vm6081
  %v6083 = vsel %vm6082, %v6075, %v6079
  %v6084 = vand.u32 2147483647, %v5635
  %vm6085 = vcmp.eq.f32.partialorder %v6084, 8.507059e+37
  %v6086 = vand.u32 %v5635, 2147483648
  %v6087 = vor.u32 1.1754944e-38, %v6086
  %v6088 = vsel %vm6085, %v6087, %v6083
  %v6089 = vmul.f32 1.0, %v6088
  %v6090 = vrcp.pop %v5636
  %v6091 = vmul.f32 %v5636, %v6090
  %v6092 = vsub.f32 1.0, %v6091
  %v6093 = vmul.f32 %v6090, %v6092
  %v6094 = vadd.f32 %v6090, %v6093
  %vm6095 = vweird.f32 %v5636
  %vm6096 = vweird.f32 %v6090
  %vm6097 = vmor %vm6095, %vm6096
  %v6098 = vsel %vm6097, %v6090, %v6094
  %v6099 = vand.u32 2147483647, %v5636
  %vm6100 = vcmp.eq.f32.partialorder %v6099, 8.507059e+37
  %v6101 = vand.u32 %v5636, 2147483648
  %v6102 = vor.u32 1.1754944e-38, %v6101
  %v6103 = vsel %vm6100, %v6102, %v6098
  %v6104 = vmul.f32 1.0, %v6103
  %v6105 = vrcp.pop %v5637
  %v6106 = vmul.f32 %v5637, %v6105
  %v6107 = vsub.f32 1.0, %v6106
  %v6108 = vmul.f32 %v6105, %v6107
  %v6109 = vadd.f32 %v6105, %v6108
  %vm6110 = vweird.f32 %v5637
  %vm6111 = vweird.f32 %v6105
  %vm6112 = vmor %vm6110, %vm6111
  %v6113 = vsel %vm6112, %v6105, %v6109
  %v6114 = vand.u32 2147483647, %v5637
  %vm6115 = vcmp.eq.f32.partialorder %v6114, 8.507059e+37
  %v6116 = vand.u32 %v5637, 2147483648
  %v6117 = vor.u32 1.1754944e-38, %v6116
  %v6118 = vsel %vm6115, %v6117, %v6113
  %v6119 = vmul.f32 1.0, %v6118
  %v6120 = vrcp.pop %v5638
  %v6121 = vmul.f32 %v5638, %v6120
  %v6122 = vsub.f32 1.0, %v6121
  %v6123 = vmul.f32 %v6120, %v6122
  %v6124 = vadd.f32 %v6120, %v6123
  %vm6125 = vweird.f32 %v5638
  %vm6126 = vweird.f32 %v6120
  %vm6127 = vmor %vm6125, %vm6126
  %v6128 = vsel %vm6127, %v6120, %v6124
  %v6129 = vand.u32 2147483647, %v5638
  %vm6130 = vcmp.eq.f32.partialorder %v6129, 8.507059e+37
  %v6131 = vand.u32 %v5638, 2147483648
  %v6132 = vor.u32 1.1754944e-38, %v6131
  %v6133 = vsel %vm6130, %v6132, %v6128
  %v6134 = vmul.f32 1.0, %v6133
  %v6135 = vrcp.pop %v5639
  %v6136 = vmul.f32 %v5639, %v6135
  %v6137 = vsub.f32 1.0, %v6136
  %v6138 = vmul.f32 %v6135, %v6137
  %v6139 = vadd.f32 %v6135, %v6138
  %vm6140 = vweird.f32 %v5639
  %vm6141 = vweird.f32 %v6135
  %vm6142 = vmor %vm6140, %vm6141
  %v6143 = vsel %vm6142, %v6135, %v6139
  %v6144 = vand.u32 2147483647, %v5639
  %vm6145 = vcmp.eq.f32.partialorder %v6144, 8.507059e+37
  %v6146 = vand.u32 %v5639, 2147483648
  %v6147 = vor.u32 1.1754944e-38, %v6146
  %v6148 = vsel %vm6145, %v6147, %v6143
  %v6149 = vmul.f32 1.0, %v6148
  %v6150 = vrcp.pop %v5640
  %v6151 = vmul.f32 %v5640, %v6150
  %v6152 = vsub.f32 1.0, %v6151
  %v6153 = vmul.f32 %v6150, %v6152
  %v6154 = vadd.f32 %v6150, %v6153
  %vm6155 = vweird.f32 %v5640
  %vm6156 = vweird.f32 %v6150
  %vm6157 = vmor %vm6155, %vm6156
  %v6158 = vsel %vm6157, %v6150, %v6154
  %v6159 = vand.u32 2147483647, %v5640
  %vm6160 = vcmp.eq.f32.partialorder %v6159, 8.507059e+37
  %v6161 = vand.u32 %v5640, 2147483648
  %v6162 = vor.u32 1.1754944e-38, %v6161
  %v6163 = vsel %vm6160, %v6162, %v6158
  %v6164 = vmul.f32 1.0, %v6163
  %v6165 = vrcp.pop %v5641
  %v6166 = vmul.f32 %v5641, %v6165
  %v6167 = vsub.f32 1.0, %v6166
  %v6168 = vmul.f32 %v6165, %v6167
  %v6169 = vadd.f32 %v6165, %v6168
  %vm6170 = vweird.f32 %v5641
  %vm6171 = vweird.f32 %v6165
  %vm6172 = vmor %vm6170, %vm6171
  %v6173 = vsel %vm6172, %v6165, %v6169
  %v6174 = vand.u32 2147483647, %v5641
  %vm6175 = vcmp.eq.f32.partialorder %v6174, 8.507059e+37
  %v6176 = vand.u32 %v5641, 2147483648
  %v6177 = vor.u32 1.1754944e-38, %v6176
  %v6178 = vsel %vm6175, %v6177, %v6173
  %v6179 = vmul.f32 1.0, %v6178
  %v6180 = vrcp.pop %v5642
  %v6181 = vmul.f32 %v5642, %v6180
  %v6182 = vsub.f32 1.0, %v6181
  %v6183 = vmul.f32 %v6180, %v6182
  %v6184 = vadd.f32 %v6180, %v6183
  %vm6185 = vweird.f32 %v5642
  %vm6186 = vweird.f32 %v6180
  %vm6187 = vmor %vm6185, %vm6186
  %v6188 = vsel %vm6187, %v6180, %v6184
  %v6189 = vand.u32 2147483647, %v5642
  %vm6190 = vcmp.eq.f32.partialorder %v6189, 8.507059e+37
  %v6191 = vand.u32 %v5642, 2147483648
  %v6192 = vor.u32 1.1754944e-38, %v6191
  %v6193 = vsel %vm6190, %v6192, %v6188
  %v6194 = vmul.f32 1.0, %v6193
  %v6195 = vrcp.pop %v5643
  %v6196 = vmul.f32 %v5643, %v6195
  %v6197 = vsub.f32 1.0, %v6196
  %v6198 = vmul.f32 %v6195, %v6197
  %v6199 = vadd.f32 %v6195, %v6198
  %vm6200 = vweird.f32 %v5643
  %vm6201 = vweird.f32 %v6195
  %vm6202 = vmor %vm6200, %vm6201
  %v6203 = vsel %vm6202, %v6195, %v6199
  %v6204 = vand.u32 2147483647, %v5643
  %vm6205 = vcmp.eq.f32.partialorder %v6204, 8.507059e+37
  %v6206 = vand.u32 %v5643, 2147483648
  %v6207 = vor.u32 1.1754944e-38, %v6206
  %v6208 = vsel %vm6205, %v6207, %v6203
  %v6209 = vmul.f32 1.0, %v6208
  %v6210 = vrcp.pop %v5644
  %v6211 = vmul.f32 %v5644, %v6210
  %v6212 = vsub.f32 1.0, %v6211
  %v6213 = vmul.f32 %v6210, %v6212
  %v6214 = vadd.f32 %v6210, %v6213
  %vm6215 = vweird.f32 %v5644
  %vm6216 = vweird.f32 %v6210
  %vm6217 = vmor %vm6215, %vm6216
  %v6218 = vsel %vm6217, %v6210, %v6214
  %v6219 = vand.u32 2147483647, %v5644
  %vm6220 = vcmp.eq.f32.partialorder %v6219, 8.507059e+37
  %v6221 = vand.u32 %v5644, 2147483648
  %v6222 = vor.u32 1.1754944e-38, %v6221
  %v6223 = vsel %vm6220, %v6222, %v6218
  %v6224 = vmul.f32 1.0, %v6223
  %v6225 = vrcp.pop %v5645
  %v6226 = vmul.f32 %v5645, %v6225
  %v6227 = vsub.f32 1.0, %v6226
  %v6228 = vmul.f32 %v6225, %v6227
  %v6229 = vadd.f32 %v6225, %v6228
  %vm6230 = vweird.f32 %v5645
  %vm6231 = vweird.f32 %v6225
  %vm6232 = vmor %vm6230, %vm6231
  %v6233 = vsel %vm6232, %v6225, %v6229
  %v6234 = vand.u32 2147483647, %v5645
  %vm6235 = vcmp.eq.f32.partialorder %v6234, 8.507059e+37
  %v6236 = vand.u32 %v5645, 2147483648
  %v6237 = vor.u32 1.1754944e-38, %v6236
  %v6238 = vsel %vm6235, %v6237, %v6233
  %v6239 = vmul.f32 1.0, %v6238
  %v6240 = vrcp.pop %v5646
  %v6241 = vmul.f32 %v5646, %v6240
  %v6242 = vsub.f32 1.0, %v6241
  %v6243 = vmul.f32 %v6240, %v6242
  %v6244 = vadd.f32 %v6240, %v6243
  %vm6245 = vweird.f32 %v5646
  %vm6246 = vweird.f32 %v6240
  %vm6247 = vmor %vm6245, %vm6246
  %v6248 = vsel %vm6247, %v6240, %v6244
  %v6249 = vand.u32 2147483647, %v5646
  %vm6250 = vcmp.eq.f32.partialorder %v6249, 8.507059e+37
  %v6251 = vand.u32 %v5646, 2147483648
  %v6252 = vor.u32 1.1754944e-38, %v6251
  %v6253 = vsel %vm6250, %v6252, %v6248
  %v6254 = vmul.f32 1.0, %v6253
  %v6255 = vrcp.pop %v5647
  %v6256 = vmul.f32 %v5647, %v6255
  %v6257 = vsub.f32 1.0, %v6256
  %v6258 = vmul.f32 %v6255, %v6257
  %v6259 = vadd.f32 %v6255, %v6258
  %vm6260 = vweird.f32 %v5647
  %vm6261 = vweird.f32 %v6255
  %vm6262 = vmor %vm6260, %vm6261
  %v6263 = vsel %vm6262, %v6255, %v6259
  %v6264 = vand.u32 2147483647, %v5647
  %vm6265 = vcmp.eq.f32.partialorder %v6264, 8.507059e+37
  %v6266 = vand.u32 %v5647, 2147483648
  %v6267 = vor.u32 1.1754944e-38, %v6266
  %v6268 = vsel %vm6265, %v6267, %v6263
  %v6269 = vmul.f32 1.0, %v6268
  %v6270 = vrcp.pop %v5648
  %v6271 = vmul.f32 %v5648, %v6270
  %v6272 = vsub.f32 1.0, %v6271
  %v6273 = vmul.f32 %v6270, %v6272
  %v6274 = vadd.f32 %v6270, %v6273
  %vm6275 = vweird.f32 %v5648
  %vm6276 = vweird.f32 %v6270
  %vm6277 = vmor %vm6275, %vm6276
  %v6278 = vsel %vm6277, %v6270, %v6274
  %v6279 = vand.u32 2147483647, %v5648
  %vm6280 = vcmp.eq.f32.partialorder %v6279, 8.507059e+37
  %v6281 = vand.u32 %v5648, 2147483648
  %v6282 = vor.u32 1.1754944e-38, %v6281
  %v6283 = vsel %vm6280, %v6282, %v6278
  %v6284 = vmul.f32 1.0, %v6283
  %v6285 = vrcp.pop %v5649
  %v6286 = vmul.f32 %v5649, %v6285
  %v6287 = vsub.f32 1.0, %v6286
  %v6288 = vmul.f32 %v6285, %v6287
  %v6289 = vadd.f32 %v6285, %v6288
  %vm6290 = vweird.f32 %v5649
  %vm6291 = vweird.f32 %v6285
  %vm6292 = vmor %vm6290, %vm6291
  %v6293 = vsel %vm6292, %v6285, %v6289
  %v6294 = vand.u32 2147483647, %v5649
  %vm6295 = vcmp.eq.f32.partialorder %v6294, 8.507059e+37
  %v6296 = vand.u32 %v5649, 2147483648
  %v6297 = vor.u32 1.1754944e-38, %v6296
  %v6298 = vsel %vm6295, %v6297, %v6293
  %v6299 = vmul.f32 1.0, %v6298
  %v6300 = vrcp.pop %v5650
  %v6301 = vmul.f32 %v5650, %v6300
  %v6302 = vsub.f32 1.0, %v6301
  %v6303 = vmul.f32 %v6300, %v6302
  %v6304 = vadd.f32 %v6300, %v6303
  %vm6305 = vweird.f32 %v5650
  %vm6306 = vweird.f32 %v6300
  %vm6307 = vmor %vm6305, %vm6306
  %v6308 = vsel %vm6307, %v6300, %v6304
  %v6309 = vand.u32 2147483647, %v5650
  %vm6310 = vcmp.eq.f32.partialorder %v6309, 8.507059e+37
  %v6311 = vand.u32 %v5650, 2147483648
  %v6312 = vor.u32 1.1754944e-38, %v6311
  %v6313 = vsel %vm6310, %v6312, %v6308
  %v6314 = vmul.f32 1.0, %v6313
  %v6315 = vrcp.pop %v5651
  %v6316 = vmul.f32 %v5651, %v6315
  %v6317 = vsub.f32 1.0, %v6316
  %v6318 = vmul.f32 %v6315, %v6317
  %v6319 = vadd.f32 %v6315, %v6318
  %vm6320 = vweird.f32 %v5651
  %vm6321 = vweird.f32 %v6315
  %vm6322 = vmor %vm6320, %vm6321
  %v6323 = vsel %vm6322, %v6315, %v6319
  %v6324 = vand.u32 2147483647, %v5651
  %vm6325 = vcmp.eq.f32.partialorder %v6324, 8.507059e+37
  %v6326 = vand.u32 %v5651, 2147483648
  %v6327 = vor.u32 1.1754944e-38, %v6326
  %v6328 = vsel %vm6325, %v6327, %v6323
  %v6329 = vmul.f32 1.0, %v6328
  %v6330 = vrcp.pop %v5652
  %v6331 = vmul.f32 %v5652, %v6330
  %v6332 = vsub.f32 1.0, %v6331
  %v6333 = vmul.f32 %v6330, %v6332
  %v6334 = vadd.f32 %v6330, %v6333
  %vm6335 = vweird.f32 %v5652
  %vm6336 = vweird.f32 %v6330
  %vm6337 = vmor %vm6335, %vm6336
  %v6338 = vsel %vm6337, %v6330, %v6334
  %v6339 = vand.u32 2147483647, %v5652
  %vm6340 = vcmp.eq.f32.partialorder %v6339, 8.507059e+37
  %v6341 = vand.u32 %v5652, 2147483648
  %v6342 = vor.u32 1.1754944e-38, %v6341
  %v6343 = vsel %vm6340, %v6342, %v6338
  %v6344 = vmul.f32 1.0, %v6343
  %v6345 = vrcp.pop %v5653
  %v6346 = vmul.f32 %v5653, %v6345
  %v6347 = vsub.f32 1.0, %v6346
  %v6348 = vmul.f32 %v6345, %v6347
  %v6349 = vadd.f32 %v6345, %v6348
  %vm6350 = vweird.f32 %v5653
  %vm6351 = vweird.f32 %v6345
  %vm6352 = vmor %vm6350, %vm6351
  %v6353 = vsel %vm6352, %v6345, %v6349
  %v6354 = vand.u32 2147483647, %v5653
  %vm6355 = vcmp.eq.f32.partialorder %v6354, 8.507059e+37
  %v6356 = vand.u32 %v5653, 2147483648
  %v6357 = vor.u32 1.1754944e-38, %v6356
  %v6358 = vsel %vm6355, %v6357, %v6353
  %v6359 = vmul.f32 1.0, %v6358
  %v6360 = vrcp.pop %v5654
  %v6361 = vmul.f32 %v5654, %v6360
  %v6362 = vsub.f32 1.0, %v6361
  %v6363 = vmul.f32 %v6360, %v6362
  %v6364 = vadd.f32 %v6360, %v6363
  %vm6365 = vweird.f32 %v5654
  %vm6366 = vweird.f32 %v6360
  %vm6367 = vmor %vm6365, %vm6366
  %v6368 = vsel %vm6367, %v6360, %v6364
  %v6369 = vand.u32 2147483647, %v5654
  %vm6370 = vcmp.eq.f32.partialorder %v6369, 8.507059e+37
  %v6371 = vand.u32 %v5654, 2147483648
  %v6372 = vor.u32 1.1754944e-38, %v6371
  %v6373 = vsel %vm6370, %v6372, %v6368
  %v6374 = vmul.f32 1.0, %v6373
  %v6375 = vld [vmem:[%s9] sm:$0xff]
  %v6376 = vld [vmem:[%s9 + $0x8] sm:$0xff]
  %v6377 = vld [vmem:[%s9 + $0x10] sm:$0xff]
  %v6378 = vld [vmem:[%s9 + $0x18] sm:$0xff]
  %v6379 = vld [vmem:[%s9 + $0x20] sm:$0xff]
  %v6380 = vld [vmem:[%s9 + $0x28] sm:$0xff]
  %v6381 = vld [vmem:[%s9 + $0x30] sm:$0xff]
  %v6382 = vld [vmem:[%s9 + $0x38] sm:$0xff]
  %v6383 = vld [vmem:[%s9 + $0x40] sm:$0xff]
  %v6384 = vld [vmem:[%s9 + $0x48] sm:$0xff]
  %v6385 = vld [vmem:[%s9 + $0x50] sm:$0xff]
  %v6386 = vld [vmem:[%s9 + $0x58] sm:$0xff]
  %v6387 = vld [vmem:[%s9 + $0x60] sm:$0xff]
  %v6388 = vld [vmem:[%s9 + $0x68] sm:$0xff]
  %v6389 = vld [vmem:[%s9 + $0x70] sm:$0xff]
  %v6390 = vld [vmem:[%s9 + $0x78] sm:$0xff]
  %v6391 = vld [vmem:[%s9 + $0x80] sm:$0xff]
  %v6392 = vld [vmem:[%s9 + $0x88] sm:$0xff]
  %v6393 = vld [vmem:[%s9 + $0x90] sm:$0xff]
  %v6394 = vld [vmem:[%s9 + $0x98] sm:$0xff]
  %v6395 = vld [vmem:[%s9 + $0xa0] sm:$0xff]
  %v6396 = vld [vmem:[%s9 + $0xa8] sm:$0xff]
  %v6397 = vld [vmem:[%s9 + $0xb0] sm:$0xff]
  %v6398 = vld [vmem:[%s9 + $0xb8] sm:$0xff]
  %v6399 = vld [vmem:[%s9 + $0xc0] sm:$0xff]
  %v6400 = vld [vmem:[%s9 + $0xc8] sm:$0xff]
  %v6401 = vld [vmem:[%s9 + $0xd0] sm:$0xff]
  %v6402 = vld [vmem:[%s9 + $0xd8] sm:$0xff]
  %v6403 = vld [vmem:[%s9 + $0xe0] sm:$0xff]
  %v6404 = vld [vmem:[%s9 + $0xe8] sm:$0xff]
  %v6405 = vld [vmem:[%s9 + $0xf0] sm:$0xff]
  %v6406 = vld [vmem:[%s9 + $0xf8] sm:$0xff]
  %v6407 = vld [vmem:[%s9 + $0x100] sm:$0xff]
  %v6408 = vld [vmem:[%s9 + $0x108] sm:$0xff]
  %v6409 = vld [vmem:[%s9 + $0x110] sm:$0xff]
  %v6410 = vld [vmem:[%s9 + $0x118] sm:$0xff]
  %v6411 = vld [vmem:[%s9 + $0x120] sm:$0xff]
  %v6412 = vld [vmem:[%s9 + $0x128] sm:$0xff]
  %v6413 = vld [vmem:[%s9 + $0x130] sm:$0xff]
  %v6414 = vld [vmem:[%s9 + $0x138] sm:$0xff]
  %v6415 = vld [vmem:[%s9 + $0x140] sm:$0xff]
  %v6416 = vld [vmem:[%s9 + $0x148] sm:$0xff]
  %v6417 = vld [vmem:[%s9 + $0x150] sm:$0xff]
  %v6418 = vld [vmem:[%s9 + $0x158] sm:$0xff]
  %v6419 = vld [vmem:[%s9 + $0x160] sm:$0xff]
  %v6420 = vld [vmem:[%s9 + $0x168] sm:$0xff]
  %v6421 = vld [vmem:[%s9 + $0x170] sm:$0xff]
  %v6422 = vld [vmem:[%s9 + $0x178] sm:$0xff]
  %v6423 = vpack.c.bf16 %v5684, %v5669
  %v6424 = vpack.c.bf16 %v5714, %v5699
  %v6425 = vpack.c.bf16 %v5744, %v5729
  %v6426 = vpack.c.bf16 %v5774, %v5759
  %v6427 = vpack.c.bf16 %v5804, %v5789
  %v6428 = vpack.c.bf16 %v5834, %v5819
  %v6429 = vpack.c.bf16 %v5864, %v5849
  %v6430 = vpack.c.bf16 %v5894, %v5879
  %v6431 = vpack.c.bf16 %v5924, %v5909
  %v6432 = vpack.c.bf16 %v5954, %v5939
  %v6433 = vpack.c.bf16 %v5984, %v5969
  %v6434 = vpack.c.bf16 %v6014, %v5999
  %v6435 = vpack.c.bf16 %v6044, %v6029
  %v6436 = vpack.c.bf16 %v6074, %v6059
  %v6437 = vpack.c.bf16 %v6104, %v6089
  %v6438 = vpack.c.bf16 %v6134, %v6119
  %v6439 = vpack.c.bf16 %v6164, %v6149
  %v6440 = vpack.c.bf16 %v6194, %v6179
  %v6441 = vpack.c.bf16 %v6224, %v6209
  %v6442 = vpack.c.bf16 %v6254, %v6239
  %v6443 = vpack.c.bf16 %v6284, %v6269
  %v6444 = vpack.c.bf16 %v6314, %v6299
  %v6445 = vpack.c.bf16 %v6344, %v6329
  %v6446 = vpack.c.bf16 %v6374, %v6359
  %v6463 = vunpack.c.l.b16 %v4899
  %v6464 = vunpack.c.l.b16 %v4900
  %v6465 = vunpack.c.l.b16 %v4901
  %v6466 = vunpack.c.l.b16 %v4902
  %v6467 = vunpack.c.l.b16 %v4903
  %v6468 = vunpack.c.l.b16 %v4904
  %v6469 = vunpack.c.l.b16 %v4905
  %v6470 = vunpack.c.l.b16 %v4906
  %v6471 = vunpack.c.l.b16 %v4907
  %v6472 = vunpack.c.l.b16 %v4908
  %v6473 = vunpack.c.l.b16 %v4909
  %v6474 = vunpack.c.l.b16 %v4910
  %v6475 = vunpack.c.l.b16 %v4911
  %v6476 = vunpack.c.l.b16 %v4912
  %v6477 = vunpack.c.l.b16 %v4913
  %v6478 = vunpack.c.l.b16 %v4914
  %v6479 = vpack.c.b16 %v6464, %v6463
  %v6480 = vpack.c.b16 %v6466, %v6465
  %v6481 = vpack.c.b16 %v6468, %v6467
  %v6482 = vpack.c.b16 %v6470, %v6469
  %v6483 = vpack.c.b16 %v6472, %v6471
  %v6484 = vpack.c.b16 %v6474, %v6473
  %v6485 = vpack.c.b16 %v6476, %v6475
  %v6486 = vpack.c.b16 %v6478, %v6477
  %6495 = vmatpush.bf16.msra.mxu0 %v6486
  %6496 = vmatpush.bf16.msra.mxu0 %v6485
  %6497 = vmatpush.bf16.msra.mxu0 %v6484
  %6498 = vmatpush.bf16.msra.mxu0 %v6483
  %6499 = vmatpush.bf16.msra.mxu0 %v6482
  %6500 = vmatpush.bf16.msra.mxu0 %v6481
  %6501 = vmatpush.bf16.msra.mxu0 %v6480
  %6502 = vmatpush.bf16.msra.mxu0 %v6479
  %6503 = vmatmul.bf16.gmra.mxu0 %v6423
  %v6504 = vpop.f32.mrf.mxu0
  %v6505 = vadd.f32 0.0, %v6504
  %v6506 = vpop.f32.mrf.mxu0
  %v6507 = vadd.f32 0.0, %v6506
  %6508 = vmatmul.bf16.gmra.mxu0 %v6424
  %v6509 = vpop.f32.mrf.mxu0
  %v6510 = vadd.f32 0.0, %v6509
  %v6511 = vpop.f32.mrf.mxu0
  %v6512 = vadd.f32 0.0, %v6511
  %6513 = vmatmul.bf16.gmra.mxu0 %v6425
  %v6514 = vpop.f32.mrf.mxu0
  %v6515 = vadd.f32 0.0, %v6514
  %v6516 = vpop.f32.mrf.mxu0
  %v6517 = vadd.f32 0.0, %v6516
  %6518 = vmatmul.bf16.gmra.mxu0 %v6426
  %v6519 = vpop.f32.mrf.mxu0
  %v6520 = vadd.f32 0.0, %v6519
  %v6521 = vpop.f32.mrf.mxu0
  %v6522 = vadd.f32 0.0, %v6521
  %6523 = vmatmul.bf16.gmra.mxu0 %v6427
  %v6524 = vpop.f32.mrf.mxu0
  %v6525 = vadd.f32 0.0, %v6524
  %v6526 = vpop.f32.mrf.mxu0
  %v6527 = vadd.f32 0.0, %v6526
  %6528 = vmatmul.bf16.gmra.mxu0 %v6428
  %v6529 = vpop.f32.mrf.mxu0
  %v6530 = vadd.f32 0.0, %v6529
  %v6531 = vpop.f32.mrf.mxu0
  %v6532 = vadd.f32 0.0, %v6531
  %6533 = vmatmul.bf16.gmra.mxu0 %v6429
  %v6534 = vpop.f32.mrf.mxu0
  %v6535 = vadd.f32 0.0, %v6534
  %v6536 = vpop.f32.mrf.mxu0
  %v6537 = vadd.f32 0.0, %v6536
  %6538 = vmatmul.bf16.gmra.mxu0 %v6430
  %v6539 = vpop.f32.mrf.mxu0
  %v6540 = vadd.f32 0.0, %v6539
  %v6541 = vpop.f32.mrf.mxu0
  %v6542 = vadd.f32 0.0, %v6541
  %6543 = vmatmul.bf16.gmra.mxu0 %v6431
  %v6544 = vpop.f32.mrf.mxu0
  %v6545 = vadd.f32 0.0, %v6544
  %v6546 = vpop.f32.mrf.mxu0
  %v6547 = vadd.f32 0.0, %v6546
  %6548 = vmatmul.bf16.gmra.mxu0 %v6432
  %v6549 = vpop.f32.mrf.mxu0
  %v6550 = vadd.f32 0.0, %v6549
  %v6551 = vpop.f32.mrf.mxu0
  %v6552 = vadd.f32 0.0, %v6551
  %6553 = vmatmul.bf16.gmra.mxu0 %v6433
  %v6554 = vpop.f32.mrf.mxu0
  %v6555 = vadd.f32 0.0, %v6554
  %v6556 = vpop.f32.mrf.mxu0
  %v6557 = vadd.f32 0.0, %v6556
  %6558 = vmatmul.bf16.gmra.mxu0 %v6434
  %v6559 = vpop.f32.mrf.mxu0
  %v6560 = vadd.f32 0.0, %v6559
  %v6561 = vpop.f32.mrf.mxu0
  %v6562 = vadd.f32 0.0, %v6561
  %6563 = vmatmul.bf16.gmra.mxu0 %v6435
  %v6564 = vpop.f32.mrf.mxu0
  %v6565 = vadd.f32 0.0, %v6564
  %v6566 = vpop.f32.mrf.mxu0
  %v6567 = vadd.f32 0.0, %v6566
  %6568 = vmatmul.bf16.gmra.mxu0 %v6436
  %v6569 = vpop.f32.mrf.mxu0
  %v6570 = vadd.f32 0.0, %v6569
  %v6571 = vpop.f32.mrf.mxu0
  %v6572 = vadd.f32 0.0, %v6571
  %6573 = vmatmul.bf16.gmra.mxu0 %v6437
  %v6574 = vpop.f32.mrf.mxu0
  %v6575 = vadd.f32 0.0, %v6574
  %v6576 = vpop.f32.mrf.mxu0
  %v6577 = vadd.f32 0.0, %v6576
  %6578 = vmatmul.bf16.gmra.mxu0 %v6438
  %v6579 = vpop.f32.mrf.mxu0
  %v6580 = vadd.f32 0.0, %v6579
  %v6581 = vpop.f32.mrf.mxu0
  %v6582 = vadd.f32 0.0, %v6581
  %6583 = vmatmul.bf16.gmra.mxu0 %v6439
  %v6584 = vpop.f32.mrf.mxu0
  %v6585 = vadd.f32 0.0, %v6584
  %v6586 = vpop.f32.mrf.mxu0
  %v6587 = vadd.f32 0.0, %v6586
  %6588 = vmatmul.bf16.gmra.mxu0 %v6440
  %v6589 = vpop.f32.mrf.mxu0
  %v6590 = vadd.f32 0.0, %v6589
  %v6591 = vpop.f32.mrf.mxu0
  %v6592 = vadd.f32 0.0, %v6591
  %6593 = vmatmul.bf16.gmra.mxu0 %v6441
  %v6594 = vpop.f32.mrf.mxu0
  %v6595 = vadd.f32 0.0, %v6594
  %v6596 = vpop.f32.mrf.mxu0
  %v6597 = vadd.f32 0.0, %v6596
  %6598 = vmatmul.bf16.gmra.mxu0 %v6442
  %v6599 = vpop.f32.mrf.mxu0
  %v6600 = vadd.f32 0.0, %v6599
  %v6601 = vpop.f32.mrf.mxu0
  %v6602 = vadd.f32 0.0, %v6601
  %6603 = vmatmul.bf16.gmra.mxu0 %v6443
  %v6604 = vpop.f32.mrf.mxu0
  %v6605 = vadd.f32 0.0, %v6604
  %v6606 = vpop.f32.mrf.mxu0
  %v6607 = vadd.f32 0.0, %v6606
  %6608 = vmatmul.bf16.gmra.mxu0 %v6444
  %v6609 = vpop.f32.mrf.mxu0
  %v6610 = vadd.f32 0.0, %v6609
  %v6611 = vpop.f32.mrf.mxu0
  %v6612 = vadd.f32 0.0, %v6611
  %6613 = vmatmul.bf16.gmra.mxu0 %v6445
  %v6614 = vpop.f32.mrf.mxu0
  %v6615 = vadd.f32 0.0, %v6614
  %v6616 = vpop.f32.mrf.mxu0
  %v6617 = vadd.f32 0.0, %v6616
  %6618 = vmatmul.bf16.gmra.mxu0 %v6446
  %v6619 = vpop.f32.mrf.mxu0
  %v6620 = vadd.f32 0.0, %v6619
  %v6621 = vpop.f32.mrf.mxu0
  %v6622 = vadd.f32 0.0, %v6621
  %6623 = vdwg.mxu0
  %v6624 = vadd.f32 %v6375, %v6505
  %v6625 = vadd.f32 %v6376, %v6507
  %v6626 = vadd.f32 %v6377, %v6510
  %v6627 = vadd.f32 %v6378, %v6512
  %v6628 = vadd.f32 %v6379, %v6515
  %v6629 = vadd.f32 %v6380, %v6517
  %v6630 = vadd.f32 %v6381, %v6520
  %v6631 = vadd.f32 %v6382, %v6522
  %v6632 = vadd.f32 %v6383, %v6525
  %v6633 = vadd.f32 %v6384, %v6527
  %v6634 = vadd.f32 %v6385, %v6530
  %v6635 = vadd.f32 %v6386, %v6532
  %v6636 = vadd.f32 %v6387, %v6535
  %v6637 = vadd.f32 %v6388, %v6537
  %v6638 = vadd.f32 %v6389, %v6540
  %v6639 = vadd.f32 %v6390, %v6542
  %v6640 = vadd.f32 %v6391, %v6545
  %v6641 = vadd.f32 %v6392, %v6547
  %v6642 = vadd.f32 %v6393, %v6550
  %v6643 = vadd.f32 %v6394, %v6552
  %v6644 = vadd.f32 %v6395, %v6555
  %v6645 = vadd.f32 %v6396, %v6557
  %v6646 = vadd.f32 %v6397, %v6560
  %v6647 = vadd.f32 %v6398, %v6562
  %v6648 = vadd.f32 %v6399, %v6565
  %v6649 = vadd.f32 %v6400, %v6567
  %v6650 = vadd.f32 %v6401, %v6570
  %v6651 = vadd.f32 %v6402, %v6572
  %v6652 = vadd.f32 %v6403, %v6575
  %v6653 = vadd.f32 %v6404, %v6577
  %v6654 = vadd.f32 %v6405, %v6580
  %v6655 = vadd.f32 %v6406, %v6582
  %v6656 = vadd.f32 %v6407, %v6585
  %v6657 = vadd.f32 %v6408, %v6587
  %v6658 = vadd.f32 %v6409, %v6590
  %v6659 = vadd.f32 %v6410, %v6592
  %v6660 = vadd.f32 %v6411, %v6595
  %v6661 = vadd.f32 %v6412, %v6597
  %v6662 = vadd.f32 %v6413, %v6600
  %v6663 = vadd.f32 %v6414, %v6602
  %v6664 = vadd.f32 %v6415, %v6605
  %v6665 = vadd.f32 %v6416, %v6607
  %v6666 = vadd.f32 %v6417, %v6610
  %v6667 = vadd.f32 %v6418, %v6612
  %v6668 = vadd.f32 %v6419, %v6615
  %v6669 = vadd.f32 %v6420, %v6617
  %v6670 = vadd.f32 %v6421, %v6620
  %v6671 = vadd.f32 %v6422, %v6622
  %6672 = vst [vmem:[%s9] sm:$0xff] %v6624
  %6673 = vst [vmem:[%s9 + $0x8] sm:$0xff] %v6625
  %6674 = vst [vmem:[%s9 + $0x10] sm:$0xff] %v6626
  %6675 = vst [vmem:[%s9 + $0x18] sm:$0xff] %v6627
  %6676 = vst [vmem:[%s9 + $0x20] sm:$0xff] %v6628
  %6677 = vst [vmem:[%s9 + $0x28] sm:$0xff] %v6629
  %6678 = vst [vmem:[%s9 + $0x30] sm:$0xff] %v6630
  %6679 = vst [vmem:[%s9 + $0x38] sm:$0xff] %v6631
  %6680 = vst [vmem:[%s9 + $0x40] sm:$0xff] %v6632
  %6681 = vst [vmem:[%s9 + $0x48] sm:$0xff] %v6633
  %6682 = vst [vmem:[%s9 + $0x50] sm:$0xff] %v6634
  %6683 = vst [vmem:[%s9 + $0x58] sm:$0xff] %v6635
  %6684 = vst [vmem:[%s9 + $0x60] sm:$0xff] %v6636
  %6685 = vst [vmem:[%s9 + $0x68] sm:$0xff] %v6637
  %6686 = vst [vmem:[%s9 + $0x70] sm:$0xff] %v6638
  %6687 = vst [vmem:[%s9 + $0x78] sm:$0xff] %v6639
  %6688 = vst [vmem:[%s9 + $0x80] sm:$0xff] %v6640
  %6689 = vst [vmem:[%s9 + $0x88] sm:$0xff] %v6641
  %6690 = vst [vmem:[%s9 + $0x90] sm:$0xff] %v6642
  %6691 = vst [vmem:[%s9 + $0x98] sm:$0xff] %v6643
  %6692 = vst [vmem:[%s9 + $0xa0] sm:$0xff] %v6644
  %6693 = vst [vmem:[%s9 + $0xa8] sm:$0xff] %v6645
  %6694 = vst [vmem:[%s9 + $0xb0] sm:$0xff] %v6646
  %6695 = vst [vmem:[%s9 + $0xb8] sm:$0xff] %v6647
  %6696 = vst [vmem:[%s9 + $0xc0] sm:$0xff] %v6648
  %6697 = vst [vmem:[%s9 + $0xc8] sm:$0xff] %v6649
  %6698 = vst [vmem:[%s9 + $0xd0] sm:$0xff] %v6650
  %6699 = vst [vmem:[%s9 + $0xd8] sm:$0xff] %v6651
  %6700 = vst [vmem:[%s9 + $0xe0] sm:$0xff] %v6652
  %6701 = vst [vmem:[%s9 + $0xe8] sm:$0xff] %v6653
  %6702 = vst [vmem:[%s9 + $0xf0] sm:$0xff] %v6654
  %6703 = vst [vmem:[%s9 + $0xf8] sm:$0xff] %v6655
  %6704 = vst [vmem:[%s9 + $0x100] sm:$0xff] %v6656
  %6705 = vst [vmem:[%s9 + $0x108] sm:$0xff] %v6657
  %6706 = vst [vmem:[%s9 + $0x110] sm:$0xff] %v6658
  %6707 = vst [vmem:[%s9 + $0x118] sm:$0xff] %v6659
  %6708 = vst [vmem:[%s9 + $0x120] sm:$0xff] %v6660
  %6709 = vst [vmem:[%s9 + $0x128] sm:$0xff] %v6661
  %6710 = vst [vmem:[%s9 + $0x130] sm:$0xff] %v6662
  %6711 = vst [vmem:[%s9 + $0x138] sm:$0xff] %v6663
  %6712 = vst [vmem:[%s9 + $0x140] sm:$0xff] %v6664
  %6713 = vst [vmem:[%s9 + $0x148] sm:$0xff] %v6665
  %6714 = vst [vmem:[%s9 + $0x150] sm:$0xff] %v6666
  %6715 = vst [vmem:[%s9 + $0x158] sm:$0xff] %v6667
  %6716 = vst [vmem:[%s9 + $0x160] sm:$0xff] %v6668
  %6717 = vst [vmem:[%s9 + $0x168] sm:$0xff] %v6669
  %6718 = vst [vmem:[%s9 + $0x170] sm:$0xff] %v6670
  %6719 = vst [vmem:[%s9 + $0x178] sm:$0xff] %v6671
  %v6720 = vadd.f32 %v5344, %v5384
  %v6721 = vadd.f32 %v5346, %v5386
  %v6722 = vadd.f32 %v5349, %v5389
  %v6723 = vadd.f32 %v5351, %v5391
  %v6724 = vadd.f32 %v5354, %v5394
  %v6725 = vadd.f32 %v5356, %v5396
  %v6726 = vadd.f32 %v5359, %v5399
  %v6727 = vadd.f32 %v5361, %v5401
  %v6728 = vadd.f32 %v5364, %v5404
  %v6729 = vadd.f32 %v5366, %v5406
  %v6730 = vadd.f32 %v5369, %v5409
  %v6731 = vadd.f32 %v5371, %v5411
  %v6732 = vadd.f32 %v5374, %v5414
  %v6733 = vadd.f32 %v5376, %v5416
  %v6734 = vadd.f32 %v5379, %v5419
  %v6735 = vadd.f32 %v5381, %v5421
  %v6736 = vadd.f32 %v6720, %v5424
  %v6737 = vadd.f32 %v6721, %v5426
  %v6738 = vadd.f32 %v6722, %v5429
  %v6739 = vadd.f32 %v6723, %v5431
  %v6740 = vadd.f32 %v6724, %v5434
  %v6741 = vadd.f32 %v6725, %v5436
  %v6742 = vadd.f32 %v6726, %v5439
  %v6743 = vadd.f32 %v6727, %v5441
  %v6744 = vadd.f32 %v6728, %v5444
  %v6745 = vadd.f32 %v6729, %v5446
  %v6746 = vadd.f32 %v6730, %v5449
  %v6747 = vadd.f32 %v6731, %v5451
  %v6748 = vadd.f32 %v6732, %v5454
  %v6749 = vadd.f32 %v6733, %v5456
  %v6750 = vadd.f32 %v6734, %v5459
  %v6751 = vadd.f32 %v6735, %v5461
  %v6752 = vmul.f32 %v6736, 0.33333334
  %v6753 = vmul.f32 %v6737, 0.33333334
  %v6754 = vmul.f32 %v6738, 0.33333334
  %v6755 = vmul.f32 %v6739, 0.33333334
  %v6756 = vmul.f32 %v6740, 0.33333334
  %v6757 = vmul.f32 %v6741, 0.33333334
  %v6758 = vmul.f32 %v6742, 0.33333334
  %v6759 = vmul.f32 %v6743, 0.33333334
  %v6760 = vmul.f32 %v6744, 0.33333334
  %v6761 = vmul.f32 %v6745, 0.33333334
  %v6762 = vmul.f32 %v6746, 0.33333334
  %v6763 = vmul.f32 %v6747, 0.33333334
  %v6764 = vmul.f32 %v6748, 0.33333334
  %v6765 = vmul.f32 %v6749, 0.33333334
  %v6766 = vmul.f32 %v6750, 0.33333334
  %v6767 = vmul.f32 %v6751, 0.33333334
  %v6768 = vxor.u32 %v6752, 2147483648
  %v6769 = vxor.u32 %v6753, 2147483648
  %v6770 = vxor.u32 %v6754, 2147483648
  %v6771 = vxor.u32 %v6755, 2147483648
  %v6772 = vxor.u32 %v6756, 2147483648
  %v6773 = vxor.u32 %v6757, 2147483648
  %v6774 = vxor.u32 %v6758, 2147483648
  %v6775 = vxor.u32 %v6759, 2147483648
  %v6776 = vxor.u32 %v6760, 2147483648
  %v6777 = vxor.u32 %v6761, 2147483648
  %v6778 = vxor.u32 %v6762, 2147483648
  %v6779 = vxor.u32 %v6763, 2147483648
  %v6780 = vxor.u32 %v6764, 2147483648
  %v6781 = vxor.u32 %v6765, 2147483648
  %v6782 = vxor.u32 %v6766, 2147483648
  %v6783 = vxor.u32 %v6767, 2147483648
  %v6784 = vmul.f32 %v6768, 1.442695
  %v6785 = vpow.pop %v6784
  %v6786 = vmul.f32 %v6769, 1.442695
  %v6787 = vpow.pop %v6786
  %v6788 = vmul.f32 %v6770, 1.442695
  %v6789 = vpow.pop %v6788
  %v6790 = vmul.f32 %v6771, 1.442695
  %v6791 = vpow.pop %v6790
  %v6792 = vmul.f32 %v6772, 1.442695
  %v6793 = vpow.pop %v6792
  %v6794 = vmul.f32 %v6773, 1.442695
  %v6795 = vpow.pop %v6794
  %v6796 = vmul.f32 %v6774, 1.442695
  %v6797 = vpow.pop %v6796
  %v6798 = vmul.f32 %v6775, 1.442695
  %v6799 = vpow.pop %v6798
  %v6800 = vmul.f32 %v6776, 1.442695
  %v6801 = vpow.pop %v6800
  %v6802 = vmul.f32 %v6777, 1.442695
  %v6803 = vpow.pop %v6802
  %v6804 = vmul.f32 %v6778, 1.442695
  %v6805 = vpow.pop %v6804
  %v6806 = vmul.f32 %v6779, 1.442695
  %v6807 = vpow.pop %v6806
  %v6808 = vmul.f32 %v6780, 1.442695
  %v6809 = vpow.pop %v6808
  %v6810 = vmul.f32 %v6781, 1.442695
  %v6811 = vpow.pop %v6810
  %v6812 = vmul.f32 %v6782, 1.442695
  %v6813 = vpow.pop %v6812
  %v6814 = vmul.f32 %v6783, 1.442695
  %v6815 = vpow.pop %v6814
  %v6816 = vadd.f32 %v6785, 1.0
  %v6817 = vadd.f32 %v6787, 1.0
  %v6818 = vadd.f32 %v6789, 1.0
  %v6819 = vadd.f32 %v6791, 1.0
  %v6820 = vadd.f32 %v6793, 1.0
  %v6821 = vadd.f32 %v6795, 1.0
  %v6822 = vadd.f32 %v6797, 1.0
  %v6823 = vadd.f32 %v6799, 1.0
  %v6824 = vadd.f32 %v6801, 1.0
  %v6825 = vadd.f32 %v6803, 1.0
  %v6826 = vadd.f32 %v6805, 1.0
  %v6827 = vadd.f32 %v6807, 1.0
  %v6828 = vadd.f32 %v6809, 1.0
  %v6829 = vadd.f32 %v6811, 1.0
  %v6830 = vadd.f32 %v6813, 1.0
  %v6831 = vadd.f32 %v6815, 1.0
  %v6832 = vrcp.pop %v6816
  %v6833 = vmul.f32 %v6816, %v6832
  %v6834 = vsub.f32 1.0, %v6833
  %v6835 = vmul.f32 %v6832, %v6834
  %v6836 = vadd.f32 %v6832, %v6835
  %vm6837 = vweird.f32 %v6816
  %vm6838 = vweird.f32 %v6832
  %vm6839 = vmor %vm6837, %vm6838
  %v6840 = vsel %vm6839, %v6832, %v6836
  %v6841 = vand.u32 2147483647, %v6816
  %vm6842 = vcmp.eq.f32.partialorder %v6841, 8.507059e+37
  %v6843 = vand.u32 %v6816, 2147483648
  %v6844 = vor.u32 1.1754944e-38, %v6843
  %v6845 = vsel %vm6842, %v6844, %v6840
  %v6846 = vmul.f32 1.0, %v6845
  %v6847 = vrcp.pop %v6817
  %v6848 = vmul.f32 %v6817, %v6847
  %v6849 = vsub.f32 1.0, %v6848
  %v6850 = vmul.f32 %v6847, %v6849
  %v6851 = vadd.f32 %v6847, %v6850
  %vm6852 = vweird.f32 %v6817
  %vm6853 = vweird.f32 %v6847
  %vm6854 = vmor %vm6852, %vm6853
  %v6855 = vsel %vm6854, %v6847, %v6851
  %v6856 = vand.u32 2147483647, %v6817
  %vm6857 = vcmp.eq.f32.partialorder %v6856, 8.507059e+37
  %v6858 = vand.u32 %v6817, 2147483648
  %v6859 = vor.u32 1.1754944e-38, %v6858
  %v6860 = vsel %vm6857, %v6859, %v6855
  %v6861 = vmul.f32 1.0, %v6860
  %v6862 = vrcp.pop %v6818
  %v6863 = vmul.f32 %v6818, %v6862
  %v6864 = vsub.f32 1.0, %v6863
  %v6865 = vmul.f32 %v6862, %v6864
  %v6866 = vadd.f32 %v6862, %v6865
  %vm6867 = vweird.f32 %v6818
  %vm6868 = vweird.f32 %v6862
  %vm6869 = vmor %vm6867, %vm6868
  %v6870 = vsel %vm6869, %v6862, %v6866
  %v6871 = vand.u32 2147483647, %v6818
  %vm6872 = vcmp.eq.f32.partialorder %v6871, 8.507059e+37
  %v6873 = vand.u32 %v6818, 2147483648
  %v6874 = vor.u32 1.1754944e-38, %v6873
  %v6875 = vsel %vm6872, %v6874, %v6870
  %v6876 = vmul.f32 1.0, %v6875
  %v6877 = vrcp.pop %v6819
  %v6878 = vmul.f32 %v6819, %v6877
  %v6879 = vsub.f32 1.0, %v6878
  %v6880 = vmul.f32 %v6877, %v6879
  %v6881 = vadd.f32 %v6877, %v6880
  %vm6882 = vweird.f32 %v6819
  %vm6883 = vweird.f32 %v6877
  %vm6884 = vmor %vm6882, %vm6883
  %v6885 = vsel %vm6884, %v6877, %v6881
  %v6886 = vand.u32 2147483647, %v6819
  %vm6887 = vcmp.eq.f32.partialorder %v6886, 8.507059e+37
  %v6888 = vand.u32 %v6819, 2147483648
  %v6889 = vor.u32 1.1754944e-38, %v6888
  %v6890 = vsel %vm6887, %v6889, %v6885
  %v6891 = vmul.f32 1.0, %v6890
  %v6892 = vrcp.pop %v6820
  %v6893 = vmul.f32 %v6820, %v6892
  %v6894 = vsub.f32 1.0, %v6893
  %v6895 = vmul.f32 %v6892, %v6894
  %v6896 = vadd.f32 %v6892, %v6895
  %vm6897 = vweird.f32 %v6820
  %vm6898 = vweird.f32 %v6892
  %vm6899 = vmor %vm6897, %vm6898
  %v6900 = vsel %vm6899, %v6892, %v6896
  %v6901 = vand.u32 2147483647, %v6820
  %vm6902 = vcmp.eq.f32.partialorder %v6901, 8.507059e+37
  %v6903 = vand.u32 %v6820, 2147483648
  %v6904 = vor.u32 1.1754944e-38, %v6903
  %v6905 = vsel %vm6902, %v6904, %v6900
  %v6906 = vmul.f32 1.0, %v6905
  %v6907 = vrcp.pop %v6821
  %v6908 = vmul.f32 %v6821, %v6907
  %v6909 = vsub.f32 1.0, %v6908
  %v6910 = vmul.f32 %v6907, %v6909
  %v6911 = vadd.f32 %v6907, %v6910
  %vm6912 = vweird.f32 %v6821
  %vm6913 = vweird.f32 %v6907
  %vm6914 = vmor %vm6912, %vm6913
  %v6915 = vsel %vm6914, %v6907, %v6911
  %v6916 = vand.u32 2147483647, %v6821
  %vm6917 = vcmp.eq.f32.partialorder %v6916, 8.507059e+37
  %v6918 = vand.u32 %v6821, 2147483648
  %v6919 = vor.u32 1.1754944e-38, %v6918
  %v6920 = vsel %vm6917, %v6919, %v6915
  %v6921 = vmul.f32 1.0, %v6920
  %v6922 = vrcp.pop %v6822
  %v6923 = vmul.f32 %v6822, %v6922
  %v6924 = vsub.f32 1.0, %v6923
  %v6925 = vmul.f32 %v6922, %v6924
  %v6926 = vadd.f32 %v6922, %v6925
  %vm6927 = vweird.f32 %v6822
  %vm6928 = vweird.f32 %v6922
  %vm6929 = vmor %vm6927, %vm6928
  %v6930 = vsel %vm6929, %v6922, %v6926
  %v6931 = vand.u32 2147483647, %v6822
  %vm6932 = vcmp.eq.f32.partialorder %v6931, 8.507059e+37
  %v6933 = vand.u32 %v6822, 2147483648
  %v6934 = vor.u32 1.1754944e-38, %v6933
  %v6935 = vsel %vm6932, %v6934, %v6930
  %v6936 = vmul.f32 1.0, %v6935
  %v6937 = vrcp.pop %v6823
  %v6938 = vmul.f32 %v6823, %v6937
  %v6939 = vsub.f32 1.0, %v6938
  %v6940 = vmul.f32 %v6937, %v6939
  %v6941 = vadd.f32 %v6937, %v6940
  %vm6942 = vweird.f32 %v6823
  %vm6943 = vweird.f32 %v6937
  %vm6944 = vmor %vm6942, %vm6943
  %v6945 = vsel %vm6944, %v6937, %v6941
  %v6946 = vand.u32 2147483647, %v6823
  %vm6947 = vcmp.eq.f32.partialorder %v6946, 8.507059e+37
  %v6948 = vand.u32 %v6823, 2147483648
  %v6949 = vor.u32 1.1754944e-38, %v6948
  %v6950 = vsel %vm6947, %v6949, %v6945
  %v6951 = vmul.f32 1.0, %v6950
  %v6952 = vrcp.pop %v6824
  %v6953 = vmul.f32 %v6824, %v6952
  %v6954 = vsub.f32 1.0, %v6953
  %v6955 = vmul.f32 %v6952, %v6954
  %v6956 = vadd.f32 %v6952, %v6955
  %vm6957 = vweird.f32 %v6824
  %vm6958 = vweird.f32 %v6952
  %vm6959 = vmor %vm6957, %vm6958
  %v6960 = vsel %vm6959, %v6952, %v6956
  %v6961 = vand.u32 2147483647, %v6824
  %vm6962 = vcmp.eq.f32.partialorder %v6961, 8.507059e+37
  %v6963 = vand.u32 %v6824, 2147483648
  %v6964 = vor.u32 1.1754944e-38, %v6963
  %v6965 = vsel %vm6962, %v6964, %v6960
  %v6966 = vmul.f32 1.0, %v6965
  %v6967 = vrcp.pop %v6825
  %v6968 = vmul.f32 %v6825, %v6967
  %v6969 = vsub.f32 1.0, %v6968
  %v6970 = vmul.f32 %v6967, %v6969
  %v6971 = vadd.f32 %v6967, %v6970
  %vm6972 = vweird.f32 %v6825
  %vm6973 = vweird.f32 %v6967
  %vm6974 = vmor %vm6972, %vm6973
  %v6975 = vsel %vm6974, %v6967, %v6971
  %v6976 = vand.u32 2147483647, %v6825
  %vm6977 = vcmp.eq.f32.partialorder %v6976, 8.507059e+37
  %v6978 = vand.u32 %v6825, 2147483648
  %v6979 = vor.u32 1.1754944e-38, %v6978
  %v6980 = vsel %vm6977, %v6979, %v6975
  %v6981 = vmul.f32 1.0, %v6980
  %v6982 = vrcp.pop %v6826
  %v6983 = vmul.f32 %v6826, %v6982
  %v6984 = vsub.f32 1.0, %v6983
  %v6985 = vmul.f32 %v6982, %v6984
  %v6986 = vadd.f32 %v6982, %v6985
  %vm6987 = vweird.f32 %v6826
  %vm6988 = vweird.f32 %v6982
  %vm6989 = vmor %vm6987, %vm6988
  %v6990 = vsel %vm6989, %v6982, %v6986
  %v6991 = vand.u32 2147483647, %v6826
  %vm6992 = vcmp.eq.f32.partialorder %v6991, 8.507059e+37
  %v6993 = vand.u32 %v6826, 2147483648
  %v6994 = vor.u32 1.1754944e-38, %v6993
  %v6995 = vsel %vm6992, %v6994, %v6990
  %v6996 = vmul.f32 1.0, %v6995
  %v6997 = vrcp.pop %v6827
  %v6998 = vmul.f32 %v6827, %v6997
  %v6999 = vsub.f32 1.0, %v6998
  %v7000 = vmul.f32 %v6997, %v6999
  %v7001 = vadd.f32 %v6997, %v7000
  %vm7002 = vweird.f32 %v6827
  %vm7003 = vweird.f32 %v6997
  %vm7004 = vmor %vm7002, %vm7003
  %v7005 = vsel %vm7004, %v6997, %v7001
  %v7006 = vand.u32 2147483647, %v6827
  %vm7007 = vcmp.eq.f32.partialorder %v7006, 8.507059e+37
  %v7008 = vand.u32 %v6827, 2147483648
  %v7009 = vor.u32 1.1754944e-38, %v7008
  %v7010 = vsel %vm7007, %v7009, %v7005
  %v7011 = vmul.f32 1.0, %v7010
  %v7012 = vrcp.pop %v6828
  %v7013 = vmul.f32 %v6828, %v7012
  %v7014 = vsub.f32 1.0, %v7013
  %v7015 = vmul.f32 %v7012, %v7014
  %v7016 = vadd.f32 %v7012, %v7015
  %vm7017 = vweird.f32 %v6828
  %vm7018 = vweird.f32 %v7012
  %vm7019 = vmor %vm7017, %vm7018
  %v7020 = vsel %vm7019, %v7012, %v7016
  %v7021 = vand.u32 2147483647, %v6828
  %vm7022 = vcmp.eq.f32.partialorder %v7021, 8.507059e+37
  %v7023 = vand.u32 %v6828, 2147483648
  %v7024 = vor.u32 1.1754944e-38, %v7023
  %v7025 = vsel %vm7022, %v7024, %v7020
  %v7026 = vmul.f32 1.0, %v7025
  %v7027 = vrcp.pop %v6829
  %v7028 = vmul.f32 %v6829, %v7027
  %v7029 = vsub.f32 1.0, %v7028
  %v7030 = vmul.f32 %v7027, %v7029
  %v7031 = vadd.f32 %v7027, %v7030
  %vm7032 = vweird.f32 %v6829
  %vm7033 = vweird.f32 %v7027
  %vm7034 = vmor %vm7032, %vm7033
  %v7035 = vsel %vm7034, %v7027, %v7031
  %v7036 = vand.u32 2147483647, %v6829
  %vm7037 = vcmp.eq.f32.partialorder %v7036, 8.507059e+37
  %v7038 = vand.u32 %v6829, 2147483648
  %v7039 = vor.u32 1.1754944e-38, %v7038
  %v7040 = vsel %vm7037, %v7039, %v7035
  %v7041 = vmul.f32 1.0, %v7040
  %v7042 = vrcp.pop %v6830
  %v7043 = vmul.f32 %v6830, %v7042
  %v7044 = vsub.f32 1.0, %v7043
  %v7045 = vmul.f32 %v7042, %v7044
  %v7046 = vadd.f32 %v7042, %v7045
  %vm7047 = vweird.f32 %v6830
  %vm7048 = vweird.f32 %v7042
  %vm7049 = vmor %vm7047, %vm7048
  %v7050 = vsel %vm7049, %v7042, %v7046
  %v7051 = vand.u32 2147483647, %v6830
  %vm7052 = vcmp.eq.f32.partialorder %v7051, 8.507059e+37
  %v7053 = vand.u32 %v6830, 2147483648
  %v7054 = vor.u32 1.1754944e-38, %v7053
  %v7055 = vsel %vm7052, %v7054, %v7050
  %v7056 = vmul.f32 1.0, %v7055
  %v7057 = vrcp.pop %v6831
  %v7058 = vmul.f32 %v6831, %v7057
  %v7059 = vsub.f32 1.0, %v7058
  %v7060 = vmul.f32 %v7057, %v7059
  %v7061 = vadd.f32 %v7057, %v7060
  %vm7062 = vweird.f32 %v6831
  %vm7063 = vweird.f32 %v7057
  %vm7064 = vmor %vm7062, %vm7063
  %v7065 = vsel %vm7064, %v7057, %v7061
  %v7066 = vand.u32 2147483647, %v6831
  %vm7067 = vcmp.eq.f32.partialorder %v7066, 8.507059e+37
  %v7068 = vand.u32 %v6831, 2147483648
  %v7069 = vor.u32 1.1754944e-38, %v7068
  %v7070 = vsel %vm7067, %v7069, %v7065
  %v7071 = vmul.f32 1.0, %v7070
  %v7072 = vpack.c.bf16 %v6861, %v6846
  %v7073 = vpack.c.bf16 %v6891, %v6876
  %v7074 = vpack.c.bf16 %v6921, %v6906
  %v7075 = vpack.c.bf16 %v6951, %v6936
  %v7076 = vpack.c.bf16 %v6981, %v6966
  %v7077 = vpack.c.bf16 %v7011, %v6996
  %v7078 = vpack.c.bf16 %v7041, %v7026
  %v7079 = vpack.c.bf16 %v7071, %v7056
  %v7080 = vld [vmem:[%s7] sm:$0xff]
  %v7081 = vld [vmem:[%s7 + $0x8] sm:$0xff]
  %v7082 = vld [vmem:[%s7 + $0x10] sm:$0xff]
  %v7083 = vld [vmem:[%s7 + $0x18] sm:$0xff]
  %v7084 = vld [vmem:[%s7 + $0x20] sm:$0xff]
  %v7085 = vld [vmem:[%s7 + $0x28] sm:$0xff]
  %v7086 = vld [vmem:[%s7 + $0x30] sm:$0xff]
  %v7087 = vld [vmem:[%s7 + $0x38] sm:$0xff]
  %v7088 = vld [vmem:[%s7 + $0x40] sm:$0xff]
  %v7089 = vld [vmem:[%s7 + $0x48] sm:$0xff]
  %v7090 = vld [vmem:[%s7 + $0x50] sm:$0xff]
  %v7091 = vld [vmem:[%s7 + $0x58] sm:$0xff]
  %v7092 = vld [vmem:[%s7 + $0x60] sm:$0xff]
  %v7093 = vld [vmem:[%s7 + $0x68] sm:$0xff]
  %v7094 = vld [vmem:[%s7 + $0x70] sm:$0xff]
  %v7095 = vld [vmem:[%s7 + $0x78] sm:$0xff]
  %7096 = vmatpush.bf16.msra.mxu0 %v6486
  %7097 = vmatpush.bf16.msra.mxu0 %v6485
  %7098 = vmatpush.bf16.msra.mxu0 %v6484
  %7099 = vmatpush.bf16.msra.mxu0 %v6483
  %7100 = vmatpush.bf16.msra.mxu0 %v6482
  %7101 = vmatpush.bf16.msra.mxu0 %v6481
  %7102 = vmatpush.bf16.msra.mxu0 %v6480
  %7103 = vmatpush.bf16.msra.mxu0 %v6479
  %7104 = vmatmul.bf16.gmra.mxu0 %v7072
  %v7105 = vpop.f32.mrf.mxu0
  %v7106 = vadd.f32 0.0, %v7105
  %v7107 = vpop.f32.mrf.mxu0
  %v7108 = vadd.f32 0.0, %v7107
  %7109 = vmatmul.bf16.gmra.mxu0 %v7073
  %v7110 = vpop.f32.mrf.mxu0
  %v7111 = vadd.f32 0.0, %v7110
  %v7112 = vpop.f32.mrf.mxu0
  %v7113 = vadd.f32 0.0, %v7112
  %7114 = vmatmul.bf16.gmra.mxu0 %v7074
  %v7115 = vpop.f32.mrf.mxu0
  %v7116 = vadd.f32 0.0, %v7115
  %v7117 = vpop.f32.mrf.mxu0
  %v7118 = vadd.f32 0.0, %v7117
  %7119 = vmatmul.bf16.gmra.mxu0 %v7075
  %v7120 = vpop.f32.mrf.mxu0
  %v7121 = vadd.f32 0.0, %v7120
  %v7122 = vpop.f32.mrf.mxu0
  %v7123 = vadd.f32 0.0, %v7122
  %7124 = vmatmul.bf16.gmra.mxu0 %v7076
  %v7125 = vpop.f32.mrf.mxu0
  %v7126 = vadd.f32 0.0, %v7125
  %v7127 = vpop.f32.mrf.mxu0
  %v7128 = vadd.f32 0.0, %v7127
  %7129 = vmatmul.bf16.gmra.mxu0 %v7077
  %v7130 = vpop.f32.mrf.mxu0
  %v7131 = vadd.f32 0.0, %v7130
  %v7132 = vpop.f32.mrf.mxu0
  %v7133 = vadd.f32 0.0, %v7132
  %7134 = vmatmul.bf16.gmra.mxu0 %v7078
  %v7135 = vpop.f32.mrf.mxu0
  %v7136 = vadd.f32 0.0, %v7135
  %v7137 = vpop.f32.mrf.mxu0
  %v7138 = vadd.f32 0.0, %v7137
  %7139 = vmatmul.bf16.gmra.mxu0 %v7079
  %v7140 = vpop.f32.mrf.mxu0
  %v7141 = vadd.f32 0.0, %v7140
  %v7142 = vpop.f32.mrf.mxu0
  %v7143 = vadd.f32 0.0, %v7142
  %7144 = vdwg.mxu0
  %v7145 = vadd.f32 %v7080, %v7106
  %v7146 = vadd.f32 %v7081, %v7108
  %v7147 = vadd.f32 %v7082, %v7111
  %v7148 = vadd.f32 %v7083, %v7113
  %v7149 = vadd.f32 %v7084, %v7116
  %v7150 = vadd.f32 %v7085, %v7118
  %v7151 = vadd.f32 %v7086, %v7121
  %v7152 = vadd.f32 %v7087, %v7123
  %v7153 = vadd.f32 %v7088, %v7126
  %v7154 = vadd.f32 %v7089, %v7128
  %v7155 = vadd.f32 %v7090, %v7131
  %v7156 = vadd.f32 %v7091, %v7133
  %v7157 = vadd.f32 %v7092, %v7136
  %v7158 = vadd.f32 %v7093, %v7138
  %v7159 = vadd.f32 %v7094, %v7141
  %v7160 = vadd.f32 %v7095, %v7143
  %7161 = vst [vmem:[%s7] sm:$0xff] %v7145
  %7162 = vst [vmem:[%s7 + $0x8] sm:$0xff] %v7146
  %7163 = vst [vmem:[%s7 + $0x10] sm:$0xff] %v7147
  %7164 = vst [vmem:[%s7 + $0x18] sm:$0xff] %v7148
  %7165 = vst [vmem:[%s7 + $0x20] sm:$0xff] %v7149
  %7166 = vst [vmem:[%s7 + $0x28] sm:$0xff] %v7150
  %7167 = vst [vmem:[%s7 + $0x30] sm:$0xff] %v7151
  %7168 = vst [vmem:[%s7 + $0x38] sm:$0xff] %v7152
  %7169 = vst [vmem:[%s7 + $0x40] sm:$0xff] %v7153
  %7170 = vst [vmem:[%s7 + $0x48] sm:$0xff] %v7154
  %7171 = vst [vmem:[%s7 + $0x50] sm:$0xff] %v7155
  %7172 = vst [vmem:[%s7 + $0x58] sm:$0xff] %v7156
  %7173 = vst [vmem:[%s7 + $0x60] sm:$0xff] %v7157
  %7174 = vst [vmem:[%s7 + $0x68] sm:$0xff] %v7158
  %7175 = vst [vmem:[%s7 + $0x70] sm:$0xff] %v7159
  %7176 = vst [vmem:[%s7 + $0x78] sm:$0xff] %v7160
  %v7177 = vld [vmem:[%s0] sm:$0xf]
  %v7178 = vld [vmem:[%s0 + $0x4] sm:$0xf]
  %v7179 = vld [vmem:[%s0 + $0x8] sm:$0xf]
  %v7180 = vld [vmem:[%s0 + $0xc] sm:$0xf]
  %v7181 = vld [vmem:[%s0 + $0x10] sm:$0xf]
  %v7182 = vld [vmem:[%s0 + $0x14] sm:$0xf]
  %v7183 = vld [vmem:[%s0 + $0x18] sm:$0xf]
  %v7184 = vld [vmem:[%s0 + $0x1c] sm:$0xf]
  %v7185 = vld [vmem:[%s0 + $0x20] sm:$0xf]
  %v7186 = vld [vmem:[%s0 + $0x24] sm:$0xf]
  %v7187 = vld [vmem:[%s0 + $0x28] sm:$0xf]
  %v7188 = vld [vmem:[%s0 + $0x2c] sm:$0xf]
  %v7189 = vld [vmem:[%s0 + $0x30] sm:$0xf]
  %v7190 = vld [vmem:[%s0 + $0x34] sm:$0xf]
  %v7191 = vld [vmem:[%s0 + $0x38] sm:$0xf]
  %v7192 = vld [vmem:[%s0 + $0x3c] sm:$0xf]
  %v7209 = vunpack.c.l.b16 %v7177
  %v7210 = vunpack.c.l.b16 %v7178
  %v7211 = vunpack.c.l.b16 %v7179
  %v7212 = vunpack.c.l.b16 %v7180
  %v7213 = vunpack.c.l.b16 %v7181
  %v7214 = vunpack.c.l.b16 %v7182
  %v7215 = vunpack.c.l.b16 %v7183
  %v7216 = vunpack.c.l.b16 %v7184
  %v7217 = vunpack.c.l.b16 %v7185
  %v7218 = vunpack.c.l.b16 %v7186
  %v7219 = vunpack.c.l.b16 %v7187
  %v7220 = vunpack.c.l.b16 %v7188
  %v7221 = vunpack.c.l.b16 %v7189
  %v7222 = vunpack.c.l.b16 %v7190
  %v7223 = vunpack.c.l.b16 %v7191
  %v7224 = vunpack.c.l.b16 %v7192
  %v7225 = vpack.c.b16 %v7210, %v7209
  %v7226 = vpack.c.b16 %v7212, %v7211
  %v7227 = vpack.c.b16 %v7214, %v7213
  %v7228 = vpack.c.b16 %v7216, %v7215
  %v7229 = vpack.c.b16 %v7218, %v7217
  %v7230 = vpack.c.b16 %v7220, %v7219
  %v7231 = vpack.c.b16 %v7222, %v7221
  %v7232 = vpack.c.b16 %v7224, %v7223
  %7241 = vxpose.xlu0.c.b16.start [1/8] %v7225, 128
  %7242 = vxpose.xlu0.c.b16.cont [2/8] %v7226, 128
  %7243 = vxpose.xlu0.c.b16.cont [3/8] %v7227, 128
  %7244 = vxpose.xlu0.c.b16.cont [4/8] %v7228, 128
  %7245 = vxpose.xlu0.c.b16.cont [5/8] %v7229, 128
  %7246 = vxpose.xlu0.c.b16.cont [6/8] %v7230, 128
  %7247 = vxpose.xlu0.c.b16.cont [7/8] %v7231, 128
  %7248 = vxpose.xlu0.c.b16.end [8/8] %v7232, 128
  %v7249 = vpop.trf.xlu0
  %v7250 = vpop.trf.xlu0
  %v7251 = vpop.trf.xlu0
  %v7252 = vpop.trf.xlu0
  %v7253 = vpop.trf.xlu0
  %v7254 = vpop.trf.xlu0
  %v7255 = vpop.trf.xlu0
  %v7256 = vpop.trf.xlu0
  %7257 = vmatpush.bf16.msra.mxu0 %v5141
  %7258 = vmatpush.bf16.msra.mxu0 %v5140
  %7259 = vmatpush.bf16.msra.mxu0 %v5139
  %7260 = vmatpush.bf16.msra.mxu0 %v5138
  %7261 = vmatpush.bf16.msra.mxu0 %v5137
  %7262 = vmatpush.bf16.msra.mxu0 %v5136
  %7263 = vmatpush.bf16.msra.mxu0 %v5135
  %7264 = vmatpush.bf16.msra.mxu0 %v5134
  %7265 = vmatmul.bf16.gmra.mxu0 %v7249
  %v7266 = vpop.f32.mrf.mxu0
  %v7267 = vadd.f32 0.0, %v7266
  %v7268 = vpop.f32.mrf.mxu0
  %v7269 = vadd.f32 0.0, %v7268
  %7270 = vmatmul.bf16.gmra.mxu0 %v7250
  %v7271 = vpop.f32.mrf.mxu0
  %v7272 = vadd.f32 0.0, %v7271
  %v7273 = vpop.f32.mrf.mxu0
  %v7274 = vadd.f32 0.0, %v7273
  %7275 = vmatmul.bf16.gmra.mxu0 %v7251
  %v7276 = vpop.f32.mrf.mxu0
  %v7277 = vadd.f32 0.0, %v7276
  %v7278 = vpop.f32.mrf.mxu0
  %v7279 = vadd.f32 0.0, %v7278
  %7280 = vmatmul.bf16.gmra.mxu0 %v7252
  %v7281 = vpop.f32.mrf.mxu0
  %v7282 = vadd.f32 0.0, %v7281
  %v7283 = vpop.f32.mrf.mxu0
  %v7284 = vadd.f32 0.0, %v7283
  %7285 = vmatmul.bf16.gmra.mxu0 %v7253
  %v7286 = vpop.f32.mrf.mxu0
  %v7287 = vadd.f32 0.0, %v7286
  %v7288 = vpop.f32.mrf.mxu0
  %v7289 = vadd.f32 0.0, %v7288
  %7290 = vmatmul.bf16.gmra.mxu0 %v7254
  %v7291 = vpop.f32.mrf.mxu0
  %v7292 = vadd.f32 0.0, %v7291
  %v7293 = vpop.f32.mrf.mxu0
  %v7294 = vadd.f32 0.0, %v7293
  %7295 = vmatmul.bf16.gmra.mxu0 %v7255
  %v7296 = vpop.f32.mrf.mxu0
  %v7297 = vadd.f32 0.0, %v7296
  %v7298 = vpop.f32.mrf.mxu0
  %v7299 = vadd.f32 0.0, %v7298
  %7300 = vmatmul.bf16.gmra.mxu0 %v7256
  %v7301 = vpop.f32.mrf.mxu0
  %v7302 = vadd.f32 0.0, %v7301
  %v7303 = vpop.f32.mrf.mxu0
  %v7304 = vadd.f32 0.0, %v7303
  %7305 = vdwg.mxu0
  %v7306 = vxor.u32 %v7267, 2147483648
  %v7307 = vxor.u32 %v7269, 2147483648
  %v7308 = vxor.u32 %v7272, 2147483648
  %v7309 = vxor.u32 %v7274, 2147483648
  %v7310 = vxor.u32 %v7277, 2147483648
  %v7311 = vxor.u32 %v7279, 2147483648
  %v7312 = vxor.u32 %v7282, 2147483648
  %v7313 = vxor.u32 %v7284, 2147483648
  %v7314 = vxor.u32 %v7287, 2147483648
  %v7315 = vxor.u32 %v7289, 2147483648
  %v7316 = vxor.u32 %v7292, 2147483648
  %v7317 = vxor.u32 %v7294, 2147483648
  %v7318 = vxor.u32 %v7297, 2147483648
  %v7319 = vxor.u32 %v7299, 2147483648
  %v7320 = vxor.u32 %v7302, 2147483648
  %v7321 = vxor.u32 %v7304, 2147483648
  %v7322 = vmul.f32 %v7306, 1.442695
  %v7323 = vpow.pop %v7322
  %v7324 = vmul.f32 %v7307, 1.442695
  %v7325 = vpow.pop %v7324
  %v7326 = vmul.f32 %v7308, 1.442695
  %v7327 = vpow.pop %v7326
  %v7328 = vmul.f32 %v7309, 1.442695
  %v7329 = vpow.pop %v7328
  %v7330 = vmul.f32 %v7310, 1.442695
  %v7331 = vpow.pop %v7330
  %v7332 = vmul.f32 %v7311, 1.442695
  %v7333 = vpow.pop %v7332
  %v7334 = vmul.f32 %v7312, 1.442695
  %v7335 = vpow.pop %v7334
  %v7336 = vmul.f32 %v7313, 1.442695
  %v7337 = vpow.pop %v7336
  %v7338 = vmul.f32 %v7314, 1.442695
  %v7339 = vpow.pop %v7338
  %v7340 = vmul.f32 %v7315, 1.442695
  %v7341 = vpow.pop %v7340
  %v7342 = vmul.f32 %v7316, 1.442695
  %v7343 = vpow.pop %v7342
  %v7344 = vmul.f32 %v7317, 1.442695
  %v7345 = vpow.pop %v7344
  %v7346 = vmul.f32 %v7318, 1.442695
  %v7347 = vpow.pop %v7346
  %v7348 = vmul.f32 %v7319, 1.442695
  %v7349 = vpow.pop %v7348
  %v7350 = vmul.f32 %v7320, 1.442695
  %v7351 = vpow.pop %v7350
  %v7352 = vmul.f32 %v7321, 1.442695
  %v7353 = vpow.pop %v7352
  %v7354 = vadd.f32 %v7323, 1.0
  %v7355 = vadd.f32 %v7325, 1.0
  %v7356 = vadd.f32 %v7327, 1.0
  %v7357 = vadd.f32 %v7329, 1.0
  %v7358 = vadd.f32 %v7331, 1.0
  %v7359 = vadd.f32 %v7333, 1.0
  %v7360 = vadd.f32 %v7335, 1.0
  %v7361 = vadd.f32 %v7337, 1.0
  %v7362 = vadd.f32 %v7339, 1.0
  %v7363 = vadd.f32 %v7341, 1.0
  %v7364 = vadd.f32 %v7343, 1.0
  %v7365 = vadd.f32 %v7345, 1.0
  %v7366 = vadd.f32 %v7347, 1.0
  %v7367 = vadd.f32 %v7349, 1.0
  %v7368 = vadd.f32 %v7351, 1.0
  %v7369 = vadd.f32 %v7353, 1.0
  %v7370 = vrcp.pop %v7354
  %v7371 = vmul.f32 %v7354, %v7370
  %v7372 = vsub.f32 1.0, %v7371
  %v7373 = vmul.f32 %v7370, %v7372
  %v7374 = vadd.f32 %v7370, %v7373
  %vm7375 = vweird.f32 %v7354
  %vm7376 = vweird.f32 %v7370
  %vm7377 = vmor %vm7375, %vm7376
  %v7378 = vsel %vm7377, %v7370, %v7374
  %v7379 = vand.u32 2147483647, %v7354
  %vm7380 = vcmp.eq.f32.partialorder %v7379, 8.507059e+37
  %v7381 = vand.u32 %v7354, 2147483648
  %v7382 = vor.u32 1.1754944e-38, %v7381
  %v7383 = vsel %vm7380, %v7382, %v7378
  %v7384 = vmul.f32 1.0, %v7383
  %v7385 = vrcp.pop %v7355
  %v7386 = vmul.f32 %v7355, %v7385
  %v7387 = vsub.f32 1.0, %v7386
  %v7388 = vmul.f32 %v7385, %v7387
  %v7389 = vadd.f32 %v7385, %v7388
  %vm7390 = vweird.f32 %v7355
  %vm7391 = vweird.f32 %v7385
  %vm7392 = vmor %vm7390, %vm7391
  %v7393 = vsel %vm7392, %v7385, %v7389
  %v7394 = vand.u32 2147483647, %v7355
  %vm7395 = vcmp.eq.f32.partialorder %v7394, 8.507059e+37
  %v7396 = vand.u32 %v7355, 2147483648
  %v7397 = vor.u32 1.1754944e-38, %v7396
  %v7398 = vsel %vm7395, %v7397, %v7393
  %v7399 = vmul.f32 1.0, %v7398
  %v7400 = vrcp.pop %v7356
  %v7401 = vmul.f32 %v7356, %v7400
  %v7402 = vsub.f32 1.0, %v7401
  %v7403 = vmul.f32 %v7400, %v7402
  %v7404 = vadd.f32 %v7400, %v7403
  %vm7405 = vweird.f32 %v7356
  %vm7406 = vweird.f32 %v7400
  %vm7407 = vmor %vm7405, %vm7406
  %v7408 = vsel %vm7407, %v7400, %v7404
  %v7409 = vand.u32 2147483647, %v7356
  %vm7410 = vcmp.eq.f32.partialorder %v7409, 8.507059e+37
  %v7411 = vand.u32 %v7356, 2147483648
  %v7412 = vor.u32 1.1754944e-38, %v7411
  %v7413 = vsel %vm7410, %v7412, %v7408
  %v7414 = vmul.f32 1.0, %v7413
  %v7415 = vrcp.pop %v7357
  %v7416 = vmul.f32 %v7357, %v7415
  %v7417 = vsub.f32 1.0, %v7416
  %v7418 = vmul.f32 %v7415, %v7417
  %v7419 = vadd.f32 %v7415, %v7418
  %vm7420 = vweird.f32 %v7357
  %vm7421 = vweird.f32 %v7415
  %vm7422 = vmor %vm7420, %vm7421
  %v7423 = vsel %vm7422, %v7415, %v7419
  %v7424 = vand.u32 2147483647, %v7357
  %vm7425 = vcmp.eq.f32.partialorder %v7424, 8.507059e+37
  %v7426 = vand.u32 %v7357, 2147483648
  %v7427 = vor.u32 1.1754944e-38, %v7426
  %v7428 = vsel %vm7425, %v7427, %v7423
  %v7429 = vmul.f32 1.0, %v7428
  %v7430 = vrcp.pop %v7358
  %v7431 = vmul.f32 %v7358, %v7430
  %v7432 = vsub.f32 1.0, %v7431
  %v7433 = vmul.f32 %v7430, %v7432
  %v7434 = vadd.f32 %v7430, %v7433
  %vm7435 = vweird.f32 %v7358
  %vm7436 = vweird.f32 %v7430
  %vm7437 = vmor %vm7435, %vm7436
  %v7438 = vsel %vm7437, %v7430, %v7434
  %v7439 = vand.u32 2147483647, %v7358
  %vm7440 = vcmp.eq.f32.partialorder %v7439, 8.507059e+37
  %v7441 = vand.u32 %v7358, 2147483648
  %v7442 = vor.u32 1.1754944e-38, %v7441
  %v7443 = vsel %vm7440, %v7442, %v7438
  %v7444 = vmul.f32 1.0, %v7443
  %v7445 = vrcp.pop %v7359
  %v7446 = vmul.f32 %v7359, %v7445
  %v7447 = vsub.f32 1.0, %v7446
  %v7448 = vmul.f32 %v7445, %v7447
  %v7449 = vadd.f32 %v7445, %v7448
  %vm7450 = vweird.f32 %v7359
  %vm7451 = vweird.f32 %v7445
  %vm7452 = vmor %vm7450, %vm7451
  %v7453 = vsel %vm7452, %v7445, %v7449
  %v7454 = vand.u32 2147483647, %v7359
  %vm7455 = vcmp.eq.f32.partialorder %v7454, 8.507059e+37
  %v7456 = vand.u32 %v7359, 2147483648
  %v7457 = vor.u32 1.1754944e-38, %v7456
  %v7458 = vsel %vm7455, %v7457, %v7453
  %v7459 = vmul.f32 1.0, %v7458
  %v7460 = vrcp.pop %v7360
  %v7461 = vmul.f32 %v7360, %v7460
  %v7462 = vsub.f32 1.0, %v7461
  %v7463 = vmul.f32 %v7460, %v7462
  %v7464 = vadd.f32 %v7460, %v7463
  %vm7465 = vweird.f32 %v7360
  %vm7466 = vweird.f32 %v7460
  %vm7467 = vmor %vm7465, %vm7466
  %v7468 = vsel %vm7467, %v7460, %v7464
  %v7469 = vand.u32 2147483647, %v7360
  %vm7470 = vcmp.eq.f32.partialorder %v7469, 8.507059e+37
  %v7471 = vand.u32 %v7360, 2147483648
  %v7472 = vor.u32 1.1754944e-38, %v7471
  %v7473 = vsel %vm7470, %v7472, %v7468
  %v7474 = vmul.f32 1.0, %v7473
  %v7475 = vrcp.pop %v7361
  %v7476 = vmul.f32 %v7361, %v7475
  %v7477 = vsub.f32 1.0, %v7476
  %v7478 = vmul.f32 %v7475, %v7477
  %v7479 = vadd.f32 %v7475, %v7478
  %vm7480 = vweird.f32 %v7361
  %vm7481 = vweird.f32 %v7475
  %vm7482 = vmor %vm7480, %vm7481
  %v7483 = vsel %vm7482, %v7475, %v7479
  %v7484 = vand.u32 2147483647, %v7361
  %vm7485 = vcmp.eq.f32.partialorder %v7484, 8.507059e+37
  %v7486 = vand.u32 %v7361, 2147483648
  %v7487 = vor.u32 1.1754944e-38, %v7486
  %v7488 = vsel %vm7485, %v7487, %v7483
  %v7489 = vmul.f32 1.0, %v7488
  %v7490 = vrcp.pop %v7362
  %v7491 = vmul.f32 %v7362, %v7490
  %v7492 = vsub.f32 1.0, %v7491
  %v7493 = vmul.f32 %v7490, %v7492
  %v7494 = vadd.f32 %v7490, %v7493
  %vm7495 = vweird.f32 %v7362
  %vm7496 = vweird.f32 %v7490
  %vm7497 = vmor %vm7495, %vm7496
  %v7498 = vsel %vm7497, %v7490, %v7494
  %v7499 = vand.u32 2147483647, %v7362
  %vm7500 = vcmp.eq.f32.partialorder %v7499, 8.507059e+37
  %v7501 = vand.u32 %v7362, 2147483648
  %v7502 = vor.u32 1.1754944e-38, %v7501
  %v7503 = vsel %vm7500, %v7502, %v7498
  %v7504 = vmul.f32 1.0, %v7503
  %v7505 = vrcp.pop %v7363
  %v7506 = vmul.f32 %v7363, %v7505
  %v7507 = vsub.f32 1.0, %v7506
  %v7508 = vmul.f32 %v7505, %v7507
  %v7509 = vadd.f32 %v7505, %v7508
  %vm7510 = vweird.f32 %v7363
  %vm7511 = vweird.f32 %v7505
  %vm7512 = vmor %vm7510, %vm7511
  %v7513 = vsel %vm7512, %v7505, %v7509
  %v7514 = vand.u32 2147483647, %v7363
  %vm7515 = vcmp.eq.f32.partialorder %v7514, 8.507059e+37
  %v7516 = vand.u32 %v7363, 2147483648
  %v7517 = vor.u32 1.1754944e-38, %v7516
  %v7518 = vsel %vm7515, %v7517, %v7513
  %v7519 = vmul.f32 1.0, %v7518
  %v7520 = vrcp.pop %v7364
  %v7521 = vmul.f32 %v7364, %v7520
  %v7522 = vsub.f32 1.0, %v7521
  %v7523 = vmul.f32 %v7520, %v7522
  %v7524 = vadd.f32 %v7520, %v7523
  %vm7525 = vweird.f32 %v7364
  %vm7526 = vweird.f32 %v7520
  %vm7527 = vmor %vm7525, %vm7526
  %v7528 = vsel %vm7527, %v7520, %v7524
  %v7529 = vand.u32 2147483647, %v7364
  %vm7530 = vcmp.eq.f32.partialorder %v7529, 8.507059e+37
  %v7531 = vand.u32 %v7364, 2147483648
  %v7532 = vor.u32 1.1754944e-38, %v7531
  %v7533 = vsel %vm7530, %v7532, %v7528
  %v7534 = vmul.f32 1.0, %v7533
  %v7535 = vrcp.pop %v7365
  %v7536 = vmul.f32 %v7365, %v7535
  %v7537 = vsub.f32 1.0, %v7536
  %v7538 = vmul.f32 %v7535, %v7537
  %v7539 = vadd.f32 %v7535, %v7538
  %vm7540 = vweird.f32 %v7365
  %vm7541 = vweird.f32 %v7535
  %vm7542 = vmor %vm7540, %vm7541
  %v7543 = vsel %vm7542, %v7535, %v7539
  %v7544 = vand.u32 2147483647, %v7365
  %vm7545 = vcmp.eq.f32.partialorder %v7544, 8.507059e+37
  %v7546 = vand.u32 %v7365, 2147483648
  %v7547 = vor.u32 1.1754944e-38, %v7546
  %v7548 = vsel %vm7545, %v7547, %v7543
  %v7549 = vmul.f32 1.0, %v7548
  %v7550 = vrcp.pop %v7366
  %v7551 = vmul.f32 %v7366, %v7550
  %v7552 = vsub.f32 1.0, %v7551
  %v7553 = vmul.f32 %v7550, %v7552
  %v7554 = vadd.f32 %v7550, %v7553
  %vm7555 = vweird.f32 %v7366
  %vm7556 = vweird.f32 %v7550
  %vm7557 = vmor %vm7555, %vm7556
  %v7558 = vsel %vm7557, %v7550, %v7554
  %v7559 = vand.u32 2147483647, %v7366
  %vm7560 = vcmp.eq.f32.partialorder %v7559, 8.507059e+37
  %v7561 = vand.u32 %v7366, 2147483648
  %v7562 = vor.u32 1.1754944e-38, %v7561
  %v7563 = vsel %vm7560, %v7562, %v7558
  %v7564 = vmul.f32 1.0, %v7563
  %v7565 = vrcp.pop %v7367
  %v7566 = vmul.f32 %v7367, %v7565
  %v7567 = vsub.f32 1.0, %v7566
  %v7568 = vmul.f32 %v7565, %v7567
  %v7569 = vadd.f32 %v7565, %v7568
  %vm7570 = vweird.f32 %v7367
  %vm7571 = vweird.f32 %v7565
  %vm7572 = vmor %vm7570, %vm7571
  %v7573 = vsel %vm7572, %v7565, %v7569
  %v7574 = vand.u32 2147483647, %v7367
  %vm7575 = vcmp.eq.f32.partialorder %v7574, 8.507059e+37
  %v7576 = vand.u32 %v7367, 2147483648
  %v7577 = vor.u32 1.1754944e-38, %v7576
  %v7578 = vsel %vm7575, %v7577, %v7573
  %v7579 = vmul.f32 1.0, %v7578
  %v7580 = vrcp.pop %v7368
  %v7581 = vmul.f32 %v7368, %v7580
  %v7582 = vsub.f32 1.0, %v7581
  %v7583 = vmul.f32 %v7580, %v7582
  %v7584 = vadd.f32 %v7580, %v7583
  %vm7585 = vweird.f32 %v7368
  %vm7586 = vweird.f32 %v7580
  %vm7587 = vmor %vm7585, %vm7586
  %v7588 = vsel %vm7587, %v7580, %v7584
  %v7589 = vand.u32 2147483647, %v7368
  %vm7590 = vcmp.eq.f32.partialorder %v7589, 8.507059e+37
  %v7591 = vand.u32 %v7368, 2147483648
  %v7592 = vor.u32 1.1754944e-38, %v7591
  %v7593 = vsel %vm7590, %v7592, %v7588
  %v7594 = vmul.f32 1.0, %v7593
  %v7595 = vrcp.pop %v7369
  %v7596 = vmul.f32 %v7369, %v7595
  %v7597 = vsub.f32 1.0, %v7596
  %v7598 = vmul.f32 %v7595, %v7597
  %v7599 = vadd.f32 %v7595, %v7598
  %vm7600 = vweird.f32 %v7369
  %vm7601 = vweird.f32 %v7595
  %vm7602 = vmor %vm7600, %vm7601
  %v7603 = vsel %vm7602, %v7595, %v7599
  %v7604 = vand.u32 2147483647, %v7369
  %vm7605 = vcmp.eq.f32.partialorder %v7604, 8.507059e+37
  %v7606 = vand.u32 %v7369, 2147483648
  %v7607 = vor.u32 1.1754944e-38, %v7606
  %v7608 = vsel %vm7605, %v7607, %v7603
  %v7609 = vmul.f32 1.0, %v7608
  %v7610 = vpack.c.bf16 %v7384, %v7384
  %v7611 = vpack.c.bf16 %v7399, %v7399
  %v7612 = vpack.c.bf16 %v7414, %v7414
  %v7613 = vpack.c.bf16 %v7429, %v7429
  %v7614 = vpack.c.bf16 %v7444, %v7444
  %v7615 = vpack.c.bf16 %v7459, %v7459
  %v7616 = vpack.c.bf16 %v7474, %v7474
  %v7617 = vpack.c.bf16 %v7489, %v7489
  %v7618 = vpack.c.bf16 %v7504, %v7504
  %v7619 = vpack.c.bf16 %v7519, %v7519
  %v7620 = vpack.c.bf16 %v7534, %v7534
  %v7621 = vpack.c.bf16 %v7549, %v7549
  %v7622 = vpack.c.bf16 %v7564, %v7564
  %v7623 = vpack.c.bf16 %v7579, %v7579
  %v7624 = vpack.c.bf16 %v7594, %v7594
  %v7625 = vpack.c.bf16 %v7609, %v7609
  %v7626 = vld [vmem:[%s0 + $0x40] sm:$0xf]
  %v7627 = vld [vmem:[%s0 + $0x44] sm:$0xf]
  %v7628 = vld [vmem:[%s0 + $0x48] sm:$0xf]
  %v7629 = vld [vmem:[%s0 + $0x4c] sm:$0xf]
  %v7630 = vld [vmem:[%s0 + $0x50] sm:$0xf]
  %v7631 = vld [vmem:[%s0 + $0x54] sm:$0xf]
  %v7632 = vld [vmem:[%s0 + $0x58] sm:$0xf]
  %v7633 = vld [vmem:[%s0 + $0x5c] sm:$0xf]
  %v7634 = vld [vmem:[%s0 + $0x60] sm:$0xf]
  %v7635 = vld [vmem:[%s0 + $0x64] sm:$0xf]
  %v7636 = vld [vmem:[%s0 + $0x68] sm:$0xf]
  %v7637 = vld [vmem:[%s0 + $0x6c] sm:$0xf]
  %v7638 = vld [vmem:[%s0 + $0x70] sm:$0xf]
  %v7639 = vld [vmem:[%s0 + $0x74] sm:$0xf]
  %v7640 = vld [vmem:[%s0 + $0x78] sm:$0xf]
  %v7641 = vld [vmem:[%s0 + $0x7c] sm:$0xf]
  %v7658 = vunpack.c.l.b16 %v7626
  %v7659 = vunpack.c.l.b16 %v7627
  %v7660 = vunpack.c.l.b16 %v7628
  %v7661 = vunpack.c.l.b16 %v7629
  %v7662 = vunpack.c.l.b16 %v7630
  %v7663 = vunpack.c.l.b16 %v7631
  %v7664 = vunpack.c.l.b16 %v7632
  %v7665 = vunpack.c.l.b16 %v7633
  %v7666 = vunpack.c.l.b16 %v7634
  %v7667 = vunpack.c.l.b16 %v7635
  %v7668 = vunpack.c.l.b16 %v7636
  %v7669 = vunpack.c.l.b16 %v7637
  %v7670 = vunpack.c.l.b16 %v7638
  %v7671 = vunpack.c.l.b16 %v7639
  %v7672 = vunpack.c.l.b16 %v7640
  %v7673 = vunpack.c.l.b16 %v7641
  %v7674 = vpack.c.b16 %v7659, %v7658
  %v7675 = vpack.c.b16 %v7661, %v7660
  %v7676 = vpack.c.b16 %v7663, %v7662
  %v7677 = vpack.c.b16 %v7665, %v7664
  %v7678 = vpack.c.b16 %v7667, %v7666
  %v7679 = vpack.c.b16 %v7669, %v7668
  %v7680 = vpack.c.b16 %v7671, %v7670
  %v7681 = vpack.c.b16 %v7673, %v7672
  %7690 = vxpose.xlu0.c.b16.start [1/8] %v7674, 128
  %7691 = vxpose.xlu0.c.b16.cont [2/8] %v7675, 128
  %7692 = vxpose.xlu0.c.b16.cont [3/8] %v7676, 128
  %7693 = vxpose.xlu0.c.b16.cont [4/8] %v7677, 128
  %7694 = vxpose.xlu0.c.b16.cont [5/8] %v7678, 128
  %7695 = vxpose.xlu0.c.b16.cont [6/8] %v7679, 128
  %7696 = vxpose.xlu0.c.b16.cont [7/8] %v7680, 128
  %7697 = vxpose.xlu0.c.b16.end [8/8] %v7681, 128
  %v7698 = vpop.trf.xlu0
  %v7699 = vpop.trf.xlu0
  %v7700 = vpop.trf.xlu0
  %v7701 = vpop.trf.xlu0
  %v7702 = vpop.trf.xlu0
  %v7703 = vpop.trf.xlu0
  %v7704 = vpop.trf.xlu0
  %v7705 = vpop.trf.xlu0
  %7706 = vmatpush.bf16.msra.mxu0 %v5141
  %7707 = vmatpush.bf16.msra.mxu0 %v5140
  %7708 = vmatpush.bf16.msra.mxu0 %v5139
  %7709 = vmatpush.bf16.msra.mxu0 %v5138
  %7710 = vmatpush.bf16.msra.mxu0 %v5137
  %7711 = vmatpush.bf16.msra.mxu0 %v5136
  %7712 = vmatpush.bf16.msra.mxu0 %v5135
  %7713 = vmatpush.bf16.msra.mxu0 %v5134
  %7714 = vmatmul.bf16.gmra.mxu0 %v7698
  %v7715 = vpop.f32.mrf.mxu0
  %v7716 = vadd.f32 0.0, %v7715
  %v7717 = vpop.f32.mrf.mxu0
  %v7718 = vadd.f32 0.0, %v7717
  %7719 = vmatmul.bf16.gmra.mxu0 %v7699
  %v7720 = vpop.f32.mrf.mxu0
  %v7721 = vadd.f32 0.0, %v7720
  %v7722 = vpop.f32.mrf.mxu0
  %v7723 = vadd.f32 0.0, %v7722
  %7724 = vmatmul.bf16.gmra.mxu0 %v7700
  %v7725 = vpop.f32.mrf.mxu0
  %v7726 = vadd.f32 0.0, %v7725
  %v7727 = vpop.f32.mrf.mxu0
  %v7728 = vadd.f32 0.0, %v7727
  %7729 = vmatmul.bf16.gmra.mxu0 %v7701
  %v7730 = vpop.f32.mrf.mxu0
  %v7731 = vadd.f32 0.0, %v7730
  %v7732 = vpop.f32.mrf.mxu0
  %v7733 = vadd.f32 0.0, %v7732
  %7734 = vmatmul.bf16.gmra.mxu0 %v7702
  %v7735 = vpop.f32.mrf.mxu0
  %v7736 = vadd.f32 0.0, %v7735
  %v7737 = vpop.f32.mrf.mxu0
  %v7738 = vadd.f32 0.0, %v7737
  %7739 = vmatmul.bf16.gmra.mxu0 %v7703
  %v7740 = vpop.f32.mrf.mxu0
  %v7741 = vadd.f32 0.0, %v7740
  %v7742 = vpop.f32.mrf.mxu0
  %v7743 = vadd.f32 0.0, %v7742
  %7744 = vmatmul.bf16.gmra.mxu0 %v7704
  %v7745 = vpop.f32.mrf.mxu0
  %v7746 = vadd.f32 0.0, %v7745
  %v7747 = vpop.f32.mrf.mxu0
  %v7748 = vadd.f32 0.0, %v7747
  %7749 = vmatmul.bf16.gmra.mxu0 %v7705
  %v7750 = vpop.f32.mrf.mxu0
  %v7751 = vadd.f32 0.0, %v7750
  %v7752 = vpop.f32.mrf.mxu0
  %v7753 = vadd.f32 0.0, %v7752
  %7754 = vdwg.mxu0
  %v7755 = vadd.f32 %v7267, %v7716
  %v7756 = vadd.f32 %v7269, %v7718
  %v7757 = vadd.f32 %v7272, %v7721
  %v7758 = vadd.f32 %v7274, %v7723
  %v7759 = vadd.f32 %v7277, %v7726
  %v7760 = vadd.f32 %v7279, %v7728
  %v7761 = vadd.f32 %v7282, %v7731
  %v7762 = vadd.f32 %v7284, %v7733
  %v7763 = vadd.f32 %v7287, %v7736
  %v7764 = vadd.f32 %v7289, %v7738
  %v7765 = vadd.f32 %v7292, %v7741
  %v7766 = vadd.f32 %v7294, %v7743
  %v7767 = vadd.f32 %v7297, %v7746
  %v7768 = vadd.f32 %v7299, %v7748
  %v7769 = vadd.f32 %v7302, %v7751
  %v7770 = vadd.f32 %v7304, %v7753
  %v7771 = vxor.u32 %v7716, 2147483648
  %v7772 = vxor.u32 %v7718, 2147483648
  %v7773 = vxor.u32 %v7721, 2147483648
  %v7774 = vxor.u32 %v7723, 2147483648
  %v7775 = vxor.u32 %v7726, 2147483648
  %v7776 = vxor.u32 %v7728, 2147483648
  %v7777 = vxor.u32 %v7731, 2147483648
  %v7778 = vxor.u32 %v7733, 2147483648
  %v7779 = vxor.u32 %v7736, 2147483648
  %v7780 = vxor.u32 %v7738, 2147483648
  %v7781 = vxor.u32 %v7741, 2147483648
  %v7782 = vxor.u32 %v7743, 2147483648
  %v7783 = vxor.u32 %v7746, 2147483648
  %v7784 = vxor.u32 %v7748, 2147483648
  %v7785 = vxor.u32 %v7751, 2147483648
  %v7786 = vxor.u32 %v7753, 2147483648
  %v7787 = vmul.f32 %v7771, 1.442695
  %v7788 = vpow.pop %v7787
  %v7789 = vmul.f32 %v7772, 1.442695
  %v7790 = vpow.pop %v7789
  %v7791 = vmul.f32 %v7773, 1.442695
  %v7792 = vpow.pop %v7791
  %v7793 = vmul.f32 %v7774, 1.442695
  %v7794 = vpow.pop %v7793
  %v7795 = vmul.f32 %v7775, 1.442695
  %v7796 = vpow.pop %v7795
  %v7797 = vmul.f32 %v7776, 1.442695
  %v7798 = vpow.pop %v7797
  %v7799 = vmul.f32 %v7777, 1.442695
  %v7800 = vpow.pop %v7799
  %v7801 = vmul.f32 %v7778, 1.442695
  %v7802 = vpow.pop %v7801
  %v7803 = vmul.f32 %v7779, 1.442695
  %v7804 = vpow.pop %v7803
  %v7805 = vmul.f32 %v7780, 1.442695
  %v7806 = vpow.pop %v7805
  %v7807 = vmul.f32 %v7781, 1.442695
  %v7808 = vpow.pop %v7807
  %v7809 = vmul.f32 %v7782, 1.442695
  %v7810 = vpow.pop %v7809
  %v7811 = vmul.f32 %v7783, 1.442695
  %v7812 = vpow.pop %v7811
  %v7813 = vmul.f32 %v7784, 1.442695
  %v7814 = vpow.pop %v7813
  %v7815 = vmul.f32 %v7785, 1.442695
  %v7816 = vpow.pop %v7815
  %v7817 = vmul.f32 %v7786, 1.442695
  %v7818 = vpow.pop %v7817
  %v7819 = vadd.f32 %v7788, 1.0
  %v7820 = vadd.f32 %v7790, 1.0
  %v7821 = vadd.f32 %v7792, 1.0
  %v7822 = vadd.f32 %v7794, 1.0
  %v7823 = vadd.f32 %v7796, 1.0
  %v7824 = vadd.f32 %v7798, 1.0
  %v7825 = vadd.f32 %v7800, 1.0
  %v7826 = vadd.f32 %v7802, 1.0
  %v7827 = vadd.f32 %v7804, 1.0
  %v7828 = vadd.f32 %v7806, 1.0
  %v7829 = vadd.f32 %v7808, 1.0
  %v7830 = vadd.f32 %v7810, 1.0
  %v7831 = vadd.f32 %v7812, 1.0
  %v7832 = vadd.f32 %v7814, 1.0
  %v7833 = vadd.f32 %v7816, 1.0
  %v7834 = vadd.f32 %v7818, 1.0
  %v7835 = vrcp.pop %v7819
  %v7836 = vmul.f32 %v7819, %v7835
  %v7837 = vsub.f32 1.0, %v7836
  %v7838 = vmul.f32 %v7835, %v7837
  %v7839 = vadd.f32 %v7835, %v7838
  %vm7840 = vweird.f32 %v7819
  %vm7841 = vweird.f32 %v7835
  %vm7842 = vmor %vm7840, %vm7841
  %v7843 = vsel %vm7842, %v7835, %v7839
  %v7844 = vand.u32 2147483647, %v7819
  %vm7845 = vcmp.eq.f32.partialorder %v7844, 8.507059e+37
  %v7846 = vand.u32 %v7819, 2147483648
  %v7847 = vor.u32 1.1754944e-38, %v7846
  %v7848 = vsel %vm7845, %v7847, %v7843
  %v7849 = vmul.f32 1.0, %v7848
  %v7850 = vrcp.pop %v7820
  %v7851 = vmul.f32 %v7820, %v7850
  %v7852 = vsub.f32 1.0, %v7851
  %v7853 = vmul.f32 %v7850, %v7852
  %v7854 = vadd.f32 %v7850, %v7853
  %vm7855 = vweird.f32 %v7820
  %vm7856 = vweird.f32 %v7850
  %vm7857 = vmor %vm7855, %vm7856
  %v7858 = vsel %vm7857, %v7850, %v7854
  %v7859 = vand.u32 2147483647, %v7820
  %vm7860 = vcmp.eq.f32.partialorder %v7859, 8.507059e+37
  %v7861 = vand.u32 %v7820, 2147483648
  %v7862 = vor.u32 1.1754944e-38, %v7861
  %v7863 = vsel %vm7860, %v7862, %v7858
  %v7864 = vmul.f32 1.0, %v7863
  %v7865 = vrcp.pop %v7821
  %v7866 = vmul.f32 %v7821, %v7865
  %v7867 = vsub.f32 1.0, %v7866
  %v7868 = vmul.f32 %v7865, %v7867
  %v7869 = vadd.f32 %v7865, %v7868
  %vm7870 = vweird.f32 %v7821
  %vm7871 = vweird.f32 %v7865
  %vm7872 = vmor %vm7870, %vm7871
  %v7873 = vsel %vm7872, %v7865, %v7869
  %v7874 = vand.u32 2147483647, %v7821
  %vm7875 = vcmp.eq.f32.partialorder %v7874, 8.507059e+37
  %v7876 = vand.u32 %v7821, 2147483648
  %v7877 = vor.u32 1.1754944e-38, %v7876
  %v7878 = vsel %vm7875, %v7877, %v7873
  %v7879 = vmul.f32 1.0, %v7878
  %v7880 = vrcp.pop %v7822
  %v7881 = vmul.f32 %v7822, %v7880
  %v7882 = vsub.f32 1.0, %v7881
  %v7883 = vmul.f32 %v7880, %v7882
  %v7884 = vadd.f32 %v7880, %v7883
  %vm7885 = vweird.f32 %v7822
  %vm7886 = vweird.f32 %v7880
  %vm7887 = vmor %vm7885, %vm7886
  %v7888 = vsel %vm7887, %v7880, %v7884
  %v7889 = vand.u32 2147483647, %v7822
  %vm7890 = vcmp.eq.f32.partialorder %v7889, 8.507059e+37
  %v7891 = vand.u32 %v7822, 2147483648
  %v7892 = vor.u32 1.1754944e-38, %v7891
  %v7893 = vsel %vm7890, %v7892, %v7888
  %v7894 = vmul.f32 1.0, %v7893
  %v7895 = vrcp.pop %v7823
  %v7896 = vmul.f32 %v7823, %v7895
  %v7897 = vsub.f32 1.0, %v7896
  %v7898 = vmul.f32 %v7895, %v7897
  %v7899 = vadd.f32 %v7895, %v7898
  %vm7900 = vweird.f32 %v7823
  %vm7901 = vweird.f32 %v7895
  %vm7902 = vmor %vm7900, %vm7901
  %v7903 = vsel %vm7902, %v7895, %v7899
  %v7904 = vand.u32 2147483647, %v7823
  %vm7905 = vcmp.eq.f32.partialorder %v7904, 8.507059e+37
  %v7906 = vand.u32 %v7823, 2147483648
  %v7907 = vor.u32 1.1754944e-38, %v7906
  %v7908 = vsel %vm7905, %v7907, %v7903
  %v7909 = vmul.f32 1.0, %v7908
  %v7910 = vrcp.pop %v7824
  %v7911 = vmul.f32 %v7824, %v7910
  %v7912 = vsub.f32 1.0, %v7911
  %v7913 = vmul.f32 %v7910, %v7912
  %v7914 = vadd.f32 %v7910, %v7913
  %vm7915 = vweird.f32 %v7824
  %vm7916 = vweird.f32 %v7910
  %vm7917 = vmor %vm7915, %vm7916
  %v7918 = vsel %vm7917, %v7910, %v7914
  %v7919 = vand.u32 2147483647, %v7824
  %vm7920 = vcmp.eq.f32.partialorder %v7919, 8.507059e+37
  %v7921 = vand.u32 %v7824, 2147483648
  %v7922 = vor.u32 1.1754944e-38, %v7921
  %v7923 = vsel %vm7920, %v7922, %v7918
  %v7924 = vmul.f32 1.0, %v7923
  %v7925 = vrcp.pop %v7825
  %v7926 = vmul.f32 %v7825, %v7925
  %v7927 = vsub.f32 1.0, %v7926
  %v7928 = vmul.f32 %v7925, %v7927
  %v7929 = vadd.f32 %v7925, %v7928
  %vm7930 = vweird.f32 %v7825
  %vm7931 = vweird.f32 %v7925
  %vm7932 = vmor %vm7930, %vm7931
  %v7933 = vsel %vm7932, %v7925, %v7929
  %v7934 = vand.u32 2147483647, %v7825
  %vm7935 = vcmp.eq.f32.partialorder %v7934, 8.507059e+37
  %v7936 = vand.u32 %v7825, 2147483648
  %v7937 = vor.u32 1.1754944e-38, %v7936
  %v7938 = vsel %vm7935, %v7937, %v7933
  %v7939 = vmul.f32 1.0, %v7938
  %v7940 = vrcp.pop %v7826
  %v7941 = vmul.f32 %v7826, %v7940
  %v7942 = vsub.f32 1.0, %v7941
  %v7943 = vmul.f32 %v7940, %v7942
  %v7944 = vadd.f32 %v7940, %v7943
  %vm7945 = vweird.f32 %v7826
  %vm7946 = vweird.f32 %v7940
  %vm7947 = vmor %vm7945, %vm7946
  %v7948 = vsel %vm7947, %v7940, %v7944
  %v7949 = vand.u32 2147483647, %v7826
  %vm7950 = vcmp.eq.f32.partialorder %v7949, 8.507059e+37
  %v7951 = vand.u32 %v7826, 2147483648
  %v7952 = vor.u32 1.1754944e-38, %v7951
  %v7953 = vsel %vm7950, %v7952, %v7948
  %v7954 = vmul.f32 1.0, %v7953
  %v7955 = vrcp.pop %v7827
  %v7956 = vmul.f32 %v7827, %v7955
  %v7957 = vsub.f32 1.0, %v7956
  %v7958 = vmul.f32 %v7955, %v7957
  %v7959 = vadd.f32 %v7955, %v7958
  %vm7960 = vweird.f32 %v7827
  %vm7961 = vweird.f32 %v7955
  %vm7962 = vmor %vm7960, %vm7961
  %v7963 = vsel %vm7962, %v7955, %v7959
  %v7964 = vand.u32 2147483647, %v7827
  %vm7965 = vcmp.eq.f32.partialorder %v7964, 8.507059e+37
  %v7966 = vand.u32 %v7827, 2147483648
  %v7967 = vor.u32 1.1754944e-38, %v7966
  %v7968 = vsel %vm7965, %v7967, %v7963
  %v7969 = vmul.f32 1.0, %v7968
  %v7970 = vrcp.pop %v7828
  %v7971 = vmul.f32 %v7828, %v7970
  %v7972 = vsub.f32 1.0, %v7971
  %v7973 = vmul.f32 %v7970, %v7972
  %v7974 = vadd.f32 %v7970, %v7973
  %vm7975 = vweird.f32 %v7828
  %vm7976 = vweird.f32 %v7970
  %vm7977 = vmor %vm7975, %vm7976
  %v7978 = vsel %vm7977, %v7970, %v7974
  %v7979 = vand.u32 2147483647, %v7828
  %vm7980 = vcmp.eq.f32.partialorder %v7979, 8.507059e+37
  %v7981 = vand.u32 %v7828, 2147483648
  %v7982 = vor.u32 1.1754944e-38, %v7981
  %v7983 = vsel %vm7980, %v7982, %v7978
  %v7984 = vmul.f32 1.0, %v7983
  %v7985 = vrcp.pop %v7829
  %v7986 = vmul.f32 %v7829, %v7985
  %v7987 = vsub.f32 1.0, %v7986
  %v7988 = vmul.f32 %v7985, %v7987
  %v7989 = vadd.f32 %v7985, %v7988
  %vm7990 = vweird.f32 %v7829
  %vm7991 = vweird.f32 %v7985
  %vm7992 = vmor %vm7990, %vm7991
  %v7993 = vsel %vm7992, %v7985, %v7989
  %v7994 = vand.u32 2147483647, %v7829
  %vm7995 = vcmp.eq.f32.partialorder %v7994, 8.507059e+37
  %v7996 = vand.u32 %v7829, 2147483648
  %v7997 = vor.u32 1.1754944e-38, %v7996
  %v7998 = vsel %vm7995, %v7997, %v7993
  %v7999 = vmul.f32 1.0, %v7998
  %v8000 = vrcp.pop %v7830
  %v8001 = vmul.f32 %v7830, %v8000
  %v8002 = vsub.f32 1.0, %v8001
  %v8003 = vmul.f32 %v8000, %v8002
  %v8004 = vadd.f32 %v8000, %v8003
  %vm8005 = vweird.f32 %v7830
  %vm8006 = vweird.f32 %v8000
  %vm8007 = vmor %vm8005, %vm8006
  %v8008 = vsel %vm8007, %v8000, %v8004
  %v8009 = vand.u32 2147483647, %v7830
  %vm8010 = vcmp.eq.f32.partialorder %v8009, 8.507059e+37
  %v8011 = vand.u32 %v7830, 2147483648
  %v8012 = vor.u32 1.1754944e-38, %v8011
  %v8013 = vsel %vm8010, %v8012, %v8008
  %v8014 = vmul.f32 1.0, %v8013
  %v8015 = vrcp.pop %v7831
  %v8016 = vmul.f32 %v7831, %v8015
  %v8017 = vsub.f32 1.0, %v8016
  %v8018 = vmul.f32 %v8015, %v8017
  %v8019 = vadd.f32 %v8015, %v8018
  %vm8020 = vweird.f32 %v7831
  %vm8021 = vweird.f32 %v8015
  %vm8022 = vmor %vm8020, %vm8021
  %v8023 = vsel %vm8022, %v8015, %v8019
  %v8024 = vand.u32 2147483647, %v7831
  %vm8025 = vcmp.eq.f32.partialorder %v8024, 8.507059e+37
  %v8026 = vand.u32 %v7831, 2147483648
  %v8027 = vor.u32 1.1754944e-38, %v8026
  %v8028 = vsel %vm8025, %v8027, %v8023
  %v8029 = vmul.f32 1.0, %v8028
  %v8030 = vrcp.pop %v7832
  %v8031 = vmul.f32 %v7832, %v8030
  %v8032 = vsub.f32 1.0, %v8031
  %v8033 = vmul.f32 %v8030, %v8032
  %v8034 = vadd.f32 %v8030, %v8033
  %vm8035 = vweird.f32 %v7832
  %vm8036 = vweird.f32 %v8030
  %vm8037 = vmor %vm8035, %vm8036
  %v8038 = vsel %vm8037, %v8030, %v8034
  %v8039 = vand.u32 2147483647, %v7832
  %vm8040 = vcmp.eq.f32.partialorder %v8039, 8.507059e+37
  %v8041 = vand.u32 %v7832, 2147483648
  %v8042 = vor.u32 1.1754944e-38, %v8041
  %v8043 = vsel %vm8040, %v8042, %v8038
  %v8044 = vmul.f32 1.0, %v8043
  %v8045 = vrcp.pop %v7833
  %v8046 = vmul.f32 %v7833, %v8045
  %v8047 = vsub.f32 1.0, %v8046
  %v8048 = vmul.f32 %v8045, %v8047
  %v8049 = vadd.f32 %v8045, %v8048
  %vm8050 = vweird.f32 %v7833
  %vm8051 = vweird.f32 %v8045
  %vm8052 = vmor %vm8050, %vm8051
  %v8053 = vsel %vm8052, %v8045, %v8049
  %v8054 = vand.u32 2147483647, %v7833
  %vm8055 = vcmp.eq.f32.partialorder %v8054, 8.507059e+37
  %v8056 = vand.u32 %v7833, 2147483648
  %v8057 = vor.u32 1.1754944e-38, %v8056
  %v8058 = vsel %vm8055, %v8057, %v8053
  %v8059 = vmul.f32 1.0, %v8058
  %v8060 = vrcp.pop %v7834
  %v8061 = vmul.f32 %v7834, %v8060
  %v8062 = vsub.f32 1.0, %v8061
  %v8063 = vmul.f32 %v8060, %v8062
  %v8064 = vadd.f32 %v8060, %v8063
  %vm8065 = vweird.f32 %v7834
  %vm8066 = vweird.f32 %v8060
  %vm8067 = vmor %vm8065, %vm8066
  %v8068 = vsel %vm8067, %v8060, %v8064
  %v8069 = vand.u32 2147483647, %v7834
  %vm8070 = vcmp.eq.f32.partialorder %v8069, 8.507059e+37
  %v8071 = vand.u32 %v7834, 2147483648
  %v8072 = vor.u32 1.1754944e-38, %v8071
  %v8073 = vsel %vm8070, %v8072, %v8068
  %v8074 = vmul.f32 1.0, %v8073
  %v8075 = vpack.c.bf16 %v7849, %v7849
  %v8076 = vpack.c.bf16 %v7864, %v7864
  %v8077 = vpack.c.bf16 %v7879, %v7879
  %v8078 = vpack.c.bf16 %v7894, %v7894
  %v8079 = vpack.c.bf16 %v7909, %v7909
  %v8080 = vpack.c.bf16 %v7924, %v7924
  %v8081 = vpack.c.bf16 %v7939, %v7939
  %v8082 = vpack.c.bf16 %v7954, %v7954
  %v8083 = vpack.c.bf16 %v7969, %v7969
  %v8084 = vpack.c.bf16 %v7984, %v7984
  %v8085 = vpack.c.bf16 %v7999, %v7999
  %v8086 = vpack.c.bf16 %v8014, %v8014
  %v8087 = vpack.c.bf16 %v8029, %v8029
  %v8088 = vpack.c.bf16 %v8044, %v8044
  %v8089 = vpack.c.bf16 %v8059, %v8059
  %v8090 = vpack.c.bf16 %v8074, %v8074
  %v8091 = vld [vmem:[%s0 + $0x80] sm:$0xf]
  %v8092 = vld [vmem:[%s0 + $0x84] sm:$0xf]
  %v8093 = vld [vmem:[%s0 + $0x88] sm:$0xf]
  %v8094 = vld [vmem:[%s0 + $0x8c] sm:$0xf]
  %v8095 = vld [vmem:[%s0 + $0x90] sm:$0xf]
  %v8096 = vld [vmem:[%s0 + $0x94] sm:$0xf]
  %v8097 = vld [vmem:[%s0 + $0x98] sm:$0xf]
  %v8098 = vld [vmem:[%s0 + $0x9c] sm:$0xf]
  %v8099 = vld [vmem:[%s0 + $0xa0] sm:$0xf]
  %v8100 = vld [vmem:[%s0 + $0xa4] sm:$0xf]
  %v8101 = vld [vmem:[%s0 + $0xa8] sm:$0xf]
  %v8102 = vld [vmem:[%s0 + $0xac] sm:$0xf]
  %v8103 = vld [vmem:[%s0 + $0xb0] sm:$0xf]
  %v8104 = vld [vmem:[%s0 + $0xb4] sm:$0xf]
  %v8105 = vld [vmem:[%s0 + $0xb8] sm:$0xf]
  %v8106 = vld [vmem:[%s0 + $0xbc] sm:$0xf]
  %v8123 = vunpack.c.l.b16 %v8091
  %v8124 = vunpack.c.l.b16 %v8092
  %v8125 = vunpack.c.l.b16 %v8093
  %v8126 = vunpack.c.l.b16 %v8094
  %v8127 = vunpack.c.l.b16 %v8095
  %v8128 = vunpack.c.l.b16 %v8096
  %v8129 = vunpack.c.l.b16 %v8097
  %v8130 = vunpack.c.l.b16 %v8098
  %v8131 = vunpack.c.l.b16 %v8099
  %v8132 = vunpack.c.l.b16 %v8100
  %v8133 = vunpack.c.l.b16 %v8101
  %v8134 = vunpack.c.l.b16 %v8102
  %v8135 = vunpack.c.l.b16 %v8103
  %v8136 = vunpack.c.l.b16 %v8104
  %v8137 = vunpack.c.l.b16 %v8105
  %v8138 = vunpack.c.l.b16 %v8106
  %v8139 = vpack.c.b16 %v8124, %v8123
  %v8140 = vpack.c.b16 %v8126, %v8125
  %v8141 = vpack.c.b16 %v8128, %v8127
  %v8142 = vpack.c.b16 %v8130, %v8129
  %v8143 = vpack.c.b16 %v8132, %v8131
  %v8144 = vpack.c.b16 %v8134, %v8133
  %v8145 = vpack.c.b16 %v8136, %v8135
  %v8146 = vpack.c.b16 %v8138, %v8137
  %8155 = vxpose.xlu0.c.b16.start [1/8] %v8139, 128
  %8156 = vxpose.xlu0.c.b16.cont [2/8] %v8140, 128
  %8157 = vxpose.xlu0.c.b16.cont [3/8] %v8141, 128
  %8158 = vxpose.xlu0.c.b16.cont [4/8] %v8142, 128
  %8159 = vxpose.xlu0.c.b16.cont [5/8] %v8143, 128
  %8160 = vxpose.xlu0.c.b16.cont [6/8] %v8144, 128
  %8161 = vxpose.xlu0.c.b16.cont [7/8] %v8145, 128
  %8162 = vxpose.xlu0.c.b16.end [8/8] %v8146, 128
  %v8163 = vpop.trf.xlu0
  %v8164 = vpop.trf.xlu0
  %v8165 = vpop.trf.xlu0
  %v8166 = vpop.trf.xlu0
  %v8167 = vpop.trf.xlu0
  %v8168 = vpop.trf.xlu0
  %v8169 = vpop.trf.xlu0
  %v8170 = vpop.trf.xlu0
  %8171 = vmatpush.bf16.msra.mxu0 %v5141
  %8172 = vmatpush.bf16.msra.mxu0 %v5140
  %8173 = vmatpush.bf16.msra.mxu0 %v5139
  %8174 = vmatpush.bf16.msra.mxu0 %v5138
  %8175 = vmatpush.bf16.msra.mxu0 %v5137
  %8176 = vmatpush.bf16.msra.mxu0 %v5136
  %8177 = vmatpush.bf16.msra.mxu0 %v5135
  %8178 = vmatpush.bf16.msra.mxu0 %v5134
  %8179 = vmatmul.bf16.gmra.mxu0 %v8163
  %v8180 = vpop.f32.mrf.mxu0
  %v8181 = vadd.f32 0.0, %v8180
  %v8182 = vpop.f32.mrf.mxu0
  %v8183 = vadd.f32 0.0, %v8182
  %8184 = vmatmul.bf16.gmra.mxu0 %v8164
  %v8185 = vpop.f32.mrf.mxu0
  %v8186 = vadd.f32 0.0, %v8185
  %v8187 = vpop.f32.mrf.mxu0
  %v8188 = vadd.f32 0.0, %v8187
  %8189 = vmatmul.bf16.gmra.mxu0 %v8165
  %v8190 = vpop.f32.mrf.mxu0
  %v8191 = vadd.f32 0.0, %v8190
  %v8192 = vpop.f32.mrf.mxu0
  %v8193 = vadd.f32 0.0, %v8192
  %8194 = vmatmul.bf16.gmra.mxu0 %v8166
  %v8195 = vpop.f32.mrf.mxu0
  %v8196 = vadd.f32 0.0, %v8195
  %v8197 = vpop.f32.mrf.mxu0
  %v8198 = vadd.f32 0.0, %v8197
  %8199 = vmatmul.bf16.gmra.mxu0 %v8167
  %v8200 = vpop.f32.mrf.mxu0
  %v8201 = vadd.f32 0.0, %v8200
  %v8202 = vpop.f32.mrf.mxu0
  %v8203 = vadd.f32 0.0, %v8202
  %8204 = vmatmul.bf16.gmra.mxu0 %v8168
  %v8205 = vpop.f32.mrf.mxu0
  %v8206 = vadd.f32 0.0, %v8205
  %v8207 = vpop.f32.mrf.mxu0
  %v8208 = vadd.f32 0.0, %v8207
  %8209 = vmatmul.bf16.gmra.mxu0 %v8169
  %v8210 = vpop.f32.mrf.mxu0
  %v8211 = vadd.f32 0.0, %v8210
  %v8212 = vpop.f32.mrf.mxu0
  %v8213 = vadd.f32 0.0, %v8212
  %8214 = vmatmul.bf16.gmra.mxu0 %v8170
  %v8215 = vpop.f32.mrf.mxu0
  %v8216 = vadd.f32 0.0, %v8215
  %v8217 = vpop.f32.mrf.mxu0
  %v8218 = vadd.f32 0.0, %v8217
  %8219 = vdwg.mxu0
  %v8220 = vadd.f32 %v7755, %v8181
  %v8221 = vadd.f32 %v7756, %v8183
  %v8222 = vadd.f32 %v7757, %v8186
  %v8223 = vadd.f32 %v7758, %v8188
  %v8224 = vadd.f32 %v7759, %v8191
  %v8225 = vadd.f32 %v7760, %v8193
  %v8226 = vadd.f32 %v7761, %v8196
  %v8227 = vadd.f32 %v7762, %v8198
  %v8228 = vadd.f32 %v7763, %v8201
  %v8229 = vadd.f32 %v7764, %v8203
  %v8230 = vadd.f32 %v7765, %v8206
  %v8231 = vadd.f32 %v7766, %v8208
  %v8232 = vadd.f32 %v7767, %v8211
  %v8233 = vadd.f32 %v7768, %v8213
  %v8234 = vadd.f32 %v7769, %v8216
  %v8235 = vadd.f32 %v7770, %v8218
  %v8236 = vxor.u32 %v8181, 2147483648
  %v8237 = vxor.u32 %v8183, 2147483648
  %v8238 = vxor.u32 %v8186, 2147483648
  %v8239 = vxor.u32 %v8188, 2147483648
  %v8240 = vxor.u32 %v8191, 2147483648
  %v8241 = vxor.u32 %v8193, 2147483648
  %v8242 = vxor.u32 %v8196, 2147483648
  %v8243 = vxor.u32 %v8198, 2147483648
  %v8244 = vxor.u32 %v8201, 2147483648
  %v8245 = vxor.u32 %v8203, 2147483648
  %v8246 = vxor.u32 %v8206, 2147483648
  %v8247 = vxor.u32 %v8208, 2147483648
  %v8248 = vxor.u32 %v8211, 2147483648
  %v8249 = vxor.u32 %v8213, 2147483648
  %v8250 = vxor.u32 %v8216, 2147483648
  %v8251 = vxor.u32 %v8218, 2147483648
  %v8252 = vmul.f32 %v8236, 1.442695
  %v8253 = vpow.pop %v8252
  %v8254 = vmul.f32 %v8237, 1.442695
  %v8255 = vpow.pop %v8254
  %v8256 = vmul.f32 %v8238, 1.442695
  %v8257 = vpow.pop %v8256
  %v8258 = vmul.f32 %v8239, 1.442695
  %v8259 = vpow.pop %v8258
  %v8260 = vmul.f32 %v8240, 1.442695
  %v8261 = vpow.pop %v8260
  %v8262 = vmul.f32 %v8241, 1.442695
  %v8263 = vpow.pop %v8262
  %v8264 = vmul.f32 %v8242, 1.442695
  %v8265 = vpow.pop %v8264
  %v8266 = vmul.f32 %v8243, 1.442695
  %v8267 = vpow.pop %v8266
  %v8268 = vmul.f32 %v8244, 1.442695
  %v8269 = vpow.pop %v8268
  %v8270 = vmul.f32 %v8245, 1.442695
  %v8271 = vpow.pop %v8270
  %v8272 = vmul.f32 %v8246, 1.442695
  %v8273 = vpow.pop %v8272
  %v8274 = vmul.f32 %v8247, 1.442695
  %v8275 = vpow.pop %v8274
  %v8276 = vmul.f32 %v8248, 1.442695
  %v8277 = vpow.pop %v8276
  %v8278 = vmul.f32 %v8249, 1.442695
  %v8279 = vpow.pop %v8278
  %v8280 = vmul.f32 %v8250, 1.442695
  %v8281 = vpow.pop %v8280
  %v8282 = vmul.f32 %v8251, 1.442695
  %v8283 = vpow.pop %v8282
  %v8284 = vadd.f32 %v8253, 1.0
  %v8285 = vadd.f32 %v8255, 1.0
  %v8286 = vadd.f32 %v8257, 1.0
  %v8287 = vadd.f32 %v8259, 1.0
  %v8288 = vadd.f32 %v8261, 1.0
  %v8289 = vadd.f32 %v8263, 1.0
  %v8290 = vadd.f32 %v8265, 1.0
  %v8291 = vadd.f32 %v8267, 1.0
  %v8292 = vadd.f32 %v8269, 1.0
  %v8293 = vadd.f32 %v8271, 1.0
  %v8294 = vadd.f32 %v8273, 1.0
  %v8295 = vadd.f32 %v8275, 1.0
  %v8296 = vadd.f32 %v8277, 1.0
  %v8297 = vadd.f32 %v8279, 1.0
  %v8298 = vadd.f32 %v8281, 1.0
  %v8299 = vadd.f32 %v8283, 1.0
  %v8300 = vrcp.pop %v8284
  %v8301 = vmul.f32 %v8284, %v8300
  %v8302 = vsub.f32 1.0, %v8301
  %v8303 = vmul.f32 %v8300, %v8302
  %v8304 = vadd.f32 %v8300, %v8303
  %vm8305 = vweird.f32 %v8284
  %vm8306 = vweird.f32 %v8300
  %vm8307 = vmor %vm8305, %vm8306
  %v8308 = vsel %vm8307, %v8300, %v8304
  %v8309 = vand.u32 2147483647, %v8284
  %vm8310 = vcmp.eq.f32.partialorder %v8309, 8.507059e+37
  %v8311 = vand.u32 %v8284, 2147483648
  %v8312 = vor.u32 1.1754944e-38, %v8311
  %v8313 = vsel %vm8310, %v8312, %v8308
  %v8314 = vmul.f32 1.0, %v8313
  %v8315 = vrcp.pop %v8285
  %v8316 = vmul.f32 %v8285, %v8315
  %v8317 = vsub.f32 1.0, %v8316
  %v8318 = vmul.f32 %v8315, %v8317
  %v8319 = vadd.f32 %v8315, %v8318
  %vm8320 = vweird.f32 %v8285
  %vm8321 = vweird.f32 %v8315
  %vm8322 = vmor %vm8320, %vm8321
  %v8323 = vsel %vm8322, %v8315, %v8319
  %v8324 = vand.u32 2147483647, %v8285
  %vm8325 = vcmp.eq.f32.partialorder %v8324, 8.507059e+37
  %v8326 = vand.u32 %v8285, 2147483648
  %v8327 = vor.u32 1.1754944e-38, %v8326
  %v8328 = vsel %vm8325, %v8327, %v8323
  %v8329 = vmul.f32 1.0, %v8328
  %v8330 = vrcp.pop %v8286
  %v8331 = vmul.f32 %v8286, %v8330
  %v8332 = vsub.f32 1.0, %v8331
  %v8333 = vmul.f32 %v8330, %v8332
  %v8334 = vadd.f32 %v8330, %v8333
  %vm8335 = vweird.f32 %v8286
  %vm8336 = vweird.f32 %v8330
  %vm8337 = vmor %vm8335, %vm8336
  %v8338 = vsel %vm8337, %v8330, %v8334
  %v8339 = vand.u32 2147483647, %v8286
  %vm8340 = vcmp.eq.f32.partialorder %v8339, 8.507059e+37
  %v8341 = vand.u32 %v8286, 2147483648
  %v8342 = vor.u32 1.1754944e-38, %v8341
  %v8343 = vsel %vm8340, %v8342, %v8338
  %v8344 = vmul.f32 1.0, %v8343
  %v8345 = vrcp.pop %v8287
  %v8346 = vmul.f32 %v8287, %v8345
  %v8347 = vsub.f32 1.0, %v8346
  %v8348 = vmul.f32 %v8345, %v8347
  %v8349 = vadd.f32 %v8345, %v8348
  %vm8350 = vweird.f32 %v8287
  %vm8351 = vweird.f32 %v8345
  %vm8352 = vmor %vm8350, %vm8351
  %v8353 = vsel %vm8352, %v8345, %v8349
  %v8354 = vand.u32 2147483647, %v8287
  %vm8355 = vcmp.eq.f32.partialorder %v8354, 8.507059e+37
  %v8356 = vand.u32 %v8287, 2147483648
  %v8357 = vor.u32 1.1754944e-38, %v8356
  %v8358 = vsel %vm8355, %v8357, %v8353
  %v8359 = vmul.f32 1.0, %v8358
  %v8360 = vrcp.pop %v8288
  %v8361 = vmul.f32 %v8288, %v8360
  %v8362 = vsub.f32 1.0, %v8361
  %v8363 = vmul.f32 %v8360, %v8362
  %v8364 = vadd.f32 %v8360, %v8363
  %vm8365 = vweird.f32 %v8288
  %vm8366 = vweird.f32 %v8360
  %vm8367 = vmor %vm8365, %vm8366
  %v8368 = vsel %vm8367, %v8360, %v8364
  %v8369 = vand.u32 2147483647, %v8288
  %vm8370 = vcmp.eq.f32.partialorder %v8369, 8.507059e+37
  %v8371 = vand.u32 %v8288, 2147483648
  %v8372 = vor.u32 1.1754944e-38, %v8371
  %v8373 = vsel %vm8370, %v8372, %v8368
  %v8374 = vmul.f32 1.0, %v8373
  %v8375 = vrcp.pop %v8289
  %v8376 = vmul.f32 %v8289, %v8375
  %v8377 = vsub.f32 1.0, %v8376
  %v8378 = vmul.f32 %v8375, %v8377
  %v8379 = vadd.f32 %v8375, %v8378
  %vm8380 = vweird.f32 %v8289
  %vm8381 = vweird.f32 %v8375
  %vm8382 = vmor %vm8380, %vm8381
  %v8383 = vsel %vm8382, %v8375, %v8379
  %v8384 = vand.u32 2147483647, %v8289
  %vm8385 = vcmp.eq.f32.partialorder %v8384, 8.507059e+37
  %v8386 = vand.u32 %v8289, 2147483648
  %v8387 = vor.u32 1.1754944e-38, %v8386
  %v8388 = vsel %vm8385, %v8387, %v8383
  %v8389 = vmul.f32 1.0, %v8388
  %v8390 = vrcp.pop %v8290
  %v8391 = vmul.f32 %v8290, %v8390
  %v8392 = vsub.f32 1.0, %v8391
  %v8393 = vmul.f32 %v8390, %v8392
  %v8394 = vadd.f32 %v8390, %v8393
  %vm8395 = vweird.f32 %v8290
  %vm8396 = vweird.f32 %v8390
  %vm8397 = vmor %vm8395, %vm8396
  %v8398 = vsel %vm8397, %v8390, %v8394
  %v8399 = vand.u32 2147483647, %v8290
  %vm8400 = vcmp.eq.f32.partialorder %v8399, 8.507059e+37
  %v8401 = vand.u32 %v8290, 2147483648
  %v8402 = vor.u32 1.1754944e-38, %v8401
  %v8403 = vsel %vm8400, %v8402, %v8398
  %v8404 = vmul.f32 1.0, %v8403
  %v8405 = vrcp.pop %v8291
  %v8406 = vmul.f32 %v8291, %v8405
  %v8407 = vsub.f32 1.0, %v8406
  %v8408 = vmul.f32 %v8405, %v8407
  %v8409 = vadd.f32 %v8405, %v8408
  %vm8410 = vweird.f32 %v8291
  %vm8411 = vweird.f32 %v8405
  %vm8412 = vmor %vm8410, %vm8411
  %v8413 = vsel %vm8412, %v8405, %v8409
  %v8414 = vand.u32 2147483647, %v8291
  %vm8415 = vcmp.eq.f32.partialorder %v8414, 8.507059e+37
  %v8416 = vand.u32 %v8291, 2147483648
  %v8417 = vor.u32 1.1754944e-38, %v8416
  %v8418 = vsel %vm8415, %v8417, %v8413
  %v8419 = vmul.f32 1.0, %v8418
  %v8420 = vrcp.pop %v8292
  %v8421 = vmul.f32 %v8292, %v8420
  %v8422 = vsub.f32 1.0, %v8421
  %v8423 = vmul.f32 %v8420, %v8422
  %v8424 = vadd.f32 %v8420, %v8423
  %vm8425 = vweird.f32 %v8292
  %vm8426 = vweird.f32 %v8420
  %vm8427 = vmor %vm8425, %vm8426
  %v8428 = vsel %vm8427, %v8420, %v8424
  %v8429 = vand.u32 2147483647, %v8292
  %vm8430 = vcmp.eq.f32.partialorder %v8429, 8.507059e+37
  %v8431 = vand.u32 %v8292, 2147483648
  %v8432 = vor.u32 1.1754944e-38, %v8431
  %v8433 = vsel %vm8430, %v8432, %v8428
  %v8434 = vmul.f32 1.0, %v8433
  %v8435 = vrcp.pop %v8293
  %v8436 = vmul.f32 %v8293, %v8435
  %v8437 = vsub.f32 1.0, %v8436
  %v8438 = vmul.f32 %v8435, %v8437
  %v8439 = vadd.f32 %v8435, %v8438
  %vm8440 = vweird.f32 %v8293
  %vm8441 = vweird.f32 %v8435
  %vm8442 = vmor %vm8440, %vm8441
  %v8443 = vsel %vm8442, %v8435, %v8439
  %v8444 = vand.u32 2147483647, %v8293
  %vm8445 = vcmp.eq.f32.partialorder %v8444, 8.507059e+37
  %v8446 = vand.u32 %v8293, 2147483648
  %v8447 = vor.u32 1.1754944e-38, %v8446
  %v8448 = vsel %vm8445, %v8447, %v8443
  %v8449 = vmul.f32 1.0, %v8448
  %v8450 = vrcp.pop %v8294
  %v8451 = vmul.f32 %v8294, %v8450
  %v8452 = vsub.f32 1.0, %v8451
  %v8453 = vmul.f32 %v8450, %v8452
  %v8454 = vadd.f32 %v8450, %v8453
  %vm8455 = vweird.f32 %v8294
  %vm8456 = vweird.f32 %v8450
  %vm8457 = vmor %vm8455, %vm8456
  %v8458 = vsel %vm8457, %v8450, %v8454
  %v8459 = vand.u32 2147483647, %v8294
  %vm8460 = vcmp.eq.f32.partialorder %v8459, 8.507059e+37
  %v8461 = vand.u32 %v8294, 2147483648
  %v8462 = vor.u32 1.1754944e-38, %v8461
  %v8463 = vsel %vm8460, %v8462, %v8458
  %v8464 = vmul.f32 1.0, %v8463
  %v8465 = vrcp.pop %v8295
  %v8466 = vmul.f32 %v8295, %v8465
  %v8467 = vsub.f32 1.0, %v8466
  %v8468 = vmul.f32 %v8465, %v8467
  %v8469 = vadd.f32 %v8465, %v8468
  %vm8470 = vweird.f32 %v8295
  %vm8471 = vweird.f32 %v8465
  %vm8472 = vmor %vm8470, %vm8471
  %v8473 = vsel %vm8472, %v8465, %v8469
  %v8474 = vand.u32 2147483647, %v8295
  %vm8475 = vcmp.eq.f32.partialorder %v8474, 8.507059e+37
  %v8476 = vand.u32 %v8295, 2147483648
  %v8477 = vor.u32 1.1754944e-38, %v8476
  %v8478 = vsel %vm8475, %v8477, %v8473
  %v8479 = vmul.f32 1.0, %v8478
  %v8480 = vrcp.pop %v8296
  %v8481 = vmul.f32 %v8296, %v8480
  %v8482 = vsub.f32 1.0, %v8481
  %v8483 = vmul.f32 %v8480, %v8482
  %v8484 = vadd.f32 %v8480, %v8483
  %vm8485 = vweird.f32 %v8296
  %vm8486 = vweird.f32 %v8480
  %vm8487 = vmor %vm8485, %vm8486
  %v8488 = vsel %vm8487, %v8480, %v8484
  %v8489 = vand.u32 2147483647, %v8296
  %vm8490 = vcmp.eq.f32.partialorder %v8489, 8.507059e+37
  %v8491 = vand.u32 %v8296, 2147483648
  %v8492 = vor.u32 1.1754944e-38, %v8491
  %v8493 = vsel %vm8490, %v8492, %v8488
  %v8494 = vmul.f32 1.0, %v8493
  %v8495 = vrcp.pop %v8297
  %v8496 = vmul.f32 %v8297, %v8495
  %v8497 = vsub.f32 1.0, %v8496
  %v8498 = vmul.f32 %v8495, %v8497
  %v8499 = vadd.f32 %v8495, %v8498
  %vm8500 = vweird.f32 %v8297
  %vm8501 = vweird.f32 %v8495
  %vm8502 = vmor %vm8500, %vm8501
  %v8503 = vsel %vm8502, %v8495, %v8499
  %v8504 = vand.u32 2147483647, %v8297
  %vm8505 = vcmp.eq.f32.partialorder %v8504, 8.507059e+37
  %v8506 = vand.u32 %v8297, 2147483648
  %v8507 = vor.u32 1.1754944e-38, %v8506
  %v8508 = vsel %vm8505, %v8507, %v8503
  %v8509 = vmul.f32 1.0, %v8508
  %v8510 = vrcp.pop %v8298
  %v8511 = vmul.f32 %v8298, %v8510
  %v8512 = vsub.f32 1.0, %v8511
  %v8513 = vmul.f32 %v8510, %v8512
  %v8514 = vadd.f32 %v8510, %v8513
  %vm8515 = vweird.f32 %v8298
  %vm8516 = vweird.f32 %v8510
  %vm8517 = vmor %vm8515, %vm8516
  %v8518 = vsel %vm8517, %v8510, %v8514
  %v8519 = vand.u32 2147483647, %v8298
  %vm8520 = vcmp.eq.f32.partialorder %v8519, 8.507059e+37
  %v8521 = vand.u32 %v8298, 2147483648
  %v8522 = vor.u32 1.1754944e-38, %v8521
  %v8523 = vsel %vm8520, %v8522, %v8518
  %v8524 = vmul.f32 1.0, %v8523
  %v8525 = vrcp.pop %v8299
  %v8526 = vmul.f32 %v8299, %v8525
  %v8527 = vsub.f32 1.0, %v8526
  %v8528 = vmul.f32 %v8525, %v8527
  %v8529 = vadd.f32 %v8525, %v8528
  %vm8530 = vweird.f32 %v8299
  %vm8531 = vweird.f32 %v8525
  %vm8532 = vmor %vm8530, %vm8531
  %v8533 = vsel %vm8532, %v8525, %v8529
  %v8534 = vand.u32 2147483647, %v8299
  %vm8535 = vcmp.eq.f32.partialorder %v8534, 8.507059e+37
  %v8536 = vand.u32 %v8299, 2147483648
  %v8537 = vor.u32 1.1754944e-38, %v8536
  %v8538 = vsel %vm8535, %v8537, %v8533
  %v8539 = vmul.f32 1.0, %v8538
  %v8540 = vpack.c.bf16 %v8314, %v8314
  %v8541 = vpack.c.bf16 %v8329, %v8329
  %v8542 = vpack.c.bf16 %v8344, %v8344
  %v8543 = vpack.c.bf16 %v8359, %v8359
  %v8544 = vpack.c.bf16 %v8374, %v8374
  %v8545 = vpack.c.bf16 %v8389, %v8389
  %v8546 = vpack.c.bf16 %v8404, %v8404
  %v8547 = vpack.c.bf16 %v8419, %v8419
  %v8548 = vpack.c.bf16 %v8434, %v8434
  %v8549 = vpack.c.bf16 %v8449, %v8449
  %v8550 = vpack.c.bf16 %v8464, %v8464
  %v8551 = vpack.c.bf16 %v8479, %v8479
  %v8552 = vpack.c.bf16 %v8494, %v8494
  %v8553 = vpack.c.bf16 %v8509, %v8509
  %v8554 = vpack.c.bf16 %v8524, %v8524
  %v8555 = vpack.c.bf16 %v8539, %v8539
  %v8572 = vunpack.c.l.b16 %v7610
  %v8573 = vunpack.c.l.b16 %v7611
  %v8574 = vunpack.c.l.b16 %v7612
  %v8575 = vunpack.c.l.b16 %v7613
  %v8576 = vunpack.c.l.b16 %v7614
  %v8577 = vunpack.c.l.b16 %v7615
  %v8578 = vunpack.c.l.b16 %v7616
  %v8579 = vunpack.c.l.b16 %v7617
  %v8580 = vunpack.c.l.b16 %v7618
  %v8581 = vunpack.c.l.b16 %v7619
  %v8582 = vunpack.c.l.b16 %v7620
  %v8583 = vunpack.c.l.b16 %v7621
  %v8584 = vunpack.c.l.b16 %v7622
  %v8585 = vunpack.c.l.b16 %v7623
  %v8586 = vunpack.c.l.b16 %v7624
  %v8587 = vunpack.c.l.b16 %v7625
  %v8588 = vpack.c.b16 %v8573, %v8572
  %v8589 = vpack.c.b16 %v8575, %v8574
  %v8590 = vpack.c.b16 %v8577, %v8576
  %v8591 = vpack.c.b16 %v8579, %v8578
  %v8592 = vpack.c.b16 %v8581, %v8580
  %v8593 = vpack.c.b16 %v8583, %v8582
  %v8594 = vpack.c.b16 %v8585, %v8584
  %v8595 = vpack.c.b16 %v8587, %v8586
  %v8620 = vunpack.c.l.b16 %v8075
  %v8621 = vunpack.c.l.b16 %v8076
  %v8622 = vunpack.c.l.b16 %v8077
  %v8623 = vunpack.c.l.b16 %v8078
  %v8624 = vunpack.c.l.b16 %v8079
  %v8625 = vunpack.c.l.b16 %v8080
  %v8626 = vunpack.c.l.b16 %v8081
  %v8627 = vunpack.c.l.b16 %v8082
  %v8628 = vunpack.c.l.b16 %v8083
  %v8629 = vunpack.c.l.b16 %v8084
  %v8630 = vunpack.c.l.b16 %v8085
  %v8631 = vunpack.c.l.b16 %v8086
  %v8632 = vunpack.c.l.b16 %v8087
  %v8633 = vunpack.c.l.b16 %v8088
  %v8634 = vunpack.c.l.b16 %v8089
  %v8635 = vunpack.c.l.b16 %v8090
  %v8636 = vpack.c.b16 %v8621, %v8620
  %v8637 = vpack.c.b16 %v8623, %v8622
  %v8638 = vpack.c.b16 %v8625, %v8624
  %v8639 = vpack.c.b16 %v8627, %v8626
  %v8640 = vpack.c.b16 %v8629, %v8628
  %v8641 = vpack.c.b16 %v8631, %v8630
  %v8642 = vpack.c.b16 %v8633, %v8632
  %v8643 = vpack.c.b16 %v8635, %v8634
  %v8668 = vunpack.c.l.b16 %v8540
  %v8669 = vunpack.c.l.b16 %v8541
  %v8670 = vunpack.c.l.b16 %v8542
  %v8671 = vunpack.c.l.b16 %v8543
  %v8672 = vunpack.c.l.b16 %v8544
  %v8673 = vunpack.c.l.b16 %v8545
  %v8674 = vunpack.c.l.b16 %v8546
  %v8675 = vunpack.c.l.b16 %v8547
  %v8676 = vunpack.c.l.b16 %v8548
  %v8677 = vunpack.c.l.b16 %v8549
  %v8678 = vunpack.c.l.b16 %v8550
  %v8679 = vunpack.c.l.b16 %v8551
  %v8680 = vunpack.c.l.b16 %v8552
  %v8681 = vunpack.c.l.b16 %v8553
  %v8682 = vunpack.c.l.b16 %v8554
  %v8683 = vunpack.c.l.b16 %v8555
  %v8684 = vpack.c.b16 %v8669, %v8668
  %v8685 = vpack.c.b16 %v8671, %v8670
  %v8686 = vpack.c.b16 %v8673, %v8672
  %v8687 = vpack.c.b16 %v8675, %v8674
  %v8688 = vpack.c.b16 %v8677, %v8676
  %v8689 = vpack.c.b16 %v8679, %v8678
  %v8690 = vpack.c.b16 %v8681, %v8680
  %v8691 = vpack.c.b16 %v8683, %v8682
  %v8700 = vld [vmem:[%s10] sm:$0xff]
  %v8701 = vld [vmem:[%s10 + $0x8] sm:$0xff]
  %v8702 = vld [vmem:[%s10 + $0x10] sm:$0xff]
  %v8703 = vld [vmem:[%s10 + $0x18] sm:$0xff]
  %v8704 = vld [vmem:[%s10 + $0x20] sm:$0xff]
  %v8705 = vld [vmem:[%s10 + $0x28] sm:$0xff]
  %v8706 = vld [vmem:[%s10 + $0x30] sm:$0xff]
  %v8707 = vld [vmem:[%s10 + $0x38] sm:$0xff]
  %v8708 = vld [vmem:[%s10 + $0x40] sm:$0xff]
  %v8709 = vld [vmem:[%s10 + $0x48] sm:$0xff]
  %v8710 = vld [vmem:[%s10 + $0x50] sm:$0xff]
  %v8711 = vld [vmem:[%s10 + $0x58] sm:$0xff]
  %v8712 = vld [vmem:[%s10 + $0x60] sm:$0xff]
  %v8713 = vld [vmem:[%s10 + $0x68] sm:$0xff]
  %v8714 = vld [vmem:[%s10 + $0x70] sm:$0xff]
  %v8715 = vld [vmem:[%s10 + $0x78] sm:$0xff]
  %v8716 = vld [vmem:[%s10 + $0x80] sm:$0xff]
  %v8717 = vld [vmem:[%s10 + $0x88] sm:$0xff]
  %v8718 = vld [vmem:[%s10 + $0x90] sm:$0xff]
  %v8719 = vld [vmem:[%s10 + $0x98] sm:$0xff]
  %v8720 = vld [vmem:[%s10 + $0xa0] sm:$0xff]
  %v8721 = vld [vmem:[%s10 + $0xa8] sm:$0xff]
  %v8722 = vld [vmem:[%s10 + $0xb0] sm:$0xff]
  %v8723 = vld [vmem:[%s10 + $0xb8] sm:$0xff]
  %v8724 = vld [vmem:[%s10 + $0xc0] sm:$0xff]
  %v8725 = vld [vmem:[%s10 + $0xc8] sm:$0xff]
  %v8726 = vld [vmem:[%s10 + $0xd0] sm:$0xff]
  %v8727 = vld [vmem:[%s10 + $0xd8] sm:$0xff]
  %v8728 = vld [vmem:[%s10 + $0xe0] sm:$0xff]
  %v8729 = vld [vmem:[%s10 + $0xe8] sm:$0xff]
  %v8730 = vld [vmem:[%s10 + $0xf0] sm:$0xff]
  %v8731 = vld [vmem:[%s10 + $0xf8] sm:$0xff]
  %v8732 = vld [vmem:[%s10 + $0x100] sm:$0xff]
  %v8733 = vld [vmem:[%s10 + $0x108] sm:$0xff]
  %v8734 = vld [vmem:[%s10 + $0x110] sm:$0xff]
  %v8735 = vld [vmem:[%s10 + $0x118] sm:$0xff]
  %v8736 = vld [vmem:[%s10 + $0x120] sm:$0xff]
  %v8737 = vld [vmem:[%s10 + $0x128] sm:$0xff]
  %v8738 = vld [vmem:[%s10 + $0x130] sm:$0xff]
  %v8739 = vld [vmem:[%s10 + $0x138] sm:$0xff]
  %v8740 = vld [vmem:[%s10 + $0x140] sm:$0xff]
  %v8741 = vld [vmem:[%s10 + $0x148] sm:$0xff]
  %v8742 = vld [vmem:[%s10 + $0x150] sm:$0xff]
  %v8743 = vld [vmem:[%s10 + $0x158] sm:$0xff]
  %v8744 = vld [vmem:[%s10 + $0x160] sm:$0xff]
  %v8745 = vld [vmem:[%s10 + $0x168] sm:$0xff]
  %v8746 = vld [vmem:[%s10 + $0x170] sm:$0xff]
  %v8747 = vld [vmem:[%s10 + $0x178] sm:$0xff]
  %v8764 = vunpack.c.l.b16 %v4916
  %v8765 = vunpack.c.l.b16 %v4917
  %v8766 = vunpack.c.l.b16 %v4918
  %v8767 = vunpack.c.l.b16 %v4919
  %v8768 = vunpack.c.l.b16 %v4920
  %v8769 = vunpack.c.l.b16 %v4921
  %v8770 = vunpack.c.l.b16 %v4922
  %v8771 = vunpack.c.l.b16 %v4923
  %v8772 = vunpack.c.l.b16 %v4924
  %v8773 = vunpack.c.l.b16 %v4925
  %v8774 = vunpack.c.l.b16 %v4926
  %v8775 = vunpack.c.l.b16 %v4927
  %v8776 = vunpack.c.l.b16 %v4928
  %v8777 = vunpack.c.l.b16 %v4929
  %v8778 = vunpack.c.l.b16 %v4930
  %v8779 = vunpack.c.l.b16 %v4931
  %v8780 = vpack.c.b16 %v8765, %v8764
  %v8781 = vpack.c.b16 %v8767, %v8766
  %v8782 = vpack.c.b16 %v8769, %v8768
  %v8783 = vpack.c.b16 %v8771, %v8770
  %v8784 = vpack.c.b16 %v8773, %v8772
  %v8785 = vpack.c.b16 %v8775, %v8774
  %v8786 = vpack.c.b16 %v8777, %v8776
  %v8787 = vpack.c.b16 %v8779, %v8778
  %8796 = vmatpush.bf16.msra.mxu0 %v8787
  %8797 = vmatpush.bf16.msra.mxu0 %v8786
  %8798 = vmatpush.bf16.msra.mxu0 %v8785
  %8799 = vmatpush.bf16.msra.mxu0 %v8784
  %8800 = vmatpush.bf16.msra.mxu0 %v8783
  %8801 = vmatpush.bf16.msra.mxu0 %v8782
  %8802 = vmatpush.bf16.msra.mxu0 %v8781
  %8803 = vmatpush.bf16.msra.mxu0 %v8780
  %8804 = vmatmul.bf16.gmra.mxu0 %v8588
  %v8805 = vpop.f32.mrf.mxu0
  %v8806 = vadd.f32 0.0, %v8805
  %v8807 = vpop.f32.mrf.mxu0
  %v8808 = vadd.f32 0.0, %v8807
  %8809 = vmatmul.bf16.gmra.mxu0 %v8589
  %v8810 = vpop.f32.mrf.mxu0
  %v8811 = vadd.f32 0.0, %v8810
  %v8812 = vpop.f32.mrf.mxu0
  %v8813 = vadd.f32 0.0, %v8812
  %8814 = vmatmul.bf16.gmra.mxu0 %v8590
  %v8815 = vpop.f32.mrf.mxu0
  %v8816 = vadd.f32 0.0, %v8815
  %v8817 = vpop.f32.mrf.mxu0
  %v8818 = vadd.f32 0.0, %v8817
  %8819 = vmatmul.bf16.gmra.mxu0 %v8591
  %v8820 = vpop.f32.mrf.mxu0
  %v8821 = vadd.f32 0.0, %v8820
  %v8822 = vpop.f32.mrf.mxu0
  %v8823 = vadd.f32 0.0, %v8822
  %8824 = vmatmul.bf16.gmra.mxu0 %v8592
  %v8825 = vpop.f32.mrf.mxu0
  %v8826 = vadd.f32 0.0, %v8825
  %v8827 = vpop.f32.mrf.mxu0
  %v8828 = vadd.f32 0.0, %v8827
  %8829 = vmatmul.bf16.gmra.mxu0 %v8593
  %v8830 = vpop.f32.mrf.mxu0
  %v8831 = vadd.f32 0.0, %v8830
  %v8832 = vpop.f32.mrf.mxu0
  %v8833 = vadd.f32 0.0, %v8832
  %8834 = vmatmul.bf16.gmra.mxu0 %v8594
  %v8835 = vpop.f32.mrf.mxu0
  %v8836 = vadd.f32 0.0, %v8835
  %v8837 = vpop.f32.mrf.mxu0
  %v8838 = vadd.f32 0.0, %v8837
  %8839 = vmatmul.bf16.gmra.mxu0 %v8595
  %v8840 = vpop.f32.mrf.mxu0
  %v8841 = vadd.f32 0.0, %v8840
  %v8842 = vpop.f32.mrf.mxu0
  %v8843 = vadd.f32 0.0, %v8842
  %8844 = vmatmul.bf16.gmra.mxu0 %v8636
  %v8845 = vpop.f32.mrf.mxu0
  %v8846 = vadd.f32 0.0, %v8845
  %v8847 = vpop.f32.mrf.mxu0
  %v8848 = vadd.f32 0.0, %v8847
  %8849 = vmatmul.bf16.gmra.mxu0 %v8637
  %v8850 = vpop.f32.mrf.mxu0
  %v8851 = vadd.f32 0.0, %v8850
  %v8852 = vpop.f32.mrf.mxu0
  %v8853 = vadd.f32 0.0, %v8852
  %8854 = vmatmul.bf16.gmra.mxu0 %v8638
  %v8855 = vpop.f32.mrf.mxu0
  %v8856 = vadd.f32 0.0, %v8855
  %v8857 = vpop.f32.mrf.mxu0
  %v8858 = vadd.f32 0.0, %v8857
  %8859 = vmatmul.bf16.gmra.mxu0 %v8639
  %v8860 = vpop.f32.mrf.mxu0
  %v8861 = vadd.f32 0.0, %v8860
  %v8862 = vpop.f32.mrf.mxu0
  %v8863 = vadd.f32 0.0, %v8862
  %8864 = vmatmul.bf16.gmra.mxu0 %v8640
  %v8865 = vpop.f32.mrf.mxu0
  %v8866 = vadd.f32 0.0, %v8865
  %v8867 = vpop.f32.mrf.mxu0
  %v8868 = vadd.f32 0.0, %v8867
  %8869 = vmatmul.bf16.gmra.mxu0 %v8641
  %v8870 = vpop.f32.mrf.mxu0
  %v8871 = vadd.f32 0.0, %v8870
  %v8872 = vpop.f32.mrf.mxu0
  %v8873 = vadd.f32 0.0, %v8872
  %8874 = vmatmul.bf16.gmra.mxu0 %v8642
  %v8875 = vpop.f32.mrf.mxu0
  %v8876 = vadd.f32 0.0, %v8875
  %v8877 = vpop.f32.mrf.mxu0
  %v8878 = vadd.f32 0.0, %v8877
  %8879 = vmatmul.bf16.gmra.mxu0 %v8643
  %v8880 = vpop.f32.mrf.mxu0
  %v8881 = vadd.f32 0.0, %v8880
  %v8882 = vpop.f32.mrf.mxu0
  %v8883 = vadd.f32 0.0, %v8882
  %8884 = vmatmul.bf16.gmra.mxu0 %v8684
  %v8885 = vpop.f32.mrf.mxu0
  %v8886 = vadd.f32 0.0, %v8885
  %v8887 = vpop.f32.mrf.mxu0
  %v8888 = vadd.f32 0.0, %v8887
  %8889 = vmatmul.bf16.gmra.mxu0 %v8685
  %v8890 = vpop.f32.mrf.mxu0
  %v8891 = vadd.f32 0.0, %v8890
  %v8892 = vpop.f32.mrf.mxu0
  %v8893 = vadd.f32 0.0, %v8892
  %8894 = vmatmul.bf16.gmra.mxu0 %v8686
  %v8895 = vpop.f32.mrf.mxu0
  %v8896 = vadd.f32 0.0, %v8895
  %v8897 = vpop.f32.mrf.mxu0
  %v8898 = vadd.f32 0.0, %v8897
  %8899 = vmatmul.bf16.gmra.mxu0 %v8687
  %v8900 = vpop.f32.mrf.mxu0
  %v8901 = vadd.f32 0.0, %v8900
  %v8902 = vpop.f32.mrf.mxu0
  %v8903 = vadd.f32 0.0, %v8902
  %8904 = vmatmul.bf16.gmra.mxu0 %v8688
  %v8905 = vpop.f32.mrf.mxu0
  %v8906 = vadd.f32 0.0, %v8905
  %v8907 = vpop.f32.mrf.mxu0
  %v8908 = vadd.f32 0.0, %v8907
  %8909 = vmatmul.bf16.gmra.mxu0 %v8689
  %v8910 = vpop.f32.mrf.mxu0
  %v8911 = vadd.f32 0.0, %v8910
  %v8912 = vpop.f32.mrf.mxu0
  %v8913 = vadd.f32 0.0, %v8912
  %8914 = vmatmul.bf16.gmra.mxu0 %v8690
  %v8915 = vpop.f32.mrf.mxu0
  %v8916 = vadd.f32 0.0, %v8915
  %v8917 = vpop.f32.mrf.mxu0
  %v8918 = vadd.f32 0.0, %v8917
  %8919 = vmatmul.bf16.gmra.mxu0 %v8691
  %v8920 = vpop.f32.mrf.mxu0
  %v8921 = vadd.f32 0.0, %v8920
  %v8922 = vpop.f32.mrf.mxu0
  %v8923 = vadd.f32 0.0, %v8922
  %8924 = vdwg.mxu0
  %v8925 = vadd.f32 %v8700, %v8806
  %v8926 = vadd.f32 %v8701, %v8808
  %v8927 = vadd.f32 %v8702, %v8811
  %v8928 = vadd.f32 %v8703, %v8813
  %v8929 = vadd.f32 %v8704, %v8816
  %v8930 = vadd.f32 %v8705, %v8818
  %v8931 = vadd.f32 %v8706, %v8821
  %v8932 = vadd.f32 %v8707, %v8823
  %v8933 = vadd.f32 %v8708, %v8826
  %v8934 = vadd.f32 %v8709, %v8828
  %v8935 = vadd.f32 %v8710, %v8831
  %v8936 = vadd.f32 %v8711, %v8833
  %v8937 = vadd.f32 %v8712, %v8836
  %v8938 = vadd.f32 %v8713, %v8838
  %v8939 = vadd.f32 %v8714, %v8841
  %v8940 = vadd.f32 %v8715, %v8843
  %v8941 = vadd.f32 %v8716, %v8846
  %v8942 = vadd.f32 %v8717, %v8848
  %v8943 = vadd.f32 %v8718, %v8851
  %v8944 = vadd.f32 %v8719, %v8853
  %v8945 = vadd.f32 %v8720, %v8856
  %v8946 = vadd.f32 %v8721, %v8858
  %v8947 = vadd.f32 %v8722, %v8861
  %v8948 = vadd.f32 %v8723, %v8863
  %v8949 = vadd.f32 %v8724, %v8866
  %v8950 = vadd.f32 %v8725, %v8868
  %v8951 = vadd.f32 %v8726, %v8871
  %v8952 = vadd.f32 %v8727, %v8873
  %v8953 = vadd.f32 %v8728, %v8876
  %v8954 = vadd.f32 %v8729, %v8878
  %v8955 = vadd.f32 %v8730, %v8881
  %v8956 = vadd.f32 %v8731, %v8883
  %v8957 = vadd.f32 %v8732, %v8886
  %v8958 = vadd.f32 %v8733, %v8888
  %v8959 = vadd.f32 %v8734, %v8891
  %v8960 = vadd.f32 %v8735, %v8893
  %v8961 = vadd.f32 %v8736, %v8896
  %v8962 = vadd.f32 %v8737, %v8898
  %v8963 = vadd.f32 %v8738, %v8901
  %v8964 = vadd.f32 %v8739, %v8903
  %v8965 = vadd.f32 %v8740, %v8906
  %v8966 = vadd.f32 %v8741, %v8908
  %v8967 = vadd.f32 %v8742, %v8911
  %v8968 = vadd.f32 %v8743, %v8913
  %v8969 = vadd.f32 %v8744, %v8916
  %v8970 = vadd.f32 %v8745, %v8918
  %v8971 = vadd.f32 %v8746, %v8921
  %v8972 = vadd.f32 %v8747, %v8923
  %8973 = vst [vmem:[%s10] sm:$0xff] %v8925
  %8974 = vst [vmem:[%s10 + $0x8] sm:$0xff] %v8926
  %8975 = vst [vmem:[%s10 + $0x10] sm:$0xff] %v8927
  %8976 = vst [vmem:[%s10 + $0x18] sm:$0xff] %v8928
  %8977 = vst [vmem:[%s10 + $0x20] sm:$0xff] %v8929
  %8978 = vst [vmem:[%s10 + $0x28] sm:$0xff] %v8930
  %8979 = vst [vmem:[%s10 + $0x30] sm:$0xff] %v8931
  %8980 = vst [vmem:[%s10 + $0x38] sm:$0xff] %v8932
  %8981 = vst [vmem:[%s10 + $0x40] sm:$0xff] %v8933
  %8982 = vst [vmem:[%s10 + $0x48] sm:$0xff] %v8934
  %8983 = vst [vmem:[%s10 + $0x50] sm:$0xff] %v8935
  %8984 = vst [vmem:[%s10 + $0x58] sm:$0xff] %v8936
  %8985 = vst [vmem:[%s10 + $0x60] sm:$0xff] %v8937
  %8986 = vst [vmem:[%s10 + $0x68] sm:$0xff] %v8938
  %8987 = vst [vmem:[%s10 + $0x70] sm:$0xff] %v8939
  %8988 = vst [vmem:[%s10 + $0x78] sm:$0xff] %v8940
  %8989 = vst [vmem:[%s10 + $0x80] sm:$0xff] %v8941
  %8990 = vst [vmem:[%s10 + $0x88] sm:$0xff] %v8942
  %8991 = vst [vmem:[%s10 + $0x90] sm:$0xff] %v8943
  %8992 = vst [vmem:[%s10 + $0x98] sm:$0xff] %v8944
  %8993 = vst [vmem:[%s10 + $0xa0] sm:$0xff] %v8945
  %8994 = vst [vmem:[%s10 + $0xa8] sm:$0xff] %v8946
  %8995 = vst [vmem:[%s10 + $0xb0] sm:$0xff] %v8947
  %8996 = vst [vmem:[%s10 + $0xb8] sm:$0xff] %v8948
  %8997 = vst [vmem:[%s10 + $0xc0] sm:$0xff] %v8949
  %8998 = vst [vmem:[%s10 + $0xc8] sm:$0xff] %v8950
  %8999 = vst [vmem:[%s10 + $0xd0] sm:$0xff] %v8951
  %9000 = vst [vmem:[%s10 + $0xd8] sm:$0xff] %v8952
  %9001 = vst [vmem:[%s10 + $0xe0] sm:$0xff] %v8953
  %9002 = vst [vmem:[%s10 + $0xe8] sm:$0xff] %v8954
  %9003 = vst [vmem:[%s10 + $0xf0] sm:$0xff] %v8955
  %9004 = vst [vmem:[%s10 + $0xf8] sm:$0xff] %v8956
  %9005 = vst [vmem:[%s10 + $0x100] sm:$0xff] %v8957
  %9006 = vst [vmem:[%s10 + $0x108] sm:$0xff] %v8958
  %9007 = vst [vmem:[%s10 + $0x110] sm:$0xff] %v8959
  %9008 = vst [vmem:[%s10 + $0x118] sm:$0xff] %v8960
  %9009 = vst [vmem:[%s10 + $0x120] sm:$0xff] %v8961
  %9010 = vst [vmem:[%s10 + $0x128] sm:$0xff] %v8962
  %9011 = vst [vmem:[%s10 + $0x130] sm:$0xff] %v8963
  %9012 = vst [vmem:[%s10 + $0x138] sm:$0xff] %v8964
  %9013 = vst [vmem:[%s10 + $0x140] sm:$0xff] %v8965
  %9014 = vst [vmem:[%s10 + $0x148] sm:$0xff] %v8966
  %9015 = vst [vmem:[%s10 + $0x150] sm:$0xff] %v8967
  %9016 = vst [vmem:[%s10 + $0x158] sm:$0xff] %v8968
  %9017 = vst [vmem:[%s10 + $0x160] sm:$0xff] %v8969
  %9018 = vst [vmem:[%s10 + $0x168] sm:$0xff] %v8970
  %9019 = vst [vmem:[%s10 + $0x170] sm:$0xff] %v8971
  %9020 = vst [vmem:[%s10 + $0x178] sm:$0xff] %v8972
  %v9021 = vmul.f32 %v8220, 0.33333334
  %v9022 = vmul.f32 %v8221, 0.33333334
  %v9023 = vmul.f32 %v8222, 0.33333334
  %v9024 = vmul.f32 %v8223, 0.33333334
  %v9025 = vmul.f32 %v8224, 0.33333334
  %v9026 = vmul.f32 %v8225, 0.33333334
  %v9027 = vmul.f32 %v8226, 0.33333334
  %v9028 = vmul.f32 %v8227, 0.33333334
  %v9029 = vmul.f32 %v8228, 0.33333334
  %v9030 = vmul.f32 %v8229, 0.33333334
  %v9031 = vmul.f32 %v8230, 0.33333334
  %v9032 = vmul.f32 %v8231, 0.33333334
  %v9033 = vmul.f32 %v8232, 0.33333334
  %v9034 = vmul.f32 %v8233, 0.33333334
  %v9035 = vmul.f32 %v8234, 0.33333334
  %v9036 = vmul.f32 %v8235, 0.33333334
  %v9037 = vxor.u32 %v9021, 2147483648
  %v9038 = vxor.u32 %v9022, 2147483648
  %v9039 = vxor.u32 %v9023, 2147483648
  %v9040 = vxor.u32 %v9024, 2147483648
  %v9041 = vxor.u32 %v9025, 2147483648
  %v9042 = vxor.u32 %v9026, 2147483648
  %v9043 = vxor.u32 %v9027, 2147483648
  %v9044 = vxor.u32 %v9028, 2147483648
  %v9045 = vxor.u32 %v9029, 2147483648
  %v9046 = vxor.u32 %v9030, 2147483648
  %v9047 = vxor.u32 %v9031, 2147483648
  %v9048 = vxor.u32 %v9032, 2147483648
  %v9049 = vxor.u32 %v9033, 2147483648
  %v9050 = vxor.u32 %v9034, 2147483648
  %v9051 = vxor.u32 %v9035, 2147483648
  %v9052 = vxor.u32 %v9036, 2147483648
  %v9053 = vmul.f32 %v9037, 1.442695
  %v9054 = vpow.pop %v9053
  %v9055 = vmul.f32 %v9038, 1.442695
  %v9056 = vpow.pop %v9055
  %v9057 = vmul.f32 %v9039, 1.442695
  %v9058 = vpow.pop %v9057
  %v9059 = vmul.f32 %v9040, 1.442695
  %v9060 = vpow.pop %v9059
  %v9061 = vmul.f32 %v9041, 1.442695
  %v9062 = vpow.pop %v9061
  %v9063 = vmul.f32 %v9042, 1.442695
  %v9064 = vpow.pop %v9063
  %v9065 = vmul.f32 %v9043, 1.442695
  %v9066 = vpow.pop %v9065
  %v9067 = vmul.f32 %v9044, 1.442695
  %v9068 = vpow.pop %v9067
  %v9069 = vmul.f32 %v9045, 1.442695
  %v9070 = vpow.pop %v9069
  %v9071 = vmul.f32 %v9046, 1.442695
  %v9072 = vpow.pop %v9071
  %v9073 = vmul.f32 %v9047, 1.442695
  %v9074 = vpow.pop %v9073
  %v9075 = vmul.f32 %v9048, 1.442695
  %v9076 = vpow.pop %v9075
  %v9077 = vmul.f32 %v9049, 1.442695
  %v9078 = vpow.pop %v9077
  %v9079 = vmul.f32 %v9050, 1.442695
  %v9080 = vpow.pop %v9079
  %v9081 = vmul.f32 %v9051, 1.442695
  %v9082 = vpow.pop %v9081
  %v9083 = vmul.f32 %v9052, 1.442695
  %v9084 = vpow.pop %v9083
  %v9085 = vadd.f32 %v9054, 1.0
  %v9086 = vadd.f32 %v9056, 1.0
  %v9087 = vadd.f32 %v9058, 1.0
  %v9088 = vadd.f32 %v9060, 1.0
  %v9089 = vadd.f32 %v9062, 1.0
  %v9090 = vadd.f32 %v9064, 1.0
  %v9091 = vadd.f32 %v9066, 1.0
  %v9092 = vadd.f32 %v9068, 1.0
  %v9093 = vadd.f32 %v9070, 1.0
  %v9094 = vadd.f32 %v9072, 1.0
  %v9095 = vadd.f32 %v9074, 1.0
  %v9096 = vadd.f32 %v9076, 1.0
  %v9097 = vadd.f32 %v9078, 1.0
  %v9098 = vadd.f32 %v9080, 1.0
  %v9099 = vadd.f32 %v9082, 1.0
  %v9100 = vadd.f32 %v9084, 1.0
  %v9101 = vrcp.pop %v9085
  %v9102 = vmul.f32 %v9085, %v9101
  %v9103 = vsub.f32 1.0, %v9102
  %v9104 = vmul.f32 %v9101, %v9103
  %v9105 = vadd.f32 %v9101, %v9104
  %vm9106 = vweird.f32 %v9085
  %vm9107 = vweird.f32 %v9101
  %vm9108 = vmor %vm9106, %vm9107
  %v9109 = vsel %vm9108, %v9101, %v9105
  %v9110 = vand.u32 2147483647, %v9085
  %vm9111 = vcmp.eq.f32.partialorder %v9110, 8.507059e+37
  %v9112 = vand.u32 %v9085, 2147483648
  %v9113 = vor.u32 1.1754944e-38, %v9112
  %v9114 = vsel %vm9111, %v9113, %v9109
  %v9115 = vmul.f32 1.0, %v9114
  %v9116 = vrcp.pop %v9086
  %v9117 = vmul.f32 %v9086, %v9116
  %v9118 = vsub.f32 1.0, %v9117
  %v9119 = vmul.f32 %v9116, %v9118
  %v9120 = vadd.f32 %v9116, %v9119
  %vm9121 = vweird.f32 %v9086
  %vm9122 = vweird.f32 %v9116
  %vm9123 = vmor %vm9121, %vm9122
  %v9124 = vsel %vm9123, %v9116, %v9120
  %v9125 = vand.u32 2147483647, %v9086
  %vm9126 = vcmp.eq.f32.partialorder %v9125, 8.507059e+37
  %v9127 = vand.u32 %v9086, 2147483648
  %v9128 = vor.u32 1.1754944e-38, %v9127
  %v9129 = vsel %vm9126, %v9128, %v9124
  %v9130 = vmul.f32 1.0, %v9129
  %v9131 = vrcp.pop %v9087
  %v9132 = vmul.f32 %v9087, %v9131
  %v9133 = vsub.f32 1.0, %v9132
  %v9134 = vmul.f32 %v9131, %v9133
  %v9135 = vadd.f32 %v9131, %v9134
  %vm9136 = vweird.f32 %v9087
  %vm9137 = vweird.f32 %v9131
  %vm9138 = vmor %vm9136, %vm9137
  %v9139 = vsel %vm9138, %v9131, %v9135
  %v9140 = vand.u32 2147483647, %v9087
  %vm9141 = vcmp.eq.f32.partialorder %v9140, 8.507059e+37
  %v9142 = vand.u32 %v9087, 2147483648
  %v9143 = vor.u32 1.1754944e-38, %v9142
  %v9144 = vsel %vm9141, %v9143, %v9139
  %v9145 = vmul.f32 1.0, %v9144
  %v9146 = vrcp.pop %v9088
  %v9147 = vmul.f32 %v9088, %v9146
  %v9148 = vsub.f32 1.0, %v9147
  %v9149 = vmul.f32 %v9146, %v9148
  %v9150 = vadd.f32 %v9146, %v9149
  %vm9151 = vweird.f32 %v9088
  %vm9152 = vweird.f32 %v9146
  %vm9153 = vmor %vm9151, %vm9152
  %v9154 = vsel %vm9153, %v9146, %v9150
  %v9155 = vand.u32 2147483647, %v9088
  %vm9156 = vcmp.eq.f32.partialorder %v9155, 8.507059e+37
  %v9157 = vand.u32 %v9088, 2147483648
  %v9158 = vor.u32 1.1754944e-38, %v9157
  %v9159 = vsel %vm9156, %v9158, %v9154
  %v9160 = vmul.f32 1.0, %v9159
  %v9161 = vrcp.pop %v9089
  %v9162 = vmul.f32 %v9089, %v9161
  %v9163 = vsub.f32 1.0, %v9162
  %v9164 = vmul.f32 %v9161, %v9163
  %v9165 = vadd.f32 %v9161, %v9164
  %vm9166 = vweird.f32 %v9089
  %vm9167 = vweird.f32 %v9161
  %vm9168 = vmor %vm9166, %vm9167
  %v9169 = vsel %vm9168, %v9161, %v9165
  %v9170 = vand.u32 2147483647, %v9089
  %vm9171 = vcmp.eq.f32.partialorder %v9170, 8.507059e+37
  %v9172 = vand.u32 %v9089, 2147483648
  %v9173 = vor.u32 1.1754944e-38, %v9172
  %v9174 = vsel %vm9171, %v9173, %v9169
  %v9175 = vmul.f32 1.0, %v9174
  %v9176 = vrcp.pop %v9090
  %v9177 = vmul.f32 %v9090, %v9176
  %v9178 = vsub.f32 1.0, %v9177
  %v9179 = vmul.f32 %v9176, %v9178
  %v9180 = vadd.f32 %v9176, %v9179
  %vm9181 = vweird.f32 %v9090
  %vm9182 = vweird.f32 %v9176
  %vm9183 = vmor %vm9181, %vm9182
  %v9184 = vsel %vm9183, %v9176, %v9180
  %v9185 = vand.u32 2147483647, %v9090
  %vm9186 = vcmp.eq.f32.partialorder %v9185, 8.507059e+37
  %v9187 = vand.u32 %v9090, 2147483648
  %v9188 = vor.u32 1.1754944e-38, %v9187
  %v9189 = vsel %vm9186, %v9188, %v9184
  %v9190 = vmul.f32 1.0, %v9189
  %v9191 = vrcp.pop %v9091
  %v9192 = vmul.f32 %v9091, %v9191
  %v9193 = vsub.f32 1.0, %v9192
  %v9194 = vmul.f32 %v9191, %v9193
  %v9195 = vadd.f32 %v9191, %v9194
  %vm9196 = vweird.f32 %v9091
  %vm9197 = vweird.f32 %v9191
  %vm9198 = vmor %vm9196, %vm9197
  %v9199 = vsel %vm9198, %v9191, %v9195
  %v9200 = vand.u32 2147483647, %v9091
  %vm9201 = vcmp.eq.f32.partialorder %v9200, 8.507059e+37
  %v9202 = vand.u32 %v9091, 2147483648
  %v9203 = vor.u32 1.1754944e-38, %v9202
  %v9204 = vsel %vm9201, %v9203, %v9199
  %v9205 = vmul.f32 1.0, %v9204
  %v9206 = vrcp.pop %v9092
  %v9207 = vmul.f32 %v9092, %v9206
  %v9208 = vsub.f32 1.0, %v9207
  %v9209 = vmul.f32 %v9206, %v9208
  %v9210 = vadd.f32 %v9206, %v9209
  %vm9211 = vweird.f32 %v9092
  %vm9212 = vweird.f32 %v9206
  %vm9213 = vmor %vm9211, %vm9212
  %v9214 = vsel %vm9213, %v9206, %v9210
  %v9215 = vand.u32 2147483647, %v9092
  %vm9216 = vcmp.eq.f32.partialorder %v9215, 8.507059e+37
  %v9217 = vand.u32 %v9092, 2147483648
  %v9218 = vor.u32 1.1754944e-38, %v9217
  %v9219 = vsel %vm9216, %v9218, %v9214
  %v9220 = vmul.f32 1.0, %v9219
  %v9221 = vrcp.pop %v9093
  %v9222 = vmul.f32 %v9093, %v9221
  %v9223 = vsub.f32 1.0, %v9222
  %v9224 = vmul.f32 %v9221, %v9223
  %v9225 = vadd.f32 %v9221, %v9224
  %vm9226 = vweird.f32 %v9093
  %vm9227 = vweird.f32 %v9221
  %vm9228 = vmor %vm9226, %vm9227
  %v9229 = vsel %vm9228, %v9221, %v9225
  %v9230 = vand.u32 2147483647, %v9093
  %vm9231 = vcmp.eq.f32.partialorder %v9230, 8.507059e+37
  %v9232 = vand.u32 %v9093, 2147483648
  %v9233 = vor.u32 1.1754944e-38, %v9232
  %v9234 = vsel %vm9231, %v9233, %v9229
  %v9235 = vmul.f32 1.0, %v9234
  %v9236 = vrcp.pop %v9094
  %v9237 = vmul.f32 %v9094, %v9236
  %v9238 = vsub.f32 1.0, %v9237
  %v9239 = vmul.f32 %v9236, %v9238
  %v9240 = vadd.f32 %v9236, %v9239
  %vm9241 = vweird.f32 %v9094
  %vm9242 = vweird.f32 %v9236
  %vm9243 = vmor %vm9241, %vm9242
  %v9244 = vsel %vm9243, %v9236, %v9240
  %v9245 = vand.u32 2147483647, %v9094
  %vm9246 = vcmp.eq.f32.partialorder %v9245, 8.507059e+37
  %v9247 = vand.u32 %v9094, 2147483648
  %v9248 = vor.u32 1.1754944e-38, %v9247
  %v9249 = vsel %vm9246, %v9248, %v9244
  %v9250 = vmul.f32 1.0, %v9249
  %v9251 = vrcp.pop %v9095
  %v9252 = vmul.f32 %v9095, %v9251
  %v9253 = vsub.f32 1.0, %v9252
  %v9254 = vmul.f32 %v9251, %v9253
  %v9255 = vadd.f32 %v9251, %v9254
  %vm9256 = vweird.f32 %v9095
  %vm9257 = vweird.f32 %v9251
  %vm9258 = vmor %vm9256, %vm9257
  %v9259 = vsel %vm9258, %v9251, %v9255
  %v9260 = vand.u32 2147483647, %v9095
  %vm9261 = vcmp.eq.f32.partialorder %v9260, 8.507059e+37
  %v9262 = vand.u32 %v9095, 2147483648
  %v9263 = vor.u32 1.1754944e-38, %v9262
  %v9264 = vsel %vm9261, %v9263, %v9259
  %v9265 = vmul.f32 1.0, %v9264
  %v9266 = vrcp.pop %v9096
  %v9267 = vmul.f32 %v9096, %v9266
  %v9268 = vsub.f32 1.0, %v9267
  %v9269 = vmul.f32 %v9266, %v9268
  %v9270 = vadd.f32 %v9266, %v9269
  %vm9271 = vweird.f32 %v9096
  %vm9272 = vweird.f32 %v9266
  %vm9273 = vmor %vm9271, %vm9272
  %v9274 = vsel %vm9273, %v9266, %v9270
  %v9275 = vand.u32 2147483647, %v9096
  %vm9276 = vcmp.eq.f32.partialorder %v9275, 8.507059e+37
  %v9277 = vand.u32 %v9096, 2147483648
  %v9278 = vor.u32 1.1754944e-38, %v9277
  %v9279 = vsel %vm9276, %v9278, %v9274
  %v9280 = vmul.f32 1.0, %v9279
  %v9281 = vrcp.pop %v9097
  %v9282 = vmul.f32 %v9097, %v9281
  %v9283 = vsub.f32 1.0, %v9282
  %v9284 = vmul.f32 %v9281, %v9283
  %v9285 = vadd.f32 %v9281, %v9284
  %vm9286 = vweird.f32 %v9097
  %vm9287 = vweird.f32 %v9281
  %vm9288 = vmor %vm9286, %vm9287
  %v9289 = vsel %vm9288, %v9281, %v9285
  %v9290 = vand.u32 2147483647, %v9097
  %vm9291 = vcmp.eq.f32.partialorder %v9290, 8.507059e+37
  %v9292 = vand.u32 %v9097, 2147483648
  %v9293 = vor.u32 1.1754944e-38, %v9292
  %v9294 = vsel %vm9291, %v9293, %v9289
  %v9295 = vmul.f32 1.0, %v9294
  %v9296 = vrcp.pop %v9098
  %v9297 = vmul.f32 %v9098, %v9296
  %v9298 = vsub.f32 1.0, %v9297
  %v9299 = vmul.f32 %v9296, %v9298
  %v9300 = vadd.f32 %v9296, %v9299
  %vm9301 = vweird.f32 %v9098
  %vm9302 = vweird.f32 %v9296
  %vm9303 = vmor %vm9301, %vm9302
  %v9304 = vsel %vm9303, %v9296, %v9300
  %v9305 = vand.u32 2147483647, %v9098
  %vm9306 = vcmp.eq.f32.partialorder %v9305, 8.507059e+37
  %v9307 = vand.u32 %v9098, 2147483648
  %v9308 = vor.u32 1.1754944e-38, %v9307
  %v9309 = vsel %vm9306, %v9308, %v9304
  %v9310 = vmul.f32 1.0, %v9309
  %v9311 = vrcp.pop %v9099
  %v9312 = vmul.f32 %v9099, %v9311
  %v9313 = vsub.f32 1.0, %v9312
  %v9314 = vmul.f32 %v9311, %v9313
  %v9315 = vadd.f32 %v9311, %v9314
  %vm9316 = vweird.f32 %v9099
  %vm9317 = vweird.f32 %v9311
  %vm9318 = vmor %vm9316, %vm9317
  %v9319 = vsel %vm9318, %v9311, %v9315
  %v9320 = vand.u32 2147483647, %v9099
  %vm9321 = vcmp.eq.f32.partialorder %v9320, 8.507059e+37
  %v9322 = vand.u32 %v9099, 2147483648
  %v9323 = vor.u32 1.1754944e-38, %v9322
  %v9324 = vsel %vm9321, %v9323, %v9319
  %v9325 = vmul.f32 1.0, %v9324
  %v9326 = vrcp.pop %v9100
  %v9327 = vmul.f32 %v9100, %v9326
  %v9328 = vsub.f32 1.0, %v9327
  %v9329 = vmul.f32 %v9326, %v9328
  %v9330 = vadd.f32 %v9326, %v9329
  %vm9331 = vweird.f32 %v9100
  %vm9332 = vweird.f32 %v9326
  %vm9333 = vmor %vm9331, %vm9332
  %v9334 = vsel %vm9333, %v9326, %v9330
  %v9335 = vand.u32 2147483647, %v9100
  %vm9336 = vcmp.eq.f32.partialorder %v9335, 8.507059e+37
  %v9337 = vand.u32 %v9100, 2147483648
  %v9338 = vor.u32 1.1754944e-38, %v9337
  %v9339 = vsel %vm9336, %v9338, %v9334
  %v9340 = vmul.f32 1.0, %v9339
  %v9341 = vpack.c.bf16 %v9130, %v9115
  %v9342 = vpack.c.bf16 %v9160, %v9145
  %v9343 = vpack.c.bf16 %v9190, %v9175
  %v9344 = vpack.c.bf16 %v9220, %v9205
  %v9345 = vpack.c.bf16 %v9250, %v9235
  %v9346 = vpack.c.bf16 %v9280, %v9265
  %v9347 = vpack.c.bf16 %v9310, %v9295
  %v9348 = vpack.c.bf16 %v9340, %v9325
  %v9349 = vld [vmem:[%s8] sm:$0xff]
  %v9350 = vld [vmem:[%s8 + $0x8] sm:$0xff]
  %v9351 = vld [vmem:[%s8 + $0x10] sm:$0xff]
  %v9352 = vld [vmem:[%s8 + $0x18] sm:$0xff]
  %v9353 = vld [vmem:[%s8 + $0x20] sm:$0xff]
  %v9354 = vld [vmem:[%s8 + $0x28] sm:$0xff]
  %v9355 = vld [vmem:[%s8 + $0x30] sm:$0xff]
  %v9356 = vld [vmem:[%s8 + $0x38] sm:$0xff]
  %v9357 = vld [vmem:[%s8 + $0x40] sm:$0xff]
  %v9358 = vld [vmem:[%s8 + $0x48] sm:$0xff]
  %v9359 = vld [vmem:[%s8 + $0x50] sm:$0xff]
  %v9360 = vld [vmem:[%s8 + $0x58] sm:$0xff]
  %v9361 = vld [vmem:[%s8 + $0x60] sm:$0xff]
  %v9362 = vld [vmem:[%s8 + $0x68] sm:$0xff]
  %v9363 = vld [vmem:[%s8 + $0x70] sm:$0xff]
  %v9364 = vld [vmem:[%s8 + $0x78] sm:$0xff]
  %9365 = vmatpush.bf16.msra.mxu0 %v8787
  %9366 = vmatpush.bf16.msra.mxu0 %v8786
  %9367 = vmatpush.bf16.msra.mxu0 %v8785
  %9368 = vmatpush.bf16.msra.mxu0 %v8784
  %9369 = vmatpush.bf16.msra.mxu0 %v8783
  %9370 = vmatpush.bf16.msra.mxu0 %v8782
  %9371 = vmatpush.bf16.msra.mxu0 %v8781
  %9372 = vmatpush.bf16.msra.mxu0 %v8780
  %9373 = vmatmul.bf16.gmra.mxu0 %v9341
  %v9374 = vpop.f32.mrf.mxu0
  %v9375 = vadd.f32 0.0, %v9374
  %v9376 = vpop.f32.mrf.mxu0
  %v9377 = vadd.f32 0.0, %v9376
  %9378 = vmatmul.bf16.gmra.mxu0 %v9342
  %v9379 = vpop.f32.mrf.mxu0
  %v9380 = vadd.f32 0.0, %v9379
  %v9381 = vpop.f32.mrf.mxu0
  %v9382 = vadd.f32 0.0, %v9381
  %9383 = vmatmul.bf16.gmra.mxu0 %v9343
  %v9384 = vpop.f32.mrf.mxu0
  %v9385 = vadd.f32 0.0, %v9384
  %v9386 = vpop.f32.mrf.mxu0
  %v9387 = vadd.f32 0.0, %v9386
  %9388 = vmatmul.bf16.gmra.mxu0 %v9344
  %v9389 = vpop.f32.mrf.mxu0
  %v9390 = vadd.f32 0.0, %v9389
  %v9391 = vpop.f32.mrf.mxu0
  %v9392 = vadd.f32 0.0, %v9391
  %9393 = vmatmul.bf16.gmra.mxu0 %v9345
  %v9394 = vpop.f32.mrf.mxu0
  %v9395 = vadd.f32 0.0, %v9394
  %v9396 = vpop.f32.mrf.mxu0
  %v9397 = vadd.f32 0.0, %v9396
  %9398 = vmatmul.bf16.gmra.mxu0 %v9346
  %v9399 = vpop.f32.mrf.mxu0
  %v9400 = vadd.f32 0.0, %v9399
  %v9401 = vpop.f32.mrf.mxu0
  %v9402 = vadd.f32 0.0, %v9401
  %9403 = vmatmul.bf16.gmra.mxu0 %v9347
  %v9404 = vpop.f32.mrf.mxu0
  %v9405 = vadd.f32 0.0, %v9404
  %v9406 = vpop.f32.mrf.mxu0
  %v9407 = vadd.f32 0.0, %v9406
  %9408 = vmatmul.bf16.gmra.mxu0 %v9348
  %v9409 = vpop.f32.mrf.mxu0
  %v9410 = vadd.f32 0.0, %v9409
  %v9411 = vpop.f32.mrf.mxu0
  %v9412 = vadd.f32 0.0, %v9411
  %9413 = vdwg.mxu0
  %v9414 = vadd.f32 %v9349, %v9375
  %v9415 = vadd.f32 %v9350, %v9377
  %v9416 = vadd.f32 %v9351, %v9380
  %v9417 = vadd.f32 %v9352, %v9382
  %v9418 = vadd.f32 %v9353, %v9385
  %v9419 = vadd.f32 %v9354, %v9387
  %v9420 = vadd.f32 %v9355, %v9390
  %v9421 = vadd.f32 %v9356, %v9392
  %v9422 = vadd.f32 %v9357, %v9395
  %v9423 = vadd.f32 %v9358, %v9397
  %v9424 = vadd.f32 %v9359, %v9400
  %v9425 = vadd.f32 %v9360, %v9402
  %v9426 = vadd.f32 %v9361, %v9405
  %v9427 = vadd.f32 %v9362, %v9407
  %v9428 = vadd.f32 %v9363, %v9410
  %v9429 = vadd.f32 %v9364, %v9412
  %9430 = vst [vmem:[%s8] sm:$0xff] %v9414
  %9431 = vst [vmem:[%s8 + $0x8] sm:$0xff] %v9415
  %9432 = vst [vmem:[%s8 + $0x10] sm:$0xff] %v9416
  %9433 = vst [vmem:[%s8 + $0x18] sm:$0xff] %v9417
  %9434 = vst [vmem:[%s8 + $0x20] sm:$0xff] %v9418
  %9435 = vst [vmem:[%s8 + $0x28] sm:$0xff] %v9419
  %9436 = vst [vmem:[%s8 + $0x30] sm:$0xff] %v9420
  %9437 = vst [vmem:[%s8 + $0x38] sm:$0xff] %v9421
  %9438 = vst [vmem:[%s8 + $0x40] sm:$0xff] %v9422
  %9439 = vst [vmem:[%s8 + $0x48] sm:$0xff] %v9423
  %9440 = vst [vmem:[%s8 + $0x50] sm:$0xff] %v9424
  %9441 = vst [vmem:[%s8 + $0x58] sm:$0xff] %v9425
  %9442 = vst [vmem:[%s8 + $0x60] sm:$0xff] %v9426
  %9443 = vst [vmem:[%s8 + $0x68] sm:$0xff] %v9427
  %9444 = vst [vmem:[%s8 + $0x70] sm:$0xff] %v9428
  %9445 = vst [vmem:[%s8 + $0x78] sm:$0xff] %v9429
  // Predicated region
  $region30: #{gcn_forward.1} parent=0 // pred_check
    _
  $region31: #{gcn_forward.1} parent=0 // pred_check_branch
    %9447 = sbr.rel (0) target = $region33
  $region32: #{gcn_forward.1} parent=0 // pred_region
    _
  $region33: #{gcn_forward.1} parent=0 // pred_fallthru
    _
  // Predicated region
  $region34: #{gcn_forward.1} parent=0 // pred_check
    _
  $region35: #{gcn_forward.1} parent=0 // pred_check_branch
    %9449 = sbr.rel (0) target = $region37
  $region36: #{gcn_forward.1} parent=0 // pred_region
    _
  $region37: #{gcn_forward.1} parent=0 // pred_fallthru
    _
  // Predicated region
  $region38: #{gcn_forward.1} parent=0 // pred_check
    _
  $region39: #{gcn_forward.1} parent=0 // pred_check_branch
    %9451 = sbr.rel (0) target = $region41
  $region40: #{gcn_forward.1} parent=0 // pred_region
    _
  $region41: #{gcn_forward.1} parent=0 // pred_fallthru
    _
  // Predicated region
  $region42: #{gcn_forward.1} parent=0 // pred_check
    _
  $region43: #{gcn_forward.1} parent=0 // pred_check_branch
    %9453 = sbr.rel (0) target = $region45
  $region44: #{gcn_forward.1} parent=0 // pred_region
    _
  $region45: #{gcn_forward.1} parent=0 // pred_fallthru
    _
  // Predicated region
  $region46: #{gcn_forward.1} parent=0 // pred_check
    _
  $region47: #{gcn_forward.1} parent=0 // pred_check_branch
    %9455 = sbr.rel (0) target = $region49
  $region48: #{gcn_forward.1} parent=0 // pred_region
    _
  $region49: #{gcn_forward.1} parent=0 // pred_fallthru
    _
  // Predicated region
  $region50: #{gcn_forward.1} parent=0 // pred_check
    _
  $region51: #{gcn_forward.1} parent=0 // pred_check_branch
    %9457 = sbr.rel (0) target = $region53
  $region52: #{gcn_forward.1} parent=0 // pred_region
    _
  $region53: #{gcn_forward.1} parent=0 // pred_fallthru
    _
  // Predicated region
  $region54: #{gcn_forward.1} parent=0 // pred_check
    _
  $region55: #{gcn_forward.1} parent=0 // pred_check_branch
    %9459 = sbr.rel (0) target = $region57
  $region56: #{gcn_forward.1} parent=0 // pred_region
    _
  $region57: #{gcn_forward.1} parent=0 // pred_fallthru
    _
  // Predicated region
  $region58: #{gcn_forward.1} parent=0 // pred_check
    _
  $region59: #{gcn_forward.1} parent=0 // pred_check_branch
    %9461 = sbr.rel (0) target = $region61
  $region60: #{gcn_forward.1} parent=0 // pred_region
    _
  $region61: #{gcn_forward.1} parent=0 // pred_fallthru
    _

</llo_original>
